<compile_context>
chip_gen: v6e
topology: v6e:2x2x1
jax: 0.10.0
libtpu: 0.0.40
codegen_flags: <defaults>
</compile_context>

<pallas_src>
import functools

import numpy as np
import jax
import jax.numpy as jnp
from jax import lax
from jax.experimental import pallas as pl
from jax.experimental.pallas import tpu as pltpu

# ---------------------------------------------------------------------------
# Architecture constants (PerceiverIO defaults the policy does not override)
# ---------------------------------------------------------------------------
CROSS_HEADS = 1
LATENT_HEADS = 8
CROSS_DIM_HEAD = 64
LATENT_DIM_HEAD = 64
FF_MULT = 4
LN_EPS = 1e-5

# MXU operand dtype: bf16 operands + f32 accumulation. jnp.float32 for parity tests.
MXU_DTYPE = jnp.bfloat16

KV_TILE = 512     # encoder cross-attn: context tokens per grid step (online softmax)
Q_TILE = 256      # decoder cross-attn: query rows per grid step

assert CROSS_HEADS == 1, "encoder/decoder kernels are specialized to 1 cross head"


# ---------------------------------------------------------------------------
# In-kernel helpers (pure jnp on values, f32 math)
# ---------------------------------------------------------------------------
def _layernorm(x, g, b):
    # x: (M, D) f32 ; g/b: (1, D). Matches torch.nn.LayerNorm (biased var, eps inside).
    mean = jnp.mean(x, axis=-1, keepdims=True)
    cen = x - mean
    var = jnp.mean(cen * cen, axis=-1, keepdims=True)
    return cen * lax.rsqrt(var + LN_EPS) * g + b


def _gelu_tanh(x):
    # tanh-approx GELU: tanh runs on the EUP slot instead of a ~10-op erf polynomial
    # on the VPU (perf-review item; small, documented numeric delta vs exact erf).
    c0 = np.float32(0.7978845608028654)   # sqrt(2/pi)
    return 0.5 * x * (1.0 + jnp.tanh(c0 * (x + np.float32(0.044715) * x * x * x)))


def _geglu_ff(x, g, b, w1, b1, w2, b2, hidden):
    # PreNorm -> Linear(dim, 2*hidden) -> GEGLU -> Linear(hidden, dim) -> + residual.
    xn = _layernorm(x, g, b).astype(MXU_DTYPE)
    h = jnp.dot(xn, w1, preferred_element_type=jnp.float32) + b1
    act = (h[:, :hidden] * _gelu_tanh(h[:, hidden:])).astype(MXU_DTYPE)
    return jnp.dot(act, w2, preferred_element_type=jnp.float32) + b2 + x


def _vmem_limit(block_bytes):
    # Scoped-VMEM limit from the actual per-step footprint (blocks are double-buffered
    # by the pipeline) plus headroom; clamped so it is valid on v5e/v6e and fits v7x's
    # 64 MiB physical VMEM.
    need = 2 * int(block_bytes) + (8 << 20)
    return int(max(32 << 20, min(need, 64 << 20)))


# ---------------------------------------------------------------------------
# Kernel 1: encoder cross-attention (KV-tiled, online softmax) + cross FF fused
# ---------------------------------------------------------------------------
def _encoder_cross_kernel(lat_ref, ctx_ref,
                          gq_ref, bq_ref, gc_ref, bc_ref,
                          wq_ref, wk_ref, wv_ref, wo_ref, bo_ref,
                          gf_ref, bf_ref, w1_ref, b1_ref, w2_ref, b2_ref,
                          o_ref,
                          q_sc, m_sc, l_sc, acc_sc,
                          *, scale, hidden, ctx_len, kv_tile, need_mask):
    kv = pl.program_id(1)

    @pl.when(kv == 0)
    def _init():
        lat = lat_ref[...].astype(jnp.float32)
        ln = _layernorm(lat, gq_ref[...], bq_ref[...]).astype(MXU_DTYPE)
        q = jnp.dot(ln, wq_ref[...], preferred_element_type=jnp.float32)
        q_sc[...] = (q * scale).astype(q_sc.dtype)          # scale folded into q
        m_sc[...] = jnp.full(m_sc.shape, -jnp.inf, m_sc.dtype)
        l_sc[...] = jnp.zeros(l_sc.shape, l_sc.dtype)
        acc_sc[...] = jnp.zeros(acc_sc.shape, acc_sc.dtype)

    # --- one context tile: k/v projections + online softmax update -------------
    ctx = ctx_ref[...].astype(jnp.float32)                   # (kv_tile, Din)
    if need_mask:                                            # ragged last tile only
        base = kv * kv_tile
        ridx = lax.broadcasted_iota(jnp.int32, ctx.shape, 0) + base
        ctx = jnp.where(ridx < ctx_len, ctx, 0.0)
    cn = _layernorm(ctx, gc_ref[...], bc_ref[...]).astype(MXU_DTYPE)
    k = jnp.dot(cn, wk_ref[...], preferred_element_type=jnp.float32)
    v = jnp.dot(cn, wv_ref[...], preferred_element_type=jnp.float32)
    # q @ k^T via NT dot_general (no explicit transpose in front of the MXU)
    sim = lax.dot_general(q_sc[...], k.astype(MXU_DTYPE), (((1,), (1,)), ((), ())),
                          preferred_element_type=jnp.float32)        # (L, kv_tile)
    if need_mask:
        cidx = lax.broadcasted_iota(jnp.int32, sim.shape, 1) + kv * kv_tile
        sim = jnp.where(cidx < ctx_len, sim, -jnp.inf)

    m_prev = m_sc[...]
    m_new = jnp.maximum(m_prev, jnp.max(sim, axis=-1, keepdims=True))
    alpha = jnp.exp(m_prev - m_new)
    p = jnp.exp(sim - m_new)
    l_sc[...] = alpha * l_sc[...] + jnp.sum(p, axis=-1, keepdims=True)
    acc_sc[...] = alpha * acc_sc[...] + jnp.dot(p.astype(MXU_DTYPE), v.astype(MXU_DTYPE),
                                                preferred_element_type=jnp.float32)
    m_sc[...] = m_new

    @pl.when(kv == pl.num_programs(1) - 1)
    def _finalize():
        lat = lat_ref[...].astype(jnp.float32)
        attn_out = acc_sc[...] * pl.reciprocal(l_sc[...], approx=True)
        z1 = (jnp.dot(attn_out.astype(MXU_DTYPE), wo_ref[...],
                      preferred_element_type=jnp.float32) + bo_ref[...] + lat)
        z2 = _geglu_ff(z1, gf_ref[...], bf_ref[...], w1_ref[...], b1_ref[...],
                       w2_ref[...], b2_ref[...], hidden)
        o_ref[...] = z2.astype(o_ref.dtype)


def encoder_block(x, latents, pa, pf):
    """x: (B, N, Din) weight tokens; latents: (1, L, D). Returns z: (B, L, D)."""
    B, N, Din = x.shape
    _, L, D = latents.shape
    inner = CROSS_HEADS * CROSS_DIM_HEAD
    hidden = pf["fc2"]["w"].shape[0]
    kv_tile = N if N <= KV_TILE else KV_TILE
    nkv = pl.cdiv(N, kv_tile)
    need_mask = (N % kv_tile) != 0

    args = [latents, x,
            pa["norm"]["g"], pa["norm"]["b"], pa["norm_ctx"]["g"], pa["norm_ctx"]["b"],
            pa["to_q"]["w"], pa["to_k"]["w"], pa["to_v"]["w"],
            pa["to_out"]["w"], pa["to_out"]["b"],
            pf["norm"]["g"], pf["norm"]["b"],
            pf["fc1"]["w"], pf["fc1"]["b"], pf["fc2"]["w"], pf["fc2"]["b"]]

    in_specs = ([pl.BlockSpec((None, L, D), lambda b, kv: (0, 0, 0)),       # latents
                 pl.BlockSpec((None, kv_tile, Din), lambda b, kv: (b, kv, 0))]  # ctx tile
                + [pl.BlockSpec(a.shape, lambda b, kv: (0, 0)) for a in args[2:]])

    blk_bytes = (int(latents.nbytes) + kv_tile * Din * 4
                 + sum(int(a.nbytes) for a in args[2:])
                 + L * D * 4                       # output block
                 + L * inner * 8 + L * 16)         # scratch (q + acc + m + l)
    flops = 2 * B * (L * D * inner + N * Din * inner * 2 + L * N * inner * 2
                     + L * inner * D + L * D * 2 * hidden + L * hidden * D)
    trans = B * (L * N + L * hidden)
    bytes_acc = (int(x.nbytes) + int(latents.nbytes) + B * L * D * 4
                 + sum(int(a.nbytes) for a in args[2:]))

    kernel = functools.partial(
        _encoder_cross_kernel, scale=float(CROSS_DIM_HEAD) ** -0.5, hidden=hidden,
        ctx_len=N, kv_tile=kv_tile, need_mask=need_mask)

    return pl.pallas_call(
        kernel,
        out_shape=jax.ShapeDtypeStruct((B, L, D), jnp.float32),
        grid=(B, nkv),
        in_specs=in_specs,
        out_specs=pl.BlockSpec((None, L, D), lambda b, kv: (b, 0, 0)),
        scratch_shapes=[pltpu.VMEM((L, inner), MXU_DTYPE),     # q (scaled)
                        pltpu.VMEM((L, 1), jnp.float32),       # running max
                        pltpu.VMEM((L, 1), jnp.float32),       # running denom
                        pltpu.VMEM((L, inner), jnp.float32)],  # running acc
        compiler_params=pltpu.CompilerParams(
            dimension_semantics=("parallel", "arbitrary"),
            vmem_limit_bytes=_vmem_limit(blk_bytes)),
        cost_estimate=pl.CostEstimate(flops=int(flops), transcendentals=int(trans),
                                      bytes_accessed=int(bytes_acc)),
    )(*args)


# ---------------------------------------------------------------------------
# Kernel 2: latent self-attention tower (attn + FF per layer, all depth fused)
# ---------------------------------------------------------------------------
def _latent_tower_kernel(z0_ref,
                         ln1g_ref, ln1b_ref, wq_ref, wk_ref, wv_ref, wo_ref, bo_ref,
                         ln2g_ref, ln2b_ref, w1_ref, b1_ref, w2_ref, b2_ref,
                         o_ref, z_sc, ho_sc,
                         *, heads, dim_head, scale, hidden):
    d = pl.program_id(1)

    @pl.when(d == 0)
    def _load():
        z_sc[...] = z0_ref[...].astype(jnp.float32)

    z = z_sc[...]                                                     # (L, D)
    zn = _layernorm(z, ln1g_ref[...], ln1b_ref[...]).astype(MXU_DTYPE)
    # q/k/v cast to the MXU dtype ONCE; heads are static lane slices below.
    q = (jnp.dot(zn, wq_ref[...], preferred_element_type=jnp.float32)
         * scale).astype(MXU_DTYPE)                                   # (L, inner)
    k = jnp.dot(zn, wk_ref[...], preferred_element_type=jnp.float32).astype(MXU_DTYPE)
    v = jnp.dot(zn, wv_ref[...], preferred_element_type=jnp.float32).astype(MXU_DTYPE)

    for h in range(heads):
        s = h * dim_head
        sim = lax.dot_general(q[:, s:s + dim_head], k[:, s:s + dim_head],
                              (((1,), (1,)), ((), ())),
                              preferred_element_type=jnp.float32)     # (L, L)
        mx = jnp.max(sim, axis=-1, keepdims=True)
        p = jnp.exp(sim - mx)
        attn = p * pl.reciprocal(jnp.sum(p, axis=-1, keepdims=True), approx=True)
        # per-head output written to its static 64-lane offset; a single full-K
        # to_out matmul follows (perf-review item: no per-head K=64 projections).
        ho_sc[:, s:s + dim_head] = jnp.dot(attn.astype(MXU_DTYPE), v[:, s:s + dim_head],
                                           preferred_element_type=jnp.float32)

    z1 = (jnp.dot(ho_sc[...].astype(MXU_DTYPE), wo_ref[...],
                  preferred_element_type=jnp.float32) + bo_ref[...] + z)
    z2 = _geglu_ff(z1, ln2g_ref[...], ln2b_ref[...], w1_ref[...], b1_ref[...],
                   w2_ref[...], b2_ref[...], hidden)
    z_sc[...] = z2

    @pl.when(d == pl.num_programs(1) - 1)
    def _write():
        o_ref[...] = z2.astype(o_ref.dtype)


_TOWER_ORDER = ["ln1_g", "ln1_b", "wq", "wk", "wv", "wo", "bo",
                "ln2_g", "ln2_b", "w1", "b1", "w2", "b2"]


def latent_tower(z, tw):
    """z: (B, L, D); tw: dict of depth-stacked layer weights. Returns (B, L, D)."""
    B, L, D = z.shape
    depth = int(tw["wq"].shape[0])
    if depth == 0:
        return z
    inner = int(tw["wq"].shape[2])
    heads = LATENT_HEADS
    dim_head = inner // heads
    hidden = int(tw["w2"].shape[1])

    args = [z] + [tw[k] for k in _TOWER_ORDER]
    in_specs = ([pl.BlockSpec((None, L, D), lambda b, d: (b, 0, 0))]
                + [pl.BlockSpec((None,) + tuple(tw[k].shape[1:]),
                                lambda b, d: (d, 0, 0)) for k in _TOWER_ORDER])

    per_layer_w = sum(int(tw[k].nbytes) for k in _TOWER_ORDER) // depth
    blk_bytes = L * D * 4 + per_layer_w + L * D * 4 + L * D * 4 + L * inner * 4
    flops = 2 * B * depth * (3 * L * D * inner + 2 * L * L * inner + L * inner * D
                             + L * D * 2 * hidden + L * hidden * D)
    trans = B * depth * (heads * L * L + L * hidden)
    bytes_acc = 2 * int(z.nbytes) + B * sum(int(tw[k].nbytes) for k in _TOWER_ORDER)

    kernel = functools.partial(_latent_tower_kernel, heads=heads, dim_head=dim_head,
                               scale=float(dim_head) ** -0.5, hidden=hidden)

    return pl.pallas_call(
        kernel,
        out_shape=jax.ShapeDtypeStruct((B, L, D), jnp.float32),
        grid=(B, depth),
        in_specs=in_specs,
        out_specs=pl.BlockSpec((None, L, D), lambda b, d: (b, 0, 0)),
        scratch_shapes=[pltpu.VMEM((L, D), jnp.float32),        # z resident across layers
                        pltpu.VMEM((L, inner), jnp.float32)],   # concat-heads buffer
        compiler_params=pltpu.CompilerParams(
            dimension_semantics=("parallel", "arbitrary"),
            vmem_limit_bytes=_vmem_limit(blk_bytes)),
        cost_estimate=pl.CostEstimate(flops=int(flops), transcendentals=int(trans),
                                      bytes_accessed=int(bytes_acc)),
    )(*args)


# ---------------------------------------------------------------------------
# Kernel 3: decoder cross-attention (query-tiled) + to_logits fused, lane-dense out
# ---------------------------------------------------------------------------
def _decoder_cross_kernel(x_ref, z_ref, gq_ref, bq_ref, gc_ref, bc_ref,
                          wq_ref, wk_ref, wv_ref, wo_ref, bo_ref, wl_ref, bl_ref,
                          o_ref, *, scale):
    xq = _layernorm(x_ref[...].astype(jnp.float32), gq_ref[...], bq_ref[...]).astype(MXU_DTYPE)
    zc = _layernorm(z_ref[...].astype(jnp.float32), gc_ref[...], bc_ref[...]).astype(MXU_DTYPE)
    q = (jnp.dot(xq, wq_ref[...], preferred_element_type=jnp.float32) * scale).astype(MXU_DTYPE)
    k = jnp.dot(zc, wk_ref[...], preferred_element_type=jnp.float32).astype(MXU_DTYPE)
    v = jnp.dot(zc, wv_ref[...], preferred_element_type=jnp.float32).astype(MXU_DTYPE)
    sim = lax.dot_general(q, k, (((1,), (1,)), ((), ())),
                          preferred_element_type=jnp.float32)         # (tile_q, L)
    mx = jnp.max(sim, axis=-1, keepdims=True)
    p = jnp.exp(sim - mx)
    attn = p * pl.reciprocal(jnp.sum(p, axis=-1, keepdims=True), approx=True)
    o = jnp.dot(attn.astype(MXU_DTYPE), v, preferred_element_type=jnp.float32)
    out = jnp.dot(o.astype(MXU_DTYPE), wo_ref[...],
                  preferred_element_type=jnp.float32) + bo_ref[...]   # no residual
    logits = jnp.dot(out.astype(MXU_DTYPE), wl_ref[...],
                     preferred_element_type=jnp.float32) + bl_ref[...]
    o_ref[...] = logits.astype(o_ref.dtype)


def decoder_block(x, z, pa, p_logits):
    """queries = x: (B, N, Din); z: (B, L, D). Returns (B, N, out_pad) f32."""
    B, N, Din = x.shape
    _, L, D = z.shape
    inner = CROSS_HEADS * CROSS_DIM_HEAD
    out_pad = p_logits["w"].shape[1]                 # padded to a multiple of 128
    tile_q = N if N <= Q_TILE else Q_TILE
    nq = pl.cdiv(N, tile_q)

    args = [x, z,
            pa["norm"]["g"], pa["norm"]["b"], pa["norm_ctx"]["g"], pa["norm_ctx"]["b"],
            pa["to_q"]["w"], pa["to_k"]["w"], pa["to_v"]["w"],
            pa["to_out"]["w"], pa["to_out"]["b"],
            p_logits["w"], p_logits["b"]]

    in_specs = ([pl.BlockSpec((None, tile_q, Din), lambda b, qi: (b, qi, 0)),
                 pl.BlockSpec((None, L, D), lambda b, qi: (b, 0, 0))]
                + [pl.BlockSpec(a.shape, lambda b, qi: (0, 0)) for a in args[2:]])

    blk_bytes = (tile_q * Din * 4 + L * D * 4
                 + sum(int(a.nbytes) for a in args[2:]) + tile_q * out_pad * 4)
    flops = 2 * B * (N * Din * inner + nq * L * D * inner * 2 + 2 * N * L * inner
                     + N * inner * Din + N * Din * out_pad)
    trans = B * N * L
    bytes_acc = (int(x.nbytes) + nq * int(z.nbytes) + B * N * out_pad * 4
                 + sum(int(a.nbytes) for a in args[2:]))

    return pl.pallas_call(
        functools.partial(_decoder_cross_kernel, scale=float(CROSS_DIM_HEAD) ** -0.5),
        out_shape=jax.ShapeDtypeStruct((B, N, out_pad), jnp.float32),
        grid=(B, nq),
        in_specs=in_specs,
        out_specs=pl.BlockSpec((None, tile_q, out_pad), lambda b, qi: (b, qi, 0)),
        compiler_params=pltpu.CompilerParams(
            dimension_semantics=("parallel", "parallel"),
            vmem_limit_bytes=_vmem_limit(blk_bytes)),
        cost_estimate=pl.CostEstimate(flops=int(flops), transcendentals=int(trans),
                                      bytes_accessed=int(bytes_acc)),
    )(*args)


# ---------------------------------------------------------------------------
# PerceiverIOPolicy forward (3 pallas_calls)
# ---------------------------------------------------------------------------
def perceiver_io_policy_forward(params, x, t):
    """x: (B, N, input_dim) float32, t: ignored diffusion step -> (B, N, input_dim)."""
    del t
    z = encoder_block(x, params["latents"], params["cross_attn"], params["cross_ff"])
    z = latent_tower(z, params["tower"])
    out = decoder_block(x, z, params["dec_attn"], params["to_logits"])
    logits_dim = x.shape[-1]                   # PerceiverIOPolicy: logits_dim == input_dim
    if out.shape[-1] != logits_dim:
        out = out[..., :logits_dim]            # drop lane padding added for dense stores
    return out


# ---------------------------------------------------------------------------
# Deterministic synthetic parameter init (shapes follow PerceiverIO __init__)
# ---------------------------------------------------------------------------
def init_params(key, *, input_dim, latent_dim, depth, num_latents):
    keys = iter(jax.random.split(key, 1024))

    def nk():
        return next(keys)

    def lin(fan_in, fan_out, bias=True, pad_out_to=None):
        bound = 1.0 / np.sqrt(fan_in)
        w = jax.random.uniform(nk(), (fan_in, fan_out), jnp.float32, -bound, bound)
        b = (jax.random.uniform(nk(), (1, fan_out), jnp.float32, -bound, bound)
             if bias else None)
        if pad_out_to is not None and pad_out_to > fan_out:
            w = jnp.pad(w, ((0, 0), (0, pad_out_to - fan_out)))
            if b is not None:
                b = jnp.pad(b, ((0, 0), (0, pad_out_to - fan_out)))
        p = {"w": w.astype(MXU_DTYPE)}   # MXU operands stored narrow; f32 accumulation
        if bias:
            p["b"] = b
        return p

    def ln(dim):
        return {"g": jnp.ones((1, dim), jnp.float32), "b": jnp.zeros((1, dim), jnp.float32)}

    def cross_attn(q_dim, ctx_dim):
        inner = CROSS_HEADS * CROSS_DIM_HEAD
        return {"norm": ln(q_dim), "norm_ctx": ln(ctx_dim),
                "to_q": lin(q_dim, inner, bias=False),
                # to_kv pre-split at init (review item: no per-call JAX weight slices)
                "to_k": lin(ctx_dim, inner, bias=False),
                "to_v": lin(ctx_dim, inner, bias=False),
                "to_out": lin(inner, q_dim)}

    def ff(dim):
        return {"norm": ln(dim),
                "fc1": lin(dim, dim * FF_MULT * 2),
                "fc2": lin(dim * FF_MULT, dim)}

    def latent_layer():
        inner = LATENT_HEADS * LATENT_DIM_HEAD
        hidden = latent_dim * FF_MULT
        n1, n2 = ln(latent_dim), ln(latent_dim)
        to_out = lin(inner, latent_dim)
        fc1, fc2 = lin(latent_dim, hidden * 2), lin(hidden, latent_dim)
        return {"ln1_g": n1["g"], "ln1_b": n1["b"],
                "wq": lin(latent_dim, inner, bias=False)["w"],
                "wk": lin(latent_dim, inner, bias=False)["w"],
                "wv": lin(latent_dim, inner, bias=False)["w"],
                "wo": to_out["w"], "bo": to_out["b"],
                "ln2_g": n2["g"], "ln2_b": n2["b"],
                "w1": fc1["w"], "b1": fc1["b"],
                "w2": fc2["w"], "b2": fc2["b"]}

    layers = [latent_layer() for _ in range(depth)]
    tower = jax.tree_util.tree_map(lambda *xs: jnp.stack(xs), *layers)

    logits_pad = ((input_dim + 127) // 128) * 128   # lane-dense decoder output
    return {
        "latents": jax.random.normal(nk(), (1, num_latents, latent_dim), jnp.float32),
        "cross_attn": cross_attn(latent_dim, input_dim),
        "cross_ff": ff(latent_dim),
        "tower": tower,
        "dec_attn": cross_attn(input_dim, latent_dim),
        "to_logits": lin(input_dim, input_dim, pad_out_to=logits_pad),
    }


# ---------------------------------------------------------------------------
if __name__ == "__main__":
    root = jax.random.PRNGKey(0)
    k_params, k_x = jax.random.split(root)

    # small shapes: batch=2, seq=8 weight tokens, input_dim=32; shrunken Perceiver
    B, N, INPUT_DIM = 2, 8, 32
    LATENT_DIM, DEPTH, NUM_LATENTS = 64, 2, 16

    params = init_params(k_params, input_dim=INPUT_DIM, latent_dim=LATENT_DIM,
                         depth=DEPTH, num_latents=NUM_LATENTS)
    x = jax.random.normal(k_x, (B, N, INPUT_DIM), jnp.float32)

    fwd = jax.jit(lambda inp: perceiver_io_policy_forward(params, inp, 0))
    out = jax.block_until_ready(fwd(x))

    assert out.shape == (B, N, INPUT_DIM), out.shape
    assert out.dtype == jnp.float32
    assert bool(jnp.all(jnp.isfinite(out)))
    print("KERNEL_OK")
</pallas_src>

<mosaic_0001>
module attributes {stable_mosaic.version = 11 : i64} {
  func.func @_encoder_cross_kernel(%arg0: i32, %arg1: i32, %arg2: memref<1x16x64xf32, #tpu.memory_space<vmem>>, %arg3: memref<1x8x32xf32, #tpu.memory_space<vmem>>, %arg4: memref<1x64xf32, #tpu.memory_space<vmem>>, %arg5: memref<1x64xf32, #tpu.memory_space<vmem>>, %arg6: memref<1x32xf32, #tpu.memory_space<vmem>>, %arg7: memref<1x32xf32, #tpu.memory_space<vmem>>, %arg8: memref<64x64xbf16, #tpu.memory_space<vmem>>, %arg9: memref<32x64xbf16, #tpu.memory_space<vmem>>, %arg10: memref<32x64xbf16, #tpu.memory_space<vmem>>, %arg11: memref<64x64xbf16, #tpu.memory_space<vmem>>, %arg12: memref<1x64xf32, #tpu.memory_space<vmem>>, %arg13: memref<1x64xf32, #tpu.memory_space<vmem>>, %arg14: memref<1x64xf32, #tpu.memory_space<vmem>>, %arg15: memref<64x512xbf16, #tpu.memory_space<vmem>>, %arg16: memref<1x512xf32, #tpu.memory_space<vmem>>, %arg17: memref<256x64xbf16, #tpu.memory_space<vmem>>, %arg18: memref<1x64xf32, #tpu.memory_space<vmem>>, %arg19: memref<1x16x64xf32, #tpu.memory_space<vmem>>, %arg20: memref<16x64xbf16, #tpu.memory_space<vmem>>, %arg21: memref<16x1xf32, #tpu.memory_space<vmem>>, %arg22: memref<16x1xf32, #tpu.memory_space<vmem>>, %arg23: memref<16x64xf32, #tpu.memory_space<vmem>>) attributes {dimension_semantics = [#tpu.dimension_semantics<parallel>, #tpu.dimension_semantics<arbitrary>], iteration_bounds = array<i64: 2, 1>, scalar_prefetch = 0 : i64, scratch_operands = 4 : i64, tpu.core_type = #tpu.core_type<tc>, window_params = [{pipeline_mode = #tpu.pipeline_mode<synchronous>, transform_indices = @transform_0, window_bounds = array<i64: 1, 16, 64>}, {transform_indices = @transform_1, window_bounds = array<i64: 1, 8, 32>}, {pipeline_mode = #tpu.pipeline_mode<synchronous>, transform_indices = @transform_2, window_bounds = array<i64: 1, 64>}, {pipeline_mode = #tpu.pipeline_mode<synchronous>, transform_indices = @transform_3, window_bounds = array<i64: 1, 64>}, {pipeline_mode = #tpu.pipeline_mode<synchronous>, transform_indices = @transform_4, window_bounds = array<i64: 1, 32>}, {pipeline_mode = #tpu.pipeline_mode<synchronous>, transform_indices = @transform_5, window_bounds = array<i64: 1, 32>}, {pipeline_mode = #tpu.pipeline_mode<synchronous>, transform_indices = @transform_6, window_bounds = array<i64: 64, 64>}, {pipeline_mode = #tpu.pipeline_mode<synchronous>, transform_indices = @transform_7, window_bounds = array<i64: 32, 64>}, {pipeline_mode = #tpu.pipeline_mode<synchronous>, transform_indices = @transform_8, window_bounds = array<i64: 32, 64>}, {pipeline_mode = #tpu.pipeline_mode<synchronous>, transform_indices = @transform_9, window_bounds = array<i64: 64, 64>}, {pipeline_mode = #tpu.pipeline_mode<synchronous>, transform_indices = @transform_10, window_bounds = array<i64: 1, 64>}, {pipeline_mode = #tpu.pipeline_mode<synchronous>, transform_indices = @transform_11, window_bounds = array<i64: 1, 64>}, {pipeline_mode = #tpu.pipeline_mode<synchronous>, transform_indices = @transform_12, window_bounds = array<i64: 1, 64>}, {pipeline_mode = #tpu.pipeline_mode<synchronous>, transform_indices = @transform_13, window_bounds = array<i64: 64, 512>}, {pipeline_mode = #tpu.pipeline_mode<synchronous>, transform_indices = @transform_14, window_bounds = array<i64: 1, 512>}, {pipeline_mode = #tpu.pipeline_mode<synchronous>, transform_indices = @transform_15, window_bounds = array<i64: 256, 64>}, {pipeline_mode = #tpu.pipeline_mode<synchronous>, transform_indices = @transform_16, window_bounds = array<i64: 1, 64>}, {transform_indices = @transform_17, window_bounds = array<i64: 1, 16, 64>}]} {
    %c0_i32 = arith.constant 0 : i32
    %0 = arith.cmpi eq, %arg1, %c0_i32 : i32
    %1 = arith.extui %0 : i1 to i32
    %c0_i32_0 = arith.constant 0 : i32
    %2 = arith.cmpi ne, %1, %c0_i32_0 : i32
    scf.if %2 {
      %c0_37 = arith.constant 0 : index
      %c0_38 = arith.constant 0 : index
      %c0_39 = arith.constant 0 : index
      %62 = vector.load %arg2[%c0_37, %c0_38, %c0_39] : memref<1x16x64xf32, #tpu.memory_space<vmem>>, vector<1x16x64xf32>
      %63 = vector.shape_cast %62 : vector<1x16x64xf32> to vector<16x64xf32>
      %c0_40 = arith.constant 0 : index
      %c0_41 = arith.constant 0 : index
      %64 = vector.load %arg4[%c0_40, %c0_41] : memref<1x64xf32, #tpu.memory_space<vmem>>, vector<1x64xf32>
      %c0_42 = arith.constant 0 : index
      %c0_43 = arith.constant 0 : index
      %65 = vector.load %arg5[%c0_42, %c0_43] : memref<1x64xf32, #tpu.memory_space<vmem>>, vector<1x64xf32>
      %cst_44 = arith.constant dense<0.000000e+00> : vector<16xf32>
      %66 = vector.multi_reduction <add>, %63, %cst_44 [1] : vector<16x64xf32> to vector<16xf32>
      %67 = vector.shape_cast %66 : vector<16xf32> to vector<16x1xf32>
      %cst_45 = arith.constant 6.400000e+01 : f32
      %68 = vector.broadcast %cst_45 : f32 to vector<16x1xf32>
      %69 = arith.divf %67, %68 : vector<16x1xf32>
      %70 = vector.broadcast %69 : vector<16x1xf32> to vector<16x64xf32>
      %71 = arith.subf %63, %70 : vector<16x64xf32>
      %72 = arith.mulf %71, %71 : vector<16x64xf32>
      %cst_46 = arith.constant dense<0.000000e+00> : vector<16xf32>
      %73 = vector.multi_reduction <add>, %72, %cst_46 [1] : vector<16x64xf32> to vector<16xf32>
      %74 = vector.shape_cast %73 : vector<16xf32> to vector<16x1xf32>
      %cst_47 = arith.constant 6.400000e+01 : f32
      %75 = vector.broadcast %cst_47 : f32 to vector<16x1xf32>
      %76 = arith.divf %74, %75 : vector<16x1xf32>
      %cst_48 = arith.constant 9.99999974E-6 : f32
      %77 = vector.broadcast %cst_48 : f32 to vector<16x1xf32>
      %78 = arith.addf %76, %77 : vector<16x1xf32>
      %79 = math.rsqrt %78 : vector<16x1xf32>
      %80 = vector.broadcast %79 : vector<16x1xf32> to vector<16x64xf32>
      %81 = arith.mulf %71, %80 : vector<16x64xf32>
      %82 = vector.broadcast %64 : vector<1x64xf32> to vector<16x64xf32>
      %83 = arith.mulf %81, %82 : vector<16x64xf32>
      %84 = vector.broadcast %65 : vector<1x64xf32> to vector<16x64xf32>
      %85 = arith.addf %83, %84 : vector<16x64xf32>
      %86 = arith.truncf %85 : vector<16x64xf32> to vector<16x64xbf16>
      %c0_49 = arith.constant 0 : index
      %c0_50 = arith.constant 0 : index
      %87 = vector.load %arg8[%c0_49, %c0_50] : memref<64x64xbf16, #tpu.memory_space<vmem>>, vector<64x64xbf16>
      %cst_51 = arith.constant dense<0.000000e+00> : vector<16x64xf32>
      %88 = tpu.matmul %86, %87, %cst_51 {dimension_numbers = #tpu.dot_dimension_numbers<[1], [0], [0], [1], [0, 0, 1, 1], [], []>} : vector<16x64xbf16>, vector<64x64xbf16>, vector<16x64xf32> -> vector<16x64xf32>
      %cst_52 = arith.constant 1.250000e-01 : f32
      %89 = vector.broadcast %cst_52 : f32 to vector<16x64xf32>
      %90 = arith.mulf %88, %89 : vector<16x64xf32>
      %91 = arith.truncf %90 : vector<16x64xf32> to vector<16x64xbf16>
      %c0_53 = arith.constant 0 : index
      %c0_54 = arith.constant 0 : index
      %92 = vector.load %arg20[%c0_53, %c0_54] : memref<16x64xbf16, #tpu.memory_space<vmem>>, vector<16x64xbf16>
      tpu.vector_store %arg20[%c0_53, %c0_54], %91 {strides = array<i32>} : memref<16x64xbf16, #tpu.memory_space<vmem>>, vector<16x64xbf16>,
      %cst_55 = arith.constant 0xFF800000 : f32
      %93 = vector.broadcast %cst_55 : f32 to vector<16x1xf32>
      %c0_56 = arith.constant 0 : index
      %c0_57 = arith.constant 0 : index
      %94 = vector.load %arg21[%c0_56, %c0_57] : memref<16x1xf32, #tpu.memory_space<vmem>>, vector<16x1xf32>
      tpu.vector_store %arg21[%c0_56, %c0_57], %93 {strides = array<i32>} : memref<16x1xf32, #tpu.memory_space<vmem>>, vector<16x1xf32>,
      %cst_58 = arith.constant 0.000000e+00 : f32
      %95 = vector.broadcast %cst_58 : f32 to vector<16x1xf32>
      %c0_59 = arith.constant 0 : index
      %c0_60 = arith.constant 0 : index
      %96 = vector.load %arg22[%c0_59, %c0_60] : memref<16x1xf32, #tpu.memory_space<vmem>>, vector<16x1xf32>
      tpu.vector_store %arg22[%c0_59, %c0_60], %95 {strides = array<i32>} : memref<16x1xf32, #tpu.memory_space<vmem>>, vector<16x1xf32>,
      %cst_61 = arith.constant 0.000000e+00 : f32
      %97 = vector.broadcast %cst_61 : f32 to vector<16x64xf32>
      %c0_62 = arith.constant 0 : index
      %c0_63 = arith.constant 0 : index
      %98 = vector.load %arg23[%c0_62, %c0_63] : memref<16x64xf32, #tpu.memory_space<vmem>>, vector<16x64xf32>
      tpu.vector_store %arg23[%c0_62, %c0_63], %97 {strides = array<i32>} : memref<16x64xf32, #tpu.memory_space<vmem>>, vector<16x64xf32>,
    } else {
    }
    %c0 = arith.constant 0 : index
    %c0_1 = arith.constant 0 : index
    %c0_2 = arith.constant 0 : index
    %3 = vector.load %arg3[%c0, %c0_1, %c0_2] : memref<1x8x32xf32, #tpu.memory_space<vmem>>, vector<1x8x32xf32>
    %4 = vector.shape_cast %3 : vector<1x8x32xf32> to vector<8x32xf32>
    %c0_3 = arith.constant 0 : index
    %c0_4 = arith.constant 0 : index
    %5 = vector.load %arg6[%c0_3, %c0_4] : memref<1x32xf32, #tpu.memory_space<vmem>>, vector<1x32xf32>
    %c0_5 = arith.constant 0 : index
    %c0_6 = arith.constant 0 : index
    %6 = vector.load %arg7[%c0_5, %c0_6] : memref<1x32xf32, #tpu.memory_space<vmem>>, vector<1x32xf32>
    %cst = arith.constant dense<0.000000e+00> : vector<8xf32>
    %7 = vector.multi_reduction <add>, %4, %cst [1] : vector<8x32xf32> to vector<8xf32>
    %8 = vector.shape_cast %7 : vector<8xf32> to vector<8x1xf32>
    %cst_7 = arith.constant 3.200000e+01 : f32
    %9 = vector.broadcast %cst_7 : f32 to vector<8x1xf32>
    %10 = arith.divf %8, %9 : vector<8x1xf32>
    %11 = vector.broadcast %10 : vector<8x1xf32> to vector<8x32xf32>
    %12 = arith.subf %4, %11 : vector<8x32xf32>
    %13 = arith.mulf %12, %12 : vector<8x32xf32>
    %cst_8 = arith.constant dense<0.000000e+00> : vector<8xf32>
    %14 = vector.multi_reduction <add>, %13, %cst_8 [1] : vector<8x32xf32> to vector<8xf32>
    %15 = vector.shape_cast %14 : vector<8xf32> to vector<8x1xf32>
    %cst_9 = arith.constant 3.200000e+01 : f32
    %16 = vector.broadcast %cst_9 : f32 to vector<8x1xf32>
    %17 = arith.divf %15, %16 : vector<8x1xf32>
    %cst_10 = arith.constant 9.99999974E-6 : f32
    %18 = vector.broadcast %cst_10 : f32 to vector<8x1xf32>
    %19 = arith.addf %17, %18 : vector<8x1xf32>
    %20 = math.rsqrt %19 : vector<8x1xf32>
    %21 = vector.broadcast %20 : vector<8x1xf32> to vector<8x32xf32>
    %22 = arith.mulf %12, %21 : vector<8x32xf32>
    %23 = vector.broadcast %5 : vector<1x32xf32> to vector<8x32xf32>
    %24 = arith.mulf %22, %23 : vector<8x32xf32>
    %25 = vector.broadcast %6 : vector<1x32xf32> to vector<8x32xf32>
    %26 = arith.addf %24, %25 : vector<8x32xf32>
    %27 = arith.truncf %26 : vector<8x32xf32> to vector<8x32xbf16>
    %c0_11 = arith.constant 0 : index
    %c0_12 = arith.constant 0 : index
    %28 = vector.load %arg9[%c0_11, %c0_12] : memref<32x64xbf16, #tpu.memory_space<vmem>>, vector<32x64xbf16>
    %cst_13 = arith.constant dense<0.000000e+00> : vector<8x64xf32>
    %29 = tpu.matmul %27, %28, %cst_13 {dimension_numbers = #tpu.dot_dimension_numbers<[1], [0], [0], [1], [0, 0, 1, 1], [], []>} : vector<8x32xbf16>, vector<32x64xbf16>, vector<8x64xf32> -> vector<8x64xf32>
    %c0_14 = arith.constant 0 : index
    %c0_15 = arith.constant 0 : index
    %30 = vector.load %arg10[%c0_14, %c0_15] : memref<32x64xbf16, #tpu.memory_space<vmem>>, vector<32x64xbf16>
    %cst_16 = arith.constant dense<0.000000e+00> : vector<8x64xf32>
    %31 = tpu.matmul %27, %30, %cst_16 {dimension_numbers = #tpu.dot_dimension_numbers<[1], [0], [0], [1], [0, 0, 1, 1], [], []>} : vector<8x32xbf16>, vector<32x64xbf16>, vector<8x64xf32> -> vector<8x64xf32>
    %c0_17 = arith.constant 0 : index
    %c0_18 = arith.constant 0 : index
    %32 = vector.load %arg20[%c0_17, %c0_18] : memref<16x64xbf16, #tpu.memory_space<vmem>>, vector<16x64xbf16>
    %33 = arith.truncf %29 : vector<8x64xf32> to vector<8x64xbf16>
    %cst_19 = arith.constant dense<0.000000e+00> : vector<16x8xf32>
    %34 = tpu.matmul %32, %33, %cst_19 {dimension_numbers = #tpu.dot_dimension_numbers<[1], [1], [0], [0], [0, 0, 1, 0], [], []>} : vector<16x64xbf16>, vector<8x64xbf16>, vector<16x8xf32> -> vector<16x8xf32>
    %c0_20 = arith.constant 0 : index
    %c0_21 = arith.constant 0 : index
    %35 = vector.load %arg21[%c0_20, %c0_21] : memref<16x1xf32, #tpu.memory_space<vmem>>, vector<16x1xf32>
    %cst_22 = arith.constant dense<0xFF800000> : vector<16xf32>
    %36 = vector.multi_reduction <maximumf>, %34, %cst_22 [1] : vector<16x8xf32> to vector<16xf32>
    %37 = vector.shape_cast %36 : vector<16xf32> to vector<16x1xf32>
    %38 = arith.maximumf %35, %37 : vector<16x1xf32>
    %39 = arith.subf %35, %38 : vector<16x1xf32>
    %40 = math.exp %39 : vector<16x1xf32>
    %41 = vector.broadcast %38 : vector<16x1xf32> to vector<16x8xf32>
    %42 = arith.subf %34, %41 : vector<16x8xf32>
    %43 = math.exp %42 : vector<16x8xf32>
    %c0_23 = arith.constant 0 : index
    %c0_24 = arith.constant 0 : index
    %44 = vector.load %arg22[%c0_23, %c0_24] : memref<16x1xf32, #tpu.memory_space<vmem>>, vector<16x1xf32>
    %45 = arith.mulf %40, %44 : vector<16x1xf32>
    %cst_25 = arith.constant dense<0.000000e+00> : vector<16xf32>
    %46 = vector.multi_reduction <add>, %43, %cst_25 [1] : vector<16x8xf32> to vector<16xf32>
    %47 = vector.shape_cast %46 : vector<16xf32> to vector<16x1xf32>
    %48 = arith.addf %45, %47 : vector<16x1xf32>
    %c0_26 = arith.constant 0 : index
    %c0_27 = arith.constant 0 : index
    %49 = vector.load %arg22[%c0_26, %c0_27] : memref<16x1xf32, #tpu.memory_space<vmem>>, vector<16x1xf32>
    tpu.vector_store %arg22[%c0_26, %c0_27], %48 {strides = array<i32>} : memref<16x1xf32, #tpu.memory_space<vmem>>, vector<16x1xf32>,
    %c0_28 = arith.constant 0 : index
    %c0_29 = arith.constant 0 : index
    %50 = vector.load %arg23[%c0_28, %c0_29] : memref<16x64xf32, #tpu.memory_space<vmem>>, vector<16x64xf32>
    %51 = vector.broadcast %40 : vector<16x1xf32> to vector<16x64xf32>
    %52 = arith.mulf %51, %50 : vector<16x64xf32>
    %53 = arith.truncf %43 : vector<16x8xf32> to vector<16x8xbf16>
    %54 = arith.truncf %31 : vector<8x64xf32> to vector<8x64xbf16>
    %cst_30 = arith.constant dense<0.000000e+00> : vector<16x64xf32>
    %55 = tpu.matmul %53, %54, %cst_30 {dimension_numbers = #tpu.dot_dimension_numbers<[1], [0], [0], [1], [0, 0, 1, 1], [], []>} : vector<16x8xbf16>, vector<8x64xbf16>, vector<16x64xf32> -> vector<16x64xf32>
    %56 = arith.addf %52, %55 : vector<16x64xf32>
    %c0_31 = arith.constant 0 : index
    %c0_32 = arith.constant 0 : index
    %57 = vector.load %arg23[%c0_31, %c0_32] : memref<16x64xf32, #tpu.memory_space<vmem>>, vector<16x64xf32>
    tpu.vector_store %arg23[%c0_31, %c0_32], %56 {strides = array<i32>} : memref<16x64xf32, #tpu.memory_space<vmem>>, vector<16x64xf32>,
    %c0_33 = arith.constant 0 : index
    %c0_34 = arith.constant 0 : index
    %58 = vector.load %arg21[%c0_33, %c0_34] : memref<16x1xf32, #tpu.memory_space<vmem>>, vector<16x1xf32>
    tpu.vector_store %arg21[%c0_33, %c0_34], %38 {strides = array<i32>} : memref<16x1xf32, #tpu.memory_space<vmem>>, vector<16x1xf32>,
    %c0_i32_35 = arith.constant 0 : i32
    %59 = arith.cmpi eq, %arg1, %c0_i32_35 : i32
    %60 = arith.extui %59 : i1 to i32
    %c0_i32_36 = arith.constant 0 : i32
    %61 = arith.cmpi ne, %60, %c0_i32_36 : i32
    scf.if %61 {
      %c0_37 = arith.constant 0 : index
      %c0_38 = arith.constant 0 : index
      %c0_39 = arith.constant 0 : index
      %62 = vector.load %arg2[%c0_37, %c0_38, %c0_39] : memref<1x16x64xf32, #tpu.memory_space<vmem>>, vector<1x16x64xf32>
      %63 = vector.shape_cast %62 : vector<1x16x64xf32> to vector<16x64xf32>
      %c0_40 = arith.constant 0 : index
      %c0_41 = arith.constant 0 : index
      %64 = vector.load %arg23[%c0_40, %c0_41] : memref<16x64xf32, #tpu.memory_space<vmem>>, vector<16x64xf32>
      %c0_42 = arith.constant 0 : index
      %c0_43 = arith.constant 0 : index
      %65 = vector.load %arg22[%c0_42, %c0_43] : memref<16x1xf32, #tpu.memory_space<vmem>>, vector<16x1xf32>
      %66 = tpu.reciprocal %65 {approx = true} : vector<16x1xf32> -> vector<16x1xf32>
      %67 = vector.broadcast %66 : vector<16x1xf32> to vector<16x64xf32>
      %68 = arith.mulf %64, %67 : vector<16x64xf32>
      %69 = arith.truncf %68 : vector<16x64xf32> to vector<16x64xbf16>
      %c0_44 = arith.constant 0 : index
      %c0_45 = arith.constant 0 : index
      %70 = vector.load %arg11[%c0_44, %c0_45] : memref<64x64xbf16, #tpu.memory_space<vmem>>, vector<64x64xbf16>
      %cst_46 = arith.constant dense<0.000000e+00> : vector<16x64xf32>
      %71 = tpu.matmul %69, %70, %cst_46 {dimension_numbers = #tpu.dot_dimension_numbers<[1], [0], [0], [1], [0, 0, 1, 1], [], []>} : vector<16x64xbf16>, vector<64x64xbf16>, vector<16x64xf32> -> vector<16x64xf32>
      %c0_47 = arith.constant 0 : index
      %c0_48 = arith.constant 0 : index
      %72 = vector.load %arg12[%c0_47, %c0_48] : memref<1x64xf32, #tpu.memory_space<vmem>>, vector<1x64xf32>
      %73 = vector.broadcast %72 : vector<1x64xf32> to vector<16x64xf32>
      %74 = arith.addf %71, %73 : vector<16x64xf32>
      %75 = arith.addf %74, %63 : vector<16x64xf32>
      %c0_49 = arith.constant 0 : index
      %c0_50 = arith.constant 0 : index
      %76 = vector.load %arg13[%c0_49, %c0_50] : memref<1x64xf32, #tpu.memory_space<vmem>>, vector<1x64xf32>
      %c0_51 = arith.constant 0 : index
      %c0_52 = arith.constant 0 : index
      %77 = vector.load %arg14[%c0_51, %c0_52] : memref<1x64xf32, #tpu.memory_space<vmem>>, vector<1x64xf32>
      %c0_53 = arith.constant 0 : index
      %c0_54 = arith.constant 0 : index
      %78 = vector.load %arg15[%c0_53, %c0_54] : memref<64x512xbf16, #tpu.memory_space<vmem>>, vector<64x512xbf16>
      %c0_55 = arith.constant 0 : index
      %c0_56 = arith.constant 0 : index
      %79 = vector.load %arg16[%c0_55, %c0_56] : memref<1x512xf32, #tpu.memory_space<vmem>>, vector<1x512xf32>
      %c0_57 = arith.constant 0 : index
      %c0_58 = arith.constant 0 : index
      %80 = vector.load %arg17[%c0_57, %c0_58] : memref<256x64xbf16, #tpu.memory_space<vmem>>, vector<256x64xbf16>
      %c0_59 = arith.constant 0 : index
      %c0_60 = arith.constant 0 : index
      %81 = vector.load %arg18[%c0_59, %c0_60] : memref<1x64xf32, #tpu.memory_space<vmem>>, vector<1x64xf32>
      %cst_61 = arith.constant dense<0.000000e+00> : vector<16xf32>
      %82 = vector.multi_reduction <add>, %75, %cst_61 [1] : vector<16x64xf32> to vector<16xf32>
      %83 = vector.shape_cast %82 : vector<16xf32> to vector<16x1xf32>
      %cst_62 = arith.constant 6.400000e+01 : f32
      %84 = vector.broadcast %cst_62 : f32 to vector<16x1xf32>
      %85 = arith.divf %83, %84 : vector<16x1xf32>
      %86 = vector.broadcast %85 : vector<16x1xf32> to vector<16x64xf32>
      %87 = arith.subf %75, %86 : vector<16x64xf32>
      %88 = arith.mulf %87, %87 : vector<16x64xf32>
      %cst_63 = arith.constant dense<0.000000e+00> : vector<16xf32>
      %89 = vector.multi_reduction <add>, %88, %cst_63 [1] : vector<16x64xf32> to vector<16xf32>
      %90 = vector.shape_cast %89 : vector<16xf32> to vector<16x1xf32>
      %cst_64 = arith.constant 6.400000e+01 : f32
      %91 = vector.broadcast %cst_64 : f32 to vector<16x1xf32>
      %92 = arith.divf %90, %91 : vector<16x1xf32>
      %cst_65 = arith.constant 9.99999974E-6 : f32
      %93 = vector.broadcast %cst_65 : f32 to vector<16x1xf32>
      %94 = arith.addf %92, %93 : vector<16x1xf32>
      %95 = math.rsqrt %94 : vector<16x1xf32>
      %96 = vector.broadcast %95 : vector<16x1xf32> to vector<16x64xf32>
      %97 = arith.mulf %87, %96 : vector<16x64xf32>
      %98 = vector.broadcast %76 : vector<1x64xf32> to vector<16x64xf32>
      %99 = arith.mulf %97, %98 : vector<16x64xf32>
      %100 = vector.broadcast %77 : vector<1x64xf32> to vector<16x64xf32>
      %101 = arith.addf %99, %100 : vector<16x64xf32>
      %102 = arith.truncf %101 : vector<16x64xf32> to vector<16x64xbf16>
      %cst_66 = arith.constant dense<0.000000e+00> : vector<16x512xf32>
      %103 = tpu.matmul %102, %78, %cst_66 {dimension_numbers = #tpu.dot_dimension_numbers<[1], [0], [0], [1], [0, 0, 1, 1], [], []>} : vector<16x64xbf16>, vector<64x512xbf16>, vector<16x512xf32> -> vector<16x512xf32>
      %104 = vector.broadcast %79 : vector<1x512xf32> to vector<16x512xf32>
      %105 = arith.addf %103, %104 : vector<16x512xf32>
      %106 = vector.extract_strided_slice %105 {offsets = [0, 0], sizes = [16, 256], strides = [1, 1]} : vector<16x512xf32> to vector<16x256xf32>
      %107 = vector.extract_strided_slice %105 {offsets = [0, 256], sizes = [16, 256], strides = [1, 1]} : vector<16x512xf32> to vector<16x256xf32>
      %cst_67 = arith.constant 5.000000e-01 : f32
      %108 = vector.broadcast %cst_67 : f32 to vector<16x256xf32>
      %109 = arith.mulf %108, %107 : vector<16x256xf32>
      %cst_68 = arith.constant 4.471500e-02 : f32
      %110 = vector.broadcast %cst_68 : f32 to vector<16x256xf32>
      %111 = arith.mulf %110, %107 : vector<16x256xf32>
      %112 = arith.mulf %111, %107 : vector<16x256xf32>
      %113 = arith.mulf %112, %107 : vector<16x256xf32>
      %114 = arith.addf %107, %113 : vector<16x256xf32>
      %cst_69 = arith.constant 0.797884583 : f32
      %115 = vector.broadcast %cst_69 : f32 to vector<16x256xf32>
      %116 = arith.mulf %115, %114 : vector<16x256xf32>
      %117 = math.tanh %116 : vector<16x256xf32>
      %cst_70 = arith.constant 1.000000e+00 : f32
      %118 = vector.broadcast %cst_70 : f32 to vector<16x256xf32>
      %119 = arith.addf %118, %117 : vector<16x256xf32>
      %120 = arith.mulf %109, %119 : vector<16x256xf32>
      %121 = arith.mulf %106, %120 : vector<16x256xf32>
      %122 = arith.truncf %121 : vector<16x256xf32> to vector<16x256xbf16>
      %cst_71 = arith.constant dense<0.000000e+00> : vector<16x64xf32>
      %123 = tpu.matmul %122, %80, %cst_71 {dimension_numbers = #tpu.dot_dimension_numbers<[1], [0], [0], [1], [0, 0, 1, 1], [], []>} : vector<16x256xbf16>, vector<256x64xbf16>, vector<16x64xf32> -> vector<16x64xf32>
      %124 = vector.broadcast %81 : vector<1x64xf32> to vector<16x64xf32>
      %125 = arith.addf %123, %124 : vector<16x64xf32>
      %126 = arith.addf %125, %75 : vector<16x64xf32>
      %c0_72 = arith.constant 0 : index
      %c0_73 = arith.constant 0 : index
      %c0_74 = arith.constant 0 : index
      %127 = vector.load %arg19[%c0_72, %c0_73, %c0_74] : memref<1x16x64xf32, #tpu.memory_space<vmem>>, vector<1x16x64xf32>
      %128 = vector.shape_cast %127 : vector<1x16x64xf32> to vector<16x64xf32>
      %129 = vector.shape_cast %126 : vector<16x64xf32> to vector<1x16x64xf32>
      tpu.vector_store %arg19[%c0_72, %c0_73, %c0_74], %129 {strides = array<i32>} : memref<1x16x64xf32, #tpu.memory_space<vmem>>, vector<1x16x64xf32>,
    } else {
    }
    return
  }
  func.func @transform_0(%arg0: i32, %arg1: i32) -> (i32, i32, i32) {
    %c0_i32 = arith.constant 0 : i32
    %c0_i32_0 = arith.constant 0 : i32
    %c0_i32_1 = arith.constant 0 : i32
    %c0_i32_2 = arith.constant 0 : i32
    return %c0_i32, %c0_i32_0, %c0_i32_1 : i32, i32, i32
  }
  func.func @transform_1(%arg0: i32, %arg1: i32) -> (i32, i32, i32) {
    %c0_i32 = arith.constant 0 : i32
    %c0_i32_0 = arith.constant 0 : i32
    return %arg0, %arg1, %c0_i32 : i32, i32, i32
  }
  func.func @transform_2(%arg0: i32, %arg1: i32) -> (i32, i32) {
    %c0_i32 = arith.constant 0 : i32
    %c0_i32_0 = arith.constant 0 : i32
    %c0_i32_1 = arith.constant 0 : i32
    return %c0_i32, %c0_i32_0 : i32, i32
  }
  func.func @transform_3(%arg0: i32, %arg1: i32) -> (i32, i32) {
    %c0_i32 = arith.constant 0 : i32
    %c0_i32_0 = arith.constant 0 : i32
    %c0_i32_1 = arith.constant 0 : i32
    return %c0_i32, %c0_i32_0 : i32, i32
  }
  func.func @transform_4(%arg0: i32, %arg1: i32) -> (i32, i32) {
    %c0_i32 = arith.constant 0 : i32
    %c0_i32_0 = arith.constant 0 : i32
    %c0_i32_1 = arith.constant 0 : i32
    return %c0_i32, %c0_i32_0 : i32, i32
  }
  func.func @transform_5(%arg0: i32, %arg1: i32) -> (i32, i32) {
    %c0_i32 = arith.constant 0 : i32
    %c0_i32_0 = arith.constant 0 : i32
    %c0_i32_1 = arith.constant 0 : i32
    return %c0_i32, %c0_i32_0 : i32, i32
  }
  func.func @transform_6(%arg0: i32, %arg1: i32) -> (i32, i32) {
    %c0_i32 = arith.constant 0 : i32
    %c0_i32_0 = arith.constant 0 : i32
    %c0_i32_1 = arith.constant 0 : i32
    return %c0_i32, %c0_i32_0 : i32, i32
  }
  func.func @transform_7(%arg0: i32, %arg1: i32) -> (i32, i32) {
    %c0_i32 = arith.constant 0 : i32
    %c0_i32_0 = arith.constant 0 : i32
    %c0_i32_1 = arith.constant 0 : i32
    return %c0_i32, %c0_i32_0 : i32, i32
  }
  func.func @transform_8(%arg0: i32, %arg1: i32) -> (i32, i32) {
    %c0_i32 = arith.constant 0 : i32
    %c0_i32_0 = arith.constant 0 : i32
    %c0_i32_1 = arith.constant 0 : i32
    return %c0_i32, %c0_i32_0 : i32, i32
  }
  func.func @transform_9(%arg0: i32, %arg1: i32) -> (i32, i32) {
    %c0_i32 = arith.constant 0 : i32
    %c0_i32_0 = arith.constant 0 : i32
    %c0_i32_1 = arith.constant 0 : i32
    return %c0_i32, %c0_i32_0 : i32, i32
  }
  func.func @transform_10(%arg0: i32, %arg1: i32) -> (i32, i32) {
    %c0_i32 = arith.constant 0 : i32
    %c0_i32_0 = arith.constant 0 : i32
    %c0_i32_1 = arith.constant 0 : i32
    return %c0_i32, %c0_i32_0 : i32, i32
  }
  func.func @transform_11(%arg0: i32, %arg1: i32) -> (i32, i32) {
    %c0_i32 = arith.constant 0 : i32
    %c0_i32_0 = arith.constant 0 : i32
    %c0_i32_1 = arith.constant 0 : i32
    return %c0_i32, %c0_i32_0 : i32, i32
  }
  func.func @transform_12(%arg0: i32, %arg1: i32) -> (i32, i32) {
    %c0_i32 = arith.constant 0 : i32
    %c0_i32_0 = arith.constant 0 : i32
    %c0_i32_1 = arith.constant 0 : i32
    return %c0_i32, %c0_i32_0 : i32, i32
  }
  func.func @transform_13(%arg0: i32, %arg1: i32) -> (i32, i32) {
    %c0_i32 = arith.constant 0 : i32
    %c0_i32_0 = arith.constant 0 : i32
    %c0_i32_1 = arith.constant 0 : i32
    return %c0_i32, %c0_i32_0 : i32, i32
  }
  func.func @transform_14(%arg0: i32, %arg1: i32) -> (i32, i32) {
    %c0_i32 = arith.constant 0 : i32
    %c0_i32_0 = arith.constant 0 : i32
    %c0_i32_1 = arith.constant 0 : i32
    return %c0_i32, %c0_i32_0 : i32, i32
  }
  func.func @transform_15(%arg0: i32, %arg1: i32) -> (i32, i32) {
    %c0_i32 = arith.constant 0 : i32
    %c0_i32_0 = arith.constant 0 : i32
    %c0_i32_1 = arith.constant 0 : i32
    return %c0_i32, %c0_i32_0 : i32, i32
  }
  func.func @transform_16(%arg0: i32, %arg1: i32) -> (i32, i32) {
    %c0_i32 = arith.constant 0 : i32
    %c0_i32_0 = arith.constant 0 : i32
    %c0_i32_1 = arith.constant 0 : i32
    return %c0_i32, %c0_i32_0 : i32, i32
  }
  func.func @transform_17(%arg0: i32, %arg1: i32) -> (i32, i32, i32) {
    %c0_i32 = arith.constant 0 : i32
    %c0_i32_0 = arith.constant 0 : i32
    %c0_i32_1 = arith.constant 0 : i32
    return %arg0, %c0_i32, %c0_i32_0 : i32, i32, i32
  }
}

module attributes {stable_mosaic.version = 11 : i64} {
  func.func @_decoder_cross_kernel(%arg0: i32, %arg1: i32, %arg2: memref<1x8x32xf32, #tpu.memory_space<vmem>>, %arg3: memref<1x16x64xf32, #tpu.memory_space<vmem>>, %arg4: memref<1x32xf32, #tpu.memory_space<vmem>>, %arg5: memref<1x32xf32, #tpu.memory_space<vmem>>, %arg6: memref<1x64xf32, #tpu.memory_space<vmem>>, %arg7: memref<1x64xf32, #tpu.memory_space<vmem>>, %arg8: memref<32x64xbf16, #tpu.memory_space<vmem>>, %arg9: memref<64x64xbf16, #tpu.memory_space<vmem>>, %arg10: memref<64x64xbf16, #tpu.memory_space<vmem>>, %arg11: memref<64x32xbf16, #tpu.memory_space<vmem>>, %arg12: memref<1x32xf32, #tpu.memory_space<vmem>>, %arg13: memref<32x128xbf16, #tpu.memory_space<vmem>>, %arg14: memref<1x128xf32, #tpu.memory_space<vmem>>, %arg15: memref<1x8x128xf32, #tpu.memory_space<vmem>>) attributes {dimension_semantics = [#tpu.dimension_semantics<parallel>, #tpu.dimension_semantics<parallel>], iteration_bounds = array<i64: 2, 1>, scalar_prefetch = 0 : i64, scratch_operands = 0 : i64, tpu.core_type = #tpu.core_type<tc>, window_params = [{transform_indices = @transform_0, window_bounds = array<i64: 1, 8, 32>}, {transform_indices = @transform_1, window_bounds = array<i64: 1, 16, 64>}, {pipeline_mode = #tpu.pipeline_mode<synchronous>, transform_indices = @transform_2, window_bounds = array<i64: 1, 32>}, {pipeline_mode = #tpu.pipeline_mode<synchronous>, transform_indices = @transform_3, window_bounds = array<i64: 1, 32>}, {pipeline_mode = #tpu.pipeline_mode<synchronous>, transform_indices = @transform_4, window_bounds = array<i64: 1, 64>}, {pipeline_mode = #tpu.pipeline_mode<synchronous>, transform_indices = @transform_5, window_bounds = array<i64: 1, 64>}, {pipeline_mode = #tpu.pipeline_mode<synchronous>, transform_indices = @transform_6, window_bounds = array<i64: 32, 64>}, {pipeline_mode = #tpu.pipeline_mode<synchronous>, transform_indices = @transform_7, window_bounds = array<i64: 64, 64>}, {pipeline_mode = #tpu.pipeline_mode<synchronous>, transform_indices = @transform_8, window_bounds = array<i64: 64, 64>}, {pipeline_mode = #tpu.pipeline_mode<synchronous>, transform_indices = @transform_9, window_bounds = array<i64: 64, 32>}, {pipeline_mode = #tpu.pipeline_mode<synchronous>, transform_indices = @transform_10, window_bounds = array<i64: 1, 32>}, {pipeline_mode = #tpu.pipeline_mode<synchronous>, transform_indices = @transform_11, window_bounds = array<i64: 32, 128>}, {pipeline_mode = #tpu.pipeline_mode<synchronous>, transform_indices = @transform_12, window_bounds = array<i64: 1, 128>}, {transform_indices = @transform_13, window_bounds = array<i64: 1, 8, 128>}]} {
    %c0 = arith.constant 0 : index
    %c0_0 = arith.constant 0 : index
    %c0_1 = arith.constant 0 : index
    %0 = vector.load %arg2[%c0, %c0_0, %c0_1] : memref<1x8x32xf32, #tpu.memory_space<vmem>>, vector<1x8x32xf32>
    %1 = vector.shape_cast %0 : vector<1x8x32xf32> to vector<8x32xf32>
    %c0_2 = arith.constant 0 : index
    %c0_3 = arith.constant 0 : index
    %2 = vector.load %arg4[%c0_2, %c0_3] : memref<1x32xf32, #tpu.memory_space<vmem>>, vector<1x32xf32>
    %c0_4 = arith.constant 0 : index
    %c0_5 = arith.constant 0 : index
    %3 = vector.load %arg5[%c0_4, %c0_5] : memref<1x32xf32, #tpu.memory_space<vmem>>, vector<1x32xf32>
    %cst = arith.constant dense<0.000000e+00> : vector<8xf32>
    %4 = vector.multi_reduction <add>, %1, %cst [1] : vector<8x32xf32> to vector<8xf32>
    %5 = vector.shape_cast %4 : vector<8xf32> to vector<8x1xf32>
    %cst_6 = arith.constant 3.200000e+01 : f32
    %6 = vector.broadcast %cst_6 : f32 to vector<8x1xf32>
    %7 = arith.divf %5, %6 : vector<8x1xf32>
    %8 = vector.broadcast %7 : vector<8x1xf32> to vector<8x32xf32>
    %9 = arith.subf %1, %8 : vector<8x32xf32>
    %10 = arith.mulf %9, %9 : vector<8x32xf32>
    %cst_7 = arith.constant dense<0.000000e+00> : vector<8xf32>
    %11 = vector.multi_reduction <add>, %10, %cst_7 [1] : vector<8x32xf32> to vector<8xf32>
    %12 = vector.shape_cast %11 : vector<8xf32> to vector<8x1xf32>
    %cst_8 = arith.constant 3.200000e+01 : f32
    %13 = vector.broadcast %cst_8 : f32 to vector<8x1xf32>
    %14 = arith.divf %12, %13 : vector<8x1xf32>
    %cst_9 = arith.constant 9.99999974E-6 : f32
    %15 = vector.broadcast %cst_9 : f32 to vector<8x1xf32>
    %16 = arith.addf %14, %15 : vector<8x1xf32>
    %17 = math.rsqrt %16 : vector<8x1xf32>
    %18 = vector.broadcast %17 : vector<8x1xf32> to vector<8x32xf32>
    %19 = arith.mulf %9, %18 : vector<8x32xf32>
    %20 = vector.broadcast %2 : vector<1x32xf32> to vector<8x32xf32>
    %21 = arith.mulf %19, %20 : vector<8x32xf32>
    %22 = vector.broadcast %3 : vector<1x32xf32> to vector<8x32xf32>
    %23 = arith.addf %21, %22 : vector<8x32xf32>
    %24 = arith.truncf %23 : vector<8x32xf32> to vector<8x32xbf16>
    %c0_10 = arith.constant 0 : index
    %c0_11 = arith.constant 0 : index
    %c0_12 = arith.constant 0 : index
    %25 = vector.load %arg3[%c0_10, %c0_11, %c0_12] : memref<1x16x64xf32, #tpu.memory_space<vmem>>, vector<1x16x64xf32>
    %26 = vector.shape_cast %25 : vector<1x16x64xf32> to vector<16x64xf32>
    %c0_13 = arith.constant 0 : index
    %c0_14 = arith.constant 0 : index
    %27 = vector.load %arg6[%c0_13, %c0_14] : memref<1x64xf32, #tpu.memory_space<vmem>>, vector<1x64xf32>
    %c0_15 = arith.constant 0 : index
    %c0_16 = arith.constant 0 : index
    %28 = vector.load %arg7[%c0_15, %c0_16] : memref<1x64xf32, #tpu.memory_space<vmem>>, vector<1x64xf32>
    %cst_17 = arith.constant dense<0.000000e+00> : vector<16xf32>
    %29 = vector.multi_reduction <add>, %26, %cst_17 [1] : vector<16x64xf32> to vector<16xf32>
    %30 = vector.shape_cast %29 : vector<16xf32> to vector<16x1xf32>
    %cst_18 = arith.constant 6.400000e+01 : f32
    %31 = vector.broadcast %cst_18 : f32 to vector<16x1xf32>
    %32 = arith.divf %30, %31 : vector<16x1xf32>
    %33 = vector.broadcast %32 : vector<16x1xf32> to vector<16x64xf32>
    %34 = arith.subf %26, %33 : vector<16x64xf32>
    %35 = arith.mulf %34, %34 : vector<16x64xf32>
    %cst_19 = arith.constant dense<0.000000e+00> : vector<16xf32>
    %36 = vector.multi_reduction <add>, %35, %cst_19 [1] : vector<16x64xf32> to vector<16xf32>
    %37 = vector.shape_cast %36 : vector<16xf32> to vector<16x1xf32>
    %cst_20 = arith.constant 6.400000e+01 : f32
    %38 = vector.broadcast %cst_20 : f32 to vector<16x1xf32>
    %39 = arith.divf %37, %38 : vector<16x1xf32>
    %cst_21 = arith.constant 9.99999974E-6 : f32
    %40 = vector.broadcast %cst_21 : f32 to vector<16x1xf32>
    %41 = arith.addf %39, %40 : vector<16x1xf32>
    %42 = math.rsqrt %41 : vector<16x1xf32>
    %43 = vector.broadcast %42 : vector<16x1xf32> to vector<16x64xf32>
    %44 = arith.mulf %34, %43 : vector<16x64xf32>
    %45 = vector.broadcast %27 : vector<1x64xf32> to vector<16x64xf32>
    %46 = arith.mulf %44, %45 : vector<16x64xf32>
    %47 = vector.broadcast %28 : vector<1x64xf32> to vector<16x64xf32>
    %48 = arith.addf %46, %47 : vector<16x64xf32>
    %49 = arith.truncf %48 : vector<16x64xf32> to vector<16x64xbf16>
    %c0_22 = arith.constant 0 : index
    %c0_23 = arith.constant 0 : index
    %50 = vector.load %arg8[%c0_22, %c0_23] : memref<32x64xbf16, #tpu.memory_space<vmem>>, vector<32x64xbf16>
    %cst_24 = arith.constant dense<0.000000e+00> : vector<8x64xf32>
    %51 = tpu.matmul %24, %50, %cst_24 {dimension_numbers = #tpu.dot_dimension_numbers<[1], [0], [0], [1], [0, 0, 1, 1], [], []>} : vector<8x32xbf16>, vector<32x64xbf16>, vector<8x64xf32> -> vector<8x64xf32>
    %cst_25 = arith.constant 1.250000e-01 : f32
    %52 = vector.broadcast %cst_25 : f32 to vector<8x64xf32>
    %53 = arith.mulf %51, %52 : vector<8x64xf32>
    %54 = arith.truncf %53 : vector<8x64xf32> to vector<8x64xbf16>
    %c0_26 = arith.constant 0 : index
    %c0_27 = arith.constant 0 : index
    %55 = vector.load %arg9[%c0_26, %c0_27] : memref<64x64xbf16, #tpu.memory_space<vmem>>, vector<64x64xbf16>
    %cst_28 = arith.constant dense<0.000000e+00> : vector<16x64xf32>
    %56 = tpu.matmul %49, %55, %cst_28 {dimension_numbers = #tpu.dot_dimension_numbers<[1], [0], [0], [1], [0, 0, 1, 1], [], []>} : vector<16x64xbf16>, vector<64x64xbf16>, vector<16x64xf32> -> vector<16x64xf32>
    %57 = arith.truncf %56 : vector<16x64xf32> to vector<16x64xbf16>
    %c0_29 = arith.constant 0 : index
    %c0_30 = arith.constant 0 : index
    %58 = vector.load %arg10[%c0_29, %c0_30] : memref<64x64xbf16, #tpu.memory_space<vmem>>, vector<64x64xbf16>
    %cst_31 = arith.constant dense<0.000000e+00> : vector<16x64xf32>
    %59 = tpu.matmul %49, %58, %cst_31 {dimension_numbers = #tpu.dot_dimension_numbers<[1], [0], [0], [1], [0, 0, 1, 1], [], []>} : vector<16x64xbf16>, vector<64x64xbf16>, vector<16x64xf32> -> vector<16x64xf32>
    %60 = arith.truncf %59 : vector<16x64xf32> to vector<16x64xbf16>
    %cst_32 = arith.constant dense<0.000000e+00> : vector<8x16xf32>
    %61 = tpu.matmul %54, %57, %cst_32 {dimension_numbers = #tpu.dot_dimension_numbers<[1], [1], [0], [0], [0, 0, 1, 0], [], []>} : vector<8x64xbf16>, vector<16x64xbf16>, vector<8x16xf32> -> vector<8x16xf32>
    %cst_33 = arith.constant dense<0xFF800000> : vector<8xf32>
    %62 = vector.multi_reduction <maximumf>, %61, %cst_33 [1] : vector<8x16xf32> to vector<8xf32>
    %63 = vector.shape_cast %62 : vector<8xf32> to vector<8x1xf32>
    %64 = vector.broadcast %63 : vector<8x1xf32> to vector<8x16xf32>
    %65 = arith.subf %61, %64 : vector<8x16xf32>
    %66 = math.exp %65 : vector<8x16xf32>
    %cst_34 = arith.constant dense<0.000000e+00> : vector<8xf32>
    %67 = vector.multi_reduction <add>, %66, %cst_34 [1] : vector<8x16xf32> to vector<8xf32>
    %68 = vector.shape_cast %67 : vector<8xf32> to vector<8x1xf32>
    %69 = tpu.reciprocal %68 {approx = true} : vector<8x1xf32> -> vector<8x1xf32>
    %70 = vector.broadcast %69 : vector<8x1xf32> to vector<8x16xf32>
    %71 = arith.mulf %66, %70 : vector<8x16xf32>
    %72 = arith.truncf %71 : vector<8x16xf32> to vector<8x16xbf16>
    %cst_35 = arith.constant dense<0.000000e+00> : vector<8x64xf32>
    %73 = tpu.matmul %72, %60, %cst_35 {dimension_numbers = #tpu.dot_dimension_numbers<[1], [0], [0], [1], [0, 0, 1, 1], [], []>} : vector<8x16xbf16>, vector<16x64xbf16>, vector<8x64xf32> -> vector<8x64xf32>
    %74 = arith.truncf %73 : vector<8x64xf32> to vector<8x64xbf16>
    %c0_36 = arith.constant 0 : index
    %c0_37 = arith.constant 0 : index
    %75 = vector.load %arg11[%c0_36, %c0_37] : memref<64x32xbf16, #tpu.memory_space<vmem>>, vector<64x32xbf16>
    %cst_38 = arith.constant dense<0.000000e+00> : vector<8x32xf32>
    %76 = tpu.matmul %74, %75, %cst_38 {dimension_numbers = #tpu.dot_dimension_numbers<[1], [0], [0], [1], [0, 0, 1, 1], [], []>} : vector<8x64xbf16>, vector<64x32xbf16>, vector<8x32xf32> -> vector<8x32xf32>
    %c0_39 = arith.constant 0 : index
    %c0_40 = arith.constant 0 : index
    %77 = vector.load %arg12[%c0_39, %c0_40] : memref<1x32xf32, #tpu.memory_space<vmem>>, vector<1x32xf32>
    %78 = vector.broadcast %77 : vector<1x32xf32> to vector<8x32xf32>
    %79 = arith.addf %76, %78 : vector<8x32xf32>
    %80 = arith.truncf %79 : vector<8x32xf32> to vector<8x32xbf16>
    %c0_41 = arith.constant 0 : index
    %c0_42 = arith.constant 0 : index
    %81 = vector.load %arg13[%c0_41, %c0_42] : memref<32x128xbf16, #tpu.memory_space<vmem>>, vector<32x128xbf16>
    %cst_43 = arith.constant dense<0.000000e+00> : vector<8x128xf32>
    %82 = tpu.matmul %80, %81, %cst_43 {dimension_numbers = #tpu.dot_dimension_numbers<[1], [0], [0], [1], [0, 0, 1, 1], [], []>} : vector<8x32xbf16>, vector<32x128xbf16>, vector<8x128xf32> -> vector<8x128xf32>
    %c0_44 = arith.constant 0 : index
    %c0_45 = arith.constant 0 : index
    %83 = vector.load %arg14[%c0_44, %c0_45] : memref<1x128xf32, #tpu.memory_space<vmem>>, vector<1x128xf32>
    %84 = vector.broadcast %83 : vector<1x128xf32> to vector<8x128xf32>
    %85 = arith.addf %82, %84 : vector<8x128xf32>
    %c0_46 = arith.constant 0 : index
    %c0_47 = arith.constant 0 : index
    %c0_48 = arith.constant 0 : index
    %86 = vector.load %arg15[%c0_46, %c0_47, %c0_48] : memref<1x8x128xf32, #tpu.memory_space<vmem>>, vector<1x8x128xf32>
    %87 = vector.shape_cast %86 : vector<1x8x128xf32> to vector<8x128xf32>
    %88 = vector.shape_cast %85 : vector<8x128xf32> to vector<1x8x128xf32>
    tpu.vector_store %arg15[%c0_46, %c0_47, %c0_48], %88 {strides = array<i32>} : memref<1x8x128xf32, #tpu.memory_space<vmem>>, vector<1x8x128xf32>,
    return
  }
  func.func @transform_0(%arg0: i32, %arg1: i32) -> (i32, i32, i32) {
    %c0_i32 = arith.constant 0 : i32
    %c0_i32_0 = arith.constant 0 : i32
    return %arg0, %arg1, %c0_i32 : i32, i32, i32
  }
  func.func @transform_1(%arg0: i32, %arg1: i32) -> (i32, i32, i32) {
    %c0_i32 = arith.constant 0 : i32
    %c0_i32_0 = arith.constant 0 : i32
    %c0_i32_1 = arith.constant 0 : i32
    return %arg0, %c0_i32, %c0_i32_0 : i32, i32, i32
  }
  func.func @transform_2(%arg0: i32, %arg1: i32) -> (i32, i32) {
    %c0_i32 = arith.constant 0 : i32
    %c0_i32_0 = arith.constant 0 : i32
    %c0_i32_1 = arith.constant 0 : i32
    return %c0_i32, %c0_i32_0 : i32, i32
  }
  func.func @transform_3(%arg0: i32, %arg1: i32) -> (i32, i32) {
    %c0_i32 = arith.constant 0 : i32
    %c0_i32_0 = arith.constant 0 : i32
    %c0_i32_1 = arith.constant 0 : i32
    return %c0_i32, %c0_i32_0 : i32, i32
  }
  func.func @transform_4(%arg0: i32, %arg1: i32) -> (i32, i32) {
    %c0_i32 = arith.constant 0 : i32
    %c0_i32_0 = arith.constant 0 : i32
    %c0_i32_1 = arith.constant 0 : i32
    return %c0_i32, %c0_i32_0 : i32, i32
  }
  func.func @transform_5(%arg0: i32, %arg1: i32) -> (i32, i32) {
    %c0_i32 = arith.constant 0 : i32
    %c0_i32_0 = arith.constant 0 : i32
    %c0_i32_1 = arith.constant 0 : i32
    return %c0_i32, %c0_i32_0 : i32, i32
  }
  func.func @transform_6(%arg0: i32, %arg1: i32) -> (i32, i32) {
    %c0_i32 = arith.constant 0 : i32
    %c0_i32_0 = arith.constant 0 : i32
    %c0_i32_1 = arith.constant 0 : i32
    return %c0_i32, %c0_i32_0 : i32, i32
  }
  func.func @transform_7(%arg0: i32, %arg1: i32) -> (i32, i32) {
    %c0_i32 = arith.constant 0 : i32
    %c0_i32_0 = arith.constant 0 : i32
    %c0_i32_1 = arith.constant 0 : i32
    return %c0_i32, %c0_i32_0 : i32, i32
  }
  func.func @transform_8(%arg0: i32, %arg1: i32) -> (i32, i32) {
    %c0_i32 = arith.constant 0 : i32
    %c0_i32_0 = arith.constant 0 : i32
    %c0_i32_1 = arith.constant 0 : i32
    return %c0_i32, %c0_i32_0 : i32, i32
  }
  func.func @transform_9(%arg0: i32, %arg1: i32) -> (i32, i32) {
    %c0_i32 = arith.constant 0 : i32
    %c0_i32_0 = arith.constant 0 : i32
    %c0_i32_1 = arith.constant 0 : i32
    return %c0_i32, %c0_i32_0 : i32, i32
  }
  func.func @transform_10(%arg0: i32, %arg1: i32) -> (i32, i32) {
    %c0_i32 = arith.constant 0 : i32
    %c0_i32_0 = arith.constant 0 : i32
    %c0_i32_1 = arith.constant 0 : i32
    return %c0_i32, %c0_i32_0 : i32, i32
  }
  func.func @transform_11(%arg0: i32, %arg1: i32) -> (i32, i32) {
    %c0_i32 = arith.constant 0 : i32
    %c0_i32_0 = arith.constant 0 : i32
    %c0_i32_1 = arith.constant 0 : i32
    return %c0_i32, %c0_i32_0 : i32, i32
  }
  func.func @transform_12(%arg0: i32, %arg1: i32) -> (i32, i32) {
    %c0_i32 = arith.constant 0 : i32
    %c0_i32_0 = arith.constant 0 : i32
    %c0_i32_1 = arith.constant 0 : i32
    return %c0_i32, %c0_i32_0 : i32, i32
  }
  func.func @transform_13(%arg0: i32, %arg1: i32) -> (i32, i32, i32) {
    %c0_i32 = arith.constant 0 : i32
    %c0_i32_0 = arith.constant 0 : i32
    return %arg0, %arg1, %c0_i32 : i32, i32, i32
  }
}

module attributes {stable_mosaic.version = 11 : i64} {
  func.func @_latent_tower_kernel(%arg0: i32, %arg1: i32, %arg2: memref<1x16x64xf32, #tpu.memory_space<vmem>>, %arg3: memref<1x1x64xf32, #tpu.memory_space<vmem>>, %arg4: memref<1x1x64xf32, #tpu.memory_space<vmem>>, %arg5: memref<1x64x512xbf16, #tpu.memory_space<vmem>>, %arg6: memref<1x64x512xbf16, #tpu.memory_space<vmem>>, %arg7: memref<1x64x512xbf16, #tpu.memory_space<vmem>>, %arg8: memref<1x512x64xbf16, #tpu.memory_space<vmem>>, %arg9: memref<1x1x64xf32, #tpu.memory_space<vmem>>, %arg10: memref<1x1x64xf32, #tpu.memory_space<vmem>>, %arg11: memref<1x1x64xf32, #tpu.memory_space<vmem>>, %arg12: memref<1x64x512xbf16, #tpu.memory_space<vmem>>, %arg13: memref<1x1x512xf32, #tpu.memory_space<vmem>>, %arg14: memref<1x256x64xbf16, #tpu.memory_space<vmem>>, %arg15: memref<1x1x64xf32, #tpu.memory_space<vmem>>, %arg16: memref<1x16x64xf32, #tpu.memory_space<vmem>>, %arg17: memref<16x64xf32, #tpu.memory_space<vmem>>, %arg18: memref<16x512xf32, #tpu.memory_space<vmem>>) attributes {dimension_semantics = [#tpu.dimension_semantics<parallel>, #tpu.dimension_semantics<arbitrary>], iteration_bounds = array<i64: 2, 2>, scalar_prefetch = 0 : i64, scratch_operands = 2 : i64, tpu.core_type = #tpu.core_type<tc>, window_params = [{transform_indices = @transform_0, window_bounds = array<i64: 1, 16, 64>}, {transform_indices = @transform_1, window_bounds = array<i64: 1, 1, 64>}, {transform_indices = @transform_2, window_bounds = array<i64: 1, 1, 64>}, {transform_indices = @transform_3, window_bounds = array<i64: 1, 64, 512>}, {transform_indices = @transform_4, window_bounds = array<i64: 1, 64, 512>}, {transform_indices = @transform_5, window_bounds = array<i64: 1, 64, 512>}, {transform_indices = @transform_6, window_bounds = array<i64: 1, 512, 64>}, {transform_indices = @transform_7, window_bounds = array<i64: 1, 1, 64>}, {transform_indices = @transform_8, window_bounds = array<i64: 1, 1, 64>}, {transform_indices = @transform_9, window_bounds = array<i64: 1, 1, 64>}, {transform_indices = @transform_10, window_bounds = array<i64: 1, 64, 512>}, {transform_indices = @transform_11, window_bounds = array<i64: 1, 1, 512>}, {transform_indices = @transform_12, window_bounds = array<i64: 1, 256, 64>}, {transform_indices = @transform_13, window_bounds = array<i64: 1, 1, 64>}, {transform_indices = @transform_14, window_bounds = array<i64: 1, 16, 64>}]} {
    %c0_i32 = arith.constant 0 : i32
    %0 = arith.cmpi eq, %arg1, %c0_i32 : i32
    %1 = arith.extui %0 : i1 to i32
    %c0_i32_0 = arith.constant 0 : i32
    %2 = arith.cmpi ne, %1, %c0_i32_0 : i32
    scf.if %2 {
      %c0_107 = arith.constant 0 : index
      %c0_108 = arith.constant 0 : index
      %c0_109 = arith.constant 0 : index
      %250 = vector.load %arg2[%c0_107, %c0_108, %c0_109] : memref<1x16x64xf32, #tpu.memory_space<vmem>>, vector<1x16x64xf32>
      %251 = vector.shape_cast %250 : vector<1x16x64xf32> to vector<16x64xf32>
      %c0_110 = arith.constant 0 : index
      %c0_111 = arith.constant 0 : index
      %252 = vector.load %arg17[%c0_110, %c0_111] : memref<16x64xf32, #tpu.memory_space<vmem>>, vector<16x64xf32>
      tpu.vector_store %arg17[%c0_110, %c0_111], %251 {strides = array<i32>} : memref<16x64xf32, #tpu.memory_space<vmem>>, vector<16x64xf32>,
    } else {
    }
    %c0 = arith.constant 0 : index
    %c0_1 = arith.constant 0 : index
    %3 = vector.load %arg17[%c0, %c0_1] : memref<16x64xf32, #tpu.memory_space<vmem>>, vector<16x64xf32>
    %c0_2 = arith.constant 0 : index
    %c0_3 = arith.constant 0 : index
    %c0_4 = arith.constant 0 : index
    %4 = vector.load %arg3[%c0_2, %c0_3, %c0_4] : memref<1x1x64xf32, #tpu.memory_space<vmem>>, vector<1x1x64xf32>
    %5 = vector.shape_cast %4 : vector<1x1x64xf32> to vector<1x64xf32>
    %c0_5 = arith.constant 0 : index
    %c0_6 = arith.constant 0 : index
    %c0_7 = arith.constant 0 : index
    %6 = vector.load %arg4[%c0_5, %c0_6, %c0_7] : memref<1x1x64xf32, #tpu.memory_space<vmem>>, vector<1x1x64xf32>
    %7 = vector.shape_cast %6 : vector<1x1x64xf32> to vector<1x64xf32>
    %cst = arith.constant dense<0.000000e+00> : vector<16xf32>
    %8 = vector.multi_reduction <add>, %3, %cst [1] : vector<16x64xf32> to vector<16xf32>
    %9 = vector.shape_cast %8 : vector<16xf32> to vector<16x1xf32>
    %cst_8 = arith.constant 6.400000e+01 : f32
    %10 = vector.broadcast %cst_8 : f32 to vector<16x1xf32>
    %11 = arith.divf %9, %10 : vector<16x1xf32>
    %12 = vector.broadcast %11 : vector<16x1xf32> to vector<16x64xf32>
    %13 = arith.subf %3, %12 : vector<16x64xf32>
    %14 = arith.mulf %13, %13 : vector<16x64xf32>
    %cst_9 = arith.constant dense<0.000000e+00> : vector<16xf32>
    %15 = vector.multi_reduction <add>, %14, %cst_9 [1] : vector<16x64xf32> to vector<16xf32>
    %16 = vector.shape_cast %15 : vector<16xf32> to vector<16x1xf32>
    %cst_10 = arith.constant 6.400000e+01 : f32
    %17 = vector.broadcast %cst_10 : f32 to vector<16x1xf32>
    %18 = arith.divf %16, %17 : vector<16x1xf32>
    %cst_11 = arith.constant 9.99999974E-6 : f32
    %19 = vector.broadcast %cst_11 : f32 to vector<16x1xf32>
    %20 = arith.addf %18, %19 : vector<16x1xf32>
    %21 = math.rsqrt %20 : vector<16x1xf32>
    %22 = vector.broadcast %21 : vector<16x1xf32> to vector<16x64xf32>
    %23 = arith.mulf %13, %22 : vector<16x64xf32>
    %24 = vector.broadcast %5 : vector<1x64xf32> to vector<16x64xf32>
    %25 = arith.mulf %23, %24 : vector<16x64xf32>
    %26 = vector.broadcast %7 : vector<1x64xf32> to vector<16x64xf32>
    %27 = arith.addf %25, %26 : vector<16x64xf32>
    %28 = arith.truncf %27 : vector<16x64xf32> to vector<16x64xbf16>
    %c0_12 = arith.constant 0 : index
    %c0_13 = arith.constant 0 : index
    %c0_14 = arith.constant 0 : index
    %29 = vector.load %arg5[%c0_12, %c0_13, %c0_14] : memref<1x64x512xbf16, #tpu.memory_space<vmem>>, vector<1x64x512xbf16>
    %30 = vector.shape_cast %29 : vector<1x64x512xbf16> to vector<64x512xbf16>
    %cst_15 = arith.constant dense<0.000000e+00> : vector<16x512xf32>
    %31 = tpu.matmul %28, %30, %cst_15 {dimension_numbers = #tpu.dot_dimension_numbers<[1], [0], [0], [1], [0, 0, 1, 1], [], []>} : vector<16x64xbf16>, vector<64x512xbf16>, vector<16x512xf32> -> vector<16x512xf32>
    %cst_16 = arith.constant 1.250000e-01 : f32
    %32 = vector.broadcast %cst_16 : f32 to vector<16x512xf32>
    %33 = arith.mulf %31, %32 : vector<16x512xf32>
    %34 = arith.truncf %33 : vector<16x512xf32> to vector<16x512xbf16>
    %c0_17 = arith.constant 0 : index
    %c0_18 = arith.constant 0 : index
    %c0_19 = arith.constant 0 : index
    %35 = vector.load %arg6[%c0_17, %c0_18, %c0_19] : memref<1x64x512xbf16, #tpu.memory_space<vmem>>, vector<1x64x512xbf16>
    %36 = vector.shape_cast %35 : vector<1x64x512xbf16> to vector<64x512xbf16>
    %cst_20 = arith.constant dense<0.000000e+00> : vector<16x512xf32>
    %37 = tpu.matmul %28, %36, %cst_20 {dimension_numbers = #tpu.dot_dimension_numbers<[1], [0], [0], [1], [0, 0, 1, 1], [], []>} : vector<16x64xbf16>, vector<64x512xbf16>, vector<16x512xf32> -> vector<16x512xf32>
    %38 = arith.truncf %37 : vector<16x512xf32> to vector<16x512xbf16>
    %c0_21 = arith.constant 0 : index
    %c0_22 = arith.constant 0 : index
    %c0_23 = arith.constant 0 : index
    %39 = vector.load %arg7[%c0_21, %c0_22, %c0_23] : memref<1x64x512xbf16, #tpu.memory_space<vmem>>, vector<1x64x512xbf16>
    %40 = vector.shape_cast %39 : vector<1x64x512xbf16> to vector<64x512xbf16>
    %cst_24 = arith.constant dense<0.000000e+00> : vector<16x512xf32>
    %41 = tpu.matmul %28, %40, %cst_24 {dimension_numbers = #tpu.dot_dimension_numbers<[1], [0], [0], [1], [0, 0, 1, 1], [], []>} : vector<16x64xbf16>, vector<64x512xbf16>, vector<16x512xf32> -> vector<16x512xf32>
    %42 = arith.truncf %41 : vector<16x512xf32> to vector<16x512xbf16>
    %43 = vector.extract_strided_slice %34 {offsets = [0, 0], sizes = [16, 64], strides = [1, 1]} : vector<16x512xbf16> to vector<16x64xbf16>
    %44 = vector.extract_strided_slice %38 {offsets = [0, 0], sizes = [16, 64], strides = [1, 1]} : vector<16x512xbf16> to vector<16x64xbf16>
    %cst_25 = arith.constant dense<0.000000e+00> : vector<16x16xf32>
    %45 = tpu.matmul %43, %44, %cst_25 {dimension_numbers = #tpu.dot_dimension_numbers<[1], [1], [0], [0], [0, 0, 1, 0], [], []>} : vector<16x64xbf16>, vector<16x64xbf16>, vector<16x16xf32> -> vector<16x16xf32>
    %cst_26 = arith.constant dense<0xFF800000> : vector<16xf32>
    %46 = vector.multi_reduction <maximumf>, %45, %cst_26 [1] : vector<16x16xf32> to vector<16xf32>
    %47 = vector.shape_cast %46 : vector<16xf32> to vector<16x1xf32>
    %48 = vector.broadcast %47 : vector<16x1xf32> to vector<16x16xf32>
    %49 = arith.subf %45, %48 : vector<16x16xf32>
    %50 = math.exp %49 : vector<16x16xf32>
    %cst_27 = arith.constant dense<0.000000e+00> : vector<16xf32>
    %51 = vector.multi_reduction <add>, %50, %cst_27 [1] : vector<16x16xf32> to vector<16xf32>
    %52 = vector.shape_cast %51 : vector<16xf32> to vector<16x1xf32>
    %53 = tpu.reciprocal %52 {approx = true} : vector<16x1xf32> -> vector<16x1xf32>
    %54 = vector.broadcast %53 : vector<16x1xf32> to vector<16x16xf32>
    %55 = arith.mulf %50, %54 : vector<16x16xf32>
    %56 = arith.truncf %55 : vector<16x16xf32> to vector<16x16xbf16>
    %57 = vector.extract_strided_slice %42 {offsets = [0, 0], sizes = [16, 64], strides = [1, 1]} : vector<16x512xbf16> to vector<16x64xbf16>
    %cst_28 = arith.constant dense<0.000000e+00> : vector<16x64xf32>
    %58 = tpu.matmul %56, %57, %cst_28 {dimension_numbers = #tpu.dot_dimension_numbers<[1], [0], [0], [1], [0, 0, 1, 1], [], []>} : vector<16x16xbf16>, vector<16x64xbf16>, vector<16x64xf32> -> vector<16x64xf32>
    %c0_29 = arith.constant 0 : index
    %c0_30 = arith.constant 0 : index
    %59 = vector.load %arg18[%c0_29, %c0_30] : memref<16x512xf32, #tpu.memory_space<vmem>>, vector<16x64xf32>
    tpu.vector_store %arg18[%c0_29, %c0_30], %58 {strides = array<i32>} : memref<16x512xf32, #tpu.memory_space<vmem>>, vector<16x64xf32>,
    %60 = vector.extract_strided_slice %34 {offsets = [0, 64], sizes = [16, 64], strides = [1, 1]} : vector<16x512xbf16> to vector<16x64xbf16>
    %61 = vector.extract_strided_slice %38 {offsets = [0, 64], sizes = [16, 64], strides = [1, 1]} : vector<16x512xbf16> to vector<16x64xbf16>
    %cst_31 = arith.constant dense<0.000000e+00> : vector<16x16xf32>
    %62 = tpu.matmul %60, %61, %cst_31 {dimension_numbers = #tpu.dot_dimension_numbers<[1], [1], [0], [0], [0, 0, 1, 0], [], []>} : vector<16x64xbf16>, vector<16x64xbf16>, vector<16x16xf32> -> vector<16x16xf32>
    %cst_32 = arith.constant dense<0xFF800000> : vector<16xf32>
    %63 = vector.multi_reduction <maximumf>, %62, %cst_32 [1] : vector<16x16xf32> to vector<16xf32>
    %64 = vector.shape_cast %63 : vector<16xf32> to vector<16x1xf32>
    %65 = vector.broadcast %64 : vector<16x1xf32> to vector<16x16xf32>
    %66 = arith.subf %62, %65 : vector<16x16xf32>
    %67 = math.exp %66 : vector<16x16xf32>
    %cst_33 = arith.constant dense<0.000000e+00> : vector<16xf32>
    %68 = vector.multi_reduction <add>, %67, %cst_33 [1] : vector<16x16xf32> to vector<16xf32>
    %69 = vector.shape_cast %68 : vector<16xf32> to vector<16x1xf32>
    %70 = tpu.reciprocal %69 {approx = true} : vector<16x1xf32> -> vector<16x1xf32>
    %71 = vector.broadcast %70 : vector<16x1xf32> to vector<16x16xf32>
    %72 = arith.mulf %67, %71 : vector<16x16xf32>
    %73 = arith.truncf %72 : vector<16x16xf32> to vector<16x16xbf16>
    %74 = vector.extract_strided_slice %42 {offsets = [0, 64], sizes = [16, 64], strides = [1, 1]} : vector<16x512xbf16> to vector<16x64xbf16>
    %cst_34 = arith.constant dense<0.000000e+00> : vector<16x64xf32>
    %75 = tpu.matmul %73, %74, %cst_34 {dimension_numbers = #tpu.dot_dimension_numbers<[1], [0], [0], [1], [0, 0, 1, 1], [], []>} : vector<16x16xbf16>, vector<16x64xbf16>, vector<16x64xf32> -> vector<16x64xf32>
    %c0_35 = arith.constant 0 : index
    %c64 = arith.constant 64 : index
    %76 = vector.load %arg18[%c0_35, %c64] : memref<16x512xf32, #tpu.memory_space<vmem>>, vector<16x64xf32>
    tpu.vector_store %arg18[%c0_35, %c64], %75 {strides = array<i32>} : memref<16x512xf32, #tpu.memory_space<vmem>>, vector<16x64xf32>,
    %77 = vector.extract_strided_slice %34 {offsets = [0, 128], sizes = [16, 64], strides = [1, 1]} : vector<16x512xbf16> to vector<16x64xbf16>
    %78 = vector.extract_strided_slice %38 {offsets = [0, 128], sizes = [16, 64], strides = [1, 1]} : vector<16x512xbf16> to vector<16x64xbf16>
    %cst_36 = arith.constant dense<0.000000e+00> : vector<16x16xf32>
    %79 = tpu.matmul %77, %78, %cst_36 {dimension_numbers = #tpu.dot_dimension_numbers<[1], [1], [0], [0], [0, 0, 1, 0], [], []>} : vector<16x64xbf16>, vector<16x64xbf16>, vector<16x16xf32> -> vector<16x16xf32>
    %cst_37 = arith.constant dense<0xFF800000> : vector<16xf32>
    %80 = vector.multi_reduction <maximumf>, %79, %cst_37 [1] : vector<16x16xf32> to vector<16xf32>
    %81 = vector.shape_cast %80 : vector<16xf32> to vector<16x1xf32>
    %82 = vector.broadcast %81 : vector<16x1xf32> to vector<16x16xf32>
    %83 = arith.subf %79, %82 : vector<16x16xf32>
    %84 = math.exp %83 : vector<16x16xf32>
    %cst_38 = arith.constant dense<0.000000e+00> : vector<16xf32>
    %85 = vector.multi_reduction <add>, %84, %cst_38 [1] : vector<16x16xf32> to vector<16xf32>
    %86 = vector.shape_cast %85 : vector<16xf32> to vector<16x1xf32>
    %87 = tpu.reciprocal %86 {approx = true} : vector<16x1xf32> -> vector<16x1xf32>
    %88 = vector.broadcast %87 : vector<16x1xf32> to vector<16x16xf32>
    %89 = arith.mulf %84, %88 : vector<16x16xf32>
    %90 = arith.truncf %89 : vector<16x16xf32> to vector<16x16xbf16>
    %91 = vector.extract_strided_slice %42 {offsets = [0, 128], sizes = [16, 64], strides = [1, 1]} : vector<16x512xbf16> to vector<16x64xbf16>
    %cst_39 = arith.constant dense<0.000000e+00> : vector<16x64xf32>
    %92 = tpu.matmul %90, %91, %cst_39 {dimension_numbers = #tpu.dot_dimension_numbers<[1], [0], [0], [1], [0, 0, 1, 1], [], []>} : vector<16x16xbf16>, vector<16x64xbf16>, vector<16x64xf32> -> vector<16x64xf32>
    %c0_40 = arith.constant 0 : index
    %c128 = arith.constant 128 : index
    %93 = vector.load %arg18[%c0_40, %c128] : memref<16x512xf32, #tpu.memory_space<vmem>>, vector<16x64xf32>
    tpu.vector_store %arg18[%c0_40, %c128], %92 {strides = array<i32>} : memref<16x512xf32, #tpu.memory_space<vmem>>, vector<16x64xf32>,
    %94 = vector.extract_strided_slice %34 {offsets = [0, 192], sizes = [16, 64], strides = [1, 1]} : vector<16x512xbf16> to vector<16x64xbf16>
    %95 = vector.extract_strided_slice %38 {offsets = [0, 192], sizes = [16, 64], strides = [1, 1]} : vector<16x512xbf16> to vector<16x64xbf16>
    %cst_41 = arith.constant dense<0.000000e+00> : vector<16x16xf32>
    %96 = tpu.matmul %94, %95, %cst_41 {dimension_numbers = #tpu.dot_dimension_numbers<[1], [1], [0], [0], [0, 0, 1, 0], [], []>} : vector<16x64xbf16>, vector<16x64xbf16>, vector<16x16xf32> -> vector<16x16xf32>
    %cst_42 = arith.constant dense<0xFF800000> : vector<16xf32>
    %97 = vector.multi_reduction <maximumf>, %96, %cst_42 [1] : vector<16x16xf32> to vector<16xf32>
    %98 = vector.shape_cast %97 : vector<16xf32> to vector<16x1xf32>
    %99 = vector.broadcast %98 : vector<16x1xf32> to vector<16x16xf32>
    %100 = arith.subf %96, %99 : vector<16x16xf32>
    %101 = math.exp %100 : vector<16x16xf32>
    %cst_43 = arith.constant dense<0.000000e+00> : vector<16xf32>
    %102 = vector.multi_reduction <add>, %101, %cst_43 [1] : vector<16x16xf32> to vector<16xf32>
    %103 = vector.shape_cast %102 : vector<16xf32> to vector<16x1xf32>
    %104 = tpu.reciprocal %103 {approx = true} : vector<16x1xf32> -> vector<16x1xf32>
    %105 = vector.broadcast %104 : vector<16x1xf32> to vector<16x16xf32>
    %106 = arith.mulf %101, %105 : vector<16x16xf32>
    %107 = arith.truncf %106 : vector<16x16xf32> to vector<16x16xbf16>
    %108 = vector.extract_strided_slice %42 {offsets = [0, 192], sizes = [16, 64], strides = [1, 1]} : vector<16x512xbf16> to vector<16x64xbf16>
    %cst_44 = arith.constant dense<0.000000e+00> : vector<16x64xf32>
    %109 = tpu.matmul %107, %108, %cst_44 {dimension_numbers = #tpu.dot_dimension_numbers<[1], [0], [0], [1], [0, 0, 1, 1], [], []>} : vector<16x16xbf16>, vector<16x64xbf16>, vector<16x64xf32> -> vector<16x64xf32>
    %c0_45 = arith.constant 0 : index
    %c192 = arith.constant 192 : index
    %110 = vector.load %arg18[%c0_45, %c192] : memref<16x512xf32, #tpu.memory_space<vmem>>, vector<16x64xf32>
    tpu.vector_store %arg18[%c0_45, %c192], %109 {strides = array<i32>} : memref<16x512xf32, #tpu.memory_space<vmem>>, vector<16x64xf32>,
    %111 = vector.extract_strided_slice %34 {offsets = [0, 256], sizes = [16, 64], strides = [1, 1]} : vector<16x512xbf16> to vector<16x64xbf16>
    %112 = vector.extract_strided_slice %38 {offsets = [0, 256], sizes = [16, 64], strides = [1, 1]} : vector<16x512xbf16> to vector<16x64xbf16>
    %cst_46 = arith.constant dense<0.000000e+00> : vector<16x16xf32>
    %113 = tpu.matmul %111, %112, %cst_46 {dimension_numbers = #tpu.dot_dimension_numbers<[1], [1], [0], [0], [0, 0, 1, 0], [], []>} : vector<16x64xbf16>, vector<16x64xbf16>, vector<16x16xf32> -> vector<16x16xf32>
    %cst_47 = arith.constant dense<0xFF800000> : vector<16xf32>
    %114 = vector.multi_reduction <maximumf>, %113, %cst_47 [1] : vector<16x16xf32> to vector<16xf32>
    %115 = vector.shape_cast %114 : vector<16xf32> to vector<16x1xf32>
    %116 = vector.broadcast %115 : vector<16x1xf32> to vector<16x16xf32>
    %117 = arith.subf %113, %116 : vector<16x16xf32>
    %118 = math.exp %117 : vector<16x16xf32>
    %cst_48 = arith.constant dense<0.000000e+00> : vector<16xf32>
    %119 = vector.multi_reduction <add>, %118, %cst_48 [1] : vector<16x16xf32> to vector<16xf32>
    %120 = vector.shape_cast %119 : vector<16xf32> to vector<16x1xf32>
    %121 = tpu.reciprocal %120 {approx = true} : vector<16x1xf32> -> vector<16x1xf32>
    %122 = vector.broadcast %121 : vector<16x1xf32> to vector<16x16xf32>
    %123 = arith.mulf %118, %122 : vector<16x16xf32>
    %124 = arith.truncf %123 : vector<16x16xf32> to vector<16x16xbf16>
    %125 = vector.extract_strided_slice %42 {offsets = [0, 256], sizes = [16, 64], strides = [1, 1]} : vector<16x512xbf16> to vector<16x64xbf16>
    %cst_49 = arith.constant dense<0.000000e+00> : vector<16x64xf32>
    %126 = tpu.matmul %124, %125, %cst_49 {dimension_numbers = #tpu.dot_dimension_numbers<[1], [0], [0], [1], [0, 0, 1, 1], [], []>} : vector<16x16xbf16>, vector<16x64xbf16>, vector<16x64xf32> -> vector<16x64xf32>
    %c0_50 = arith.constant 0 : index
    %c256 = arith.constant 256 : index
    %127 = vector.load %arg18[%c0_50, %c256] : memref<16x512xf32, #tpu.memory_space<vmem>>, vector<16x64xf32>
    tpu.vector_store %arg18[%c0_50, %c256], %126 {strides = array<i32>} : memref<16x512xf32, #tpu.memory_space<vmem>>, vector<16x64xf32>,
    %128 = vector.extract_strided_slice %34 {offsets = [0, 320], sizes = [16, 64], strides = [1, 1]} : vector<16x512xbf16> to vector<16x64xbf16>
    %129 = vector.extract_strided_slice %38 {offsets = [0, 320], sizes = [16, 64], strides = [1, 1]} : vector<16x512xbf16> to vector<16x64xbf16>
    %cst_51 = arith.constant dense<0.000000e+00> : vector<16x16xf32>
    %130 = tpu.matmul %128, %129, %cst_51 {dimension_numbers = #tpu.dot_dimension_numbers<[1], [1], [0], [0], [0, 0, 1, 0], [], []>} : vector<16x64xbf16>, vector<16x64xbf16>, vector<16x16xf32> -> vector<16x16xf32>
    %cst_52 = arith.constant dense<0xFF800000> : vector<16xf32>
    %131 = vector.multi_reduction <maximumf>, %130, %cst_52 [1] : vector<16x16xf32> to vector<16xf32>
    %132 = vector.shape_cast %131 : vector<16xf32> to vector<16x1xf32>
    %133 = vector.broadcast %132 : vector<16x1xf32> to vector<16x16xf32>
    %134 = arith.subf %130, %133 : vector<16x16xf32>
    %135 = math.exp %134 : vector<16x16xf32>
    %cst_53 = arith.constant dense<0.000000e+00> : vector<16xf32>
    %136 = vector.multi_reduction <add>, %135, %cst_53 [1] : vector<16x16xf32> to vector<16xf32>
    %137 = vector.shape_cast %136 : vector<16xf32> to vector<16x1xf32>
    %138 = tpu.reciprocal %137 {approx = true} : vector<16x1xf32> -> vector<16x1xf32>
    %139 = vector.broadcast %138 : vector<16x1xf32> to vector<16x16xf32>
    %140 = arith.mulf %135, %139 : vector<16x16xf32>
    %141 = arith.truncf %140 : vector<16x16xf32> to vector<16x16xbf16>
    %142 = vector.extract_strided_slice %42 {offsets = [0, 320], sizes = [16, 64], strides = [1, 1]} : vector<16x512xbf16> to vector<16x64xbf16>
    %cst_54 = arith.constant dense<0.000000e+00> : vector<16x64xf32>
    %143 = tpu.matmul %141, %142, %cst_54 {dimension_numbers = #tpu.dot_dimension_numbers<[1], [0], [0], [1], [0, 0, 1, 1], [], []>} : vector<16x16xbf16>, vector<16x64xbf16>, vector<16x64xf32> -> vector<16x64xf32>
    %c0_55 = arith.constant 0 : index
    %c320 = arith.constant 320 : index
    %144 = vector.load %arg18[%c0_55, %c320] : memref<16x512xf32, #tpu.memory_space<vmem>>, vector<16x64xf32>
    tpu.vector_store %arg18[%c0_55, %c320], %143 {strides = array<i32>} : memref<16x512xf32, #tpu.memory_space<vmem>>, vector<16x64xf32>,
    %145 = vector.extract_strided_slice %34 {offsets = [0, 384], sizes = [16, 64], strides = [1, 1]} : vector<16x512xbf16> to vector<16x64xbf16>
    %146 = vector.extract_strided_slice %38 {offsets = [0, 384], sizes = [16, 64], strides = [1, 1]} : vector<16x512xbf16> to vector<16x64xbf16>
    %cst_56 = arith.constant dense<0.000000e+00> : vector<16x16xf32>
    %147 = tpu.matmul %145, %146, %cst_56 {dimension_numbers = #tpu.dot_dimension_numbers<[1], [1], [0], [0], [0, 0, 1, 0], [], []>} : vector<16x64xbf16>, vector<16x64xbf16>, vector<16x16xf32> -> vector<16x16xf32>
    %cst_57 = arith.constant dense<0xFF800000> : vector<16xf32>
    %148 = vector.multi_reduction <maximumf>, %147, %cst_57 [1] : vector<16x16xf32> to vector<16xf32>
    %149 = vector.shape_cast %148 : vector<16xf32> to vector<16x1xf32>
    %150 = vector.broadcast %149 : vector<16x1xf32> to vector<16x16xf32>
    %151 = arith.subf %147, %150 : vector<16x16xf32>
    %152 = math.exp %151 : vector<16x16xf32>
    %cst_58 = arith.constant dense<0.000000e+00> : vector<16xf32>
    %153 = vector.multi_reduction <add>, %152, %cst_58 [1] : vector<16x16xf32> to vector<16xf32>
    %154 = vector.shape_cast %153 : vector<16xf32> to vector<16x1xf32>
    %155 = tpu.reciprocal %154 {approx = true} : vector<16x1xf32> -> vector<16x1xf32>
    %156 = vector.broadcast %155 : vector<16x1xf32> to vector<16x16xf32>
    %157 = arith.mulf %152, %156 : vector<16x16xf32>
    %158 = arith.truncf %157 : vector<16x16xf32> to vector<16x16xbf16>
    %159 = vector.extract_strided_slice %42 {offsets = [0, 384], sizes = [16, 64], strides = [1, 1]} : vector<16x512xbf16> to vector<16x64xbf16>
    %cst_59 = arith.constant dense<0.000000e+00> : vector<16x64xf32>
    %160 = tpu.matmul %158, %159, %cst_59 {dimension_numbers = #tpu.dot_dimension_numbers<[1], [0], [0], [1], [0, 0, 1, 1], [], []>} : vector<16x16xbf16>, vector<16x64xbf16>, vector<16x64xf32> -> vector<16x64xf32>
    %c0_60 = arith.constant 0 : index
    %c384 = arith.constant 384 : index
    %161 = vector.load %arg18[%c0_60, %c384] : memref<16x512xf32, #tpu.memory_space<vmem>>, vector<16x64xf32>
    tpu.vector_store %arg18[%c0_60, %c384], %160 {strides = array<i32>} : memref<16x512xf32, #tpu.memory_space<vmem>>, vector<16x64xf32>,
    %162 = vector.extract_strided_slice %34 {offsets = [0, 448], sizes = [16, 64], strides = [1, 1]} : vector<16x512xbf16> to vector<16x64xbf16>
    %163 = vector.extract_strided_slice %38 {offsets = [0, 448], sizes = [16, 64], strides = [1, 1]} : vector<16x512xbf16> to vector<16x64xbf16>
    %cst_61 = arith.constant dense<0.000000e+00> : vector<16x16xf32>
    %164 = tpu.matmul %162, %163, %cst_61 {dimension_numbers = #tpu.dot_dimension_numbers<[1], [1], [0], [0], [0, 0, 1, 0], [], []>} : vector<16x64xbf16>, vector<16x64xbf16>, vector<16x16xf32> -> vector<16x16xf32>
    %cst_62 = arith.constant dense<0xFF800000> : vector<16xf32>
    %165 = vector.multi_reduction <maximumf>, %164, %cst_62 [1] : vector<16x16xf32> to vector<16xf32>
    %166 = vector.shape_cast %165 : vector<16xf32> to vector<16x1xf32>
    %167 = vector.broadcast %166 : vector<16x1xf32> to vector<16x16xf32>
    %168 = arith.subf %164, %167 : vector<16x16xf32>
    %169 = math.exp %168 : vector<16x16xf32>
    %cst_63 = arith.constant dense<0.000000e+00> : vector<16xf32>
    %170 = vector.multi_reduction <add>, %169, %cst_63 [1] : vector<16x16xf32> to vector<16xf32>
    %171 = vector.shape_cast %170 : vector<16xf32> to vector<16x1xf32>
    %172 = tpu.reciprocal %171 {approx = true} : vector<16x1xf32> -> vector<16x1xf32>
    %173 = vector.broadcast %172 : vector<16x1xf32> to vector<16x16xf32>
    %174 = arith.mulf %169, %173 : vector<16x16xf32>
    %175 = arith.truncf %174 : vector<16x16xf32> to vector<16x16xbf16>
    %176 = vector.extract_strided_slice %42 {offsets = [0, 448], sizes = [16, 64], strides = [1, 1]} : vector<16x512xbf16> to vector<16x64xbf16>
    %cst_64 = arith.constant dense<0.000000e+00> : vector<16x64xf32>
    %177 = tpu.matmul %175, %176, %cst_64 {dimension_numbers = #tpu.dot_dimension_numbers<[1], [0], [0], [1], [0, 0, 1, 1], [], []>} : vector<16x16xbf16>, vector<16x64xbf16>, vector<16x64xf32> -> vector<16x64xf32>
    %c0_65 = arith.constant 0 : index
    %c448 = arith.constant 448 : index
    %178 = vector.load %arg18[%c0_65, %c448] : memref<16x512xf32, #tpu.memory_space<vmem>>, vector<16x64xf32>
    tpu.vector_store %arg18[%c0_65, %c448], %177 {strides = array<i32>} : memref<16x512xf32, #tpu.memory_space<vmem>>, vector<16x64xf32>,
    %c0_66 = arith.constant 0 : index
    %c0_67 = arith.constant 0 : index
    %179 = vector.load %arg18[%c0_66, %c0_67] : memref<16x512xf32, #tpu.memory_space<vmem>>, vector<16x512xf32>
    %180 = arith.truncf %179 : vector<16x512xf32> to vector<16x512xbf16>
    %c0_68 = arith.constant 0 : index
    %c0_69 = arith.constant 0 : index
    %c0_70 = arith.constant 0 : index
    %181 = vector.load %arg8[%c0_68, %c0_69, %c0_70] : memref<1x512x64xbf16, #tpu.memory_space<vmem>>, vector<1x512x64xbf16>
    %182 = vector.shape_cast %181 : vector<1x512x64xbf16> to vector<512x64xbf16>
    %cst_71 = arith.constant dense<0.000000e+00> : vector<16x64xf32>
    %183 = tpu.matmul %180, %182, %cst_71 {dimension_numbers = #tpu.dot_dimension_numbers<[1], [0], [0], [1], [0, 0, 1, 1], [], []>} : vector<16x512xbf16>, vector<512x64xbf16>, vector<16x64xf32> -> vector<16x64xf32>
    %c0_72 = arith.constant 0 : index
    %c0_73 = arith.constant 0 : index
    %c0_74 = arith.constant 0 : index
    %184 = vector.load %arg9[%c0_72, %c0_73, %c0_74] : memref<1x1x64xf32, #tpu.memory_space<vmem>>, vector<1x1x64xf32>
    %185 = vector.shape_cast %184 : vector<1x1x64xf32> to vector<1x64xf32>
    %186 = vector.broadcast %185 : vector<1x64xf32> to vector<16x64xf32>
    %187 = arith.addf %183, %186 : vector<16x64xf32>
    %188 = arith.addf %187, %3 : vector<16x64xf32>
    %c0_75 = arith.constant 0 : index
    %c0_76 = arith.constant 0 : index
    %c0_77 = arith.constant 0 : index
    %189 = vector.load %arg10[%c0_75, %c0_76, %c0_77] : memref<1x1x64xf32, #tpu.memory_space<vmem>>, vector<1x1x64xf32>
    %190 = vector.shape_cast %189 : vector<1x1x64xf32> to vector<1x64xf32>
    %c0_78 = arith.constant 0 : index
    %c0_79 = arith.constant 0 : index
    %c0_80 = arith.constant 0 : index
    %191 = vector.load %arg11[%c0_78, %c0_79, %c0_80] : memref<1x1x64xf32, #tpu.memory_space<vmem>>, vector<1x1x64xf32>
    %192 = vector.shape_cast %191 : vector<1x1x64xf32> to vector<1x64xf32>
    %c0_81 = arith.constant 0 : index
    %c0_82 = arith.constant 0 : index
    %c0_83 = arith.constant 0 : index
    %193 = vector.load %arg12[%c0_81, %c0_82, %c0_83] : memref<1x64x512xbf16, #tpu.memory_space<vmem>>, vector<1x64x512xbf16>
    %194 = vector.shape_cast %193 : vector<1x64x512xbf16> to vector<64x512xbf16>
    %c0_84 = arith.constant 0 : index
    %c0_85 = arith.constant 0 : index
    %c0_86 = arith.constant 0 : index
    %195 = vector.load %arg13[%c0_84, %c0_85, %c0_86] : memref<1x1x512xf32, #tpu.memory_space<vmem>>, vector<1x1x512xf32>
    %196 = vector.shape_cast %195 : vector<1x1x512xf32> to vector<1x512xf32>
    %c0_87 = arith.constant 0 : index
    %c0_88 = arith.constant 0 : index
    %c0_89 = arith.constant 0 : index
    %197 = vector.load %arg14[%c0_87, %c0_88, %c0_89] : memref<1x256x64xbf16, #tpu.memory_space<vmem>>, vector<1x256x64xbf16>
    %198 = vector.shape_cast %197 : vector<1x256x64xbf16> to vector<256x64xbf16>
    %c0_90 = arith.constant 0 : index
    %c0_91 = arith.constant 0 : index
    %c0_92 = arith.constant 0 : index
    %199 = vector.load %arg15[%c0_90, %c0_91, %c0_92] : memref<1x1x64xf32, #tpu.memory_space<vmem>>, vector<1x1x64xf32>
    %200 = vector.shape_cast %199 : vector<1x1x64xf32> to vector<1x64xf32>
    %cst_93 = arith.constant dense<0.000000e+00> : vector<16xf32>
    %201 = vector.multi_reduction <add>, %188, %cst_93 [1] : vector<16x64xf32> to vector<16xf32>
    %202 = vector.shape_cast %201 : vector<16xf32> to vector<16x1xf32>
    %cst_94 = arith.constant 6.400000e+01 : f32
    %203 = vector.broadcast %cst_94 : f32 to vector<16x1xf32>
    %204 = arith.divf %202, %203 : vector<16x1xf32>
    %205 = vector.broadcast %204 : vector<16x1xf32> to vector<16x64xf32>
    %206 = arith.subf %188, %205 : vector<16x64xf32>
    %207 = arith.mulf %206, %206 : vector<16x64xf32>
    %cst_95 = arith.constant dense<0.000000e+00> : vector<16xf32>
    %208 = vector.multi_reduction <add>, %207, %cst_95 [1] : vector<16x64xf32> to vector<16xf32>
    %209 = vector.shape_cast %208 : vector<16xf32> to vector<16x1xf32>
    %cst_96 = arith.constant 6.400000e+01 : f32
    %210 = vector.broadcast %cst_96 : f32 to vector<16x1xf32>
    %211 = arith.divf %209, %210 : vector<16x1xf32>
    %cst_97 = arith.constant 9.99999974E-6 : f32
    %212 = vector.broadcast %cst_97 : f32 to vector<16x1xf32>
    %213 = arith.addf %211, %212 : vector<16x1xf32>
    %214 = math.rsqrt %213 : vector<16x1xf32>
    %215 = vector.broadcast %214 : vector<16x1xf32> to vector<16x64xf32>
    %216 = arith.mulf %206, %215 : vector<16x64xf32>
    %217 = vector.broadcast %190 : vector<1x64xf32> to vector<16x64xf32>
    %218 = arith.mulf %216, %217 : vector<16x64xf32>
    %219 = vector.broadcast %192 : vector<1x64xf32> to vector<16x64xf32>
    %220 = arith.addf %218, %219 : vector<16x64xf32>
    %221 = arith.truncf %220 : vector<16x64xf32> to vector<16x64xbf16>
    %cst_98 = arith.constant dense<0.000000e+00> : vector<16x512xf32>
    %222 = tpu.matmul %221, %194, %cst_98 {dimension_numbers = #tpu.dot_dimension_numbers<[1], [0], [0], [1], [0, 0, 1, 1], [], []>} : vector<16x64xbf16>, vector<64x512xbf16>, vector<16x512xf32> -> vector<16x512xf32>
    %223 = vector.broadcast %196 : vector<1x512xf32> to vector<16x512xf32>
    %224 = arith.addf %222, %223 : vector<16x512xf32>
    %225 = vector.extract_strided_slice %224 {offsets = [0, 0], sizes = [16, 256], strides = [1, 1]} : vector<16x512xf32> to vector<16x256xf32>
    %226 = vector.extract_strided_slice %224 {offsets = [0, 256], sizes = [16, 256], strides = [1, 1]} : vector<16x512xf32> to vector<16x256xf32>
    %cst_99 = arith.constant 5.000000e-01 : f32
    %227 = vector.broadcast %cst_99 : f32 to vector<16x256xf32>
    %228 = arith.mulf %227, %226 : vector<16x256xf32>
    %cst_100 = arith.constant 4.471500e-02 : f32
    %229 = vector.broadcast %cst_100 : f32 to vector<16x256xf32>
    %230 = arith.mulf %229, %226 : vector<16x256xf32>
    %231 = arith.mulf %230, %226 : vector<16x256xf32>
    %232 = arith.mulf %231, %226 : vector<16x256xf32>
    %233 = arith.addf %226, %232 : vector<16x256xf32>
    %cst_101 = arith.constant 0.797884583 : f32
    %234 = vector.broadcast %cst_101 : f32 to vector<16x256xf32>
    %235 = arith.mulf %234, %233 : vector<16x256xf32>
    %236 = math.tanh %235 : vector<16x256xf32>
    %cst_102 = arith.constant 1.000000e+00 : f32
    %237 = vector.broadcast %cst_102 : f32 to vector<16x256xf32>
    %238 = arith.addf %237, %236 : vector<16x256xf32>
    %239 = arith.mulf %228, %238 : vector<16x256xf32>
    %240 = arith.mulf %225, %239 : vector<16x256xf32>
    %241 = arith.truncf %240 : vector<16x256xf32> to vector<16x256xbf16>
    %cst_103 = arith.constant dense<0.000000e+00> : vector<16x64xf32>
    %242 = tpu.matmul %241, %198, %cst_103 {dimension_numbers = #tpu.dot_dimension_numbers<[1], [0], [0], [1], [0, 0, 1, 1], [], []>} : vector<16x256xbf16>, vector<256x64xbf16>, vector<16x64xf32> -> vector<16x64xf32>
    %243 = vector.broadcast %200 : vector<1x64xf32> to vector<16x64xf32>
    %244 = arith.addf %242, %243 : vector<16x64xf32>
    %245 = arith.addf %244, %188 : vector<16x64xf32>
    %c0_104 = arith.constant 0 : index
    %c0_105 = arith.constant 0 : index
    %246 = vector.load %arg17[%c0_104, %c0_105] : memref<16x64xf32, #tpu.memory_space<vmem>>, vector<16x64xf32>
    tpu.vector_store %arg17[%c0_104, %c0_105], %245 {strides = array<i32>} : memref<16x64xf32, #tpu.memory_space<vmem>>, vector<16x64xf32>,
    %c1_i32 = arith.constant 1 : i32
    %247 = arith.cmpi eq, %arg1, %c1_i32 : i32
    %248 = arith.extui %247 : i1 to i32
    %c0_i32_106 = arith.constant 0 : i32
    %249 = arith.cmpi ne, %248, %c0_i32_106 : i32
    scf.if %249 {
      %c0_107 = arith.constant 0 : index
      %c0_108 = arith.constant 0 : index
      %c0_109 = arith.constant 0 : index
      %250 = vector.load %arg16[%c0_107, %c0_108, %c0_109] : memref<1x16x64xf32, #tpu.memory_space<vmem>>, vector<1x16x64xf32>
      %251 = vector.shape_cast %250 : vector<1x16x64xf32> to vector<16x64xf32>
      %252 = vector.shape_cast %245 : vector<16x64xf32> to vector<1x16x64xf32>
      tpu.vector_store %arg16[%c0_107, %c0_108, %c0_109], %252 {strides = array<i32>} : memref<1x16x64xf32, #tpu.memory_space<vmem>>, vector<1x16x64xf32>,
    } else {
    }
    return
  }
  func.func @transform_0(%arg0: i32, %arg1: i32) -> (i32, i32, i32) {
    %c0_i32 = arith.constant 0 : i32
    %c0_i32_0 = arith.constant 0 : i32
    %c0_i32_1 = arith.constant 0 : i32
    return %arg0, %c0_i32, %c0_i32_0 : i32, i32, i32
  }
  func.func @transform_1(%arg0: i32, %arg1: i32) -> (i32, i32, i32) {
    %c0_i32 = arith.constant 0 : i32
    %c0_i32_0 = arith.constant 0 : i32
    %c0_i32_1 = arith.constant 0 : i32
    return %arg1, %c0_i32, %c0_i32_0 : i32, i32, i32
  }
  func.func @transform_2(%arg0: i32, %arg1: i32) -> (i32, i32, i32) {
    %c0_i32 = arith.constant 0 : i32
    %c0_i32_0 = arith.constant 0 : i32
    %c0_i32_1 = arith.constant 0 : i32
    return %arg1, %c0_i32, %c0_i32_0 : i32, i32, i32
  }
  func.func @transform_3(%arg0: i32, %arg1: i32) -> (i32, i32, i32) {
    %c0_i32 = arith.constant 0 : i32
    %c0_i32_0 = arith.constant 0 : i32
    %c0_i32_1 = arith.constant 0 : i32
    return %arg1, %c0_i32, %c0_i32_0 : i32, i32, i32
  }
  func.func @transform_4(%arg0: i32, %arg1: i32) -> (i32, i32, i32) {
    %c0_i32 = arith.constant 0 : i32
    %c0_i32_0 = arith.constant 0 : i32
    %c0_i32_1 = arith.constant 0 : i32
    return %arg1, %c0_i32, %c0_i32_0 : i32, i32, i32
  }
  func.func @transform_5(%arg0: i32, %arg1: i32) -> (i32, i32, i32) {
    %c0_i32 = arith.constant 0 : i32
    %c0_i32_0 = arith.constant 0 : i32
    %c0_i32_1 = arith.constant 0 : i32
    return %arg1, %c0_i32, %c0_i32_0 : i32, i32, i32
  }
  func.func @transform_6(%arg0: i32, %arg1: i32) -> (i32, i32, i32) {
    %c0_i32 = arith.constant 0 : i32
    %c0_i32_0 = arith.constant 0 : i32
    %c0_i32_1 = arith.constant 0 : i32
    return %arg1, %c0_i32, %c0_i32_0 : i32, i32, i32
  }
  func.func @transform_7(%arg0: i32, %arg1: i32) -> (i32, i32, i32) {
    %c0_i32 = arith.constant 0 : i32
    %c0_i32_0 = arith.constant 0 : i32
    %c0_i32_1 = arith.constant 0 : i32
    return %arg1, %c0_i32, %c0_i32_0 : i32, i32, i32
  }
  func.func @transform_8(%arg0: i32, %arg1: i32) -> (i32, i32, i32) {
    %c0_i32 = arith.constant 0 : i32
    %c0_i32_0 = arith.constant 0 : i32
    %c0_i32_1 = arith.constant 0 : i32
    return %arg1, %c0_i32, %c0_i32_0 : i32, i32, i32
  }
  func.func @transform_9(%arg0: i32, %arg1: i32) -> (i32, i32, i32) {
    %c0_i32 = arith.constant 0 : i32
    %c0_i32_0 = arith.constant 0 : i32
    %c0_i32_1 = arith.constant 0 : i32
    return %arg1, %c0_i32, %c0_i32_0 : i32, i32, i32
  }
  func.func @transform_10(%arg0: i32, %arg1: i32) -> (i32, i32, i32) {
    %c0_i32 = arith.constant 0 : i32
    %c0_i32_0 = arith.constant 0 : i32
    %c0_i32_1 = arith.constant 0 : i32
    return %arg1, %c0_i32, %c0_i32_0 : i32, i32, i32
  }
  func.func @transform_11(%arg0: i32, %arg1: i32) -> (i32, i32, i32) {
    %c0_i32 = arith.constant 0 : i32
    %c0_i32_0 = arith.constant 0 : i32
    %c0_i32_1 = arith.constant 0 : i32
    return %arg1, %c0_i32, %c0_i32_0 : i32, i32, i32
  }
  func.func @transform_12(%arg0: i32, %arg1: i32) -> (i32, i32, i32) {
    %c0_i32 = arith.constant 0 : i32
    %c0_i32_0 = arith.constant 0 : i32
    %c0_i32_1 = arith.constant 0 : i32
    return %arg1, %c0_i32, %c0_i32_0 : i32, i32, i32
  }
  func.func @transform_13(%arg0: i32, %arg1: i32) -> (i32, i32, i32) {
    %c0_i32 = arith.constant 0 : i32
    %c0_i32_0 = arith.constant 0 : i32
    %c0_i32_1 = arith.constant 0 : i32
    return %arg1, %c0_i32, %c0_i32_0 : i32, i32, i32
  }
  func.func @transform_14(%arg0: i32, %arg1: i32) -> (i32, i32, i32) {
    %c0_i32 = arith.constant 0 : i32
    %c0_i32_0 = arith.constant 0 : i32
    %c0_i32_1 = arith.constant 0 : i32
    return %arg0, %c0_i32, %c0_i32_0 : i32, i32, i32
  }
}

</mosaic_0001>

<llo_original>
// kernel: _lambda_.5
$region0: #{_lambda_.5}
  #allocation0 [shape = 'u32[]', space=smem, size = 0x4, offset = 0x4, fixed_abs, tag = 'smem constant byte address 0x4 - core index']
  #allocation1 [shape = 'u32[144,128]{1,0:T(1,128)}', space=vmem, size = 0x12000, scoped, tag = 'internal scratch']
  %s0 = inlined_call_operand.vmem [shape: f32[2,8,32], index: 0, kind: input, shape index: {}]
  %s1 = inlined_call_operand.vmem [shape: f32[2,16,64], index: 1, kind: input, shape index: {}]
  %s2 = inlined_call_operand.vmem [shape: f32[1,32], index: 2, kind: input, shape index: {}]
  %s3 = inlined_call_operand.vmem [shape: f32[1,32], index: 3, kind: input, shape index: {}]
  %s4 = inlined_call_operand.vmem [shape: f32[1,64], index: 4, kind: input, shape index: {}]
  %s5 = inlined_call_operand.vmem [shape: f32[1,64], index: 5, kind: input, shape index: {}]
  %s6 = inlined_call_operand.vmem [shape: bf16[32,64], index: 6, kind: input, shape index: {}]
  %s7 = inlined_call_operand.vmem [shape: bf16[64,64], index: 7, kind: input, shape index: {}]
  %s8 = inlined_call_operand.vmem [shape: bf16[64,64], index: 8, kind: input, shape index: {}]
  %s9 = inlined_call_operand.vmem [shape: bf16[64,32], index: 9, kind: input, shape index: {}]
  %s10 = inlined_call_operand.vmem [shape: f32[1,32], index: 10, kind: input, shape index: {}]
  %s11 = inlined_call_operand.vmem [shape: bf16[32,128], index: 11, kind: input, shape index: {}]
  %s12 = inlined_call_operand.vmem [shape: f32[1,128], index: 12, kind: input, shape index: {}]
  %s13 = inlined_call_operand.hbm [shape: f32[2,8,128], index: 13, kind: output, shape index: {}]
  %s14 = sld [smem:[#allocation0]]
  $region85: #{_lambda_.5} parent=0
    _
  %s16 = ssub.s32 1, %s14
  %s17 = scalar_select 0, %s16, %s14
  $region1: #{_lambda_.5} parent=0
    #allocation2 [shape = 'u8[8192]{0}', space=vmem, size = 0x2000, scoped, tag = 'output window, operand 0']
    #allocation3 [shape = 's32[2]{0}', space=sflag, size = 0x8, scoped, tag = 'scoped memory for _lambda_.5']
    %18 = vsyncpa [#allocation3], 0
    %s19 = scalar_lea.sflag [#allocation3], 1
    %20 = vsyncpa %s19, 0
    loop: start=0, step=1, limit=4
    $region2: #{_lambda_.5} parent=1 // loop_pre_header
      _
    $region3: #{_lambda_.5} parent=1 // loop_header
      %s22 = sphi 0, %s26
      %p23 = scmp.ge.s32.totalorder %s22, 4
      %s29 = sphi 0, %s41
      %s30 = sphi 0, %s37
      %s31 = sphi 0, %s29
      %s32 = sphi 0, %s30
      %s33 = sphi 0, %s31
      %s34 = sphi 0, %s32
      %s46 = sphi 0, %s48
      %s49 = sphi 0, %s46
      %s50 = sphi 0, %s49
      %s66 = sphi 0, %s50
      %s72 = sphi 0, %s74
      %s75 = sphi 0, %s72
      %s76 = sphi 0, %s75
      %s92 = sphi 0, %s76
      %s96 = sphi 0, %s96
      %s98 = sphi 0, %s96
      %s99 = sphi 0, %s98
      %s113 = sphi 0, %s99
      %s117 = sphi 0, %s117
      %s119 = sphi 0, %s117
      %s120 = sphi 0, %s119
      %s134 = sphi 0, %s120
      %s138 = sphi 0, %s138
      %s140 = sphi 0, %s138
      %s141 = sphi 0, %s140
      %s155 = sphi 0, %s141
      %s159 = sphi 0, %s159
      %s161 = sphi 0, %s159
      %s162 = sphi 0, %s161
      %s176 = sphi 0, %s162
      %s180 = sphi 0, %s180
      %s182 = sphi 0, %s180
      %s183 = sphi 0, %s182
      %s197 = sphi 0, %s183
      %s201 = sphi 0, %s201
      %s203 = sphi 0, %s201
      %s204 = sphi 0, %s203
      %s218 = sphi 0, %s204
      %s222 = sphi 0, %s222
      %s224 = sphi 0, %s222
      %s225 = sphi 0, %s224
      %s239 = sphi 0, %s225
      %s243 = sphi 0, %s243
      %s245 = sphi 0, %s243
      %s246 = sphi 0, %s245
      %s260 = sphi 0, %s246
      %s264 = sphi 0, %s264
      %s266 = sphi 0, %s264
      %s267 = sphi 0, %s266
      %s281 = sphi 0, %s267
      %s285 = sphi 0, %s285
      %s287 = sphi 0, %s285
      %s288 = sphi 0, %s287
      %s302 = sphi 0, %s288
      %s306 = sphi 0, %s306
      %s308 = sphi 0, %s306
      %s309 = sphi 0, %s308
      %s323 = sphi 0, %s309
      %s331 = sphi 0, %s333
      %s334 = sphi 0, %s331
      %s335 = sphi 0, %s334
      %s351 = sphi 0, %s335
    $region4: #{_lambda_.5} parent=1 // loop_header_branch
      %25 = sbr.rel (%p23) target = $region8
    $region5: #{_lambda_.5} parent=1 // loop_body
      %s27 = ssub.s32 %s22, 1
      %s28 = ssub.s32 %s22, 2
      %s35 = sadd.s32 1, %s30
      %p36 = scmp.ge.s32.totalorder %s35, 1
      %s37 = scalar_select %p36, 0, %s35
      %s38 = sadd.s32 1, %s29
      %s39 = scalar_select %p36, %s38, %s29
      %p40 = scmp.ge.s32.totalorder %s39, 2
      %s41 = scalar_select %p40, 0, %s39
      %s42 = ssub.s32 %s29, %s41
      %s43 = ssub.s32 %s30, %s37
      %s44 = sor.u32 %s42, %s43
      %p45 = scmp.eq.s32.totalorder %s44, 0
      %s47 = sadd.s32 %s46, 1
      %s48 = scalar_select %p45, %s46, %s47
      %p51 = pneg %p45
      %p52 = scmp.eq.s32.totalorder %s22, 1
      %p53 = por %p51, %p52
      %p54 = scmp.ne.s32.totalorder %s46, %s49
      %p55 = scmp.eq.s32.totalorder %s22, 0
      %p56 = por %p54, %p55
      %p57 = scmp.ne.s32.totalorder %s46, %s49
      %p58 = scmp.eq.s32.totalorder %s27, 1
      %p59 = por %p57, %p58
      %p60 = scmp.ne.s32.totalorder %s49, %s50
      %p61 = scmp.eq.s32.totalorder %s27, 0
      %p62 = por %p60, %p61
      %p63 = scmp.ne.s32.totalorder %s49, %s50
      %p64 = scmp.eq.s32.totalorder %s28, 1
      %p65 = por %p63, %p64
      %p67 = scmp.ne.s32.totalorder %s50, %s66
      %p68 = scmp.eq.s32.totalorder %s28, 0
      %p69 = por %p67, %p68
      %s70 = ssub.s32 %s29, %s41
      %p71 = scmp.eq.s32.totalorder %s70, 0
      %s73 = sadd.s32 %s72, 1
      %s74 = scalar_select %p71, %s72, %s73
      %p77 = pneg %p71
      %p78 = scmp.eq.s32.totalorder %s22, 1
      %p79 = por %p77, %p78
      %p80 = scmp.ne.s32.totalorder %s72, %s75
      %p81 = scmp.eq.s32.totalorder %s22, 0
      %p82 = por %p80, %p81
      %p83 = scmp.ne.s32.totalorder %s72, %s75
      %p84 = scmp.eq.s32.totalorder %s27, 1
      %p85 = por %p83, %p84
      %p86 = scmp.ne.s32.totalorder %s75, %s76
      %p87 = scmp.eq.s32.totalorder %s27, 0
      %p88 = por %p86, %p87
      %p89 = scmp.ne.s32.totalorder %s75, %s76
      %p90 = scmp.eq.s32.totalorder %s28, 1
      %p91 = por %p89, %p90
      %p93 = scmp.ne.s32.totalorder %s76, %s92
      %p94 = scmp.eq.s32.totalorder %s28, 0
      %p95 = por %p93, %p94
      %s97 = sadd.s32 %s96, 1
      %p100 = scmp.eq.s32.totalorder %s22, 1
      %p101 = scmp.ne.s32.totalorder %s96, %s98
      %p102 = scmp.eq.s32.totalorder %s22, 0
      %p103 = por %p101, %p102
      %p104 = scmp.ne.s32.totalorder %s96, %s98
      %p105 = scmp.eq.s32.totalorder %s27, 1
      %p106 = por %p104, %p105
      %p107 = scmp.ne.s32.totalorder %s98, %s99
      %p108 = scmp.eq.s32.totalorder %s27, 0
      %p109 = por %p107, %p108
      %p110 = scmp.ne.s32.totalorder %s98, %s99
      %p111 = scmp.eq.s32.totalorder %s28, 1
      %p112 = por %p110, %p111
      %p114 = scmp.ne.s32.totalorder %s99, %s113
      %p115 = scmp.eq.s32.totalorder %s28, 0
      %p116 = por %p114, %p115
      %s118 = sadd.s32 %s117, 1
      %p121 = scmp.eq.s32.totalorder %s22, 1
      %p122 = scmp.ne.s32.totalorder %s117, %s119
      %p123 = scmp.eq.s32.totalorder %s22, 0
      %p124 = por %p122, %p123
      %p125 = scmp.ne.s32.totalorder %s117, %s119
      %p126 = scmp.eq.s32.totalorder %s27, 1
      %p127 = por %p125, %p126
      %p128 = scmp.ne.s32.totalorder %s119, %s120
      %p129 = scmp.eq.s32.totalorder %s27, 0
      %p130 = por %p128, %p129
      %p131 = scmp.ne.s32.totalorder %s119, %s120
      %p132 = scmp.eq.s32.totalorder %s28, 1
      %p133 = por %p131, %p132
      %p135 = scmp.ne.s32.totalorder %s120, %s134
      %p136 = scmp.eq.s32.totalorder %s28, 0
      %p137 = por %p135, %p136
      %s139 = sadd.s32 %s138, 1
      %p142 = scmp.eq.s32.totalorder %s22, 1
      %p143 = scmp.ne.s32.totalorder %s138, %s140
      %p144 = scmp.eq.s32.totalorder %s22, 0
      %p145 = por %p143, %p144
      %p146 = scmp.ne.s32.totalorder %s138, %s140
      %p147 = scmp.eq.s32.totalorder %s27, 1
      %p148 = por %p146, %p147
      %p149 = scmp.ne.s32.totalorder %s140, %s141
      %p150 = scmp.eq.s32.totalorder %s27, 0
      %p151 = por %p149, %p150
      %p152 = scmp.ne.s32.totalorder %s140, %s141
      %p153 = scmp.eq.s32.totalorder %s28, 1
      %p154 = por %p152, %p153
      %p156 = scmp.ne.s32.totalorder %s141, %s155
      %p157 = scmp.eq.s32.totalorder %s28, 0
      %p158 = por %p156, %p157
      %s160 = sadd.s32 %s159, 1
      %p163 = scmp.eq.s32.totalorder %s22, 1
      %p164 = scmp.ne.s32.totalorder %s159, %s161
      %p165 = scmp.eq.s32.totalorder %s22, 0
      %p166 = por %p164, %p165
      %p167 = scmp.ne.s32.totalorder %s159, %s161
      %p168 = scmp.eq.s32.totalorder %s27, 1
      %p169 = por %p167, %p168
      %p170 = scmp.ne.s32.totalorder %s161, %s162
      %p171 = scmp.eq.s32.totalorder %s27, 0
      %p172 = por %p170, %p171
      %p173 = scmp.ne.s32.totalorder %s161, %s162
      %p174 = scmp.eq.s32.totalorder %s28, 1
      %p175 = por %p173, %p174
      %p177 = scmp.ne.s32.totalorder %s162, %s176
      %p178 = scmp.eq.s32.totalorder %s28, 0
      %p179 = por %p177, %p178
      %s181 = sadd.s32 %s180, 1
      %p184 = scmp.eq.s32.totalorder %s22, 1
      %p185 = scmp.ne.s32.totalorder %s180, %s182
      %p186 = scmp.eq.s32.totalorder %s22, 0
      %p187 = por %p185, %p186
      %p188 = scmp.ne.s32.totalorder %s180, %s182
      %p189 = scmp.eq.s32.totalorder %s27, 1
      %p190 = por %p188, %p189
      %p191 = scmp.ne.s32.totalorder %s182, %s183
      %p192 = scmp.eq.s32.totalorder %s27, 0
      %p193 = por %p191, %p192
      %p194 = scmp.ne.s32.totalorder %s182, %s183
      %p195 = scmp.eq.s32.totalorder %s28, 1
      %p196 = por %p194, %p195
      %p198 = scmp.ne.s32.totalorder %s183, %s197
      %p199 = scmp.eq.s32.totalorder %s28, 0
      %p200 = por %p198, %p199
      %s202 = sadd.s32 %s201, 1
      %p205 = scmp.eq.s32.totalorder %s22, 1
      %p206 = scmp.ne.s32.totalorder %s201, %s203
      %p207 = scmp.eq.s32.totalorder %s22, 0
      %p208 = por %p206, %p207
      %p209 = scmp.ne.s32.totalorder %s201, %s203
      %p210 = scmp.eq.s32.totalorder %s27, 1
      %p211 = por %p209, %p210
      %p212 = scmp.ne.s32.totalorder %s203, %s204
      %p213 = scmp.eq.s32.totalorder %s27, 0
      %p214 = por %p212, %p213
      %p215 = scmp.ne.s32.totalorder %s203, %s204
      %p216 = scmp.eq.s32.totalorder %s28, 1
      %p217 = por %p215, %p216
      %p219 = scmp.ne.s32.totalorder %s204, %s218
      %p220 = scmp.eq.s32.totalorder %s28, 0
      %p221 = por %p219, %p220
      %s223 = sadd.s32 %s222, 1
      %p226 = scmp.eq.s32.totalorder %s22, 1
      %p227 = scmp.ne.s32.totalorder %s222, %s224
      %p228 = scmp.eq.s32.totalorder %s22, 0
      %p229 = por %p227, %p228
      %p230 = scmp.ne.s32.totalorder %s222, %s224
      %p231 = scmp.eq.s32.totalorder %s27, 1
      %p232 = por %p230, %p231
      %p233 = scmp.ne.s32.totalorder %s224, %s225
      %p234 = scmp.eq.s32.totalorder %s27, 0
      %p235 = por %p233, %p234
      %p236 = scmp.ne.s32.totalorder %s224, %s225
      %p237 = scmp.eq.s32.totalorder %s28, 1
      %p238 = por %p236, %p237
      %p240 = scmp.ne.s32.totalorder %s225, %s239
      %p241 = scmp.eq.s32.totalorder %s28, 0
      %p242 = por %p240, %p241
      %s244 = sadd.s32 %s243, 1
      %p247 = scmp.eq.s32.totalorder %s22, 1
      %p248 = scmp.ne.s32.totalorder %s243, %s245
      %p249 = scmp.eq.s32.totalorder %s22, 0
      %p250 = por %p248, %p249
      %p251 = scmp.ne.s32.totalorder %s243, %s245
      %p252 = scmp.eq.s32.totalorder %s27, 1
      %p253 = por %p251, %p252
      %p254 = scmp.ne.s32.totalorder %s245, %s246
      %p255 = scmp.eq.s32.totalorder %s27, 0
      %p256 = por %p254, %p255
      %p257 = scmp.ne.s32.totalorder %s245, %s246
      %p258 = scmp.eq.s32.totalorder %s28, 1
      %p259 = por %p257, %p258
      %p261 = scmp.ne.s32.totalorder %s246, %s260
      %p262 = scmp.eq.s32.totalorder %s28, 0
      %p263 = por %p261, %p262
      %s265 = sadd.s32 %s264, 1
      %p268 = scmp.eq.s32.totalorder %s22, 1
      %p269 = scmp.ne.s32.totalorder %s264, %s266
      %p270 = scmp.eq.s32.totalorder %s22, 0
      %p271 = por %p269, %p270
      %p272 = scmp.ne.s32.totalorder %s264, %s266
      %p273 = scmp.eq.s32.totalorder %s27, 1
      %p274 = por %p272, %p273
      %p275 = scmp.ne.s32.totalorder %s266, %s267
      %p276 = scmp.eq.s32.totalorder %s27, 0
      %p277 = por %p275, %p276
      %p278 = scmp.ne.s32.totalorder %s266, %s267
      %p279 = scmp.eq.s32.totalorder %s28, 1
      %p280 = por %p278, %p279
      %p282 = scmp.ne.s32.totalorder %s267, %s281
      %p283 = scmp.eq.s32.totalorder %s28, 0
      %p284 = por %p282, %p283
      %s286 = sadd.s32 %s285, 1
      %p289 = scmp.eq.s32.totalorder %s22, 1
      %p290 = scmp.ne.s32.totalorder %s285, %s287
      %p291 = scmp.eq.s32.totalorder %s22, 0
      %p292 = por %p290, %p291
      %p293 = scmp.ne.s32.totalorder %s285, %s287
      %p294 = scmp.eq.s32.totalorder %s27, 1
      %p295 = por %p293, %p294
      %p296 = scmp.ne.s32.totalorder %s287, %s288
      %p297 = scmp.eq.s32.totalorder %s27, 0
      %p298 = por %p296, %p297
      %p299 = scmp.ne.s32.totalorder %s287, %s288
      %p300 = scmp.eq.s32.totalorder %s28, 1
      %p301 = por %p299, %p300
      %p303 = scmp.ne.s32.totalorder %s288, %s302
      %p304 = scmp.eq.s32.totalorder %s28, 0
      %p305 = por %p303, %p304
      %s307 = sadd.s32 %s306, 1
      %p310 = scmp.eq.s32.totalorder %s22, 1
      %p311 = scmp.ne.s32.totalorder %s306, %s308
      %p312 = scmp.eq.s32.totalorder %s22, 0
      %p313 = por %p311, %p312
      %p314 = scmp.ne.s32.totalorder %s306, %s308
      %p315 = scmp.eq.s32.totalorder %s27, 1
      %p316 = por %p314, %p315
      %p317 = scmp.ne.s32.totalorder %s308, %s309
      %p318 = scmp.eq.s32.totalorder %s27, 0
      %p319 = por %p317, %p318
      %p320 = scmp.ne.s32.totalorder %s308, %s309
      %p321 = scmp.eq.s32.totalorder %s28, 1
      %p322 = por %p320, %p321
      %p324 = scmp.ne.s32.totalorder %s309, %s323
      %p325 = scmp.eq.s32.totalorder %s28, 0
      %p326 = por %p324, %p325
      %s327 = ssub.s32 %s29, %s41
      %s328 = ssub.s32 %s30, %s37
      %s329 = sor.u32 %s327, %s328
      %p330 = scmp.eq.s32.totalorder %s329, 0
      %s332 = sadd.s32 %s331, 1
      %s333 = scalar_select %p330, %s331, %s332
      %p336 = pneg %p330
      %p337 = scmp.eq.s32.totalorder %s22, 1
      %p338 = por %p336, %p337
      %p339 = scmp.ne.s32.totalorder %s331, %s334
      %p340 = scmp.eq.s32.totalorder %s22, 0
      %p341 = por %p339, %p340
      %p342 = scmp.ne.s32.totalorder %s331, %s334
      %p343 = scmp.eq.s32.totalorder %s27, 1
      %p344 = por %p342, %p343
      %p345 = scmp.ne.s32.totalorder %s334, %s335
      %p346 = scmp.eq.s32.totalorder %s27, 0
      %p347 = por %p345, %p346
      %p348 = scmp.ne.s32.totalorder %s334, %s335
      %p349 = scmp.eq.s32.totalorder %s28, 1
      %p350 = por %p348, %p349
      %p352 = scmp.ne.s32.totalorder %s335, %s351
      %p353 = scmp.eq.s32.totalorder %s28, 0
      %p354 = por %p352, %p353
      %p355 = scmp.le.s32.totalorder 1, %s22
      %p356 = scmp.lt.s32.totalorder %s22, 3
      %p357 = pnand %p355, %p356
      %p358 = pneg %p357
      // Predicated region
      $region9: #{_lambda_.5} parent=5 // pred_check
        _
      $region10: #{_lambda_.5} parent=5 // pred_check_branch
        %360 = sbr.rel (%p357) target = $region12
      $region11: #{_lambda_.5} parent=5 // pred_region
        %s361 = ssub.s32 %s22, 1
        // Predicated region
        $region13: #{_lambda_.5} parent=11 // pred_check
          %p362 = pneg %p109
        $region14: #{_lambda_.5} parent=11 // pred_check_branch
          %364 = sbr.rel (%p362) target = $region16
        $region15: #{_lambda_.5} parent=11 // pred_region
          _
        $region16: #{_lambda_.5} parent=11 // pred_fallthru
          _
        // Predicated region
        $region17: #{_lambda_.5} parent=11 // pred_check
          %p365 = pneg %p130
        $region18: #{_lambda_.5} parent=11 // pred_check_branch
          %367 = sbr.rel (%p365) target = $region20
        $region19: #{_lambda_.5} parent=11 // pred_region
          _
        $region20: #{_lambda_.5} parent=11 // pred_fallthru
          _
        // Predicated region
        $region21: #{_lambda_.5} parent=11 // pred_check
          %p368 = pneg %p151
        $region22: #{_lambda_.5} parent=11 // pred_check_branch
          %370 = sbr.rel (%p368) target = $region24
        $region23: #{_lambda_.5} parent=11 // pred_region
          _
        $region24: #{_lambda_.5} parent=11 // pred_fallthru
          _
        // Predicated region
        $region25: #{_lambda_.5} parent=11 // pred_check
          %p371 = pneg %p172
        $region26: #{_lambda_.5} parent=11 // pred_check_branch
          %373 = sbr.rel (%p371) target = $region28
        $region27: #{_lambda_.5} parent=11 // pred_region
          _
        $region28: #{_lambda_.5} parent=11 // pred_fallthru
          _
        // Predicated region
        $region29: #{_lambda_.5} parent=11 // pred_check
          %p374 = pneg %p193
        $region30: #{_lambda_.5} parent=11 // pred_check_branch
          %376 = sbr.rel (%p374) target = $region32
        $region31: #{_lambda_.5} parent=11 // pred_region
          _
        $region32: #{_lambda_.5} parent=11 // pred_fallthru
          _
        // Predicated region
        $region33: #{_lambda_.5} parent=11 // pred_check
          %p377 = pneg %p214
        $region34: #{_lambda_.5} parent=11 // pred_check_branch
          %379 = sbr.rel (%p377) target = $region36
        $region35: #{_lambda_.5} parent=11 // pred_region
          _
        $region36: #{_lambda_.5} parent=11 // pred_fallthru
          _
        // Predicated region
        $region37: #{_lambda_.5} parent=11 // pred_check
          %p380 = pneg %p235
        $region38: #{_lambda_.5} parent=11 // pred_check_branch
          %382 = sbr.rel (%p380) target = $region40
        $region39: #{_lambda_.5} parent=11 // pred_region
          _
        $region40: #{_lambda_.5} parent=11 // pred_fallthru
          _
        // Predicated region
        $region41: #{_lambda_.5} parent=11 // pred_check
          %p383 = pneg %p256
        $region42: #{_lambda_.5} parent=11 // pred_check_branch
          %385 = sbr.rel (%p383) target = $region44
        $region43: #{_lambda_.5} parent=11 // pred_region
          _
        $region44: #{_lambda_.5} parent=11 // pred_fallthru
          _
        // Predicated region
        $region45: #{_lambda_.5} parent=11 // pred_check
          %p386 = pneg %p277
        $region46: #{_lambda_.5} parent=11 // pred_check_branch
          %388 = sbr.rel (%p386) target = $region48
        $region47: #{_lambda_.5} parent=11 // pred_region
          _
        $region48: #{_lambda_.5} parent=11 // pred_fallthru
          _
        // Predicated region
        $region49: #{_lambda_.5} parent=11 // pred_check
          %p389 = pneg %p298
        $region50: #{_lambda_.5} parent=11 // pred_check_branch
          %391 = sbr.rel (%p389) target = $region52
        $region51: #{_lambda_.5} parent=11 // pred_region
          _
        $region52: #{_lambda_.5} parent=11 // pred_fallthru
          _
        // Predicated region
        $region53: #{_lambda_.5} parent=11 // pred_check
          %p392 = pneg %p319
        $region54: #{_lambda_.5} parent=11 // pred_check_branch
          %394 = sbr.rel (%p392) target = $region56
        $region55: #{_lambda_.5} parent=11 // pred_region
          _
        $region56: #{_lambda_.5} parent=11 // pred_fallthru
          _
      $region12: #{_lambda_.5} parent=5 // pred_fallthru
        _
      %p395 = scmp.lt.s32.totalorder %s22, 2
      // Predicated region
      $region57: #{_lambda_.5} parent=5 // pred_check
        %p396 = pneg %p395
      $region58: #{_lambda_.5} parent=5 // pred_check_branch
        %398 = sbr.rel (%p396) target = $region60
      $region59: #{_lambda_.5} parent=5 // pred_region
        // Predicated region
        $region61: #{_lambda_.5} parent=59 // pred_check
          %p399 = pneg %p56
        $region62: #{_lambda_.5} parent=59 // pred_check_branch
          %401 = sbr.rel (%p399) target = $region64
        $region63: #{_lambda_.5} parent=59 // pred_region
          %p402 = scmp.lt.s32.totalorder %s29, 1
          %s403 = scalar_select %p402, %s29, 1
          %p404 = scmp.lt.s32.totalorder %s30, 0
          %s405 = scalar_select %p404, %s30, 0
          %s406 = sadd.s32 %s405, %s403
          %s407 = smul.addr %s406, 8
          %s408 = scalar_lea.vmem %s0, %s407
        $region64: #{_lambda_.5} parent=59 // pred_fallthru
          _
        // Predicated region
        $region65: #{_lambda_.5} parent=59 // pred_check
          %p409 = pneg %p82
        $region66: #{_lambda_.5} parent=59 // pred_check_branch
          %411 = sbr.rel (%p409) target = $region68
        $region67: #{_lambda_.5} parent=59 // pred_region
          %p412 = scmp.lt.s32.totalorder %s29, 1
          %s413 = scalar_select %p412, %s29, 1
          %s414 = smul.addr %s413, 2
          %s415 = smul.addr %s414, 8
          %s416 = scalar_lea.vmem %s1, %s415
        $region68: #{_lambda_.5} parent=59 // pred_fallthru
          _
      $region60: #{_lambda_.5} parent=5 // pred_fallthru
        _
      %p417 = scmp.le.s32.totalorder 1, %s22
      %p418 = scmp.lt.s32.totalorder %s22, 3
      %p419 = pnand %p417, %p418
      %p420 = pneg %p419
      // Predicated region
      $region69: #{_lambda_.5} parent=5 // pred_check
        _
      $region70: #{_lambda_.5} parent=5 // pred_check_branch
        %422 = sbr.rel (%p419) target = $region72
      $region71: #{_lambda_.5} parent=5 // pred_region
        %s423 = ssub.s32 %s22, 1
        %p424 = scmp.lt.s32.totalorder %s31, 1
        %s425 = scalar_select %p424, %s31, 1
        %p426 = scmp.lt.s32.totalorder %s32, 0
        %s427 = scalar_select %p426, %s32, 0
        %s428 = sadd.s32 %s427, %s425
        %s429 = smul.addr %s428, 8
        %s430 = scalar_lea.vmem %s0, %s429
        %p431 = pneg %p62
        %p432 = pneg %p59
        %p433 = scmp.lt.s32.totalorder %s31, 1
        %s434 = scalar_select %p433, %s31, 1
        %s435 = smul.addr %s434, 2
        %s436 = smul.addr %s435, 8
        %s437 = scalar_lea.vmem %s1, %s436
        %p438 = pneg %p88
        %p439 = pneg %p85
        %p440 = pneg %p109
        %p441 = pneg %p106
        %p442 = pneg %p130
        %p443 = pneg %p127
        %p444 = pneg %p151
        %p445 = pneg %p148
        %p446 = pneg %p172
        %p447 = pneg %p169
        %p448 = pneg %p193
        %p449 = pneg %p190
        %p450 = pneg %p214
        %p451 = pneg %p211
        %p452 = pneg %p235
        %p453 = pneg %p232
        %p454 = pneg %p256
        %p455 = pneg %p253
        %p456 = pneg %p277
        %p457 = pneg %p274
        %p458 = pneg %p298
        %p459 = pneg %p295
        %p460 = pneg %p319
        %p461 = pneg %p316
        %p462 = pneg %p347
        %p463 = pneg %p344
        %s464 = sand.u32 %s334, 1
        %s465 = scalar_lea.sflag [#allocation3], %s464
        %s466 = sand.u32 %s334, 1
        %s467 = smul.addr %s466, 8
        %s468 = scalar_lea.vmem [#allocation2], %s467
        %p469 = scmp.lt.s32.totalorder %s31, 1
        %s470 = scalar_select %p469, %s31, 1
        %p471 = scmp.lt.s32.totalorder %s32, 0
        %s472 = scalar_select %p471, %s32, 0
        %s473 = sadd.s32 %s472, %s470
        %s474 = smul.addr %s473, 8
        %s475 = scalar_lea.vmem %s0, %s474
        %p476 = scmp.lt.s32.totalorder %s31, 1
        %s477 = scalar_select %p476, %s31, 1
        %s478 = smul.addr %s477, 2
        %s479 = smul.addr %s478, 8
        %s480 = scalar_lea.vmem %s1, %s479
        %v482 = vld [vmem:[%s475] sm:$0xff]
        %v483 = vld [vmem:[%s2] sm:$0x1]
        %v484 = vld [vmem:[%s3] sm:$0x1]
        %vm485 = vcmask 261120
        %v486 = vsel %vm485, %v482, 0.0
        %487 = vadd.xlane.f32.xlu0 %v486
        %v488 = vpop.xlane.xlu0 %487
        %v489 = vrcp.pop 32.0
        %v490 = vmul.f32 %v488, %v489
        %v491 = vsub.f32 %v482, %v490
        %v492 = vmul.f32 %v491, %v491
        %v493 = vsel %vm485, %v492, 0.0
        %494 = vadd.xlane.f32.xlu0 %v493
        %v495 = vpop.xlane.xlu0 %494
        %v496 = vmul.f32 %v495, %v489
        %v497 = vadd.f32 %v496, 1e-05
        %v498 = vrsqrt.pop %v497
        %v499 = vmul.f32 %v491, %v498
        %v501 = vlaneseq
        %v502 = vshrl.u32 %v501, 7
        %v503 = vsub.s32 0, %v502
        %v504 = vrot.slane %v483, %v503
        %v506 = vmul.f32 %v499, %v504
        %v508 = vlaneseq
        %v509 = vshrl.u32 %v508, 7
        %v510 = vsub.s32 0, %v509
        %v511 = vrot.slane %v484, %v510
        %v513 = vadd.f32 %v506, %v511
        %v514 = vpack.c.bf16 %v513, %v513
        %v515 = vld [vmem:[%s480] sm:$0xff]
        %v516 = vld [vmem:[%s480 + $0x8] sm:$0xff]
        %v517 = vld [vmem:[%s4] sm:$0x1]
        %v518 = vld [vmem:[%s5] sm:$0x1]
        %vm519 = vcmask 523264
        %v520 = vsel %vm519, %v515, 0.0
        %521 = vadd.xlane.f32.xlu0 %v520
        %v522 = vpop.xlane.xlu0 %521
        %v523 = vsel %vm519, %v516, 0.0
        %524 = vadd.xlane.f32.xlu0 %v523
        %v525 = vpop.xlane.xlu0 %524
        %v526 = vrcp.pop 64.0
        %v527 = vmul.f32 %v522, %v526
        %v528 = vmul.f32 %v525, %v526
        %v529 = vsub.f32 %v515, %v527
        %v530 = vsub.f32 %v516, %v528
        %v531 = vmul.f32 %v529, %v529
        %v532 = vmul.f32 %v530, %v530
        %v533 = vsel %vm519, %v531, 0.0
        %534 = vadd.xlane.f32.xlu0 %v533
        %v535 = vpop.xlane.xlu0 %534
        %v536 = vsel %vm519, %v532, 0.0
        %537 = vadd.xlane.f32.xlu0 %v536
        %v538 = vpop.xlane.xlu0 %537
        %v539 = vmul.f32 %v535, %v526
        %v540 = vmul.f32 %v538, %v526
        %v541 = vadd.f32 %v539, 1e-05
        %v542 = vadd.f32 %v540, 1e-05
        %v543 = vrsqrt.pop %v541
        %v544 = vrsqrt.pop %v542
        %v545 = vmul.f32 %v529, %v543
        %v546 = vmul.f32 %v530, %v544
        %v548 = vlaneseq
        %v549 = vshrl.u32 %v548, 7
        %v550 = vsub.s32 0, %v549
        %v551 = vrot.slane %v517, %v550
        %v553 = vmul.f32 %v545, %v551
        %v554 = vmul.f32 %v546, %v551
        %v556 = vlaneseq
        %v557 = vshrl.u32 %v556, 7
        %v558 = vsub.s32 0, %v557
        %v559 = vrot.slane %v518, %v558
        %v561 = vadd.f32 %v553, %v559
        %v562 = vadd.f32 %v554, %v559
        %v563 = vpack.c.bf16 %v562, %v561
        %v564 = vld [vmem:[%s6] sm:$0xf]
        %v565 = vld [vmem:[%s6 + $0x4] sm:$0xf]
        %v566 = vld [vmem:[%s6 + $0x8] sm:$0xf]
        %v567 = vld [vmem:[%s6 + $0xc] sm:$0xf]
        %v572 = vunpack.c.l.b16 %v564
        %v573 = vunpack.c.l.b16 %v565
        %v574 = vunpack.c.l.b16 %v566
        %v575 = vunpack.c.l.b16 %v567
        %v576 = vpack.c.b16 %v573, %v572
        %v577 = vpack.c.b16 %v575, %v574
        %v581 = vsel %vm485, %v514, 0
        %583 = vmatprep.subr.bf16.mxu0 0
        %584 = vmatpush1.bf16.msra.mxu0 0
        %585 = vmatprep.subr.bf16.mxu0 0
        %586 = vmatpush1.bf16.msra.mxu0 0
        %587 = vmatprep.subr.bf16.mxu0 0
        %588 = vmatpush1.bf16.msra.mxu0 0
        %589 = vmatprep.subr.bf16.mxu0 0
        %590 = vmatpush1.bf16.msra.mxu0 0
        %591 = vmatprep.subr.bf16.mxu0 0
        %592 = vmatpush1.bf16.msra.mxu0 0
        %593 = vmatprep.subr.bf16.mxu0 0
        %594 = vmatpush1.bf16.msra.mxu0 0
        %595 = vmatprep.subr.bf16.mxu0 0
        %596 = vmatpush1.bf16.msra.mxu0 %v577
        %597 = vmatprep.subr.bf16.mxu0 0
        %598 = vmatpush1.bf16.msra.mxu0 %v576
        %599 = vmatprep.subr.bf16.mxu0 0
        %600 = vmatpush2.bf16.msra.mxu0 0
        %601 = vmatprep.subr.bf16.mxu0 0
        %602 = vmatpush2.bf16.msra.mxu0 0
        %603 = vmatprep.subr.bf16.mxu0 0
        %604 = vmatpush2.bf16.msra.mxu0 0
        %605 = vmatprep.subr.bf16.mxu0 0
        %606 = vmatpush2.bf16.msra.mxu0 0
        %607 = vmatprep.subr.bf16.mxu0 0
        %608 = vmatpush2.bf16.msra.mxu0 0
        %609 = vmatprep.subr.bf16.mxu0 0
        %610 = vmatpush2.bf16.msra.mxu0 0
        %611 = vmatprep.subr.bf16.mxu0 0
        %612 = vmatpush2.bf16.msra.mxu0 0
        %613 = vmatprep.subr.bf16.mxu0 0
        %614 = vmatpush2.bf16.msra.mxu0 0
        %615 = vmatprep.mubr.bf16.mxu0 0
        %616 = vmatmul.mubr.bf16.gmra.mxu0 %v581
        %v617 = vpop.f32.mrf.mxu0
        %v618 = vadd.f32 0.0, %v617
        %v619 = vpop.f32.mrf.mxu0
        %v620 = vpop.f32.mrf.mxu0
        %v621 = vpop.f32.mrf.mxu0
        %622 = vdwg.mxu0
        %v623 = vmul.f32 %v618, 0.125
        %v624 = vpack.c.bf16 %v623, %v623
        %v625 = vld [vmem:[%s7] sm:$0xf]
        %v626 = vld [vmem:[%s7 + $0x4] sm:$0xf]
        %v627 = vld [vmem:[%s7 + $0x8] sm:$0xf]
        %v628 = vld [vmem:[%s7 + $0xc] sm:$0xf]
        %v629 = vld [vmem:[%s7 + $0x10] sm:$0xf]
        %v630 = vld [vmem:[%s7 + $0x14] sm:$0xf]
        %v631 = vld [vmem:[%s7 + $0x18] sm:$0xf]
        %v632 = vld [vmem:[%s7 + $0x1c] sm:$0xf]
        %v641 = vunpack.c.l.b16 %v625
        %v642 = vunpack.c.l.b16 %v626
        %v643 = vunpack.c.l.b16 %v627
        %v644 = vunpack.c.l.b16 %v628
        %v645 = vunpack.c.l.b16 %v629
        %v646 = vunpack.c.l.b16 %v630
        %v647 = vunpack.c.l.b16 %v631
        %v648 = vunpack.c.l.b16 %v632
        %v649 = vpack.c.b16 %v642, %v641
        %v650 = vpack.c.b16 %v644, %v643
        %v651 = vpack.c.b16 %v646, %v645
        %v652 = vpack.c.b16 %v648, %v647
        %v658 = vsel %vm519, %v563, 0
        %660 = vmatprep.subr.bf16.mxu0 0
        %661 = vmatpush1.bf16.msra.mxu0 0
        %662 = vmatprep.subr.bf16.mxu0 0
        %663 = vmatpush1.bf16.msra.mxu0 0
        %664 = vmatprep.subr.bf16.mxu0 0
        %665 = vmatpush1.bf16.msra.mxu0 0
        %666 = vmatprep.subr.bf16.mxu0 0
        %667 = vmatpush1.bf16.msra.mxu0 0
        %668 = vmatprep.subr.bf16.mxu0 0
        %669 = vmatpush1.bf16.msra.mxu0 %v652
        %670 = vmatprep.subr.bf16.mxu0 0
        %671 = vmatpush1.bf16.msra.mxu0 %v651
        %672 = vmatprep.subr.bf16.mxu0 0
        %673 = vmatpush1.bf16.msra.mxu0 %v650
        %674 = vmatprep.subr.bf16.mxu0 0
        %675 = vmatpush1.bf16.msra.mxu0 %v649
        %676 = vmatprep.subr.bf16.mxu0 0
        %677 = vmatpush2.bf16.msra.mxu0 0
        %678 = vmatprep.subr.bf16.mxu0 0
        %679 = vmatpush2.bf16.msra.mxu0 0
        %680 = vmatprep.subr.bf16.mxu0 0
        %681 = vmatpush2.bf16.msra.mxu0 0
        %682 = vmatprep.subr.bf16.mxu0 0
        %683 = vmatpush2.bf16.msra.mxu0 0
        %684 = vmatprep.subr.bf16.mxu0 0
        %685 = vmatpush2.bf16.msra.mxu0 0
        %686 = vmatprep.subr.bf16.mxu0 0
        %687 = vmatpush2.bf16.msra.mxu0 0
        %688 = vmatprep.subr.bf16.mxu0 0
        %689 = vmatpush2.bf16.msra.mxu0 0
        %690 = vmatprep.subr.bf16.mxu0 0
        %691 = vmatpush2.bf16.msra.mxu0 0
        %692 = vmatprep.mubr.bf16.mxu0 0
        %693 = vmatmul.mubr.bf16.gmra.mxu0 %v658
        %v694 = vpop.f32.mrf.mxu0
        %v695 = vadd.f32 0.0, %v694
        %v696 = vpop.f32.mrf.mxu0
        %v697 = vpop.f32.mrf.mxu0
        %v698 = vadd.f32 0.0, %v697
        %v699 = vpop.f32.mrf.mxu0
        %700 = vdwg.mxu0
        %v701 = vpack.c.bf16 %v698, %v695
        %v702 = vld [vmem:[%s8] sm:$0xf]
        %v703 = vld [vmem:[%s8 + $0x4] sm:$0xf]
        %v704 = vld [vmem:[%s8 + $0x8] sm:$0xf]
        %v705 = vld [vmem:[%s8 + $0xc] sm:$0xf]
        %v706 = vld [vmem:[%s8 + $0x10] sm:$0xf]
        %v707 = vld [vmem:[%s8 + $0x14] sm:$0xf]
        %v708 = vld [vmem:[%s8 + $0x18] sm:$0xf]
        %v709 = vld [vmem:[%s8 + $0x1c] sm:$0xf]
        %v718 = vunpack.c.l.b16 %v702
        %v719 = vunpack.c.l.b16 %v703
        %v720 = vunpack.c.l.b16 %v704
        %v721 = vunpack.c.l.b16 %v705
        %v722 = vunpack.c.l.b16 %v706
        %v723 = vunpack.c.l.b16 %v707
        %v724 = vunpack.c.l.b16 %v708
        %v725 = vunpack.c.l.b16 %v709
        %v726 = vpack.c.b16 %v719, %v718
        %v727 = vpack.c.b16 %v721, %v720
        %v728 = vpack.c.b16 %v723, %v722
        %v729 = vpack.c.b16 %v725, %v724
        %734 = vmatprep.subr.bf16.mxu0 0
        %735 = vmatpush1.bf16.msra.mxu0 0
        %736 = vmatprep.subr.bf16.mxu0 0
        %737 = vmatpush1.bf16.msra.mxu0 0
        %738 = vmatprep.subr.bf16.mxu0 0
        %739 = vmatpush1.bf16.msra.mxu0 0
        %740 = vmatprep.subr.bf16.mxu0 0
        %741 = vmatpush1.bf16.msra.mxu0 0
        %742 = vmatprep.subr.bf16.mxu0 0
        %743 = vmatpush1.bf16.msra.mxu0 %v729
        %744 = vmatprep.subr.bf16.mxu0 0
        %745 = vmatpush1.bf16.msra.mxu0 %v728
        %746 = vmatprep.subr.bf16.mxu0 0
        %747 = vmatpush1.bf16.msra.mxu0 %v727
        %748 = vmatprep.subr.bf16.mxu0 0
        %749 = vmatpush1.bf16.msra.mxu0 %v726
        %750 = vmatprep.subr.bf16.mxu0 0
        %751 = vmatpush2.bf16.msra.mxu0 0
        %752 = vmatprep.subr.bf16.mxu0 0
        %753 = vmatpush2.bf16.msra.mxu0 0
        %754 = vmatprep.subr.bf16.mxu0 0
        %755 = vmatpush2.bf16.msra.mxu0 0
        %756 = vmatprep.subr.bf16.mxu0 0
        %757 = vmatpush2.bf16.msra.mxu0 0
        %758 = vmatprep.subr.bf16.mxu0 0
        %759 = vmatpush2.bf16.msra.mxu0 0
        %760 = vmatprep.subr.bf16.mxu0 0
        %761 = vmatpush2.bf16.msra.mxu0 0
        %762 = vmatprep.subr.bf16.mxu0 0
        %763 = vmatpush2.bf16.msra.mxu0 0
        %764 = vmatprep.subr.bf16.mxu0 0
        %765 = vmatpush2.bf16.msra.mxu0 0
        %766 = vmatprep.mubr.bf16.mxu0 0
        %767 = vmatmul.mubr.bf16.gmra.mxu0 %v658
        %v768 = vpop.f32.mrf.mxu0
        %v769 = vadd.f32 0.0, %v768
        %v770 = vpop.f32.mrf.mxu0
        %v771 = vpop.f32.mrf.mxu0
        %v772 = vadd.f32 0.0, %v771
        %v773 = vpop.f32.mrf.mxu0
        %774 = vdwg.mxu0
        %v775 = vpack.c.bf16 %v772, %v769
        %v777 = vsel %vm519, %v624, 0
        %v780 = vsel %vm519, %v701, 0
        %782 = vmatprep.subr.bf16.mxu0 0
        %783 = vmatpush1.bf16.xpose.msra.mxu0 0
        %784 = vmatprep.subr.bf16.mxu0 0
        %785 = vmatpush1.bf16.xpose.msra.mxu0 0
        %786 = vmatprep.subr.bf16.mxu0 0
        %787 = vmatpush1.bf16.xpose.msra.mxu0 0
        %788 = vmatprep.subr.bf16.mxu0 0
        %789 = vmatpush1.bf16.xpose.msra.mxu0 0
        %790 = vmatprep.subr.bf16.mxu0 0
        %791 = vmatpush1.bf16.xpose.msra.mxu0 0
        %792 = vmatprep.subr.bf16.mxu0 0
        %793 = vmatpush1.bf16.xpose.msra.mxu0 0
        %794 = vmatprep.subr.bf16.mxu0 0
        %795 = vmatpush1.bf16.xpose.msra.mxu0 0
        %796 = vmatprep.subr.bf16.mxu0 0
        %797 = vmatpush1.bf16.xpose.msra.mxu0 %v780
        %798 = vmatprep.subr.bf16.mxu0 0
        %799 = vmatpush2.bf16.xpose.msra.mxu0 0
        %800 = vmatprep.subr.bf16.mxu0 0
        %801 = vmatpush2.bf16.xpose.msra.mxu0 0
        %802 = vmatprep.subr.bf16.mxu0 0
        %803 = vmatpush2.bf16.xpose.msra.mxu0 0
        %804 = vmatprep.subr.bf16.mxu0 0
        %805 = vmatpush2.bf16.xpose.msra.mxu0 0
        %806 = vmatprep.subr.bf16.mxu0 0
        %807 = vmatpush2.bf16.xpose.msra.mxu0 0
        %808 = vmatprep.subr.bf16.mxu0 0
        %809 = vmatpush2.bf16.xpose.msra.mxu0 0
        %810 = vmatprep.subr.bf16.mxu0 0
        %811 = vmatpush2.bf16.xpose.msra.mxu0 0
        %812 = vmatprep.subr.bf16.mxu0 0
        %813 = vmatpush2.bf16.xpose.msra.mxu0 0
        %814 = vmatprep.mubr.bf16.mxu0 0
        %815 = vmatmul.mubr.bf16.gmra.mxu0 %v777
        %v816 = vpop.f32.mrf.mxu0
        %v817 = vadd.f32 0.0, %v816
        %v818 = vpop.f32.mrf.mxu0
        %v819 = vpop.f32.mrf.mxu0
        %v820 = vpop.f32.mrf.mxu0
        %821 = vdwg.mxu0
        %vm822 = vcmask 130048
        %v823 = vsel %vm822, %v817, -inf
        %824 = vmax.xlane.f32.xlu0 %v823
        %v825 = vpop.xlane.xlu0 %824
        %v826 = vsub.f32 %v817, %v825
        %v827 = vmul.f32 %v826, 1.442695
        %v828 = vpow.pop %v827
        %v829 = vsel %vm822, %v828, 0.0
        %830 = vadd.xlane.f32.xlu0 %v829
        %v831 = vpop.xlane.xlu0 %830
        %v832 = vrcp.pop %v831
        %v833 = vmul.f32 %v828, %v832
        %v834 = vpack.c.bf16 %v833, %v833
        %v836 = vsel %vm822, %v834, 0
        %838 = vmatprep.subr.bf16.mxu0 0
        %839 = vmatpush1.bf16.msra.mxu0 0
        %840 = vmatprep.subr.bf16.mxu0 0
        %841 = vmatpush1.bf16.msra.mxu0 0
        %842 = vmatprep.subr.bf16.mxu0 0
        %843 = vmatpush1.bf16.msra.mxu0 0
        %844 = vmatprep.subr.bf16.mxu0 0
        %845 = vmatpush1.bf16.msra.mxu0 0
        %846 = vmatprep.subr.bf16.mxu0 0
        %847 = vmatpush1.bf16.msra.mxu0 0
        %848 = vmatprep.subr.bf16.mxu0 0
        %849 = vmatpush1.bf16.msra.mxu0 0
        %850 = vmatprep.subr.bf16.mxu0 0
        %851 = vmatpush1.bf16.msra.mxu0 0
        %852 = vmatprep.subr.bf16.mxu0 0
        %853 = vmatpush1.bf16.msra.mxu0 %v775
        %854 = vmatprep.subr.bf16.mxu0 0
        %855 = vmatpush2.bf16.msra.mxu0 0
        %856 = vmatprep.subr.bf16.mxu0 0
        %857 = vmatpush2.bf16.msra.mxu0 0
        %858 = vmatprep.subr.bf16.mxu0 0
        %859 = vmatpush2.bf16.msra.mxu0 0
        %860 = vmatprep.subr.bf16.mxu0 0
        %861 = vmatpush2.bf16.msra.mxu0 0
        %862 = vmatprep.subr.bf16.mxu0 0
        %863 = vmatpush2.bf16.msra.mxu0 0
        %864 = vmatprep.subr.bf16.mxu0 0
        %865 = vmatpush2.bf16.msra.mxu0 0
        %866 = vmatprep.subr.bf16.mxu0 0
        %867 = vmatpush2.bf16.msra.mxu0 0
        %868 = vmatprep.subr.bf16.mxu0 0
        %869 = vmatpush2.bf16.msra.mxu0 0
        %870 = vmatprep.mubr.bf16.mxu0 0
        %871 = vmatmul.mubr.bf16.gmra.mxu0 %v836
        %v872 = vpop.f32.mrf.mxu0
        %v873 = vadd.f32 0.0, %v872
        %v874 = vpop.f32.mrf.mxu0
        %v875 = vpop.f32.mrf.mxu0
        %v876 = vpop.f32.mrf.mxu0
        %877 = vdwg.mxu0
        %v878 = vpack.c.bf16 %v873, %v873
        %v879 = vld [vmem:[%s9] sm:$0xf]
        %v880 = vld [vmem:[%s9 + $0x4] sm:$0xf]
        %v881 = vld [vmem:[%s9 + $0x8] sm:$0xf]
        %v882 = vld [vmem:[%s9 + $0xc] sm:$0xf]
        %v883 = vld [vmem:[%s9 + $0x10] sm:$0xf]
        %v884 = vld [vmem:[%s9 + $0x14] sm:$0xf]
        %v885 = vld [vmem:[%s9 + $0x18] sm:$0xf]
        %v886 = vld [vmem:[%s9 + $0x1c] sm:$0xf]
        %v887 = vld [vmem:[%s10] sm:$0x1]
        %v889 = vlaneseq
        %v890 = vshrl.u32 %v889, 7
        %v891 = vsub.s32 0, %v890
        %v892 = vrot.slane %v887, %v891
        %v902 = vunpack.c.l.b16 %v879
        %v903 = vunpack.c.l.b16 %v880
        %v904 = vunpack.c.l.b16 %v881
        %v905 = vunpack.c.l.b16 %v882
        %v906 = vunpack.c.l.b16 %v883
        %v907 = vunpack.c.l.b16 %v884
        %v908 = vunpack.c.l.b16 %v885
        %v909 = vunpack.c.l.b16 %v886
        %v910 = vpack.c.b16 %v903, %v902
        %v911 = vpack.c.b16 %v905, %v904
        %v912 = vpack.c.b16 %v907, %v906
        %v913 = vpack.c.b16 %v909, %v908
        %v919 = vsel %vm519, %v878, 0
        %921 = vmatprep.subr.bf16.mxu0 0
        %922 = vmatpush1.bf16.msra.mxu0 0
        %923 = vmatprep.subr.bf16.mxu0 0
        %924 = vmatpush1.bf16.msra.mxu0 0
        %925 = vmatprep.subr.bf16.mxu0 0
        %926 = vmatpush1.bf16.msra.mxu0 0
        %927 = vmatprep.subr.bf16.mxu0 0
        %928 = vmatpush1.bf16.msra.mxu0 0
        %929 = vmatprep.subr.bf16.mxu0 0
        %930 = vmatpush1.bf16.msra.mxu0 %v913
        %931 = vmatprep.subr.bf16.mxu0 0
        %932 = vmatpush1.bf16.msra.mxu0 %v912
        %933 = vmatprep.subr.bf16.mxu0 0
        %934 = vmatpush1.bf16.msra.mxu0 %v911
        %935 = vmatprep.subr.bf16.mxu0 0
        %936 = vmatpush1.bf16.msra.mxu0 %v910
        %937 = vmatprep.subr.bf16.mxu0 0
        %938 = vmatpush2.bf16.msra.mxu0 0
        %939 = vmatprep.subr.bf16.mxu0 0
        %940 = vmatpush2.bf16.msra.mxu0 0
        %941 = vmatprep.subr.bf16.mxu0 0
        %942 = vmatpush2.bf16.msra.mxu0 0
        %943 = vmatprep.subr.bf16.mxu0 0
        %944 = vmatpush2.bf16.msra.mxu0 0
        %945 = vmatprep.subr.bf16.mxu0 0
        %946 = vmatpush2.bf16.msra.mxu0 0
        %947 = vmatprep.subr.bf16.mxu0 0
        %948 = vmatpush2.bf16.msra.mxu0 0
        %949 = vmatprep.subr.bf16.mxu0 0
        %950 = vmatpush2.bf16.msra.mxu0 0
        %951 = vmatprep.subr.bf16.mxu0 0
        %952 = vmatpush2.bf16.msra.mxu0 0
        %953 = vmatprep.mubr.bf16.mxu0 0
        %954 = vmatmul.mubr.bf16.gmra.mxu0 %v919
        %v955 = vpop.f32.mrf.mxu0
        %v956 = vadd.f32 %v892, %v955
        %v957 = vpop.f32.mrf.mxu0
        %v958 = vpop.f32.mrf.mxu0
        %v959 = vpop.f32.mrf.mxu0
        %960 = vdwg.mxu0
        %v961 = vpack.c.bf16 %v956, %v956
        %v962 = vld [vmem:[%s11] sm:$0xf]
        %v963 = vld [vmem:[%s11 + $0x4] sm:$0xf]
        %v964 = vld [vmem:[%s11 + $0x8] sm:$0xf]
        %v965 = vld [vmem:[%s11 + $0xc] sm:$0xf]
        %v966 = vld [vmem:[%s12] sm:$0x1]
        %v968 = vlaneseq
        %v969 = vshrl.u32 %v968, 7
        %v970 = vsub.s32 0, %v969
        %v971 = vrot.slane %v966, %v970
        %v977 = vunpack.c.l.b16 %v962
        %v978 = vunpack.c.l.b16 %v963
        %v979 = vunpack.c.l.b16 %v964
        %v980 = vunpack.c.l.b16 %v965
        %v981 = vpack.c.b16 %v978, %v977
        %v982 = vpack.c.b16 %v980, %v979
        %v986 = vsel %vm485, %v961, 0
        %988 = vmatprep.subr.bf16.mxu0 0
        %989 = vmatpush1.bf16.msra.mxu0 0
        %990 = vmatprep.subr.bf16.mxu0 0
        %991 = vmatpush1.bf16.msra.mxu0 0
        %992 = vmatprep.subr.bf16.mxu0 0
        %993 = vmatpush1.bf16.msra.mxu0 0
        %994 = vmatprep.subr.bf16.mxu0 0
        %995 = vmatpush1.bf16.msra.mxu0 0
        %996 = vmatprep.subr.bf16.mxu0 0
        %997 = vmatpush1.bf16.msra.mxu0 0
        %998 = vmatprep.subr.bf16.mxu0 0
        %999 = vmatpush1.bf16.msra.mxu0 0
        %1000 = vmatprep.subr.bf16.mxu0 0
        %1001 = vmatpush1.bf16.msra.mxu0 %v982
        %1002 = vmatprep.subr.bf16.mxu0 0
        %1003 = vmatpush1.bf16.msra.mxu0 %v981
        %1004 = vmatprep.subr.bf16.mxu0 0
        %1005 = vmatpush2.bf16.msra.mxu0 0
        %1006 = vmatprep.subr.bf16.mxu0 0
        %1007 = vmatpush2.bf16.msra.mxu0 0
        %1008 = vmatprep.subr.bf16.mxu0 0
        %1009 = vmatpush2.bf16.msra.mxu0 0
        %1010 = vmatprep.subr.bf16.mxu0 0
        %1011 = vmatpush2.bf16.msra.mxu0 0
        %1012 = vmatprep.subr.bf16.mxu0 0
        %1013 = vmatpush2.bf16.msra.mxu0 0
        %1014 = vmatprep.subr.bf16.mxu0 0
        %1015 = vmatpush2.bf16.msra.mxu0 0
        %1016 = vmatprep.subr.bf16.mxu0 0
        %1017 = vmatpush2.bf16.msra.mxu0 0
        %1018 = vmatprep.subr.bf16.mxu0 0
        %1019 = vmatpush2.bf16.msra.mxu0 0
        %1020 = vmatprep.mubr.bf16.mxu0 0
        %1021 = vmatmul.mubr.bf16.gmra.mxu0 %v986
        %v1022 = vpop.f32.mrf.mxu0
        %v1023 = vadd.f32 %v971, %v1022
        %v1024 = vpop.f32.mrf.mxu0
        %v1025 = vpop.f32.mrf.mxu0
        %v1026 = vpop.f32.mrf.mxu0
        %1027 = vdwg.mxu0
        %1028 = vst [vmem:[%s468] sm:$0xff] %v1023
        %s1029 = sand.u32 %s334, 1
        %s1030 = scalar_lea.sflag [#allocation3], %s1029
        %s1031 = sand.u32 %s334, 1
        %s1032 = smul.addr %s1031, 8
        %s1033 = scalar_lea.vmem [#allocation2], %s1032
        // Predicated region
        $region73: #{_lambda_.5} parent=71 // pred_check
          %p1034 = pneg %p344
        $region74: #{_lambda_.5} parent=71 // pred_check_branch
          %1036 = sbr.rel (%p1034) target = $region76
        $region75: #{_lambda_.5} parent=71 // pred_region
          %s1038 = ssub.s32 128, 128
          %1039 = vsyncadd %s1030, %s1038
          %s1040 = sadd.s32 %s32, %s31
          %s1041 = smul.addr %s1040, 128
          %s1042 = scalar_lea.hbm %s13, %s1041
          %s1044 = sshll.u32 %s1033, 4
          %s1045 = int_to_ptr.vmem [resolvable:$true] %s1044
          %1047 = dma.vmem_to_hbm [thread:$0]  %s1045, 128, %s1042, %s1030
        $region76: #{_lambda_.5} parent=71 // pred_fallthru
          _
      $region72: #{_lambda_.5} parent=5 // pred_fallthru
        _
      %p1048 = scmp.le.s32.totalorder 2, %s22
      // Predicated region
      $region77: #{_lambda_.5} parent=5 // pred_check
        %p1049 = pneg %p1048
      $region78: #{_lambda_.5} parent=5 // pred_check_branch
        %1051 = sbr.rel (%p1049) target = $region80
      $region79: #{_lambda_.5} parent=5 // pred_region
        %s1052 = ssub.s32 %s22, 2
        // Predicated region
        $region81: #{_lambda_.5} parent=79 // pred_check
          %p1053 = pneg %p350
        $region82: #{_lambda_.5} parent=79 // pred_check_branch
          %1055 = sbr.rel (%p1053) target = $region84
        $region83: #{_lambda_.5} parent=79 // pred_region
          %s1056 = sand.u32 %s335, 1
          %s1057 = scalar_lea.sflag [#allocation3], %s1056
          %s1058 = sand.u32 %s335, 1
          %s1059 = smul.addr %s1058, 8
          %s1060 = scalar_lea.vmem [#allocation2], %s1059
          %1061 = dma.done %s1057, 128
        $region84: #{_lambda_.5} parent=79 // pred_fallthru
          _
      $region80: #{_lambda_.5} parent=5 // pred_fallthru
        _
    $region6: #{_lambda_.5} parent=1 // loop_footer
      %s26 = sadd.s32 1, %s22
    $region7: #{_lambda_.5} parent=1 // loop_footer_branch
      %21 = sbr.rel target = $region3
    $region8: #{_lambda_.5} parent=1 // loop_exit
      _
    %1062 = vsyncpa [#allocation3], 1
    %s1063 = scalar_lea.sflag [#allocation3], 1
    %1064 = vsyncpa %s1063, 1

// kernel: _lambda_.3
$region0: #{_lambda_.3}
  #allocation0 [shape = 'u32[]', space=smem, size = 0x4, offset = 0x4, fixed_abs, tag = 'smem constant byte address 0x4 - core index']
  #allocation1 [shape = 'u32[144,128]{1,0:T(1,128)}', space=vmem, size = 0x12000, scoped, tag = 'internal scratch']
  #allocation2 [shape = 'bf16[16,64]{1,0:T(8,128)(2,1)}', space=vmem, size = 0x1000, scoped, tag = 'scratch operand']
  #allocation3 [shape = 'f32[16,1]{1,0:T(8,128)}', space=vmem, size = 0x2000, scoped, tag = 'scratch operand']
  #allocation4 [shape = 'f32[16,1]{1,0:T(8,128)}', space=vmem, size = 0x2000, scoped, tag = 'scratch operand']
  #allocation5 [shape = 'f32[16,64]{1,0:T(8,128)}', space=vmem, size = 0x2000, scoped, tag = 'scratch operand']
  %s0 = inlined_call_operand.hbm [shape: f32[1,16,64], index: 0, kind: input, shape index: {}]
  %s1 = inlined_call_operand.hbm [shape: f32[2,8,32], index: 1, kind: input, shape index: {}]
  %s2 = inlined_call_operand.vmem [shape: f32[1,64], index: 2, kind: input, shape index: {}, may-alias: {2,11}]
  %s3 = inlined_call_operand.vmem [shape: f32[1,64], index: 3, kind: input, shape index: {}, may-alias: {3,12}]
  %s4 = inlined_call_operand.vmem [shape: f32[1,32], index: 4, kind: input, shape index: {}]
  %s5 = inlined_call_operand.vmem [shape: f32[1,32], index: 5, kind: input, shape index: {}]
  %s6 = inlined_call_operand.hbm [shape: bf16[64,64], index: 6, kind: input, shape index: {}]
  %s7 = inlined_call_operand.hbm [shape: bf16[32,64], index: 7, kind: input, shape index: {}]
  %s8 = inlined_call_operand.vmem [shape: bf16[32,64], index: 8, kind: input, shape index: {}]
  %s9 = inlined_call_operand.vmem [shape: bf16[64,64], index: 9, kind: input, shape index: {}]
  %s10 = inlined_call_operand.hbm [shape: f32[1,64], index: 10, kind: input, shape index: {}]
  %s11 = inlined_call_operand.vmem [shape: f32[1,64], index: 11, kind: input, shape index: {}, may-alias: {2,11}]
  %s12 = inlined_call_operand.vmem [shape: f32[1,64], index: 12, kind: input, shape index: {}, may-alias: {3,12}]
  %s13 = inlined_call_operand.hbm [shape: bf16[64,512], index: 13, kind: input, shape index: {}]
  %s14 = inlined_call_operand.vmem [shape: f32[1,512], index: 14, kind: input, shape index: {}]
  %s15 = inlined_call_operand.hbm [shape: bf16[256,64], index: 15, kind: input, shape index: {}]
  %s16 = inlined_call_operand.vmem [shape: f32[1,64], index: 16, kind: input, shape index: {}]
  %s17 = inlined_call_operand.vmem [shape: f32[2,16,64], index: 17, kind: output, shape index: {}]
  %s18 = sld [smem:[#allocation0]]
  $region137: #{_lambda_.3} parent=0
    _
  %s20 = ssub.s32 1, %s18
  %s21 = scalar_select 0, %s20, %s18
  $region1: #{_lambda_.3} parent=0
    #allocation6 [shape = 'u8[8192]{0}', space=vmem, size = 0x2000, scoped, tag = 'input window, operand 0, single buffered']
    #allocation7 [shape = 's32[2]{0}', space=sflag, size = 0x8, scoped, tag = 'scoped memory for _lambda_.3']
    #allocation8 [shape = 'u8[8192]{0}', space=vmem, size = 0x2000, scoped, tag = 'input window, operand 1']
    #allocation9 [shape = 's32[2]{0}', space=sflag, size = 0x8, scoped, tag = 'scoped memory for _lambda_.3']
    #allocation10 [shape = 'u8[16384]{0}', space=vmem, size = 0x4000, scoped, tag = 'input window, operand 6, single buffered']
    #allocation11 [shape = 'u8[8192]{0}', space=vmem, size = 0x2000, scoped, tag = 'input window, operand 7, single buffered']
    #allocation12 [shape = 's32[1]{0}', space=sflag, size = 0x4, scoped, tag = 'scoped memory for _lambda_.3']
    #allocation13 [shape = 'u8[512]{0}', space=vmem, size = 0x400, scoped, tag = 'input window, operand 10, single buffered']
    #allocation14 [shape = 'u8[65536]{0}', space=vmem, size = 0x10000, scoped, tag = 'input window, operand 13, single buffered']
    #allocation15 [shape = 's32[1]{0}', space=sflag, size = 0x4, scoped, tag = 'scoped memory for _lambda_.3']
    #allocation16 [shape = 'u8[65536]{0}', space=vmem, size = 0x10000, scoped, tag = 'input window, operand 15, single buffered']
    %22 = vsyncpa [#allocation7], 0
    %23 = vsyncpa [#allocation9], 0
    %s24 = scalar_lea.sflag [#allocation9], 1
    %25 = vsyncpa %s24, 0
    %26 = vsyncpa [#allocation12], 0
    %27 = vsyncpa [#allocation15], 0
    loop: start=0, step=1, limit=4
    $region2: #{_lambda_.3} parent=1 // loop_pre_header
      _
    $region3: #{_lambda_.3} parent=1 // loop_header
      %s29 = sphi 0, %s33
      %p30 = scmp.ge.s32.totalorder %s29, 4
      %s36 = sphi 0, %s48
      %s37 = sphi 0, %s44
      %s38 = sphi 0, %s36
      %s39 = sphi 0, %s37
      %s40 = sphi 0, %s38
      %s41 = sphi 0, %s39
      %s49 = sphi 0, %s49
      %s51 = sphi 0, %s49
      %s52 = sphi 0, %s51
      %s66 = sphi 0, %s52
      %s74 = sphi 0, %s76
      %s77 = sphi 0, %s74
      %s78 = sphi 0, %s77
      %s94 = sphi 0, %s78
      %s98 = sphi 0, %s98
      %s100 = sphi 0, %s98
      %s101 = sphi 0, %s100
      %s115 = sphi 0, %s101
      %s119 = sphi 0, %s119
      %s121 = sphi 0, %s119
      %s122 = sphi 0, %s121
      %s136 = sphi 0, %s122
      %s140 = sphi 0, %s140
      %s142 = sphi 0, %s140
      %s143 = sphi 0, %s142
      %s157 = sphi 0, %s143
      %s161 = sphi 0, %s161
      %s163 = sphi 0, %s161
      %s164 = sphi 0, %s163
      %s178 = sphi 0, %s164
      %s182 = sphi 0, %s182
      %s184 = sphi 0, %s182
      %s185 = sphi 0, %s184
      %s199 = sphi 0, %s185
      %s203 = sphi 0, %s203
      %s205 = sphi 0, %s203
      %s206 = sphi 0, %s205
      %s220 = sphi 0, %s206
      %s224 = sphi 0, %s224
      %s226 = sphi 0, %s224
      %s227 = sphi 0, %s226
      %s241 = sphi 0, %s227
      %s245 = sphi 0, %s245
      %s247 = sphi 0, %s245
      %s248 = sphi 0, %s247
      %s262 = sphi 0, %s248
      %s266 = sphi 0, %s266
      %s268 = sphi 0, %s266
      %s269 = sphi 0, %s268
      %s283 = sphi 0, %s269
      %s287 = sphi 0, %s287
      %s289 = sphi 0, %s287
      %s290 = sphi 0, %s289
      %s304 = sphi 0, %s290
      %s308 = sphi 0, %s308
      %s310 = sphi 0, %s308
      %s311 = sphi 0, %s310
      %s325 = sphi 0, %s311
      %s329 = sphi 0, %s329
      %s331 = sphi 0, %s329
      %s332 = sphi 0, %s331
      %s346 = sphi 0, %s332
      %s350 = sphi 0, %s350
      %s352 = sphi 0, %s350
      %s353 = sphi 0, %s352
      %s367 = sphi 0, %s353
      %s371 = sphi 0, %s371
      %s373 = sphi 0, %s371
      %s374 = sphi 0, %s373
      %s388 = sphi 0, %s374
      %s392 = sphi 0, %s392
      %s394 = sphi 0, %s392
      %s395 = sphi 0, %s394
      %s409 = sphi 0, %s395
      %s415 = sphi 0, %s417
      %s418 = sphi 0, %s415
      %s419 = sphi 0, %s418
      %s435 = sphi 0, %s419
    $region4: #{_lambda_.3} parent=1 // loop_header_branch
      %32 = sbr.rel (%p30) target = $region8
    $region5: #{_lambda_.3} parent=1 // loop_body
      %s34 = ssub.s32 %s29, 1
      %s35 = ssub.s32 %s29, 2
      %s42 = sadd.s32 1, %s37
      %p43 = scmp.ge.s32.totalorder %s42, 1
      %s44 = scalar_select %p43, 0, %s42
      %s45 = sadd.s32 1, %s36
      %s46 = scalar_select %p43, %s45, %s36
      %p47 = scmp.ge.s32.totalorder %s46, 2
      %s48 = scalar_select %p47, 0, %s46
      %s50 = sadd.s32 %s49, 1
      %p53 = scmp.eq.s32.totalorder %s29, 1
      %p54 = scmp.ne.s32.totalorder %s49, %s51
      %p55 = scmp.eq.s32.totalorder %s29, 0
      %p56 = por %p54, %p55
      %p57 = scmp.ne.s32.totalorder %s49, %s51
      %p58 = scmp.eq.s32.totalorder %s34, 1
      %p59 = por %p57, %p58
      %p60 = scmp.ne.s32.totalorder %s51, %s52
      %p61 = scmp.eq.s32.totalorder %s34, 0
      %p62 = por %p60, %p61
      %p63 = scmp.ne.s32.totalorder %s51, %s52
      %p64 = scmp.eq.s32.totalorder %s35, 1
      %p65 = por %p63, %p64
      %p67 = scmp.ne.s32.totalorder %s52, %s66
      %p68 = scmp.eq.s32.totalorder %s35, 0
      %p69 = por %p67, %p68
      %s70 = ssub.s32 %s36, %s48
      %s71 = ssub.s32 %s37, %s44
      %s72 = sor.u32 %s70, %s71
      %p73 = scmp.eq.s32.totalorder %s72, 0
      %s75 = sadd.s32 %s74, 1
      %s76 = scalar_select %p73, %s74, %s75
      %p79 = pneg %p73
      %p80 = scmp.eq.s32.totalorder %s29, 1
      %p81 = por %p79, %p80
      %p82 = scmp.ne.s32.totalorder %s74, %s77
      %p83 = scmp.eq.s32.totalorder %s29, 0
      %p84 = por %p82, %p83
      %p85 = scmp.ne.s32.totalorder %s74, %s77
      %p86 = scmp.eq.s32.totalorder %s34, 1
      %p87 = por %p85, %p86
      %p88 = scmp.ne.s32.totalorder %s77, %s78
      %p89 = scmp.eq.s32.totalorder %s34, 0
      %p90 = por %p88, %p89
      %p91 = scmp.ne.s32.totalorder %s77, %s78
      %p92 = scmp.eq.s32.totalorder %s35, 1
      %p93 = por %p91, %p92
      %p95 = scmp.ne.s32.totalorder %s78, %s94
      %p96 = scmp.eq.s32.totalorder %s35, 0
      %p97 = por %p95, %p96
      %s99 = sadd.s32 %s98, 1
      %p102 = scmp.eq.s32.totalorder %s29, 1
      %p103 = scmp.ne.s32.totalorder %s98, %s100
      %p104 = scmp.eq.s32.totalorder %s29, 0
      %p105 = por %p103, %p104
      %p106 = scmp.ne.s32.totalorder %s98, %s100
      %p107 = scmp.eq.s32.totalorder %s34, 1
      %p108 = por %p106, %p107
      %p109 = scmp.ne.s32.totalorder %s100, %s101
      %p110 = scmp.eq.s32.totalorder %s34, 0
      %p111 = por %p109, %p110
      %p112 = scmp.ne.s32.totalorder %s100, %s101
      %p113 = scmp.eq.s32.totalorder %s35, 1
      %p114 = por %p112, %p113
      %p116 = scmp.ne.s32.totalorder %s101, %s115
      %p117 = scmp.eq.s32.totalorder %s35, 0
      %p118 = por %p116, %p117
      %s120 = sadd.s32 %s119, 1
      %p123 = scmp.eq.s32.totalorder %s29, 1
      %p124 = scmp.ne.s32.totalorder %s119, %s121
      %p125 = scmp.eq.s32.totalorder %s29, 0
      %p126 = por %p124, %p125
      %p127 = scmp.ne.s32.totalorder %s119, %s121
      %p128 = scmp.eq.s32.totalorder %s34, 1
      %p129 = por %p127, %p128
      %p130 = scmp.ne.s32.totalorder %s121, %s122
      %p131 = scmp.eq.s32.totalorder %s34, 0
      %p132 = por %p130, %p131
      %p133 = scmp.ne.s32.totalorder %s121, %s122
      %p134 = scmp.eq.s32.totalorder %s35, 1
      %p135 = por %p133, %p134
      %p137 = scmp.ne.s32.totalorder %s122, %s136
      %p138 = scmp.eq.s32.totalorder %s35, 0
      %p139 = por %p137, %p138
      %s141 = sadd.s32 %s140, 1
      %p144 = scmp.eq.s32.totalorder %s29, 1
      %p145 = scmp.ne.s32.totalorder %s140, %s142
      %p146 = scmp.eq.s32.totalorder %s29, 0
      %p147 = por %p145, %p146
      %p148 = scmp.ne.s32.totalorder %s140, %s142
      %p149 = scmp.eq.s32.totalorder %s34, 1
      %p150 = por %p148, %p149
      %p151 = scmp.ne.s32.totalorder %s142, %s143
      %p152 = scmp.eq.s32.totalorder %s34, 0
      %p153 = por %p151, %p152
      %p154 = scmp.ne.s32.totalorder %s142, %s143
      %p155 = scmp.eq.s32.totalorder %s35, 1
      %p156 = por %p154, %p155
      %p158 = scmp.ne.s32.totalorder %s143, %s157
      %p159 = scmp.eq.s32.totalorder %s35, 0
      %p160 = por %p158, %p159
      %s162 = sadd.s32 %s161, 1
      %p165 = scmp.eq.s32.totalorder %s29, 1
      %p166 = scmp.ne.s32.totalorder %s161, %s163
      %p167 = scmp.eq.s32.totalorder %s29, 0
      %p168 = por %p166, %p167
      %p169 = scmp.ne.s32.totalorder %s161, %s163
      %p170 = scmp.eq.s32.totalorder %s34, 1
      %p171 = por %p169, %p170
      %p172 = scmp.ne.s32.totalorder %s163, %s164
      %p173 = scmp.eq.s32.totalorder %s34, 0
      %p174 = por %p172, %p173
      %p175 = scmp.ne.s32.totalorder %s163, %s164
      %p176 = scmp.eq.s32.totalorder %s35, 1
      %p177 = por %p175, %p176
      %p179 = scmp.ne.s32.totalorder %s164, %s178
      %p180 = scmp.eq.s32.totalorder %s35, 0
      %p181 = por %p179, %p180
      %s183 = sadd.s32 %s182, 1
      %p186 = scmp.eq.s32.totalorder %s29, 1
      %p187 = scmp.ne.s32.totalorder %s182, %s184
      %p188 = scmp.eq.s32.totalorder %s29, 0
      %p189 = por %p187, %p188
      %p190 = scmp.ne.s32.totalorder %s182, %s184
      %p191 = scmp.eq.s32.totalorder %s34, 1
      %p192 = por %p190, %p191
      %p193 = scmp.ne.s32.totalorder %s184, %s185
      %p194 = scmp.eq.s32.totalorder %s34, 0
      %p195 = por %p193, %p194
      %p196 = scmp.ne.s32.totalorder %s184, %s185
      %p197 = scmp.eq.s32.totalorder %s35, 1
      %p198 = por %p196, %p197
      %p200 = scmp.ne.s32.totalorder %s185, %s199
      %p201 = scmp.eq.s32.totalorder %s35, 0
      %p202 = por %p200, %p201
      %s204 = sadd.s32 %s203, 1
      %p207 = scmp.eq.s32.totalorder %s29, 1
      %p208 = scmp.ne.s32.totalorder %s203, %s205
      %p209 = scmp.eq.s32.totalorder %s29, 0
      %p210 = por %p208, %p209
      %p211 = scmp.ne.s32.totalorder %s203, %s205
      %p212 = scmp.eq.s32.totalorder %s34, 1
      %p213 = por %p211, %p212
      %p214 = scmp.ne.s32.totalorder %s205, %s206
      %p215 = scmp.eq.s32.totalorder %s34, 0
      %p216 = por %p214, %p215
      %p217 = scmp.ne.s32.totalorder %s205, %s206
      %p218 = scmp.eq.s32.totalorder %s35, 1
      %p219 = por %p217, %p218
      %p221 = scmp.ne.s32.totalorder %s206, %s220
      %p222 = scmp.eq.s32.totalorder %s35, 0
      %p223 = por %p221, %p222
      %s225 = sadd.s32 %s224, 1
      %p228 = scmp.eq.s32.totalorder %s29, 1
      %p229 = scmp.ne.s32.totalorder %s224, %s226
      %p230 = scmp.eq.s32.totalorder %s29, 0
      %p231 = por %p229, %p230
      %p232 = scmp.ne.s32.totalorder %s224, %s226
      %p233 = scmp.eq.s32.totalorder %s34, 1
      %p234 = por %p232, %p233
      %p235 = scmp.ne.s32.totalorder %s226, %s227
      %p236 = scmp.eq.s32.totalorder %s34, 0
      %p237 = por %p235, %p236
      %p238 = scmp.ne.s32.totalorder %s226, %s227
      %p239 = scmp.eq.s32.totalorder %s35, 1
      %p240 = por %p238, %p239
      %p242 = scmp.ne.s32.totalorder %s227, %s241
      %p243 = scmp.eq.s32.totalorder %s35, 0
      %p244 = por %p242, %p243
      %s246 = sadd.s32 %s245, 1
      %p249 = scmp.eq.s32.totalorder %s29, 1
      %p250 = scmp.ne.s32.totalorder %s245, %s247
      %p251 = scmp.eq.s32.totalorder %s29, 0
      %p252 = por %p250, %p251
      %p253 = scmp.ne.s32.totalorder %s245, %s247
      %p254 = scmp.eq.s32.totalorder %s34, 1
      %p255 = por %p253, %p254
      %p256 = scmp.ne.s32.totalorder %s247, %s248
      %p257 = scmp.eq.s32.totalorder %s34, 0
      %p258 = por %p256, %p257
      %p259 = scmp.ne.s32.totalorder %s247, %s248
      %p260 = scmp.eq.s32.totalorder %s35, 1
      %p261 = por %p259, %p260
      %p263 = scmp.ne.s32.totalorder %s248, %s262
      %p264 = scmp.eq.s32.totalorder %s35, 0
      %p265 = por %p263, %p264
      %s267 = sadd.s32 %s266, 1
      %p270 = scmp.eq.s32.totalorder %s29, 1
      %p271 = scmp.ne.s32.totalorder %s266, %s268
      %p272 = scmp.eq.s32.totalorder %s29, 0
      %p273 = por %p271, %p272
      %p274 = scmp.ne.s32.totalorder %s266, %s268
      %p275 = scmp.eq.s32.totalorder %s34, 1
      %p276 = por %p274, %p275
      %p277 = scmp.ne.s32.totalorder %s268, %s269
      %p278 = scmp.eq.s32.totalorder %s34, 0
      %p279 = por %p277, %p278
      %p280 = scmp.ne.s32.totalorder %s268, %s269
      %p281 = scmp.eq.s32.totalorder %s35, 1
      %p282 = por %p280, %p281
      %p284 = scmp.ne.s32.totalorder %s269, %s283
      %p285 = scmp.eq.s32.totalorder %s35, 0
      %p286 = por %p284, %p285
      %s288 = sadd.s32 %s287, 1
      %p291 = scmp.eq.s32.totalorder %s29, 1
      %p292 = scmp.ne.s32.totalorder %s287, %s289
      %p293 = scmp.eq.s32.totalorder %s29, 0
      %p294 = por %p292, %p293
      %p295 = scmp.ne.s32.totalorder %s287, %s289
      %p296 = scmp.eq.s32.totalorder %s34, 1
      %p297 = por %p295, %p296
      %p298 = scmp.ne.s32.totalorder %s289, %s290
      %p299 = scmp.eq.s32.totalorder %s34, 0
      %p300 = por %p298, %p299
      %p301 = scmp.ne.s32.totalorder %s289, %s290
      %p302 = scmp.eq.s32.totalorder %s35, 1
      %p303 = por %p301, %p302
      %p305 = scmp.ne.s32.totalorder %s290, %s304
      %p306 = scmp.eq.s32.totalorder %s35, 0
      %p307 = por %p305, %p306
      %s309 = sadd.s32 %s308, 1
      %p312 = scmp.eq.s32.totalorder %s29, 1
      %p313 = scmp.ne.s32.totalorder %s308, %s310
      %p314 = scmp.eq.s32.totalorder %s29, 0
      %p315 = por %p313, %p314
      %p316 = scmp.ne.s32.totalorder %s308, %s310
      %p317 = scmp.eq.s32.totalorder %s34, 1
      %p318 = por %p316, %p317
      %p319 = scmp.ne.s32.totalorder %s310, %s311
      %p320 = scmp.eq.s32.totalorder %s34, 0
      %p321 = por %p319, %p320
      %p322 = scmp.ne.s32.totalorder %s310, %s311
      %p323 = scmp.eq.s32.totalorder %s35, 1
      %p324 = por %p322, %p323
      %p326 = scmp.ne.s32.totalorder %s311, %s325
      %p327 = scmp.eq.s32.totalorder %s35, 0
      %p328 = por %p326, %p327
      %s330 = sadd.s32 %s329, 1
      %p333 = scmp.eq.s32.totalorder %s29, 1
      %p334 = scmp.ne.s32.totalorder %s329, %s331
      %p335 = scmp.eq.s32.totalorder %s29, 0
      %p336 = por %p334, %p335
      %p337 = scmp.ne.s32.totalorder %s329, %s331
      %p338 = scmp.eq.s32.totalorder %s34, 1
      %p339 = por %p337, %p338
      %p340 = scmp.ne.s32.totalorder %s331, %s332
      %p341 = scmp.eq.s32.totalorder %s34, 0
      %p342 = por %p340, %p341
      %p343 = scmp.ne.s32.totalorder %s331, %s332
      %p344 = scmp.eq.s32.totalorder %s35, 1
      %p345 = por %p343, %p344
      %p347 = scmp.ne.s32.totalorder %s332, %s346
      %p348 = scmp.eq.s32.totalorder %s35, 0
      %p349 = por %p347, %p348
      %s351 = sadd.s32 %s350, 1
      %p354 = scmp.eq.s32.totalorder %s29, 1
      %p355 = scmp.ne.s32.totalorder %s350, %s352
      %p356 = scmp.eq.s32.totalorder %s29, 0
      %p357 = por %p355, %p356
      %p358 = scmp.ne.s32.totalorder %s350, %s352
      %p359 = scmp.eq.s32.totalorder %s34, 1
      %p360 = por %p358, %p359
      %p361 = scmp.ne.s32.totalorder %s352, %s353
      %p362 = scmp.eq.s32.totalorder %s34, 0
      %p363 = por %p361, %p362
      %p364 = scmp.ne.s32.totalorder %s352, %s353
      %p365 = scmp.eq.s32.totalorder %s35, 1
      %p366 = por %p364, %p365
      %p368 = scmp.ne.s32.totalorder %s353, %s367
      %p369 = scmp.eq.s32.totalorder %s35, 0
      %p370 = por %p368, %p369
      %s372 = sadd.s32 %s371, 1
      %p375 = scmp.eq.s32.totalorder %s29, 1
      %p376 = scmp.ne.s32.totalorder %s371, %s373
      %p377 = scmp.eq.s32.totalorder %s29, 0
      %p378 = por %p376, %p377
      %p379 = scmp.ne.s32.totalorder %s371, %s373
      %p380 = scmp.eq.s32.totalorder %s34, 1
      %p381 = por %p379, %p380
      %p382 = scmp.ne.s32.totalorder %s373, %s374
      %p383 = scmp.eq.s32.totalorder %s34, 0
      %p384 = por %p382, %p383
      %p385 = scmp.ne.s32.totalorder %s373, %s374
      %p386 = scmp.eq.s32.totalorder %s35, 1
      %p387 = por %p385, %p386
      %p389 = scmp.ne.s32.totalorder %s374, %s388
      %p390 = scmp.eq.s32.totalorder %s35, 0
      %p391 = por %p389, %p390
      %s393 = sadd.s32 %s392, 1
      %p396 = scmp.eq.s32.totalorder %s29, 1
      %p397 = scmp.ne.s32.totalorder %s392, %s394
      %p398 = scmp.eq.s32.totalorder %s29, 0
      %p399 = por %p397, %p398
      %p400 = scmp.ne.s32.totalorder %s392, %s394
      %p401 = scmp.eq.s32.totalorder %s34, 1
      %p402 = por %p400, %p401
      %p403 = scmp.ne.s32.totalorder %s394, %s395
      %p404 = scmp.eq.s32.totalorder %s34, 0
      %p405 = por %p403, %p404
      %p406 = scmp.ne.s32.totalorder %s394, %s395
      %p407 = scmp.eq.s32.totalorder %s35, 1
      %p408 = por %p406, %p407
      %p410 = scmp.ne.s32.totalorder %s395, %s409
      %p411 = scmp.eq.s32.totalorder %s35, 0
      %p412 = por %p410, %p411
      %s413 = ssub.s32 %s36, %s48
      %p414 = scmp.eq.s32.totalorder %s413, 0
      %s416 = sadd.s32 %s415, 1
      %s417 = scalar_select %p414, %s415, %s416
      %p420 = pneg %p414
      %p421 = scmp.eq.s32.totalorder %s29, 1
      %p422 = por %p420, %p421
      %p423 = scmp.ne.s32.totalorder %s415, %s418
      %p424 = scmp.eq.s32.totalorder %s29, 0
      %p425 = por %p423, %p424
      %p426 = scmp.ne.s32.totalorder %s415, %s418
      %p427 = scmp.eq.s32.totalorder %s34, 1
      %p428 = por %p426, %p427
      %p429 = scmp.ne.s32.totalorder %s418, %s419
      %p430 = scmp.eq.s32.totalorder %s34, 0
      %p431 = por %p429, %p430
      %p432 = scmp.ne.s32.totalorder %s418, %s419
      %p433 = scmp.eq.s32.totalorder %s35, 1
      %p434 = por %p432, %p433
      %p436 = scmp.ne.s32.totalorder %s419, %s435
      %p437 = scmp.eq.s32.totalorder %s35, 0
      %p438 = por %p436, %p437
      %p439 = scmp.le.s32.totalorder 1, %s29
      %p440 = scmp.lt.s32.totalorder %s29, 3
      %p441 = pnand %p439, %p440
      %p442 = pneg %p441
      // Predicated region
      $region9: #{_lambda_.3} parent=5 // pred_check
        _
      $region10: #{_lambda_.3} parent=5 // pred_check_branch
        %444 = sbr.rel (%p441) target = $region12
      $region11: #{_lambda_.3} parent=5 // pred_region
        %s445 = ssub.s32 %s29, 1
        // Predicated region
        $region13: #{_lambda_.3} parent=11 // pred_check
          %p446 = pneg %p62
        $region14: #{_lambda_.3} parent=11 // pred_check_branch
          %448 = sbr.rel (%p446) target = $region16
        $region15: #{_lambda_.3} parent=11 // pred_region
          %s450 = ssub.s32 256, 256
          %451 = vsyncadd [#allocation7], %s450
          %s452 = sshll.u32 [#allocation6], 4
          %s453 = int_to_ptr.vmem [resolvable:$true] %s452
          %458 = dma.hbm_to_vmem [thread:$0]  %s0, 256, %s453, [#allocation7], 128, 128, 8
        $region16: #{_lambda_.3} parent=11 // pred_fallthru
          _
        // Predicated region
        $region17: #{_lambda_.3} parent=11 // pred_check
          %p459 = pneg %p111
        $region18: #{_lambda_.3} parent=11 // pred_check_branch
          %461 = sbr.rel (%p459) target = $region20
        $region19: #{_lambda_.3} parent=11 // pred_region
          _
        $region20: #{_lambda_.3} parent=11 // pred_fallthru
          _
        // Predicated region
        $region21: #{_lambda_.3} parent=11 // pred_check
          %p462 = pneg %p132
        $region22: #{_lambda_.3} parent=11 // pred_check_branch
          %464 = sbr.rel (%p462) target = $region24
        $region23: #{_lambda_.3} parent=11 // pred_region
          _
        $region24: #{_lambda_.3} parent=11 // pred_fallthru
          _
        // Predicated region
        $region25: #{_lambda_.3} parent=11 // pred_check
          %p465 = pneg %p153
        $region26: #{_lambda_.3} parent=11 // pred_check_branch
          %467 = sbr.rel (%p465) target = $region28
        $region27: #{_lambda_.3} parent=11 // pred_region
          _
        $region28: #{_lambda_.3} parent=11 // pred_fallthru
          _
        // Predicated region
        $region29: #{_lambda_.3} parent=11 // pred_check
          %p468 = pneg %p174
        $region30: #{_lambda_.3} parent=11 // pred_check_branch
          %470 = sbr.rel (%p468) target = $region32
        $region31: #{_lambda_.3} parent=11 // pred_region
          _
        $region32: #{_lambda_.3} parent=11 // pred_fallthru
          _
        // Predicated region
        $region33: #{_lambda_.3} parent=11 // pred_check
          %p471 = pneg %p195
        $region34: #{_lambda_.3} parent=11 // pred_check_branch
          %473 = sbr.rel (%p471) target = $region36
        $region35: #{_lambda_.3} parent=11 // pred_region
          %s475 = ssub.s32 512, 512
          %476 = vsyncadd [#allocation9], %s475
          %s477 = sshll.u32 [#allocation10], 4
          %s478 = int_to_ptr.vmem [resolvable:$true] %s477
          %483 = dma.hbm_to_vmem [thread:$0]  %s6, 512, %s478, [#allocation9], 64, 64, 4
        $region36: #{_lambda_.3} parent=11 // pred_fallthru
          _
        // Predicated region
        $region37: #{_lambda_.3} parent=11 // pred_check
          %p484 = pneg %p216
        $region38: #{_lambda_.3} parent=11 // pred_check_branch
          %486 = sbr.rel (%p484) target = $region40
        $region39: #{_lambda_.3} parent=11 // pred_region
          %s488 = ssub.s32 256, 256
          %489 = vsyncadd [#allocation12], %s488
          %s490 = sshll.u32 [#allocation11], 4
          %s491 = int_to_ptr.vmem [resolvable:$true] %s490
          %496 = dma.hbm_to_vmem [thread:$0]  %s7, 256, %s491, [#allocation12], 64, 64, 4
        $region40: #{_lambda_.3} parent=11 // pred_fallthru
          _
        // Predicated region
        $region41: #{_lambda_.3} parent=11 // pred_check
          %p497 = pneg %p237
        $region42: #{_lambda_.3} parent=11 // pred_check_branch
          %499 = sbr.rel (%p497) target = $region44
        $region43: #{_lambda_.3} parent=11 // pred_region
          _
        $region44: #{_lambda_.3} parent=11 // pred_fallthru
          _
        // Predicated region
        $region45: #{_lambda_.3} parent=11 // pred_check
          %p500 = pneg %p258
        $region46: #{_lambda_.3} parent=11 // pred_check_branch
          %502 = sbr.rel (%p500) target = $region48
        $region47: #{_lambda_.3} parent=11 // pred_region
          _
        $region48: #{_lambda_.3} parent=11 // pred_fallthru
          _
        // Predicated region
        $region49: #{_lambda_.3} parent=11 // pred_check
          %p503 = pneg %p279
        $region50: #{_lambda_.3} parent=11 // pred_check_branch
          %505 = sbr.rel (%p503) target = $region52
        $region51: #{_lambda_.3} parent=11 // pred_region
          %s507 = ssub.s32 16, 16
          %508 = vsyncadd [#allocation12], %s507
          %s510 = sshll.u32 [#allocation13], 4
          %s511 = int_to_ptr.vmem [resolvable:$true] %s510
          %513 = dma.hbm_to_vmem [thread:$0]  %s10, 16, %s511, [#allocation12]
        $region52: #{_lambda_.3} parent=11 // pred_fallthru
          _
        // Predicated region
        $region53: #{_lambda_.3} parent=11 // pred_check
          %p514 = pneg %p300
        $region54: #{_lambda_.3} parent=11 // pred_check_branch
          %516 = sbr.rel (%p514) target = $region56
        $region55: #{_lambda_.3} parent=11 // pred_region
          _
        $region56: #{_lambda_.3} parent=11 // pred_fallthru
          _
        // Predicated region
        $region57: #{_lambda_.3} parent=11 // pred_check
          %p517 = pneg %p321
        $region58: #{_lambda_.3} parent=11 // pred_check_branch
          %519 = sbr.rel (%p517) target = $region60
        $region59: #{_lambda_.3} parent=11 // pred_region
          _
        $region60: #{_lambda_.3} parent=11 // pred_fallthru
          _
        // Predicated region
        $region61: #{_lambda_.3} parent=11 // pred_check
          %p520 = pneg %p342
        $region62: #{_lambda_.3} parent=11 // pred_check_branch
          %522 = sbr.rel (%p520) target = $region64
        $region63: #{_lambda_.3} parent=11 // pred_region
          %s524 = ssub.s32 2048, 2048
          %525 = vsyncadd [#allocation15], %s524
          %s526 = sshll.u32 [#allocation14], 4
          %s527 = int_to_ptr.vmem [resolvable:$true] %s526
          %532 = dma.hbm_to_vmem [thread:$0]  %s13, 2048, %s527, [#allocation15], 256, 256, 16
        $region64: #{_lambda_.3} parent=11 // pred_fallthru
          _
        // Predicated region
        $region65: #{_lambda_.3} parent=11 // pred_check
          %p533 = pneg %p363
        $region66: #{_lambda_.3} parent=11 // pred_check_branch
          %535 = sbr.rel (%p533) target = $region68
        $region67: #{_lambda_.3} parent=11 // pred_region
          _
        $region68: #{_lambda_.3} parent=11 // pred_fallthru
          _
        // Predicated region
        $region69: #{_lambda_.3} parent=11 // pred_check
          %p536 = pneg %p384
        $region70: #{_lambda_.3} parent=11 // pred_check_branch
          %538 = sbr.rel (%p536) target = $region72
        $region71: #{_lambda_.3} parent=11 // pred_region
          %s540 = ssub.s32 2048, 2048
          %541 = vsyncadd [#allocation15], %s540
          %s542 = sshll.u32 [#allocation16], 4
          %s543 = int_to_ptr.vmem [resolvable:$true] %s542
          %548 = dma.hbm_to_vmem [thread:$0]  %s15, 2048, %s543, [#allocation15], 64, 64, 4
        $region72: #{_lambda_.3} parent=11 // pred_fallthru
          _
        // Predicated region
        $region73: #{_lambda_.3} parent=11 // pred_check
          %p549 = pneg %p405
        $region74: #{_lambda_.3} parent=11 // pred_check_branch
          %551 = sbr.rel (%p549) target = $region76
        $region75: #{_lambda_.3} parent=11 // pred_region
          _
        $region76: #{_lambda_.3} parent=11 // pred_fallthru
          _
      $region12: #{_lambda_.3} parent=5 // pred_fallthru
        _
      %p552 = scmp.lt.s32.totalorder %s29, 2
      // Predicated region
      $region77: #{_lambda_.3} parent=5 // pred_check
        %p553 = pneg %p552
      $region78: #{_lambda_.3} parent=5 // pred_check_branch
        %555 = sbr.rel (%p553) target = $region80
      $region79: #{_lambda_.3} parent=5 // pred_region
        // Predicated region
        $region81: #{_lambda_.3} parent=79 // pred_check
          %p556 = pneg %p84
        $region82: #{_lambda_.3} parent=79 // pred_check_branch
          %558 = sbr.rel (%p556) target = $region84
        $region83: #{_lambda_.3} parent=79 // pred_region
          %s559 = sand.u32 %s29, 1
          %s560 = scalar_lea.sflag [#allocation9], %s559
          %s561 = sand.u32 %s74, 1
          %s562 = smul.addr %s561, 8
          %s563 = scalar_lea.vmem [#allocation8], %s562
          %s565 = ssub.s32 128, 128
          %566 = vsyncadd %s560, %s565
          %s567 = sadd.s32 %s37, %s36
          %s568 = smul.addr %s567, 128
          %s569 = scalar_lea.hbm %s1, %s568
          %s571 = sshll.u32 %s563, 4
          %s572 = int_to_ptr.vmem [resolvable:$true] %s571
          %574 = dma.hbm_to_vmem [thread:$0]  %s569, 128, %s572, %s560
        $region84: #{_lambda_.3} parent=79 // pred_fallthru
          _
      $region80: #{_lambda_.3} parent=5 // pred_fallthru
        _
      %p575 = scmp.le.s32.totalorder 1, %s29
      %p576 = scmp.lt.s32.totalorder %s29, 3
      %p577 = pnand %p575, %p576
      %p578 = pneg %p577
      // Predicated region
      $region85: #{_lambda_.3} parent=5 // pred_check
        _
      $region86: #{_lambda_.3} parent=5 // pred_check_branch
        %580 = sbr.rel (%p577) target = $region88
      $region87: #{_lambda_.3} parent=5 // pred_region
        %s581 = ssub.s32 %s29, 1
        // Predicated region
        $region89: #{_lambda_.3} parent=87 // pred_check
          %p582 = pneg %p62
        $region90: #{_lambda_.3} parent=87 // pred_check_branch
          %584 = sbr.rel (%p582) target = $region92
        $region91: #{_lambda_.3} parent=87 // pred_region
          %585 = dma.done [#allocation7], 256
        $region92: #{_lambda_.3} parent=87 // pred_fallthru
          _
        %s586 = sand.u32 %s34, 1
        %s587 = scalar_lea.sflag [#allocation9], %s586
        %s588 = sand.u32 %s77, 1
        %s589 = smul.addr %s588, 8
        %s590 = scalar_lea.vmem [#allocation8], %s589
        // Predicated region
        $region93: #{_lambda_.3} parent=87 // pred_check
          %p591 = pneg %p90
        $region94: #{_lambda_.3} parent=87 // pred_check_branch
          %593 = sbr.rel (%p591) target = $region96
        $region95: #{_lambda_.3} parent=87 // pred_region
          %594 = dma.done %s587, 128
        $region96: #{_lambda_.3} parent=87 // pred_fallthru
          _
        // Predicated region
        $region97: #{_lambda_.3} parent=87 // pred_check
          %p595 = pneg %p195
        $region98: #{_lambda_.3} parent=87 // pred_check_branch
          %597 = sbr.rel (%p595) target = $region100
        $region99: #{_lambda_.3} parent=87 // pred_region
          %598 = dma.done [#allocation9], 512
        $region100: #{_lambda_.3} parent=87 // pred_fallthru
          _
        // Predicated region
        $region101: #{_lambda_.3} parent=87 // pred_check
          %p599 = pneg %p216
        $region102: #{_lambda_.3} parent=87 // pred_check_branch
          %601 = sbr.rel (%p599) target = $region104
        $region103: #{_lambda_.3} parent=87 // pred_region
          %602 = dma.done [#allocation12], 256
        $region104: #{_lambda_.3} parent=87 // pred_fallthru
          _
        // Predicated region
        $region105: #{_lambda_.3} parent=87 // pred_check
          %p603 = pneg %p279
        $region106: #{_lambda_.3} parent=87 // pred_check_branch
          %605 = sbr.rel (%p603) target = $region108
        $region107: #{_lambda_.3} parent=87 // pred_region
          %606 = dma.done [#allocation12], 16
        $region108: #{_lambda_.3} parent=87 // pred_fallthru
          _
        // Predicated region
        $region109: #{_lambda_.3} parent=87 // pred_check
          %p607 = pneg %p342
        $region110: #{_lambda_.3} parent=87 // pred_check_branch
          %609 = sbr.rel (%p607) target = $region112
        $region111: #{_lambda_.3} parent=87 // pred_region
          %610 = dma.done [#allocation15], 2048
        $region112: #{_lambda_.3} parent=87 // pred_fallthru
          _
        // Predicated region
        $region113: #{_lambda_.3} parent=87 // pred_check
          %p611 = pneg %p384
        $region114: #{_lambda_.3} parent=87 // pred_check_branch
          %613 = sbr.rel (%p611) target = $region116
        $region115: #{_lambda_.3} parent=87 // pred_region
          %614 = dma.done [#allocation15], 2048
        $region116: #{_lambda_.3} parent=87 // pred_fallthru
          _
        %p615 = pneg %p62
        %p616 = pneg %p59
        %s617 = sand.u32 %s34, 1
        %s618 = scalar_lea.sflag [#allocation9], %s617
        %s619 = sand.u32 %s77, 1
        %s620 = smul.addr %s619, 8
        %s621 = scalar_lea.vmem [#allocation8], %s620
        %p622 = pneg %p90
        %p623 = pneg %p87
        %p624 = pneg %p111
        %p625 = pneg %p108
        %p626 = pneg %p132
        %p627 = pneg %p129
        %p628 = pneg %p153
        %p629 = pneg %p150
        %p630 = pneg %p174
        %p631 = pneg %p171
        %p632 = pneg %p195
        %p633 = pneg %p192
        %p634 = pneg %p216
        %p635 = pneg %p213
        %p636 = pneg %p237
        %p637 = pneg %p234
        %p638 = pneg %p258
        %p639 = pneg %p255
        %p640 = pneg %p279
        %p641 = pneg %p276
        %p642 = pneg %p300
        %p643 = pneg %p297
        %p644 = pneg %p321
        %p645 = pneg %p318
        %p646 = pneg %p342
        %p647 = pneg %p339
        %p648 = pneg %p363
        %p649 = pneg %p360
        %p650 = pneg %p384
        %p651 = pneg %p381
        %p652 = pneg %p405
        %p653 = pneg %p402
        %p654 = pneg %p431
        %p655 = pneg %p428
        %p656 = scmp.lt.s32.totalorder %s38, 1
        %s657 = scalar_select %p656, %s38, 1
        %s658 = smul.addr %s657, 2
        %s659 = smul.addr %s658, 8
        %s660 = scalar_lea.vmem %s17, %s659
        %p661 = scmp.lt.s32.totalorder %s38, 1
        %s662 = scalar_select %p661, %s38, 1
        %s663 = smul.addr %s662, 2
        %s664 = smul.addr %s663, 8
        %s665 = scalar_lea.vmem %s17, %s664
        %p667 = scmp.eq.s32.totalorder %s39, 0
        // Predicated region
        $region117: #{_lambda_.3} parent=87 // pred_check
          %p668 = pneg %p667
        $region118: #{_lambda_.3} parent=87 // pred_check_branch
          %670 = sbr.rel (%p668) target = $region120
        $region119: #{_lambda_.3} parent=87 // pred_region
          %v671 = vld [vmem:[#allocation6] sm:$0xff]
          %v672 = vld [vmem:[#allocation6 + $0x8] sm:$0xff]
          %v673 = vld [vmem:[%s2] sm:$0x1]
          %v674 = vld [vmem:[%s3] sm:$0x1]
          %vm675 = vcmask 523264
          %v676 = vsel %vm675, %v671, 0.0
          %677 = vadd.xlane.f32.xlu0 %v676
          %v678 = vpop.xlane.xlu0 %677
          %v679 = vsel %vm675, %v672, 0.0
          %680 = vadd.xlane.f32.xlu0 %v679
          %v681 = vpop.xlane.xlu0 %680
          %v682 = vrcp.pop 64.0
          %v683 = vmul.f32 %v678, %v682
          %v684 = vmul.f32 %v681, %v682
          %v685 = vsub.f32 %v671, %v683
          %v686 = vsub.f32 %v672, %v684
          %v687 = vmul.f32 %v685, %v685
          %v688 = vmul.f32 %v686, %v686
          %v689 = vsel %vm675, %v687, 0.0
          %690 = vadd.xlane.f32.xlu0 %v689
          %v691 = vpop.xlane.xlu0 %690
          %v692 = vsel %vm675, %v688, 0.0
          %693 = vadd.xlane.f32.xlu0 %v692
          %v694 = vpop.xlane.xlu0 %693
          %v695 = vmul.f32 %v691, %v682
          %v696 = vmul.f32 %v694, %v682
          %v697 = vadd.f32 %v695, 1e-05
          %v698 = vadd.f32 %v696, 1e-05
          %v699 = vrsqrt.pop %v697
          %v700 = vrsqrt.pop %v698
          %v701 = vmul.f32 %v685, %v699
          %v702 = vmul.f32 %v686, %v700
          %v704 = vlaneseq
          %v705 = vshrl.u32 %v704, 7
          %v706 = vsub.s32 0, %v705
          %v707 = vrot.slane %v673, %v706
          %v709 = vmul.f32 %v701, %v707
          %v710 = vmul.f32 %v702, %v707
          %v712 = vlaneseq
          %v713 = vshrl.u32 %v712, 7
          %v714 = vsub.s32 0, %v713
          %v715 = vrot.slane %v674, %v714
          %v717 = vadd.f32 %v709, %v715
          %v718 = vadd.f32 %v710, %v715
          %v719 = vpack.c.bf16 %v718, %v717
          %v720 = vld [vmem:[#allocation10] sm:$0xf]
          %v721 = vld [vmem:[#allocation10 + $0x4] sm:$0xf]
          %v722 = vld [vmem:[#allocation10 + $0x8] sm:$0xf]
          %v723 = vld [vmem:[#allocation10 + $0xc] sm:$0xf]
          %v724 = vld [vmem:[#allocation10 + $0x10] sm:$0xf]
          %v725 = vld [vmem:[#allocation10 + $0x14] sm:$0xf]
          %v726 = vld [vmem:[#allocation10 + $0x18] sm:$0xf]
          %v727 = vld [vmem:[#allocation10 + $0x1c] sm:$0xf]
          %v736 = vunpack.c.l.b16 %v720
          %v737 = vunpack.c.l.b16 %v721
          %v738 = vunpack.c.l.b16 %v722
          %v739 = vunpack.c.l.b16 %v723
          %v740 = vunpack.c.l.b16 %v724
          %v741 = vunpack.c.l.b16 %v725
          %v742 = vunpack.c.l.b16 %v726
          %v743 = vunpack.c.l.b16 %v727
          %v744 = vpack.c.b16 %v737, %v736
          %v745 = vpack.c.b16 %v739, %v738
          %v746 = vpack.c.b16 %v741, %v740
          %v747 = vpack.c.b16 %v743, %v742
          %v753 = vsel %vm675, %v719, 0
          %755 = vmatprep.subr.bf16.mxu0 0
          %756 = vmatpush1.bf16.msra.mxu0 0
          %757 = vmatprep.subr.bf16.mxu0 0
          %758 = vmatpush1.bf16.msra.mxu0 0
          %759 = vmatprep.subr.bf16.mxu0 0
          %760 = vmatpush1.bf16.msra.mxu0 0
          %761 = vmatprep.subr.bf16.mxu0 0
          %762 = vmatpush1.bf16.msra.mxu0 0
          %763 = vmatprep.subr.bf16.mxu0 0
          %764 = vmatpush1.bf16.msra.mxu0 %v747
          %765 = vmatprep.subr.bf16.mxu0 0
          %766 = vmatpush1.bf16.msra.mxu0 %v746
          %767 = vmatprep.subr.bf16.mxu0 0
          %768 = vmatpush1.bf16.msra.mxu0 %v745
          %769 = vmatprep.subr.bf16.mxu0 0
          %770 = vmatpush1.bf16.msra.mxu0 %v744
          %771 = vmatprep.subr.bf16.mxu0 0
          %772 = vmatpush2.bf16.msra.mxu0 0
          %773 = vmatprep.subr.bf16.mxu0 0
          %774 = vmatpush2.bf16.msra.mxu0 0
          %775 = vmatprep.subr.bf16.mxu0 0
          %776 = vmatpush2.bf16.msra.mxu0 0
          %777 = vmatprep.subr.bf16.mxu0 0
          %778 = vmatpush2.bf16.msra.mxu0 0
          %779 = vmatprep.subr.bf16.mxu0 0
          %780 = vmatpush2.bf16.msra.mxu0 0
          %781 = vmatprep.subr.bf16.mxu0 0
          %782 = vmatpush2.bf16.msra.mxu0 0
          %783 = vmatprep.subr.bf16.mxu0 0
          %784 = vmatpush2.bf16.msra.mxu0 0
          %785 = vmatprep.subr.bf16.mxu0 0
          %786 = vmatpush2.bf16.msra.mxu0 0
          %787 = vmatprep.mubr.bf16.mxu0 0
          %788 = vmatmul.mubr.bf16.gmra.mxu0 %v753
          %v789 = vpop.f32.mrf.mxu0
          %v790 = vadd.f32 0.0, %v789
          %v791 = vpop.f32.mrf.mxu0
          %v792 = vpop.f32.mrf.mxu0
          %v793 = vadd.f32 0.0, %v792
          %v794 = vpop.f32.mrf.mxu0
          %795 = vdwg.mxu0
          %v796 = vmul.f32 %v790, 0.125
          %v797 = vmul.f32 %v793, 0.125
          %v798 = vpack.c.bf16 %v797, %v796
          %v800 = vunpack.c.l.b16 %v798
          %v801 = vunpack.c.h.b16 %v798
          %v802 = vpack.c.b16 %v800, %v800
          %v803 = vpack.c.b16 %v801, %v801
          %vm806 = vcmask 519168
          %807 = vst.msk [vmem:[#allocation2] sm:$0xf] %vm806, %v802
          %808 = vst.msk [vmem:[#allocation2 + $0x4] sm:$0xf] %vm806, %v803
          %vm809 = vcmask 7168
          %810 = vst.msk [vmem:[#allocation3] sm:$0xff] %vm809, -inf
          %811 = vst.msk [vmem:[#allocation3 + $0x8] sm:$0xff] %vm809, -inf
          %812 = vst.msk [vmem:[#allocation4] sm:$0xff] %vm809, 0.0
          %813 = vst.msk [vmem:[#allocation4 + $0x8] sm:$0xff] %vm809, 0.0
          %814 = vst.msk [vmem:[#allocation5] sm:$0xff] %vm675, 0.0
          %815 = vst.msk [vmem:[#allocation5 + $0x8] sm:$0xff] %vm675, 0.0
        $region120: #{_lambda_.3} parent=87 // pred_fallthru
          _
        %v816 = vld [vmem:[%s590] sm:$0xff]
        %v817 = vld [vmem:[%s4] sm:$0x1]
        %v818 = vld [vmem:[%s5] sm:$0x1]
        %vm819 = vcmask 261120
        %v820 = vsel %vm819, %v816, 0.0
        %821 = vadd.xlane.f32.xlu0 %v820
        %v822 = vpop.xlane.xlu0 %821
        %v823 = vrcp.pop 32.0
        %v824 = vmul.f32 %v822, %v823
        %v825 = vsub.f32 %v816, %v824
        %v826 = vmul.f32 %v825, %v825
        %v827 = vsel %vm819, %v826, 0.0
        %828 = vadd.xlane.f32.xlu0 %v827
        %v829 = vpop.xlane.xlu0 %828
        %v830 = vmul.f32 %v829, %v823
        %v831 = vadd.f32 %v830, 1e-05
        %v832 = vrsqrt.pop %v831
        %v833 = vmul.f32 %v825, %v832
        %v835 = vlaneseq
        %v836 = vshrl.u32 %v835, 7
        %v837 = vsub.s32 0, %v836
        %v838 = vrot.slane %v817, %v837
        %v840 = vmul.f32 %v833, %v838
        %v842 = vlaneseq
        %v843 = vshrl.u32 %v842, 7
        %v844 = vsub.s32 0, %v843
        %v845 = vrot.slane %v818, %v844
        %v847 = vadd.f32 %v840, %v845
        %v848 = vpack.c.bf16 %v847, %v847
        %v849 = vld [vmem:[#allocation11] sm:$0xf]
        %v850 = vld [vmem:[#allocation11 + $0x4] sm:$0xf]
        %v851 = vld [vmem:[#allocation11 + $0x8] sm:$0xf]
        %v852 = vld [vmem:[#allocation11 + $0xc] sm:$0xf]
        %v857 = vunpack.c.l.b16 %v849
        %v858 = vunpack.c.l.b16 %v850
        %v859 = vunpack.c.l.b16 %v851
        %v860 = vunpack.c.l.b16 %v852
        %v861 = vpack.c.b16 %v858, %v857
        %v862 = vpack.c.b16 %v860, %v859
        %v866 = vsel %vm819, %v848, 0
        %868 = vmatprep.subr.bf16.mxu0 0
        %869 = vmatpush1.bf16.msra.mxu0 0
        %870 = vmatprep.subr.bf16.mxu0 0
        %871 = vmatpush1.bf16.msra.mxu0 0
        %872 = vmatprep.subr.bf16.mxu0 0
        %873 = vmatpush1.bf16.msra.mxu0 0
        %874 = vmatprep.subr.bf16.mxu0 0
        %875 = vmatpush1.bf16.msra.mxu0 0
        %876 = vmatprep.subr.bf16.mxu0 0
        %877 = vmatpush1.bf16.msra.mxu0 0
        %878 = vmatprep.subr.bf16.mxu0 0
        %879 = vmatpush1.bf16.msra.mxu0 0
        %880 = vmatprep.subr.bf16.mxu0 0
        %881 = vmatpush1.bf16.msra.mxu0 %v862
        %882 = vmatprep.subr.bf16.mxu0 0
        %883 = vmatpush1.bf16.msra.mxu0 %v861
        %884 = vmatprep.subr.bf16.mxu0 0
        %885 = vmatpush2.bf16.msra.mxu0 0
        %886 = vmatprep.subr.bf16.mxu0 0
        %887 = vmatpush2.bf16.msra.mxu0 0
        %888 = vmatprep.subr.bf16.mxu0 0
        %889 = vmatpush2.bf16.msra.mxu0 0
        %890 = vmatprep.subr.bf16.mxu0 0
        %891 = vmatpush2.bf16.msra.mxu0 0
        %892 = vmatprep.subr.bf16.mxu0 0
        %893 = vmatpush2.bf16.msra.mxu0 0
        %894 = vmatprep.subr.bf16.mxu0 0
        %895 = vmatpush2.bf16.msra.mxu0 0
        %896 = vmatprep.subr.bf16.mxu0 0
        %897 = vmatpush2.bf16.msra.mxu0 0
        %898 = vmatprep.subr.bf16.mxu0 0
        %899 = vmatpush2.bf16.msra.mxu0 0
        %900 = vmatprep.mubr.bf16.mxu0 0
        %901 = vmatmul.mubr.bf16.gmra.mxu0 %v866
        %v902 = vpop.f32.mrf.mxu0
        %v903 = vadd.f32 0.0, %v902
        %v904 = vpop.f32.mrf.mxu0
        %v905 = vpop.f32.mrf.mxu0
        %v906 = vpop.f32.mrf.mxu0
        %907 = vdwg.mxu0
        %v908 = vld [vmem:[%s8] sm:$0xf]
        %v909 = vld [vmem:[%s8 + $0x4] sm:$0xf]
        %v910 = vld [vmem:[%s8 + $0x8] sm:$0xf]
        %v911 = vld [vmem:[%s8 + $0xc] sm:$0xf]
        %v916 = vunpack.c.l.b16 %v908
        %v917 = vunpack.c.l.b16 %v909
        %v918 = vunpack.c.l.b16 %v910
        %v919 = vunpack.c.l.b16 %v911
        %v920 = vpack.c.b16 %v917, %v916
        %v921 = vpack.c.b16 %v919, %v918
        %924 = vmatprep.subr.bf16.mxu0 0
        %925 = vmatpush1.bf16.msra.mxu0 0
        %926 = vmatprep.subr.bf16.mxu0 0
        %927 = vmatpush1.bf16.msra.mxu0 0
        %928 = vmatprep.subr.bf16.mxu0 0
        %929 = vmatpush1.bf16.msra.mxu0 0
        %930 = vmatprep.subr.bf16.mxu0 0
        %931 = vmatpush1.bf16.msra.mxu0 0
        %932 = vmatprep.subr.bf16.mxu0 0
        %933 = vmatpush1.bf16.msra.mxu0 0
        %934 = vmatprep.subr.bf16.mxu0 0
        %935 = vmatpush1.bf16.msra.mxu0 0
        %936 = vmatprep.subr.bf16.mxu0 0
        %937 = vmatpush1.bf16.msra.mxu0 %v921
        %938 = vmatprep.subr.bf16.mxu0 0
        %939 = vmatpush1.bf16.msra.mxu0 %v920
        %940 = vmatprep.subr.bf16.mxu0 0
        %941 = vmatpush2.bf16.msra.mxu0 0
        %942 = vmatprep.subr.bf16.mxu0 0
        %943 = vmatpush2.bf16.msra.mxu0 0
        %944 = vmatprep.subr.bf16.mxu0 0
        %945 = vmatpush2.bf16.msra.mxu0 0
        %946 = vmatprep.subr.bf16.mxu0 0
        %947 = vmatpush2.bf16.msra.mxu0 0
        %948 = vmatprep.subr.bf16.mxu0 0
        %949 = vmatpush2.bf16.msra.mxu0 0
        %950 = vmatprep.subr.bf16.mxu0 0
        %951 = vmatpush2.bf16.msra.mxu0 0
        %952 = vmatprep.subr.bf16.mxu0 0
        %953 = vmatpush2.bf16.msra.mxu0 0
        %954 = vmatprep.subr.bf16.mxu0 0
        %955 = vmatpush2.bf16.msra.mxu0 0
        %956 = vmatprep.mubr.bf16.mxu0 0
        %957 = vmatmul.mubr.bf16.gmra.mxu0 %v866
        %v958 = vpop.f32.mrf.mxu0
        %v959 = vadd.f32 0.0, %v958
        %v960 = vpop.f32.mrf.mxu0
        %v961 = vpop.f32.mrf.mxu0
        %v962 = vpop.f32.mrf.mxu0
        %963 = vdwg.mxu0
        %v964 = vld [vmem:[#allocation2] sm:$0xf]
        %v965 = vld [vmem:[#allocation2 + $0x4] sm:$0xf]
        %v966 = vpack.c.bf16 %v903, %v903
        %v969 = vunpack.c.l.b16 %v964
        %v970 = vunpack.c.l.b16 %v965
        %v971 = vpack.c.b16 %v970, %v969
        %vm972 = vcmask 523264
        %v974 = vsel %vm972, %v971, 0
        %v977 = vsel %vm972, %v966, 0
        %979 = vmatprep.subr.bf16.mxu0 0
        %980 = vmatpush1.bf16.xpose.msra.mxu0 0
        %981 = vmatprep.subr.bf16.mxu0 0
        %982 = vmatpush1.bf16.xpose.msra.mxu0 0
        %983 = vmatprep.subr.bf16.mxu0 0
        %984 = vmatpush1.bf16.xpose.msra.mxu0 0
        %985 = vmatprep.subr.bf16.mxu0 0
        %986 = vmatpush1.bf16.xpose.msra.mxu0 0
        %987 = vmatprep.subr.bf16.mxu0 0
        %988 = vmatpush1.bf16.xpose.msra.mxu0 0
        %989 = vmatprep.subr.bf16.mxu0 0
        %990 = vmatpush1.bf16.xpose.msra.mxu0 0
        %991 = vmatprep.subr.bf16.mxu0 0
        %992 = vmatpush1.bf16.xpose.msra.mxu0 0
        %993 = vmatprep.subr.bf16.mxu0 0
        %994 = vmatpush1.bf16.xpose.msra.mxu0 %v977
        %995 = vmatprep.subr.bf16.mxu0 0
        %996 = vmatpush2.bf16.xpose.msra.mxu0 0
        %997 = vmatprep.subr.bf16.mxu0 0
        %998 = vmatpush2.bf16.xpose.msra.mxu0 0
        %999 = vmatprep.subr.bf16.mxu0 0
        %1000 = vmatpush2.bf16.xpose.msra.mxu0 0
        %1001 = vmatprep.subr.bf16.mxu0 0
        %1002 = vmatpush2.bf16.xpose.msra.mxu0 0
        %1003 = vmatprep.subr.bf16.mxu0 0
        %1004 = vmatpush2.bf16.xpose.msra.mxu0 0
        %1005 = vmatprep.subr.bf16.mxu0 0
        %1006 = vmatpush2.bf16.xpose.msra.mxu0 0
        %1007 = vmatprep.subr.bf16.mxu0 0
        %1008 = vmatpush2.bf16.xpose.msra.mxu0 0
        %1009 = vmatprep.subr.bf16.mxu0 0
        %1010 = vmatpush2.bf16.xpose.msra.mxu0 0
        %1011 = vmatprep.mubr.bf16.mxu0 0
        %1012 = vmatmul.mubr.bf16.gmra.mxu0 %v974
        %v1013 = vpop.f32.mrf.mxu0
        %v1014 = vadd.f32 0.0, %v1013
        %v1015 = vpop.f32.mrf.mxu0
        %v1016 = vpop.f32.mrf.mxu0
        %v1017 = vadd.f32 0.0, %v1016
        %v1018 = vpop.f32.mrf.mxu0
        %1019 = vdwg.mxu0
        %v1020 = vld [vmem:[#allocation3] sm:$0xff]
        %v1021 = vld [vmem:[#allocation3 + $0x8] sm:$0xff]
        %vm1022 = vcmask 64512
        %v1023 = vsel %vm1022, %v1014, -inf
        %1024 = vmax.xlane.f32.xlu0 %v1023
        %v1025 = vpop.xlane.xlu0 %1024
        %v1026 = vsel %vm1022, %v1017, -inf
        %1027 = vmax.xlane.f32.xlu0 %v1026
        %v1028 = vpop.xlane.xlu0 %1027
        %v1029 = vmax.f32 %v1020, %v1025
        %v1030 = vmax.f32 %v1021, %v1028
        %v1031 = vsub.f32 %v1020, %v1029
        %v1032 = vsub.f32 %v1021, %v1030
        %v1033 = vmul.f32 %v1031, 1.442695
        %v1034 = vpow.pop %v1033
        %v1035 = vmul.f32 %v1032, 1.442695
        %v1036 = vpow.pop %v1035
        %1038 = vset.pattern.permute.xlu0 0
        %1039 = vperm.xlu0 %1038, %v1029
        %v1040 = vpop.permute.xlu0 %1039
        %1043 = vset.pattern.permute.xlu0 0
        %1044 = vperm.xlu0 %1043, %v1030
        %v1045 = vpop.permute.xlu0 %1044
        %v1047 = vsub.f32 %v1014, %v1040
        %v1048 = vsub.f32 %v1017, %v1045
        %v1049 = vmul.f32 %v1047, 1.442695
        %v1050 = vpow.pop %v1049
        %v1051 = vmul.f32 %v1048, 1.442695
        %v1052 = vpow.pop %v1051
        %v1053 = vld [vmem:[#allocation4] sm:$0xff]
        %v1054 = vld [vmem:[#allocation4 + $0x8] sm:$0xff]
        %v1055 = vmul.f32 %v1034, %v1053
        %v1056 = vmul.f32 %v1036, %v1054
        %v1057 = vsel %vm1022, %v1050, 0.0
        %1058 = vadd.xlane.f32.xlu0 %v1057
        %v1059 = vpop.xlane.xlu0 %1058
        %v1060 = vsel %vm1022, %v1052, 0.0
        %1061 = vadd.xlane.f32.xlu0 %v1060
        %v1062 = vpop.xlane.xlu0 %1061
        %v1063 = vadd.f32 %v1055, %v1059
        %v1064 = vadd.f32 %v1056, %v1062
        %vm1065 = vcmask 7168
        %1066 = vst.msk [vmem:[#allocation4] sm:$0xff] %vm1065, %v1063
        %1067 = vst.msk [vmem:[#allocation4 + $0x8] sm:$0xff] %vm1065, %v1064
        %v1068 = vld [vmem:[#allocation5] sm:$0xff]
        %v1069 = vld [vmem:[#allocation5 + $0x8] sm:$0xff]
        %1071 = vset.pattern.permute.xlu0 0
        %1072 = vperm.xlu0 %1071, %v1034
        %v1073 = vpop.permute.xlu0 %1072
        %1076 = vset.pattern.permute.xlu0 0
        %1077 = vperm.xlu0 %1076, %v1036
        %v1078 = vpop.permute.xlu0 %1077
        %v1080 = vmul.f32 %v1073, %v1068
        %v1081 = vmul.f32 %v1078, %v1069
        %v1082 = vpack.c.bf16 %v1052, %v1050
        %v1083 = vpack.c.bf16 %v959, %v959
        %v1085 = vsel %vm1022, %v1082, 0
        %vm1087 = vcmask 1043456
        %v1089 = vsel %vm1087, %v1083, 0
        %1091 = vmatprep.subr.bf16.mxu0 0
        %1092 = vmatpush1.bf16.msra.mxu0 0
        %1093 = vmatprep.subr.bf16.mxu0 0
        %1094 = vmatpush1.bf16.msra.mxu0 0
        %1095 = vmatprep.subr.bf16.mxu0 0
        %1096 = vmatpush1.bf16.msra.mxu0 0
        %1097 = vmatprep.subr.bf16.mxu0 0
        %1098 = vmatpush1.bf16.msra.mxu0 0
        %1099 = vmatprep.subr.bf16.mxu0 0
        %1100 = vmatpush1.bf16.msra.mxu0 0
        %1101 = vmatprep.subr.bf16.mxu0 0
        %1102 = vmatpush1.bf16.msra.mxu0 0
        %1103 = vmatprep.subr.bf16.mxu0 0
        %1104 = vmatpush1.bf16.msra.mxu0 0
        %1105 = vmatprep.subr.bf16.mxu0 0
        %1106 = vmatpush1.bf16.msra.mxu0 %v1089
        %1107 = vmatprep.subr.bf16.mxu0 0
        %1108 = vmatpush2.bf16.msra.mxu0 0
        %1109 = vmatprep.subr.bf16.mxu0 0
        %1110 = vmatpush2.bf16.msra.mxu0 0
        %1111 = vmatprep.subr.bf16.mxu0 0
        %1112 = vmatpush2.bf16.msra.mxu0 0
        %1113 = vmatprep.subr.bf16.mxu0 0
        %1114 = vmatpush2.bf16.msra.mxu0 0
        %1115 = vmatprep.subr.bf16.mxu0 0
        %1116 = vmatpush2.bf16.msra.mxu0 0
        %1117 = vmatprep.subr.bf16.mxu0 0
        %1118 = vmatpush2.bf16.msra.mxu0 0
        %1119 = vmatprep.subr.bf16.mxu0 0
        %1120 = vmatpush2.bf16.msra.mxu0 0
        %1121 = vmatprep.subr.bf16.mxu0 0
        %1122 = vmatpush2.bf16.msra.mxu0 0
        %1123 = vmatprep.mubr.bf16.mxu0 0
        %1124 = vmatmul.mubr.bf16.gmra.mxu0 %v1085
        %v1125 = vpop.f32.mrf.mxu0
        %v1126 = vadd.f32 0.0, %v1125
        %v1127 = vpop.f32.mrf.mxu0
        %v1128 = vpop.f32.mrf.mxu0
        %v1129 = vadd.f32 0.0, %v1128
        %v1130 = vpop.f32.mrf.mxu0
        %1131 = vdwg.mxu0
        %v1132 = vadd.f32 %v1080, %v1126
        %v1133 = vadd.f32 %v1081, %v1129
        %1134 = vst.msk [vmem:[#allocation5] sm:$0xff] %vm972, %v1132
        %1135 = vst.msk [vmem:[#allocation5 + $0x8] sm:$0xff] %vm972, %v1133
        %1136 = vst.msk [vmem:[#allocation3] sm:$0xff] %vm1065, %v1029
        %1137 = vst.msk [vmem:[#allocation3 + $0x8] sm:$0xff] %vm1065, %v1030
        // Predicated region
        $region121: #{_lambda_.3} parent=87 // pred_check
          %p1138 = pneg %p667
        $region122: #{_lambda_.3} parent=87 // pred_check_branch
          %1140 = sbr.rel (%p1138) target = $region124
        $region123: #{_lambda_.3} parent=87 // pred_region
          %v1141 = vld [vmem:[#allocation6] sm:$0xff]
          %v1142 = vld [vmem:[#allocation6 + $0x8] sm:$0xff]
          %v1143 = vld [vmem:[#allocation5] sm:$0xff]
          %v1144 = vld [vmem:[#allocation5 + $0x8] sm:$0xff]
          %v1145 = vld [vmem:[#allocation4] sm:$0xff]
          %v1146 = vld [vmem:[#allocation4 + $0x8] sm:$0xff]
          %v1147 = vrcp.pop %v1145
          %v1148 = vrcp.pop %v1146
          %1150 = vset.pattern.permute.xlu0 0
          %1151 = vperm.xlu0 %1150, %v1147
          %v1152 = vpop.permute.xlu0 %1151
          %1155 = vset.pattern.permute.xlu0 0
          %1156 = vperm.xlu0 %1155, %v1148
          %v1157 = vpop.permute.xlu0 %1156
          %v1159 = vmul.f32 %v1143, %v1152
          %v1160 = vmul.f32 %v1144, %v1157
          %v1161 = vpack.c.bf16 %v1160, %v1159
          %v1162 = vld [vmem:[%s9] sm:$0xf]
          %v1163 = vld [vmem:[%s9 + $0x4] sm:$0xf]
          %v1164 = vld [vmem:[%s9 + $0x8] sm:$0xf]
          %v1165 = vld [vmem:[%s9 + $0xc] sm:$0xf]
          %v1166 = vld [vmem:[%s9 + $0x10] sm:$0xf]
          %v1167 = vld [vmem:[%s9 + $0x14] sm:$0xf]
          %v1168 = vld [vmem:[%s9 + $0x18] sm:$0xf]
          %v1169 = vld [vmem:[%s9 + $0x1c] sm:$0xf]
          %v1170 = vld [vmem:[#allocation13] sm:$0x1]
          %v1172 = vlaneseq
          %v1173 = vshrl.u32 %v1172, 7
          %v1174 = vsub.s32 0, %v1173
          %v1175 = vrot.slane %v1170, %v1174
          %v1185 = vunpack.c.l.b16 %v1162
          %v1186 = vunpack.c.l.b16 %v1163
          %v1187 = vunpack.c.l.b16 %v1164
          %v1188 = vunpack.c.l.b16 %v1165
          %v1189 = vunpack.c.l.b16 %v1166
          %v1190 = vunpack.c.l.b16 %v1167
          %v1191 = vunpack.c.l.b16 %v1168
          %v1192 = vunpack.c.l.b16 %v1169
          %v1193 = vpack.c.b16 %v1186, %v1185
          %v1194 = vpack.c.b16 %v1188, %v1187
          %v1195 = vpack.c.b16 %v1190, %v1189
          %v1196 = vpack.c.b16 %v1192, %v1191
          %v1202 = vsel %vm972, %v1161, 0
          %1204 = vmatprep.subr.bf16.mxu0 0
          %1205 = vmatpush1.bf16.msra.mxu0 0
          %1206 = vmatprep.subr.bf16.mxu0 0
          %1207 = vmatpush1.bf16.msra.mxu0 0
          %1208 = vmatprep.subr.bf16.mxu0 0
          %1209 = vmatpush1.bf16.msra.mxu0 0
          %1210 = vmatprep.subr.bf16.mxu0 0
          %1211 = vmatpush1.bf16.msra.mxu0 0
          %1212 = vmatprep.subr.bf16.mxu0 0
          %1213 = vmatpush1.bf16.msra.mxu0 %v1196
          %1214 = vmatprep.subr.bf16.mxu0 0
          %1215 = vmatpush1.bf16.msra.mxu0 %v1195
          %1216 = vmatprep.subr.bf16.mxu0 0
          %1217 = vmatpush1.bf16.msra.mxu0 %v1194
          %1218 = vmatprep.subr.bf16.mxu0 0
          %1219 = vmatpush1.bf16.msra.mxu0 %v1193
          %1220 = vmatprep.subr.bf16.mxu0 0
          %1221 = vmatpush2.bf16.msra.mxu0 0
          %1222 = vmatprep.subr.bf16.mxu0 0
          %1223 = vmatpush2.bf16.msra.mxu0 0
          %1224 = vmatprep.subr.bf16.mxu0 0
          %1225 = vmatpush2.bf16.msra.mxu0 0
          %1226 = vmatprep.subr.bf16.mxu0 0
          %1227 = vmatpush2.bf16.msra.mxu0 0
          %1228 = vmatprep.subr.bf16.mxu0 0
          %1229 = vmatpush2.bf16.msra.mxu0 0
          %1230 = vmatprep.subr.bf16.mxu0 0
          %1231 = vmatpush2.bf16.msra.mxu0 0
          %1232 = vmatprep.subr.bf16.mxu0 0
          %1233 = vmatpush2.bf16.msra.mxu0 0
          %1234 = vmatprep.subr.bf16.mxu0 0
          %1235 = vmatpush2.bf16.msra.mxu0 0
          %1236 = vmatprep.mubr.bf16.mxu0 0
          %1237 = vmatmul.mubr.bf16.gmra.mxu0 %v1202
          %v1238 = vpop.f32.mrf.mxu0
          %v1239 = vadd.f32 %v1175, %v1238
          %v1240 = vpop.f32.mrf.mxu0
          %v1241 = vpop.f32.mrf.mxu0
          %v1242 = vadd.f32 %v1175, %v1241
          %v1243 = vpop.f32.mrf.mxu0
          %1244 = vdwg.mxu0
          %v1245 = vadd.f32 %v1239, %v1141
          %v1246 = vadd.f32 %v1242, %v1142
          %v1247 = vld [vmem:[%s11] sm:$0x1]
          %v1248 = vld [vmem:[%s12] sm:$0x1]
          %v1249 = vld [vmem:[#allocation14] sm:$0xff]
          %v1250 = vld [vmem:[#allocation14 + $0x8] sm:$0xff]
          %v1251 = vld [vmem:[#allocation14 + $0x10] sm:$0xff]
          %v1252 = vld [vmem:[#allocation14 + $0x18] sm:$0xff]
          %v1253 = vld [vmem:[#allocation14 + $0x20] sm:$0xff]
          %v1254 = vld [vmem:[#allocation14 + $0x28] sm:$0xff]
          %v1255 = vld [vmem:[#allocation14 + $0x30] sm:$0xff]
          %v1256 = vld [vmem:[#allocation14 + $0x38] sm:$0xff]
          %v1257 = vld [vmem:[#allocation14 + $0x40] sm:$0xff]
          %v1258 = vld [vmem:[#allocation14 + $0x48] sm:$0xff]
          %v1259 = vld [vmem:[#allocation14 + $0x50] sm:$0xff]
          %v1260 = vld [vmem:[#allocation14 + $0x58] sm:$0xff]
          %v1261 = vld [vmem:[#allocation14 + $0x60] sm:$0xff]
          %v1262 = vld [vmem:[#allocation14 + $0x68] sm:$0xff]
          %v1263 = vld [vmem:[#allocation14 + $0x70] sm:$0xff]
          %v1264 = vld [vmem:[#allocation14 + $0x78] sm:$0xff]
          %v1265 = vld [vmem:[%s14] sm:$0xf]
          %v1266 = vld [vmem:[#allocation16] sm:$0xf]
          %v1267 = vld [vmem:[#allocation16 + $0x4] sm:$0xf]
          %v1268 = vld [vmem:[#allocation16 + $0x8] sm:$0xf]
          %v1269 = vld [vmem:[#allocation16 + $0xc] sm:$0xf]
          %v1270 = vld [vmem:[#allocation16 + $0x10] sm:$0xf]
          %v1271 = vld [vmem:[#allocation16 + $0x14] sm:$0xf]
          %v1272 = vld [vmem:[#allocation16 + $0x18] sm:$0xf]
          %v1273 = vld [vmem:[#allocation16 + $0x1c] sm:$0xf]
          %v1274 = vld [vmem:[#allocation16 + $0x20] sm:$0xf]
          %v1275 = vld [vmem:[#allocation16 + $0x24] sm:$0xf]
          %v1276 = vld [vmem:[#allocation16 + $0x28] sm:$0xf]
          %v1277 = vld [vmem:[#allocation16 + $0x2c] sm:$0xf]
          %v1278 = vld [vmem:[#allocation16 + $0x30] sm:$0xf]
          %v1279 = vld [vmem:[#allocation16 + $0x34] sm:$0xf]
          %v1280 = vld [vmem:[#allocation16 + $0x38] sm:$0xf]
          %v1281 = vld [vmem:[#allocation16 + $0x3c] sm:$0xf]
          %v1282 = vld [vmem:[#allocation16 + $0x40] sm:$0xf]
          %v1283 = vld [vmem:[#allocation16 + $0x44] sm:$0xf]
          %v1284 = vld [vmem:[#allocation16 + $0x48] sm:$0xf]
          %v1285 = vld [vmem:[#allocation16 + $0x4c] sm:$0xf]
          %v1286 = vld [vmem:[#allocation16 + $0x50] sm:$0xf]
          %v1287 = vld [vmem:[#allocation16 + $0x54] sm:$0xf]
          %v1288 = vld [vmem:[#allocation16 + $0x58] sm:$0xf]
          %v1289 = vld [vmem:[#allocation16 + $0x5c] sm:$0xf]
          %v1290 = vld [vmem:[#allocation16 + $0x60] sm:$0xf]
          %v1291 = vld [vmem:[#allocation16 + $0x64] sm:$0xf]
          %v1292 = vld [vmem:[#allocation16 + $0x68] sm:$0xf]
          %v1293 = vld [vmem:[#allocation16 + $0x6c] sm:$0xf]
          %v1294 = vld [vmem:[#allocation16 + $0x70] sm:$0xf]
          %v1295 = vld [vmem:[#allocation16 + $0x74] sm:$0xf]
          %v1296 = vld [vmem:[#allocation16 + $0x78] sm:$0xf]
          %v1297 = vld [vmem:[#allocation16 + $0x7c] sm:$0xf]
          %v1298 = vld [vmem:[%s16] sm:$0x1]
          %v1299 = vsel %vm972, %v1245, 0.0
          %1300 = vadd.xlane.f32.xlu0 %v1299
          %v1301 = vpop.xlane.xlu0 %1300
          %v1302 = vsel %vm972, %v1246, 0.0
          %1303 = vadd.xlane.f32.xlu0 %v1302
          %v1304 = vpop.xlane.xlu0 %1303
          %v1305 = vrcp.pop 64.0
          %v1306 = vmul.f32 %v1301, %v1305
          %v1307 = vmul.f32 %v1304, %v1305
          %v1308 = vsub.f32 %v1245, %v1306
          %v1309 = vsub.f32 %v1246, %v1307
          %v1310 = vmul.f32 %v1308, %v1308
          %v1311 = vmul.f32 %v1309, %v1309
          %v1312 = vsel %vm972, %v1310, 0.0
          %1313 = vadd.xlane.f32.xlu0 %v1312
          %v1314 = vpop.xlane.xlu0 %1313
          %v1315 = vsel %vm972, %v1311, 0.0
          %1316 = vadd.xlane.f32.xlu0 %v1315
          %v1317 = vpop.xlane.xlu0 %1316
          %v1318 = vmul.f32 %v1314, %v1305
          %v1319 = vmul.f32 %v1317, %v1305
          %v1320 = vadd.f32 %v1318, 1e-05
          %v1321 = vadd.f32 %v1319, 1e-05
          %v1322 = vrsqrt.pop %v1320
          %v1323 = vrsqrt.pop %v1321
          %v1324 = vmul.f32 %v1308, %v1322
          %v1325 = vmul.f32 %v1309, %v1323
          %v1327 = vlaneseq
          %v1328 = vshrl.u32 %v1327, 7
          %v1329 = vsub.s32 0, %v1328
          %v1330 = vrot.slane %v1247, %v1329
          %v1332 = vmul.f32 %v1324, %v1330
          %v1333 = vmul.f32 %v1325, %v1330
          %v1335 = vlaneseq
          %v1336 = vshrl.u32 %v1335, 7
          %v1337 = vsub.s32 0, %v1336
          %v1338 = vrot.slane %v1248, %v1337
          %v1340 = vadd.f32 %v1332, %v1338
          %v1341 = vadd.f32 %v1333, %v1338
          %v1342 = vpack.c.bf16 %v1341, %v1340
          %v1344 = vlaneseq
          %v1345 = vshrl.u32 %v1344, 7
          %v1346 = vsub.s32 0, %v1345
          %v1347 = vrot.slane %v1265, %v1346
          %v1348 = vlaneseq
          %v1349 = vshrl.u32 %v1348, 7
          %v1350 = vsub.s32 1, %v1349
          %v1351 = vrot.slane %v1265, %v1350
          %v1352 = vlaneseq
          %v1353 = vshrl.u32 %v1352, 7
          %v1354 = vsub.s32 2, %v1353
          %v1355 = vrot.slane %v1265, %v1354
          %v1356 = vlaneseq
          %v1357 = vshrl.u32 %v1356, 7
          %v1358 = vsub.s32 3, %v1357
          %v1359 = vrot.slane %v1265, %v1358
          %v1380 = vunpack.c.l.b16 %v1249
          %v1381 = vunpack.c.h.b16 %v1249
          %v1382 = vunpack.c.l.b16 %v1250
          %v1383 = vunpack.c.h.b16 %v1250
          %v1384 = vunpack.c.l.b16 %v1251
          %v1385 = vunpack.c.h.b16 %v1251
          %v1386 = vunpack.c.l.b16 %v1252
          %v1387 = vunpack.c.h.b16 %v1252
          %v1388 = vunpack.c.l.b16 %v1253
          %v1389 = vunpack.c.h.b16 %v1253
          %v1390 = vunpack.c.l.b16 %v1254
          %v1391 = vunpack.c.h.b16 %v1254
          %v1392 = vunpack.c.l.b16 %v1255
          %v1393 = vunpack.c.h.b16 %v1255
          %v1394 = vunpack.c.l.b16 %v1256
          %v1395 = vunpack.c.h.b16 %v1256
          %v1396 = vunpack.c.l.b16 %v1257
          %v1397 = vunpack.c.h.b16 %v1257
          %v1398 = vunpack.c.l.b16 %v1258
          %v1399 = vunpack.c.h.b16 %v1258
          %v1400 = vunpack.c.l.b16 %v1259
          %v1401 = vunpack.c.h.b16 %v1259
          %v1402 = vunpack.c.l.b16 %v1260
          %v1403 = vunpack.c.h.b16 %v1260
          %v1404 = vunpack.c.l.b16 %v1261
          %v1405 = vunpack.c.h.b16 %v1261
          %v1406 = vunpack.c.l.b16 %v1262
          %v1407 = vunpack.c.h.b16 %v1262
          %v1408 = vunpack.c.l.b16 %v1263
          %v1409 = vunpack.c.h.b16 %v1263
          %v1410 = vunpack.c.l.b16 %v1264
          %v1411 = vunpack.c.h.b16 %v1264
          %v1412 = vpack.c.b16 %v1384, %v1380
          %v1413 = vpack.c.b16 %v1385, %v1381
          %v1414 = vpack.c.b16 %v1386, %v1382
          %v1415 = vpack.c.b16 %v1387, %v1383
          %v1416 = vpack.c.b16 %v1392, %v1388
          %v1417 = vpack.c.b16 %v1393, %v1389
          %v1418 = vpack.c.b16 %v1394, %v1390
          %v1419 = vpack.c.b16 %v1395, %v1391
          %v1420 = vpack.c.b16 %v1400, %v1396
          %v1421 = vpack.c.b16 %v1401, %v1397
          %v1422 = vpack.c.b16 %v1402, %v1398
          %v1423 = vpack.c.b16 %v1403, %v1399
          %v1424 = vpack.c.b16 %v1408, %v1404
          %v1425 = vpack.c.b16 %v1409, %v1405
          %v1426 = vpack.c.b16 %v1410, %v1406
          %v1427 = vpack.c.b16 %v1411, %v1407
          %v1445 = vsel %vm972, %v1342, 0
          %1447 = vmatprep.subr.bf16.mxu0 0
          %1448 = vmatpush1.bf16.msra.mxu0 0
          %1449 = vmatprep.subr.bf16.mxu0 0
          %1450 = vmatpush1.bf16.msra.mxu0 0
          %1451 = vmatprep.subr.bf16.mxu0 0
          %1452 = vmatpush1.bf16.msra.mxu0 0
          %1453 = vmatprep.subr.bf16.mxu0 0
          %1454 = vmatpush1.bf16.msra.mxu0 0
          %1455 = vmatprep.subr.bf16.mxu0 %v1425
          %1456 = vmatpush1.bf16.msra.mxu0 %v1424
          %1457 = vmatprep.subr.bf16.mxu0 %v1421
          %1458 = vmatpush1.bf16.msra.mxu0 %v1420
          %1459 = vmatprep.subr.bf16.mxu0 %v1417
          %1460 = vmatpush1.bf16.msra.mxu0 %v1416
          %1461 = vmatprep.subr.bf16.mxu0 %v1413
          %1462 = vmatpush1.bf16.msra.mxu0 %v1412
          %1463 = vmatprep.subr.bf16.mxu0 0
          %1464 = vmatpush2.bf16.msra.mxu0 0
          %1465 = vmatprep.subr.bf16.mxu0 0
          %1466 = vmatpush2.bf16.msra.mxu0 0
          %1467 = vmatprep.subr.bf16.mxu0 0
          %1468 = vmatpush2.bf16.msra.mxu0 0
          %1469 = vmatprep.subr.bf16.mxu0 0
          %1470 = vmatpush2.bf16.msra.mxu0 0
          %1471 = vmatprep.subr.bf16.mxu0 0
          %1472 = vmatpush2.bf16.msra.mxu0 0
          %1473 = vmatprep.subr.bf16.mxu0 0
          %1474 = vmatpush2.bf16.msra.mxu0 0
          %1475 = vmatprep.subr.bf16.mxu0 0
          %1476 = vmatpush2.bf16.msra.mxu0 0
          %1477 = vmatprep.subr.bf16.mxu0 0
          %1478 = vmatpush2.bf16.msra.mxu0 0
          %1479 = vmatprep.mubr.bf16.mxu0 0
          %1480 = vmatmul.mubr.bf16.gmra.mxu0 %v1445
          %v1481 = vpop.f32.mrf.mxu0
          %v1482 = vadd.f32 %v1347, %v1481
          %v1483 = vpop.f32.mrf.mxu0
          %v1484 = vadd.f32 %v1351, %v1483
          %v1485 = vpop.f32.mrf.mxu0
          %v1486 = vadd.f32 %v1347, %v1485
          %v1487 = vpop.f32.mrf.mxu0
          %v1488 = vadd.f32 %v1351, %v1487
          %1489 = vdwg.mxu0
          %1490 = vmatprep.subr.bf16.mxu0 0
          %1491 = vmatpush1.bf16.msra.mxu0 0
          %1492 = vmatprep.subr.bf16.mxu0 0
          %1493 = vmatpush1.bf16.msra.mxu0 0
          %1494 = vmatprep.subr.bf16.mxu0 0
          %1495 = vmatpush1.bf16.msra.mxu0 0
          %1496 = vmatprep.subr.bf16.mxu0 0
          %1497 = vmatpush1.bf16.msra.mxu0 0
          %1498 = vmatprep.subr.bf16.mxu0 %v1427
          %1499 = vmatpush1.bf16.msra.mxu0 %v1426
          %1500 = vmatprep.subr.bf16.mxu0 %v1423
          %1501 = vmatpush1.bf16.msra.mxu0 %v1422
          %1502 = vmatprep.subr.bf16.mxu0 %v1419
          %1503 = vmatpush1.bf16.msra.mxu0 %v1418
          %1504 = vmatprep.subr.bf16.mxu0 %v1415
          %1505 = vmatpush1.bf16.msra.mxu0 %v1414
          %1506 = vmatprep.subr.bf16.mxu0 0
          %1507 = vmatpush2.bf16.msra.mxu0 0
          %1508 = vmatprep.subr.bf16.mxu0 0
          %1509 = vmatpush2.bf16.msra.mxu0 0
          %1510 = vmatprep.subr.bf16.mxu0 0
          %1511 = vmatpush2.bf16.msra.mxu0 0
          %1512 = vmatprep.subr.bf16.mxu0 0
          %1513 = vmatpush2.bf16.msra.mxu0 0
          %1514 = vmatprep.subr.bf16.mxu0 0
          %1515 = vmatpush2.bf16.msra.mxu0 0
          %1516 = vmatprep.subr.bf16.mxu0 0
          %1517 = vmatpush2.bf16.msra.mxu0 0
          %1518 = vmatprep.subr.bf16.mxu0 0
          %1519 = vmatpush2.bf16.msra.mxu0 0
          %1520 = vmatprep.subr.bf16.mxu0 0
          %1521 = vmatpush2.bf16.msra.mxu0 0
          %1522 = vmatprep.mubr.bf16.mxu0 0
          %1523 = vmatmul.mubr.bf16.gmra.mxu0 %v1445
          %v1524 = vpop.f32.mrf.mxu0
          %v1525 = vadd.f32 %v1355, %v1524
          %v1526 = vpop.f32.mrf.mxu0
          %v1527 = vadd.f32 %v1359, %v1526
          %v1528 = vpop.f32.mrf.mxu0
          %v1529 = vadd.f32 %v1355, %v1528
          %v1530 = vpop.f32.mrf.mxu0
          %v1531 = vadd.f32 %v1359, %v1530
          %1532 = vdwg.mxu0
          %v1533 = vmul.f32 %v1525, 0.5
          %v1534 = vmul.f32 %v1527, 0.5
          %v1535 = vmul.f32 %v1529, 0.5
          %v1536 = vmul.f32 %v1531, 0.5
          %v1537 = vmul.f32 %v1525, 0.044715
          %v1538 = vmul.f32 %v1527, 0.044715
          %v1539 = vmul.f32 %v1529, 0.044715
          %v1540 = vmul.f32 %v1531, 0.044715
          %v1541 = vmul.f32 %v1537, %v1525
          %v1542 = vmul.f32 %v1538, %v1527
          %v1543 = vmul.f32 %v1539, %v1529
          %v1544 = vmul.f32 %v1540, %v1531
          %v1545 = vmul.f32 %v1541, %v1525
          %v1546 = vmul.f32 %v1542, %v1527
          %v1547 = vmul.f32 %v1543, %v1529
          %v1548 = vmul.f32 %v1544, %v1531
          %v1549 = vadd.f32 %v1525, %v1545
          %v1550 = vadd.f32 %v1527, %v1546
          %v1551 = vadd.f32 %v1529, %v1547
          %v1552 = vadd.f32 %v1531, %v1548
          %v1553 = vmul.f32 %v1549, 0.7978846
          %v1554 = vmul.f32 %v1550, 0.7978846
          %v1555 = vmul.f32 %v1551, 0.7978846
          %v1556 = vmul.f32 %v1552, 0.7978846
          %v1557 = vtanh.pop %v1553
          %v1558 = vtanh.pop %v1554
          %v1559 = vtanh.pop %v1555
          %v1560 = vtanh.pop %v1556
          %v1561 = vadd.f32 %v1557, 1.0
          %v1562 = vadd.f32 %v1558, 1.0
          %v1563 = vadd.f32 %v1559, 1.0
          %v1564 = vadd.f32 %v1560, 1.0
          %v1565 = vmul.f32 %v1533, %v1561
          %v1566 = vmul.f32 %v1534, %v1562
          %v1567 = vmul.f32 %v1535, %v1563
          %v1568 = vmul.f32 %v1536, %v1564
          %v1569 = vmul.f32 %v1482, %v1565
          %v1570 = vmul.f32 %v1484, %v1566
          %v1571 = vmul.f32 %v1486, %v1567
          %v1572 = vmul.f32 %v1488, %v1568
          %v1573 = vpack.c.bf16 %v1571, %v1569
          %v1574 = vpack.c.bf16 %v1572, %v1570
          %v1576 = vlaneseq
          %v1577 = vshrl.u32 %v1576, 7
          %v1578 = vsub.s32 0, %v1577
          %v1579 = vrot.slane %v1298, %v1578
          %v1613 = vunpack.c.l.b16 %v1266
          %v1614 = vunpack.c.l.b16 %v1267
          %v1615 = vunpack.c.l.b16 %v1268
          %v1616 = vunpack.c.l.b16 %v1269
          %v1617 = vunpack.c.l.b16 %v1270
          %v1618 = vunpack.c.l.b16 %v1271
          %v1619 = vunpack.c.l.b16 %v1272
          %v1620 = vunpack.c.l.b16 %v1273
          %v1621 = vunpack.c.l.b16 %v1274
          %v1622 = vunpack.c.l.b16 %v1275
          %v1623 = vunpack.c.l.b16 %v1276
          %v1624 = vunpack.c.l.b16 %v1277
          %v1625 = vunpack.c.l.b16 %v1278
          %v1626 = vunpack.c.l.b16 %v1279
          %v1627 = vunpack.c.l.b16 %v1280
          %v1628 = vunpack.c.l.b16 %v1281
          %v1629 = vunpack.c.l.b16 %v1282
          %v1630 = vunpack.c.l.b16 %v1283
          %v1631 = vunpack.c.l.b16 %v1284
          %v1632 = vunpack.c.l.b16 %v1285
          %v1633 = vunpack.c.l.b16 %v1286
          %v1634 = vunpack.c.l.b16 %v1287
          %v1635 = vunpack.c.l.b16 %v1288
          %v1636 = vunpack.c.l.b16 %v1289
          %v1637 = vunpack.c.l.b16 %v1290
          %v1638 = vunpack.c.l.b16 %v1291
          %v1639 = vunpack.c.l.b16 %v1292
          %v1640 = vunpack.c.l.b16 %v1293
          %v1641 = vunpack.c.l.b16 %v1294
          %v1642 = vunpack.c.l.b16 %v1295
          %v1643 = vunpack.c.l.b16 %v1296
          %v1644 = vunpack.c.l.b16 %v1297
          %v1645 = vpack.c.b16 %v1614, %v1613
          %v1646 = vpack.c.b16 %v1616, %v1615
          %v1647 = vpack.c.b16 %v1618, %v1617
          %v1648 = vpack.c.b16 %v1620, %v1619
          %v1649 = vpack.c.b16 %v1622, %v1621
          %v1650 = vpack.c.b16 %v1624, %v1623
          %v1651 = vpack.c.b16 %v1626, %v1625
          %v1652 = vpack.c.b16 %v1628, %v1627
          %v1653 = vpack.c.b16 %v1630, %v1629
          %v1654 = vpack.c.b16 %v1632, %v1631
          %v1655 = vpack.c.b16 %v1634, %v1633
          %v1656 = vpack.c.b16 %v1636, %v1635
          %v1657 = vpack.c.b16 %v1638, %v1637
          %v1658 = vpack.c.b16 %v1640, %v1639
          %v1659 = vpack.c.b16 %v1642, %v1641
          %v1660 = vpack.c.b16 %v1644, %v1643
          %1677 = vmatprep.subr.bf16.mxu0 0
          %1678 = vmatpush1.bf16.msra.mxu0 %v1652
          %1679 = vmatprep.subr.bf16.mxu0 0
          %1680 = vmatpush1.bf16.msra.mxu0 %v1651
          %1681 = vmatprep.subr.bf16.mxu0 0
          %1682 = vmatpush1.bf16.msra.mxu0 %v1650
          %1683 = vmatprep.subr.bf16.mxu0 0
          %1684 = vmatpush1.bf16.msra.mxu0 %v1649
          %1685 = vmatprep.subr.bf16.mxu0 0
          %1686 = vmatpush1.bf16.msra.mxu0 %v1648
          %1687 = vmatprep.subr.bf16.mxu0 0
          %1688 = vmatpush1.bf16.msra.mxu0 %v1647
          %1689 = vmatprep.subr.bf16.mxu0 0
          %1690 = vmatpush1.bf16.msra.mxu0 %v1646
          %1691 = vmatprep.subr.bf16.mxu0 0
          %1692 = vmatpush1.bf16.msra.mxu0 %v1645
          %1693 = vmatprep.subr.bf16.mxu0 0
          %1694 = vmatpush2.bf16.msra.mxu0 %v1660
          %1695 = vmatprep.subr.bf16.mxu0 0
          %1696 = vmatpush2.bf16.msra.mxu0 %v1659
          %1697 = vmatprep.subr.bf16.mxu0 0
          %1698 = vmatpush2.bf16.msra.mxu0 %v1658
          %1699 = vmatprep.subr.bf16.mxu0 0
          %1700 = vmatpush2.bf16.msra.mxu0 %v1657
          %1701 = vmatprep.subr.bf16.mxu0 0
          %1702 = vmatpush2.bf16.msra.mxu0 %v1656
          %1703 = vmatprep.subr.bf16.mxu0 0
          %1704 = vmatpush2.bf16.msra.mxu0 %v1655
          %1705 = vmatprep.subr.bf16.mxu0 0
          %1706 = vmatpush2.bf16.msra.mxu0 %v1654
          %1707 = vmatprep.subr.bf16.mxu0 0
          %1708 = vmatpush2.bf16.msra.mxu0 %v1653
          %1709 = vmatprep.mubr.bf16.mxu0 %v1574
          %1710 = vmatmul.mubr.bf16.gmra.mxu0 %v1573
          %v1711 = vpop.f32.mrf.mxu0
          %v1712 = vadd.f32 %v1579, %v1711
          %v1713 = vpop.f32.mrf.mxu0
          %v1714 = vpop.f32.mrf.mxu0
          %v1715 = vadd.f32 %v1579, %v1714
          %v1716 = vpop.f32.mrf.mxu0
          %1717 = vdwg.mxu0
          %v1718 = vadd.f32 %v1712, %v1245
          %v1719 = vadd.f32 %v1715, %v1246
          %1720 = vst.msk [vmem:[%s665] sm:$0xff] %vm972, %v1718
          %1721 = vst.msk [vmem:[%s665 + $0x8] sm:$0xff] %vm972, %v1719
        $region124: #{_lambda_.3} parent=87 // pred_fallthru
          _
        %p1722 = scmp.lt.s32.totalorder %s38, 1
        %s1723 = scalar_select %p1722, %s38, 1
        %s1724 = smul.addr %s1723, 2
        %s1725 = smul.addr %s1724, 8
        %s1726 = scalar_lea.vmem %s17, %s1725
        // Predicated region
        $region125: #{_lambda_.3} parent=87 // pred_check
          %p1727 = pneg %p428
        $region126: #{_lambda_.3} parent=87 // pred_check_branch
          %1729 = sbr.rel (%p1727) target = $region128
        $region127: #{_lambda_.3} parent=87 // pred_region
          _
        $region128: #{_lambda_.3} parent=87 // pred_fallthru
          _
      $region88: #{_lambda_.3} parent=5 // pred_fallthru
        _
      %p1730 = scmp.le.s32.totalorder 2, %s29
      // Predicated region
      $region129: #{_lambda_.3} parent=5 // pred_check
        %p1731 = pneg %p1730
      $region130: #{_lambda_.3} parent=5 // pred_check_branch
        %1733 = sbr.rel (%p1731) target = $region132
      $region131: #{_lambda_.3} parent=5 // pred_region
        %s1734 = ssub.s32 %s29, 2
        // Predicated region
        $region133: #{_lambda_.3} parent=131 // pred_check
          %p1735 = pneg %p434
        $region134: #{_lambda_.3} parent=131 // pred_check_branch
          %1737 = sbr.rel (%p1735) target = $region136
        $region135: #{_lambda_.3} parent=131 // pred_region
          %p1738 = scmp.lt.s32.totalorder %s40, 1
          %s1739 = scalar_select %p1738, %s40, 1
          %s1740 = smul.addr %s1739, 2
          %s1741 = smul.addr %s1740, 8
          %s1742 = scalar_lea.vmem %s17, %s1741
        $region136: #{_lambda_.3} parent=131 // pred_fallthru
          _
      $region132: #{_lambda_.3} parent=5 // pred_fallthru
        _
    $region6: #{_lambda_.3} parent=1 // loop_footer
      %s33 = sadd.s32 1, %s29
    $region7: #{_lambda_.3} parent=1 // loop_footer_branch
      %28 = sbr.rel target = $region3
    $region8: #{_lambda_.3} parent=1 // loop_exit
      _
    %1743 = vsyncpa [#allocation7], 1
    %s1744 = scalar_lea.sflag [#allocation7], 1
    %1745 = vsyncpa %s1744, 1
    %1746 = vsyncpa [#allocation9], 1
    %s1747 = scalar_lea.sflag [#allocation9], 1
    %1748 = vsyncpa %s1747, 1
    %1749 = vsyncpa [#allocation12], 1
    %1750 = vsyncpa [#allocation15], 1

// kernel: _lambda_.4
$region0: #{_lambda_.4}
  #allocation0 [shape = 'u32[]', space=smem, size = 0x4, offset = 0x4, fixed_abs, tag = 'smem constant byte address 0x4 - core index']
  #allocation1 [shape = 'u32[144,128]{1,0:T(1,128)}', space=vmem, size = 0x12000, scoped, tag = 'internal scratch']
  #allocation2 [shape = 'f32[16,64]{1,0:T(8,128)}', space=vmem, size = 0x2000, scoped, tag = 'scratch operand']
  #allocation3 [shape = 'f32[16,512]{1,0:T(8,128)}', space=vmem, size = 0x8000, scoped, tag = 'scratch operand']
  %s0 = inlined_call_operand.vmem [shape: f32[2,16,64], index: 0, kind: input, shape index: {}]
  %s1 = inlined_call_operand.vmem [shape: f32[2,1,64], index: 1, kind: input, shape index: {}, may-alias: {1,8}]
  %s2 = inlined_call_operand.vmem [shape: f32[2,1,64], index: 2, kind: input, shape index: {}, may-alias: {2,9}]
  %s3 = inlined_call_operand.hbm [shape: bf16[2,64,512], index: 3, kind: input, shape index: {}]
  %s4 = inlined_call_operand.hbm [shape: bf16[2,64,512], index: 4, kind: input, shape index: {}]
  %s5 = inlined_call_operand.hbm [shape: bf16[2,64,512], index: 5, kind: input, shape index: {}]
  %s6 = inlined_call_operand.hbm [shape: bf16[2,512,64], index: 6, kind: input, shape index: {}]
  %s7 = inlined_call_operand.vmem [shape: f32[2,1,64], index: 7, kind: input, shape index: {}]
  %s8 = inlined_call_operand.vmem [shape: f32[2,1,64], index: 8, kind: input, shape index: {}, may-alias: {1,8}]
  %s9 = inlined_call_operand.vmem [shape: f32[2,1,64], index: 9, kind: input, shape index: {}, may-alias: {2,9}]
  %s10 = inlined_call_operand.hbm [shape: bf16[2,64,512], index: 10, kind: input, shape index: {}]
  %s11 = inlined_call_operand.vmem [shape: f32[2,1,512], index: 11, kind: input, shape index: {}]
  %s12 = inlined_call_operand.vmem [shape: bf16[2,256,64], index: 12, kind: input, shape index: {}]
  %s13 = inlined_call_operand.vmem [shape: f32[2,1,64], index: 13, kind: input, shape index: {}]
  %s14 = inlined_call_operand.vmem [shape: f32[2,16,64], index: 14, kind: output, shape index: {}]
  %s15 = sld [smem:[#allocation0]]
  $region117: #{_lambda_.4} parent=0
    _
  %s17 = ssub.s32 1, %s15
  %s18 = scalar_select 0, %s17, %s15
  $region1: #{_lambda_.4} parent=0
    #allocation4 [shape = 'u8[131072]{0}', space=vmem, size = 0x20000, scoped, tag = 'input window, operand 3']
    #allocation5 [shape = 's32[2]{0}', space=sflag, size = 0x8, scoped, tag = 'scoped memory for _lambda_.4']
    #allocation6 [shape = 'u8[131072]{0}', space=vmem, size = 0x20000, scoped, tag = 'input window, operand 4']
    #allocation7 [shape = 's32[2]{0}', space=sflag, size = 0x8, scoped, tag = 'scoped memory for _lambda_.4']
    #allocation8 [shape = 'u8[131072]{0}', space=vmem, size = 0x20000, scoped, tag = 'input window, operand 5']
    #allocation9 [shape = 'u8[262144]{0}', space=vmem, size = 0x40000, scoped, tag = 'input window, operand 6']
    #allocation10 [shape = 's32[2]{0}', space=sflag, size = 0x8, scoped, tag = 'scoped memory for _lambda_.4']
    #allocation11 [shape = 'u8[131072]{0}', space=vmem, size = 0x20000, scoped, tag = 'input window, operand 10']
    %19 = vsyncpa [#allocation5], 0
    %s20 = scalar_lea.sflag [#allocation5], 1
    %21 = vsyncpa %s20, 0
    %22 = vsyncpa [#allocation7], 0
    %s23 = scalar_lea.sflag [#allocation7], 1
    %24 = vsyncpa %s23, 0
    %25 = vsyncpa [#allocation10], 0
    %s26 = scalar_lea.sflag [#allocation10], 1
    %27 = vsyncpa %s26, 0
    loop: start=0, step=1, limit=6
    $region2: #{_lambda_.4} parent=1 // loop_pre_header
      _
    $region3: #{_lambda_.4} parent=1 // loop_header
      %s29 = sphi 0, %s33
      %p30 = scmp.ge.s32.totalorder %s29, 6
      %s36 = sphi 0, %s48
      %s37 = sphi 0, %s44
      %s38 = sphi 0, %s36
      %s39 = sphi 0, %s37
      %s40 = sphi 0, %s38
      %s41 = sphi 0, %s39
      %s51 = sphi 0, %s53
      %s54 = sphi 0, %s51
      %s55 = sphi 0, %s54
      %s71 = sphi 0, %s55
      %s77 = sphi 0, %s79
      %s80 = sphi 0, %s77
      %s81 = sphi 0, %s80
      %s97 = sphi 0, %s81
      %s103 = sphi 0, %s105
      %s106 = sphi 0, %s103
      %s107 = sphi 0, %s106
      %s123 = sphi 0, %s107
      %s129 = sphi 0, %s131
      %s132 = sphi 0, %s129
      %s133 = sphi 0, %s132
      %s149 = sphi 0, %s133
      %s155 = sphi 0, %s157
      %s158 = sphi 0, %s155
      %s159 = sphi 0, %s158
      %s175 = sphi 0, %s159
      %s181 = sphi 0, %s183
      %s184 = sphi 0, %s181
      %s185 = sphi 0, %s184
      %s201 = sphi 0, %s185
      %s207 = sphi 0, %s209
      %s210 = sphi 0, %s207
      %s211 = sphi 0, %s210
      %s227 = sphi 0, %s211
      %s233 = sphi 0, %s235
      %s236 = sphi 0, %s233
      %s237 = sphi 0, %s236
      %s253 = sphi 0, %s237
      %s259 = sphi 0, %s261
      %s262 = sphi 0, %s259
      %s263 = sphi 0, %s262
      %s279 = sphi 0, %s263
      %s285 = sphi 0, %s287
      %s288 = sphi 0, %s285
      %s289 = sphi 0, %s288
      %s305 = sphi 0, %s289
      %s311 = sphi 0, %s313
      %s314 = sphi 0, %s311
      %s315 = sphi 0, %s314
      %s331 = sphi 0, %s315
      %s337 = sphi 0, %s339
      %s340 = sphi 0, %s337
      %s341 = sphi 0, %s340
      %s357 = sphi 0, %s341
      %s363 = sphi 0, %s365
      %s366 = sphi 0, %s363
      %s367 = sphi 0, %s366
      %s383 = sphi 0, %s367
      %s389 = sphi 0, %s391
      %s392 = sphi 0, %s389
      %s393 = sphi 0, %s392
      %s409 = sphi 0, %s393
      %s415 = sphi 0, %s417
      %s418 = sphi 0, %s415
      %s419 = sphi 0, %s418
      %s435 = sphi 0, %s419
    $region4: #{_lambda_.4} parent=1 // loop_header_branch
      %32 = sbr.rel (%p30) target = $region8
    $region5: #{_lambda_.4} parent=1 // loop_body
      %s34 = ssub.s32 %s29, 1
      %s35 = ssub.s32 %s29, 2
      %s42 = sadd.s32 1, %s37
      %p43 = scmp.ge.s32.totalorder %s42, 2
      %s44 = scalar_select %p43, 0, %s42
      %s45 = sadd.s32 1, %s36
      %s46 = scalar_select %p43, %s45, %s36
      %p47 = scmp.ge.s32.totalorder %s46, 2
      %s48 = scalar_select %p47, 0, %s46
      %s49 = ssub.s32 %s36, %s48
      %p50 = scmp.eq.s32.totalorder %s49, 0
      %s52 = sadd.s32 %s51, 1
      %s53 = scalar_select %p50, %s51, %s52
      %p56 = pneg %p50
      %p57 = scmp.eq.s32.totalorder %s29, 3
      %p58 = por %p56, %p57
      %p59 = scmp.ne.s32.totalorder %s51, %s54
      %p60 = scmp.eq.s32.totalorder %s29, 0
      %p61 = por %p59, %p60
      %p62 = scmp.ne.s32.totalorder %s51, %s54
      %p63 = scmp.eq.s32.totalorder %s34, 3
      %p64 = por %p62, %p63
      %p65 = scmp.ne.s32.totalorder %s54, %s55
      %p66 = scmp.eq.s32.totalorder %s34, 0
      %p67 = por %p65, %p66
      %p68 = scmp.ne.s32.totalorder %s54, %s55
      %p69 = scmp.eq.s32.totalorder %s35, 3
      %p70 = por %p68, %p69
      %p72 = scmp.ne.s32.totalorder %s55, %s71
      %p73 = scmp.eq.s32.totalorder %s35, 0
      %p74 = por %p72, %p73
      %s75 = ssub.s32 %s37, %s44
      %p76 = scmp.eq.s32.totalorder %s75, 0
      %s78 = sadd.s32 %s77, 1
      %s79 = scalar_select %p76, %s77, %s78
      %p82 = pneg %p76
      %p83 = scmp.eq.s32.totalorder %s29, 3
      %p84 = por %p82, %p83
      %p85 = scmp.ne.s32.totalorder %s77, %s80
      %p86 = scmp.eq.s32.totalorder %s29, 0
      %p87 = por %p85, %p86
      %p88 = scmp.ne.s32.totalorder %s77, %s80
      %p89 = scmp.eq.s32.totalorder %s34, 3
      %p90 = por %p88, %p89
      %p91 = scmp.ne.s32.totalorder %s80, %s81
      %p92 = scmp.eq.s32.totalorder %s34, 0
      %p93 = por %p91, %p92
      %p94 = scmp.ne.s32.totalorder %s80, %s81
      %p95 = scmp.eq.s32.totalorder %s35, 3
      %p96 = por %p94, %p95
      %p98 = scmp.ne.s32.totalorder %s81, %s97
      %p99 = scmp.eq.s32.totalorder %s35, 0
      %p100 = por %p98, %p99
      %s101 = ssub.s32 %s37, %s44
      %p102 = scmp.eq.s32.totalorder %s101, 0
      %s104 = sadd.s32 %s103, 1
      %s105 = scalar_select %p102, %s103, %s104
      %p108 = pneg %p102
      %p109 = scmp.eq.s32.totalorder %s29, 3
      %p110 = por %p108, %p109
      %p111 = scmp.ne.s32.totalorder %s103, %s106
      %p112 = scmp.eq.s32.totalorder %s29, 0
      %p113 = por %p111, %p112
      %p114 = scmp.ne.s32.totalorder %s103, %s106
      %p115 = scmp.eq.s32.totalorder %s34, 3
      %p116 = por %p114, %p115
      %p117 = scmp.ne.s32.totalorder %s106, %s107
      %p118 = scmp.eq.s32.totalorder %s34, 0
      %p119 = por %p117, %p118
      %p120 = scmp.ne.s32.totalorder %s106, %s107
      %p121 = scmp.eq.s32.totalorder %s35, 3
      %p122 = por %p120, %p121
      %p124 = scmp.ne.s32.totalorder %s107, %s123
      %p125 = scmp.eq.s32.totalorder %s35, 0
      %p126 = por %p124, %p125
      %s127 = ssub.s32 %s37, %s44
      %p128 = scmp.eq.s32.totalorder %s127, 0
      %s130 = sadd.s32 %s129, 1
      %s131 = scalar_select %p128, %s129, %s130
      %p134 = pneg %p128
      %p135 = scmp.eq.s32.totalorder %s29, 3
      %p136 = por %p134, %p135
      %p137 = scmp.ne.s32.totalorder %s129, %s132
      %p138 = scmp.eq.s32.totalorder %s29, 0
      %p139 = por %p137, %p138
      %p140 = scmp.ne.s32.totalorder %s129, %s132
      %p141 = scmp.eq.s32.totalorder %s34, 3
      %p142 = por %p140, %p141
      %p143 = scmp.ne.s32.totalorder %s132, %s133
      %p144 = scmp.eq.s32.totalorder %s34, 0
      %p145 = por %p143, %p144
      %p146 = scmp.ne.s32.totalorder %s132, %s133
      %p147 = scmp.eq.s32.totalorder %s35, 3
      %p148 = por %p146, %p147
      %p150 = scmp.ne.s32.totalorder %s133, %s149
      %p151 = scmp.eq.s32.totalorder %s35, 0
      %p152 = por %p150, %p151
      %s153 = ssub.s32 %s37, %s44
      %p154 = scmp.eq.s32.totalorder %s153, 0
      %s156 = sadd.s32 %s155, 1
      %s157 = scalar_select %p154, %s155, %s156
      %p160 = pneg %p154
      %p161 = scmp.eq.s32.totalorder %s29, 3
      %p162 = por %p160, %p161
      %p163 = scmp.ne.s32.totalorder %s155, %s158
      %p164 = scmp.eq.s32.totalorder %s29, 0
      %p165 = por %p163, %p164
      %p166 = scmp.ne.s32.totalorder %s155, %s158
      %p167 = scmp.eq.s32.totalorder %s34, 3
      %p168 = por %p166, %p167
      %p169 = scmp.ne.s32.totalorder %s158, %s159
      %p170 = scmp.eq.s32.totalorder %s34, 0
      %p171 = por %p169, %p170
      %p172 = scmp.ne.s32.totalorder %s158, %s159
      %p173 = scmp.eq.s32.totalorder %s35, 3
      %p174 = por %p172, %p173
      %p176 = scmp.ne.s32.totalorder %s159, %s175
      %p177 = scmp.eq.s32.totalorder %s35, 0
      %p178 = por %p176, %p177
      %s179 = ssub.s32 %s37, %s44
      %p180 = scmp.eq.s32.totalorder %s179, 0
      %s182 = sadd.s32 %s181, 1
      %s183 = scalar_select %p180, %s181, %s182
      %p186 = pneg %p180
      %p187 = scmp.eq.s32.totalorder %s29, 3
      %p188 = por %p186, %p187
      %p189 = scmp.ne.s32.totalorder %s181, %s184
      %p190 = scmp.eq.s32.totalorder %s29, 0
      %p191 = por %p189, %p190
      %p192 = scmp.ne.s32.totalorder %s181, %s184
      %p193 = scmp.eq.s32.totalorder %s34, 3
      %p194 = por %p192, %p193
      %p195 = scmp.ne.s32.totalorder %s184, %s185
      %p196 = scmp.eq.s32.totalorder %s34, 0
      %p197 = por %p195, %p196
      %p198 = scmp.ne.s32.totalorder %s184, %s185
      %p199 = scmp.eq.s32.totalorder %s35, 3
      %p200 = por %p198, %p199
      %p202 = scmp.ne.s32.totalorder %s185, %s201
      %p203 = scmp.eq.s32.totalorder %s35, 0
      %p204 = por %p202, %p203
      %s205 = ssub.s32 %s37, %s44
      %p206 = scmp.eq.s32.totalorder %s205, 0
      %s208 = sadd.s32 %s207, 1
      %s209 = scalar_select %p206, %s207, %s208
      %p212 = pneg %p206
      %p213 = scmp.eq.s32.totalorder %s29, 3
      %p214 = por %p212, %p213
      %p215 = scmp.ne.s32.totalorder %s207, %s210
      %p216 = scmp.eq.s32.totalorder %s29, 0
      %p217 = por %p215, %p216
      %p218 = scmp.ne.s32.totalorder %s207, %s210
      %p219 = scmp.eq.s32.totalorder %s34, 3
      %p220 = por %p218, %p219
      %p221 = scmp.ne.s32.totalorder %s210, %s211
      %p222 = scmp.eq.s32.totalorder %s34, 0
      %p223 = por %p221, %p222
      %p224 = scmp.ne.s32.totalorder %s210, %s211
      %p225 = scmp.eq.s32.totalorder %s35, 3
      %p226 = por %p224, %p225
      %p228 = scmp.ne.s32.totalorder %s211, %s227
      %p229 = scmp.eq.s32.totalorder %s35, 0
      %p230 = por %p228, %p229
      %s231 = ssub.s32 %s37, %s44
      %p232 = scmp.eq.s32.totalorder %s231, 0
      %s234 = sadd.s32 %s233, 1
      %s235 = scalar_select %p232, %s233, %s234
      %p238 = pneg %p232
      %p239 = scmp.eq.s32.totalorder %s29, 3
      %p240 = por %p238, %p239
      %p241 = scmp.ne.s32.totalorder %s233, %s236
      %p242 = scmp.eq.s32.totalorder %s29, 0
      %p243 = por %p241, %p242
      %p244 = scmp.ne.s32.totalorder %s233, %s236
      %p245 = scmp.eq.s32.totalorder %s34, 3
      %p246 = por %p244, %p245
      %p247 = scmp.ne.s32.totalorder %s236, %s237
      %p248 = scmp.eq.s32.totalorder %s34, 0
      %p249 = por %p247, %p248
      %p250 = scmp.ne.s32.totalorder %s236, %s237
      %p251 = scmp.eq.s32.totalorder %s35, 3
      %p252 = por %p250, %p251
      %p254 = scmp.ne.s32.totalorder %s237, %s253
      %p255 = scmp.eq.s32.totalorder %s35, 0
      %p256 = por %p254, %p255
      %s257 = ssub.s32 %s37, %s44
      %p258 = scmp.eq.s32.totalorder %s257, 0
      %s260 = sadd.s32 %s259, 1
      %s261 = scalar_select %p258, %s259, %s260
      %p264 = pneg %p258
      %p265 = scmp.eq.s32.totalorder %s29, 3
      %p266 = por %p264, %p265
      %p267 = scmp.ne.s32.totalorder %s259, %s262
      %p268 = scmp.eq.s32.totalorder %s29, 0
      %p269 = por %p267, %p268
      %p270 = scmp.ne.s32.totalorder %s259, %s262
      %p271 = scmp.eq.s32.totalorder %s34, 3
      %p272 = por %p270, %p271
      %p273 = scmp.ne.s32.totalorder %s262, %s263
      %p274 = scmp.eq.s32.totalorder %s34, 0
      %p275 = por %p273, %p274
      %p276 = scmp.ne.s32.totalorder %s262, %s263
      %p277 = scmp.eq.s32.totalorder %s35, 3
      %p278 = por %p276, %p277
      %p280 = scmp.ne.s32.totalorder %s263, %s279
      %p281 = scmp.eq.s32.totalorder %s35, 0
      %p282 = por %p280, %p281
      %s283 = ssub.s32 %s37, %s44
      %p284 = scmp.eq.s32.totalorder %s283, 0
      %s286 = sadd.s32 %s285, 1
      %s287 = scalar_select %p284, %s285, %s286
      %p290 = pneg %p284
      %p291 = scmp.eq.s32.totalorder %s29, 3
      %p292 = por %p290, %p291
      %p293 = scmp.ne.s32.totalorder %s285, %s288
      %p294 = scmp.eq.s32.totalorder %s29, 0
      %p295 = por %p293, %p294
      %p296 = scmp.ne.s32.totalorder %s285, %s288
      %p297 = scmp.eq.s32.totalorder %s34, 3
      %p298 = por %p296, %p297
      %p299 = scmp.ne.s32.totalorder %s288, %s289
      %p300 = scmp.eq.s32.totalorder %s34, 0
      %p301 = por %p299, %p300
      %p302 = scmp.ne.s32.totalorder %s288, %s289
      %p303 = scmp.eq.s32.totalorder %s35, 3
      %p304 = por %p302, %p303
      %p306 = scmp.ne.s32.totalorder %s289, %s305
      %p307 = scmp.eq.s32.totalorder %s35, 0
      %p308 = por %p306, %p307
      %s309 = ssub.s32 %s37, %s44
      %p310 = scmp.eq.s32.totalorder %s309, 0
      %s312 = sadd.s32 %s311, 1
      %s313 = scalar_select %p310, %s311, %s312
      %p316 = pneg %p310
      %p317 = scmp.eq.s32.totalorder %s29, 3
      %p318 = por %p316, %p317
      %p319 = scmp.ne.s32.totalorder %s311, %s314
      %p320 = scmp.eq.s32.totalorder %s29, 0
      %p321 = por %p319, %p320
      %p322 = scmp.ne.s32.totalorder %s311, %s314
      %p323 = scmp.eq.s32.totalorder %s34, 3
      %p324 = por %p322, %p323
      %p325 = scmp.ne.s32.totalorder %s314, %s315
      %p326 = scmp.eq.s32.totalorder %s34, 0
      %p327 = por %p325, %p326
      %p328 = scmp.ne.s32.totalorder %s314, %s315
      %p329 = scmp.eq.s32.totalorder %s35, 3
      %p330 = por %p328, %p329
      %p332 = scmp.ne.s32.totalorder %s315, %s331
      %p333 = scmp.eq.s32.totalorder %s35, 0
      %p334 = por %p332, %p333
      %s335 = ssub.s32 %s37, %s44
      %p336 = scmp.eq.s32.totalorder %s335, 0
      %s338 = sadd.s32 %s337, 1
      %s339 = scalar_select %p336, %s337, %s338
      %p342 = pneg %p336
      %p343 = scmp.eq.s32.totalorder %s29, 3
      %p344 = por %p342, %p343
      %p345 = scmp.ne.s32.totalorder %s337, %s340
      %p346 = scmp.eq.s32.totalorder %s29, 0
      %p347 = por %p345, %p346
      %p348 = scmp.ne.s32.totalorder %s337, %s340
      %p349 = scmp.eq.s32.totalorder %s34, 3
      %p350 = por %p348, %p349
      %p351 = scmp.ne.s32.totalorder %s340, %s341
      %p352 = scmp.eq.s32.totalorder %s34, 0
      %p353 = por %p351, %p352
      %p354 = scmp.ne.s32.totalorder %s340, %s341
      %p355 = scmp.eq.s32.totalorder %s35, 3
      %p356 = por %p354, %p355
      %p358 = scmp.ne.s32.totalorder %s341, %s357
      %p359 = scmp.eq.s32.totalorder %s35, 0
      %p360 = por %p358, %p359
      %s361 = ssub.s32 %s37, %s44
      %p362 = scmp.eq.s32.totalorder %s361, 0
      %s364 = sadd.s32 %s363, 1
      %s365 = scalar_select %p362, %s363, %s364
      %p368 = pneg %p362
      %p369 = scmp.eq.s32.totalorder %s29, 3
      %p370 = por %p368, %p369
      %p371 = scmp.ne.s32.totalorder %s363, %s366
      %p372 = scmp.eq.s32.totalorder %s29, 0
      %p373 = por %p371, %p372
      %p374 = scmp.ne.s32.totalorder %s363, %s366
      %p375 = scmp.eq.s32.totalorder %s34, 3
      %p376 = por %p374, %p375
      %p377 = scmp.ne.s32.totalorder %s366, %s367
      %p378 = scmp.eq.s32.totalorder %s34, 0
      %p379 = por %p377, %p378
      %p380 = scmp.ne.s32.totalorder %s366, %s367
      %p381 = scmp.eq.s32.totalorder %s35, 3
      %p382 = por %p380, %p381
      %p384 = scmp.ne.s32.totalorder %s367, %s383
      %p385 = scmp.eq.s32.totalorder %s35, 0
      %p386 = por %p384, %p385
      %s387 = ssub.s32 %s37, %s44
      %p388 = scmp.eq.s32.totalorder %s387, 0
      %s390 = sadd.s32 %s389, 1
      %s391 = scalar_select %p388, %s389, %s390
      %p394 = pneg %p388
      %p395 = scmp.eq.s32.totalorder %s29, 3
      %p396 = por %p394, %p395
      %p397 = scmp.ne.s32.totalorder %s389, %s392
      %p398 = scmp.eq.s32.totalorder %s29, 0
      %p399 = por %p397, %p398
      %p400 = scmp.ne.s32.totalorder %s389, %s392
      %p401 = scmp.eq.s32.totalorder %s34, 3
      %p402 = por %p400, %p401
      %p403 = scmp.ne.s32.totalorder %s392, %s393
      %p404 = scmp.eq.s32.totalorder %s34, 0
      %p405 = por %p403, %p404
      %p406 = scmp.ne.s32.totalorder %s392, %s393
      %p407 = scmp.eq.s32.totalorder %s35, 3
      %p408 = por %p406, %p407
      %p410 = scmp.ne.s32.totalorder %s393, %s409
      %p411 = scmp.eq.s32.totalorder %s35, 0
      %p412 = por %p410, %p411
      %s413 = ssub.s32 %s36, %s48
      %p414 = scmp.eq.s32.totalorder %s413, 0
      %s416 = sadd.s32 %s415, 1
      %s417 = scalar_select %p414, %s415, %s416
      %p420 = pneg %p414
      %p421 = scmp.eq.s32.totalorder %s29, 3
      %p422 = por %p420, %p421
      %p423 = scmp.ne.s32.totalorder %s415, %s418
      %p424 = scmp.eq.s32.totalorder %s29, 0
      %p425 = por %p423, %p424
      %p426 = scmp.ne.s32.totalorder %s415, %s418
      %p427 = scmp.eq.s32.totalorder %s34, 3
      %p428 = por %p426, %p427
      %p429 = scmp.ne.s32.totalorder %s418, %s419
      %p430 = scmp.eq.s32.totalorder %s34, 0
      %p431 = por %p429, %p430
      %p432 = scmp.ne.s32.totalorder %s418, %s419
      %p433 = scmp.eq.s32.totalorder %s35, 3
      %p434 = por %p432, %p433
      %p436 = scmp.ne.s32.totalorder %s419, %s435
      %p437 = scmp.eq.s32.totalorder %s35, 0
      %p438 = por %p436, %p437
      %p439 = scmp.le.s32.totalorder 1, %s29
      %p440 = scmp.lt.s32.totalorder %s29, 5
      %p441 = pnand %p439, %p440
      %p442 = pneg %p441
      // Predicated region
      $region9: #{_lambda_.4} parent=5 // pred_check
        _
      $region10: #{_lambda_.4} parent=5 // pred_check_branch
        %444 = sbr.rel (%p441) target = $region12
      $region11: #{_lambda_.4} parent=5 // pred_region
        %s445 = ssub.s32 %s29, 1
      $region12: #{_lambda_.4} parent=5 // pred_fallthru
        _
      %p446 = scmp.lt.s32.totalorder %s29, 4
      // Predicated region
      $region13: #{_lambda_.4} parent=5 // pred_check
        %p447 = pneg %p446
      $region14: #{_lambda_.4} parent=5 // pred_check_branch
        %449 = sbr.rel (%p447) target = $region16
      $region15: #{_lambda_.4} parent=5 // pred_region
        // Predicated region
        $region17: #{_lambda_.4} parent=15 // pred_check
          %p450 = pneg %p61
        $region18: #{_lambda_.4} parent=15 // pred_check_branch
          %452 = sbr.rel (%p450) target = $region20
        $region19: #{_lambda_.4} parent=15 // pred_region
          %p453 = scmp.lt.s32.totalorder %s36, 1
          %s454 = scalar_select %p453, %s36, 1
          %s455 = smul.addr %s454, 2
          %s456 = smul.addr %s455, 8
          %s457 = scalar_lea.vmem %s0, %s456
        $region20: #{_lambda_.4} parent=15 // pred_fallthru
          _
        // Predicated region
        $region21: #{_lambda_.4} parent=15 // pred_check
          %p458 = pneg %p87
        $region22: #{_lambda_.4} parent=15 // pred_check_branch
          %460 = sbr.rel (%p458) target = $region24
        $region23: #{_lambda_.4} parent=15 // pred_region
          %p461 = scmp.lt.s32.totalorder %s37, 1
          %s462 = scalar_select %p461, %s37, 1
          %s463 = scalar_lea.vmem %s1, %s462
        $region24: #{_lambda_.4} parent=15 // pred_fallthru
          _
        // Predicated region
        $region25: #{_lambda_.4} parent=15 // pred_check
          %p464 = pneg %p113
        $region26: #{_lambda_.4} parent=15 // pred_check_branch
          %466 = sbr.rel (%p464) target = $region28
        $region27: #{_lambda_.4} parent=15 // pred_region
          %p467 = scmp.lt.s32.totalorder %s37, 1
          %s468 = scalar_select %p467, %s37, 1
          %s469 = scalar_lea.vmem %s2, %s468
        $region28: #{_lambda_.4} parent=15 // pred_fallthru
          _
        // Predicated region
        $region29: #{_lambda_.4} parent=15 // pred_check
          %p470 = pneg %p139
        $region30: #{_lambda_.4} parent=15 // pred_check_branch
          %472 = sbr.rel (%p470) target = $region32
        $region31: #{_lambda_.4} parent=15 // pred_region
          %s473 = sand.u32 %s129, 1
          %s474 = scalar_lea.sflag [#allocation5], %s473
          %s475 = sand.u32 %s129, 1
          %s476 = smul.addr %s475, 128
          %s477 = scalar_lea.vmem [#allocation4], %s476
          %s479 = ssub.s32 2048, 2048
          %480 = vsyncadd %s474, %s479
          %s481 = smul.addr %s37, 32
          %s482 = smul.addr %s481, 64
          %s483 = scalar_lea.hbm %s3, %s482
          %s484 = sshll.u32 %s477, 4
          %s485 = int_to_ptr.vmem [resolvable:$true] %s484
          %490 = dma.hbm_to_vmem [thread:$0]  %s483, 2048, %s485, %s474, 256, 256, 16
        $region32: #{_lambda_.4} parent=15 // pred_fallthru
          _
        // Predicated region
        $region33: #{_lambda_.4} parent=15 // pred_check
          %p491 = pneg %p165
        $region34: #{_lambda_.4} parent=15 // pred_check_branch
          %493 = sbr.rel (%p491) target = $region36
        $region35: #{_lambda_.4} parent=15 // pred_region
          %s494 = sand.u32 %s29, 1
          %s495 = scalar_lea.sflag [#allocation7], %s494
          %s496 = sand.u32 %s155, 1
          %s497 = smul.addr %s496, 128
          %s498 = scalar_lea.vmem [#allocation6], %s497
          %s500 = ssub.s32 2048, 2048
          %501 = vsyncadd %s495, %s500
          %s502 = smul.addr %s37, 32
          %s503 = smul.addr %s502, 64
          %s504 = scalar_lea.hbm %s4, %s503
          %s505 = sshll.u32 %s498, 4
          %s506 = int_to_ptr.vmem [resolvable:$true] %s505
          %511 = dma.hbm_to_vmem [thread:$0]  %s504, 2048, %s506, %s495, 256, 256, 16
        $region36: #{_lambda_.4} parent=15 // pred_fallthru
          _
        // Predicated region
        $region37: #{_lambda_.4} parent=15 // pred_check
          %p512 = pneg %p191
        $region38: #{_lambda_.4} parent=15 // pred_check_branch
          %514 = sbr.rel (%p512) target = $region40
        $region39: #{_lambda_.4} parent=15 // pred_region
          %s515 = sand.u32 %s29, 1
          %s516 = scalar_lea.sflag [#allocation7], %s515
          %s517 = sand.u32 %s181, 1
          %s518 = smul.addr %s517, 128
          %s519 = scalar_lea.vmem [#allocation8], %s518
          %s521 = ssub.s32 2048, 2048
          %522 = vsyncadd %s516, %s521
          %s523 = smul.addr %s37, 32
          %s524 = smul.addr %s523, 64
          %s525 = scalar_lea.hbm %s5, %s524
          %s526 = sshll.u32 %s519, 4
          %s527 = int_to_ptr.vmem [resolvable:$true] %s526
          %532 = dma.hbm_to_vmem [thread:$0]  %s525, 2048, %s527, %s516, 256, 256, 16
        $region40: #{_lambda_.4} parent=15 // pred_fallthru
          _
        // Predicated region
        $region41: #{_lambda_.4} parent=15 // pred_check
          %p533 = pneg %p217
        $region42: #{_lambda_.4} parent=15 // pred_check_branch
          %535 = sbr.rel (%p533) target = $region44
        $region43: #{_lambda_.4} parent=15 // pred_region
          %s536 = sand.u32 %s29, 1
          %s537 = scalar_lea.sflag [#allocation10], %s536
          %s538 = sand.u32 %s207, 1
          %s539 = smul.addr %s538, 256
          %s540 = scalar_lea.vmem [#allocation9], %s539
          %s542 = ssub.s32 4096, 4096
          %543 = vsyncadd %s537, %s542
          %s544 = smul.addr %s37, 64
          %s545 = smul.addr %s544, 64
          %s546 = scalar_lea.hbm %s6, %s545
          %s547 = sshll.u32 %s540, 4
          %s548 = int_to_ptr.vmem [resolvable:$true] %s547
          %553 = dma.hbm_to_vmem [thread:$0]  %s546, 4096, %s548, %s537, 64, 64, 4
        $region44: #{_lambda_.4} parent=15 // pred_fallthru
          _
        // Predicated region
        $region45: #{_lambda_.4} parent=15 // pred_check
          %p554 = pneg %p243
        $region46: #{_lambda_.4} parent=15 // pred_check_branch
          %556 = sbr.rel (%p554) target = $region48
        $region47: #{_lambda_.4} parent=15 // pred_region
          %p557 = scmp.lt.s32.totalorder %s37, 1
          %s558 = scalar_select %p557, %s37, 1
          %s559 = scalar_lea.vmem %s7, %s558
        $region48: #{_lambda_.4} parent=15 // pred_fallthru
          _
        // Predicated region
        $region49: #{_lambda_.4} parent=15 // pred_check
          %p560 = pneg %p269
        $region50: #{_lambda_.4} parent=15 // pred_check_branch
          %562 = sbr.rel (%p560) target = $region52
        $region51: #{_lambda_.4} parent=15 // pred_region
          %p563 = scmp.lt.s32.totalorder %s37, 1
          %s564 = scalar_select %p563, %s37, 1
          %s565 = scalar_lea.vmem %s8, %s564
        $region52: #{_lambda_.4} parent=15 // pred_fallthru
          _
        // Predicated region
        $region53: #{_lambda_.4} parent=15 // pred_check
          %p566 = pneg %p295
        $region54: #{_lambda_.4} parent=15 // pred_check_branch
          %568 = sbr.rel (%p566) target = $region56
        $region55: #{_lambda_.4} parent=15 // pred_region
          %p569 = scmp.lt.s32.totalorder %s37, 1
          %s570 = scalar_select %p569, %s37, 1
          %s571 = scalar_lea.vmem %s9, %s570
        $region56: #{_lambda_.4} parent=15 // pred_fallthru
          _
        // Predicated region
        $region57: #{_lambda_.4} parent=15 // pred_check
          %p572 = pneg %p321
        $region58: #{_lambda_.4} parent=15 // pred_check_branch
          %574 = sbr.rel (%p572) target = $region60
        $region59: #{_lambda_.4} parent=15 // pred_region
          %s575 = sand.u32 %s29, 1
          %s576 = scalar_lea.sflag [#allocation10], %s575
          %s577 = sand.u32 %s311, 1
          %s578 = smul.addr %s577, 128
          %s579 = scalar_lea.vmem [#allocation11], %s578
          %s581 = ssub.s32 2048, 2048
          %582 = vsyncadd %s576, %s581
          %s583 = smul.addr %s37, 32
          %s584 = smul.addr %s583, 64
          %s585 = scalar_lea.hbm %s10, %s584
          %s586 = sshll.u32 %s579, 4
          %s587 = int_to_ptr.vmem [resolvable:$true] %s586
          %592 = dma.hbm_to_vmem [thread:$0]  %s585, 2048, %s587, %s576, 256, 256, 16
        $region60: #{_lambda_.4} parent=15 // pred_fallthru
          _
        // Predicated region
        $region61: #{_lambda_.4} parent=15 // pred_check
          %p593 = pneg %p347
        $region62: #{_lambda_.4} parent=15 // pred_check_branch
          %595 = sbr.rel (%p593) target = $region64
        $region63: #{_lambda_.4} parent=15 // pred_region
          %p596 = scmp.lt.s32.totalorder %s37, 1
          %s597 = scalar_select %p596, %s37, 1
          %s598 = smul.addr %s597, 4
          %s599 = scalar_lea.vmem %s11, %s598
        $region64: #{_lambda_.4} parent=15 // pred_fallthru
          _
        // Predicated region
        $region65: #{_lambda_.4} parent=15 // pred_check
          %p600 = pneg %p373
        $region66: #{_lambda_.4} parent=15 // pred_check_branch
          %602 = sbr.rel (%p600) target = $region68
        $region67: #{_lambda_.4} parent=15 // pred_region
          %p603 = scmp.lt.s32.totalorder %s37, 1
          %s604 = scalar_select %p603, %s37, 1
          %s605 = smul.addr %s604, 32
          %s606 = smul.addr %s605, 4
          %s607 = scalar_lea.vmem %s12, %s606
        $region68: #{_lambda_.4} parent=15 // pred_fallthru
          _
        // Predicated region
        $region69: #{_lambda_.4} parent=15 // pred_check
          %p608 = pneg %p399
        $region70: #{_lambda_.4} parent=15 // pred_check_branch
          %610 = sbr.rel (%p608) target = $region72
        $region71: #{_lambda_.4} parent=15 // pred_region
          %p611 = scmp.lt.s32.totalorder %s37, 1
          %s612 = scalar_select %p611, %s37, 1
          %s613 = scalar_lea.vmem %s13, %s612
        $region72: #{_lambda_.4} parent=15 // pred_fallthru
          _
      $region16: #{_lambda_.4} parent=5 // pred_fallthru
        _
      %p614 = scmp.le.s32.totalorder 1, %s29
      %p615 = scmp.lt.s32.totalorder %s29, 5
      %p616 = pnand %p614, %p615
      %p617 = pneg %p616
      // Predicated region
      $region73: #{_lambda_.4} parent=5 // pred_check
        _
      $region74: #{_lambda_.4} parent=5 // pred_check_branch
        %619 = sbr.rel (%p616) target = $region76
      $region75: #{_lambda_.4} parent=5 // pred_region
        %s620 = ssub.s32 %s29, 1
        %s621 = sand.u32 %s132, 1
        %s622 = scalar_lea.sflag [#allocation5], %s621
        %s623 = sand.u32 %s132, 1
        %s624 = smul.addr %s623, 128
        %s625 = scalar_lea.vmem [#allocation4], %s624
        // Predicated region
        $region77: #{_lambda_.4} parent=75 // pred_check
          %p626 = pneg %p145
        $region78: #{_lambda_.4} parent=75 // pred_check_branch
          %628 = sbr.rel (%p626) target = $region80
        $region79: #{_lambda_.4} parent=75 // pred_region
          %629 = dma.done %s622, 2048
        $region80: #{_lambda_.4} parent=75 // pred_fallthru
          _
        %s630 = sand.u32 %s34, 1
        %s631 = scalar_lea.sflag [#allocation7], %s630
        %s632 = sand.u32 %s158, 1
        %s633 = smul.addr %s632, 128
        %s634 = scalar_lea.vmem [#allocation6], %s633
        // Predicated region
        $region81: #{_lambda_.4} parent=75 // pred_check
          %p635 = pneg %p171
        $region82: #{_lambda_.4} parent=75 // pred_check_branch
          %637 = sbr.rel (%p635) target = $region84
        $region83: #{_lambda_.4} parent=75 // pred_region
          %638 = dma.done %s631, 2048
        $region84: #{_lambda_.4} parent=75 // pred_fallthru
          _
        %s639 = sand.u32 %s34, 1
        %s640 = scalar_lea.sflag [#allocation7], %s639
        %s641 = sand.u32 %s184, 1
        %s642 = smul.addr %s641, 128
        %s643 = scalar_lea.vmem [#allocation8], %s642
        // Predicated region
        $region85: #{_lambda_.4} parent=75 // pred_check
          %p644 = pneg %p197
        $region86: #{_lambda_.4} parent=75 // pred_check_branch
          %646 = sbr.rel (%p644) target = $region88
        $region87: #{_lambda_.4} parent=75 // pred_region
          %647 = dma.done %s640, 2048
        $region88: #{_lambda_.4} parent=75 // pred_fallthru
          _
        %s648 = sand.u32 %s34, 1
        %s649 = scalar_lea.sflag [#allocation10], %s648
        %s650 = sand.u32 %s210, 1
        %s651 = smul.addr %s650, 256
        %s652 = scalar_lea.vmem [#allocation9], %s651
        // Predicated region
        $region89: #{_lambda_.4} parent=75 // pred_check
          %p653 = pneg %p223
        $region90: #{_lambda_.4} parent=75 // pred_check_branch
          %655 = sbr.rel (%p653) target = $region92
        $region91: #{_lambda_.4} parent=75 // pred_region
          %656 = dma.done %s649, 4096
        $region92: #{_lambda_.4} parent=75 // pred_fallthru
          _
        %s657 = sand.u32 %s34, 1
        %s658 = scalar_lea.sflag [#allocation10], %s657
        %s659 = sand.u32 %s314, 1
        %s660 = smul.addr %s659, 128
        %s661 = scalar_lea.vmem [#allocation11], %s660
        // Predicated region
        $region93: #{_lambda_.4} parent=75 // pred_check
          %p662 = pneg %p327
        $region94: #{_lambda_.4} parent=75 // pred_check_branch
          %664 = sbr.rel (%p662) target = $region96
        $region95: #{_lambda_.4} parent=75 // pred_region
          %665 = dma.done %s658, 2048
        $region96: #{_lambda_.4} parent=75 // pred_fallthru
          _
        %p666 = scmp.lt.s32.totalorder %s38, 1
        %s667 = scalar_select %p666, %s38, 1
        %s668 = smul.addr %s667, 2
        %s669 = smul.addr %s668, 8
        %s670 = scalar_lea.vmem %s0, %s669
        %p671 = pneg %p67
        %p672 = pneg %p64
        %p673 = scmp.lt.s32.totalorder %s39, 1
        %s674 = scalar_select %p673, %s39, 1
        %s675 = scalar_lea.vmem %s1, %s674
        %p676 = pneg %p93
        %p677 = pneg %p90
        %p678 = scmp.lt.s32.totalorder %s39, 1
        %s679 = scalar_select %p678, %s39, 1
        %s680 = scalar_lea.vmem %s2, %s679
        %p681 = pneg %p119
        %p682 = pneg %p116
        %s683 = sand.u32 %s132, 1
        %s684 = scalar_lea.sflag [#allocation5], %s683
        %s685 = sand.u32 %s132, 1
        %s686 = smul.addr %s685, 128
        %s687 = scalar_lea.vmem [#allocation4], %s686
        %p688 = pneg %p145
        %p689 = pneg %p142
        %s690 = sand.u32 %s34, 1
        %s691 = scalar_lea.sflag [#allocation7], %s690
        %s692 = sand.u32 %s158, 1
        %s693 = smul.addr %s692, 128
        %s694 = scalar_lea.vmem [#allocation6], %s693
        %p695 = pneg %p171
        %p696 = pneg %p168
        %s697 = sand.u32 %s34, 1
        %s698 = scalar_lea.sflag [#allocation7], %s697
        %s699 = sand.u32 %s184, 1
        %s700 = smul.addr %s699, 128
        %s701 = scalar_lea.vmem [#allocation8], %s700
        %p702 = pneg %p197
        %p703 = pneg %p194
        %s704 = sand.u32 %s34, 1
        %s705 = scalar_lea.sflag [#allocation10], %s704
        %s706 = sand.u32 %s210, 1
        %s707 = smul.addr %s706, 256
        %s708 = scalar_lea.vmem [#allocation9], %s707
        %p709 = pneg %p223
        %p710 = pneg %p220
        %p711 = scmp.lt.s32.totalorder %s39, 1
        %s712 = scalar_select %p711, %s39, 1
        %s713 = scalar_lea.vmem %s7, %s712
        %p714 = pneg %p249
        %p715 = pneg %p246
        %p716 = scmp.lt.s32.totalorder %s39, 1
        %s717 = scalar_select %p716, %s39, 1
        %s718 = scalar_lea.vmem %s8, %s717
        %p719 = pneg %p275
        %p720 = pneg %p272
        %p721 = scmp.lt.s32.totalorder %s39, 1
        %s722 = scalar_select %p721, %s39, 1
        %s723 = scalar_lea.vmem %s9, %s722
        %p724 = pneg %p301
        %p725 = pneg %p298
        %s726 = sand.u32 %s34, 1
        %s727 = scalar_lea.sflag [#allocation10], %s726
        %s728 = sand.u32 %s314, 1
        %s729 = smul.addr %s728, 128
        %s730 = scalar_lea.vmem [#allocation11], %s729
        %p731 = pneg %p327
        %p732 = pneg %p324
        %p733 = scmp.lt.s32.totalorder %s39, 1
        %s734 = scalar_select %p733, %s39, 1
        %s735 = smul.addr %s734, 4
        %s736 = scalar_lea.vmem %s11, %s735
        %p737 = pneg %p353
        %p738 = pneg %p350
        %p739 = scmp.lt.s32.totalorder %s39, 1
        %s740 = scalar_select %p739, %s39, 1
        %s741 = smul.addr %s740, 32
        %s742 = smul.addr %s741, 4
        %s743 = scalar_lea.vmem %s12, %s742
        %p744 = pneg %p379
        %p745 = pneg %p376
        %p746 = scmp.lt.s32.totalorder %s39, 1
        %s747 = scalar_select %p746, %s39, 1
        %s748 = scalar_lea.vmem %s13, %s747
        %p749 = pneg %p405
        %p750 = pneg %p402
        %p751 = pneg %p431
        %p752 = pneg %p428
        %p753 = scmp.lt.s32.totalorder %s38, 1
        %s754 = scalar_select %p753, %s38, 1
        %s755 = smul.addr %s754, 2
        %s756 = smul.addr %s755, 8
        %s757 = scalar_lea.vmem %s14, %s756
        %p758 = scmp.lt.s32.totalorder %s38, 1
        %s759 = scalar_select %p758, %s38, 1
        %s760 = smul.addr %s759, 2
        %s761 = smul.addr %s760, 8
        %s762 = scalar_lea.vmem %s0, %s761
        %p763 = scmp.lt.s32.totalorder %s39, 1
        %s764 = scalar_select %p763, %s39, 1
        %s765 = scalar_lea.vmem %s1, %s764
        %p766 = scmp.lt.s32.totalorder %s39, 1
        %s767 = scalar_select %p766, %s39, 1
        %s768 = scalar_lea.vmem %s2, %s767
        %p769 = scmp.lt.s32.totalorder %s39, 1
        %s770 = scalar_select %p769, %s39, 1
        %s771 = scalar_lea.vmem %s7, %s770
        %p772 = scmp.lt.s32.totalorder %s39, 1
        %s773 = scalar_select %p772, %s39, 1
        %s774 = scalar_lea.vmem %s8, %s773
        %p775 = scmp.lt.s32.totalorder %s39, 1
        %s776 = scalar_select %p775, %s39, 1
        %s777 = scalar_lea.vmem %s9, %s776
        %p778 = scmp.lt.s32.totalorder %s39, 1
        %s779 = scalar_select %p778, %s39, 1
        %s780 = smul.addr %s779, 4
        %s781 = scalar_lea.vmem %s11, %s780
        %p782 = scmp.lt.s32.totalorder %s39, 1
        %s783 = scalar_select %p782, %s39, 1
        %s784 = smul.addr %s783, 32
        %s785 = smul.addr %s784, 4
        %s786 = scalar_lea.vmem %s12, %s785
        %p787 = scmp.lt.s32.totalorder %s39, 1
        %s788 = scalar_select %p787, %s39, 1
        %s789 = scalar_lea.vmem %s13, %s788
        %p790 = scmp.lt.s32.totalorder %s38, 1
        %s791 = scalar_select %p790, %s38, 1
        %s792 = smul.addr %s791, 2
        %s793 = smul.addr %s792, 8
        %s794 = scalar_lea.vmem %s14, %s793
        %p796 = scmp.eq.s32.totalorder %s39, 0
        // Predicated region
        $region97: #{_lambda_.4} parent=75 // pred_check
          %p797 = pneg %p796
        $region98: #{_lambda_.4} parent=75 // pred_check_branch
          %799 = sbr.rel (%p797) target = $region100
        $region99: #{_lambda_.4} parent=75 // pred_region
          %v800 = vld [vmem:[%s762] sm:$0xff]
          %v801 = vld [vmem:[%s762 + $0x8] sm:$0xff]
          %vm802 = vcmask 523264
          %803 = vst.msk [vmem:[#allocation2] sm:$0xff] %vm802, %v800
          %804 = vst.msk [vmem:[#allocation2 + $0x8] sm:$0xff] %vm802, %v801
        $region100: #{_lambda_.4} parent=75 // pred_fallthru
          _
        %v805 = vld [vmem:[#allocation2] sm:$0xff]
        %v806 = vld [vmem:[#allocation2 + $0x8] sm:$0xff]
        %v807 = vld [vmem:[%s765] sm:$0x1]
        %v808 = vld [vmem:[%s768] sm:$0x1]
        %vm809 = vcmask 523264
        %v810 = vsel %vm809, %v805, 0.0
        %811 = vadd.xlane.f32.xlu0 %v810
        %v812 = vpop.xlane.xlu0 %811
        %v813 = vsel %vm809, %v806, 0.0
        %814 = vadd.xlane.f32.xlu0 %v813
        %v815 = vpop.xlane.xlu0 %814
        %v816 = vrcp.pop 64.0
        %v817 = vmul.f32 %v812, %v816
        %v818 = vmul.f32 %v815, %v816
        %v819 = vsub.f32 %v805, %v817
        %v820 = vsub.f32 %v806, %v818
        %v821 = vmul.f32 %v819, %v819
        %v822 = vmul.f32 %v820, %v820
        %v823 = vsel %vm809, %v821, 0.0
        %824 = vadd.xlane.f32.xlu0 %v823
        %v825 = vpop.xlane.xlu0 %824
        %v826 = vsel %vm809, %v822, 0.0
        %827 = vadd.xlane.f32.xlu0 %v826
        %v828 = vpop.xlane.xlu0 %827
        %v829 = vmul.f32 %v825, %v816
        %v830 = vmul.f32 %v828, %v816
        %v831 = vadd.f32 %v829, 1e-05
        %v832 = vadd.f32 %v830, 1e-05
        %v833 = vrsqrt.pop %v831
        %v834 = vrsqrt.pop %v832
        %v835 = vmul.f32 %v819, %v833
        %v836 = vmul.f32 %v820, %v834
        %v838 = vlaneseq
        %v839 = vshrl.u32 %v838, 7
        %v840 = vsub.s32 0, %v839
        %v841 = vrot.slane %v807, %v840
        %v843 = vmul.f32 %v835, %v841
        %v844 = vmul.f32 %v836, %v841
        %v846 = vlaneseq
        %v847 = vshrl.u32 %v846, 7
        %v848 = vsub.s32 0, %v847
        %v849 = vrot.slane %v808, %v848
        %v851 = vadd.f32 %v843, %v849
        %v852 = vadd.f32 %v844, %v849
        %v853 = vpack.c.bf16 %v852, %v851
        %v854 = vld [vmem:[%s625] sm:$0xff]
        %v855 = vld [vmem:[%s625 + $0x8] sm:$0xff]
        %v856 = vld [vmem:[%s625 + $0x10] sm:$0xff]
        %v857 = vld [vmem:[%s625 + $0x18] sm:$0xff]
        %v858 = vld [vmem:[%s625 + $0x20] sm:$0xff]
        %v859 = vld [vmem:[%s625 + $0x28] sm:$0xff]
        %v860 = vld [vmem:[%s625 + $0x30] sm:$0xff]
        %v861 = vld [vmem:[%s625 + $0x38] sm:$0xff]
        %v862 = vld [vmem:[%s625 + $0x40] sm:$0xff]
        %v863 = vld [vmem:[%s625 + $0x48] sm:$0xff]
        %v864 = vld [vmem:[%s625 + $0x50] sm:$0xff]
        %v865 = vld [vmem:[%s625 + $0x58] sm:$0xff]
        %v866 = vld [vmem:[%s625 + $0x60] sm:$0xff]
        %v867 = vld [vmem:[%s625 + $0x68] sm:$0xff]
        %v868 = vld [vmem:[%s625 + $0x70] sm:$0xff]
        %v869 = vld [vmem:[%s625 + $0x78] sm:$0xff]
        %v886 = vunpack.c.l.b16 %v854
        %v887 = vunpack.c.h.b16 %v854
        %v888 = vunpack.c.l.b16 %v855
        %v889 = vunpack.c.h.b16 %v855
        %v890 = vunpack.c.l.b16 %v856
        %v891 = vunpack.c.h.b16 %v856
        %v892 = vunpack.c.l.b16 %v857
        %v893 = vunpack.c.h.b16 %v857
        %v894 = vunpack.c.l.b16 %v858
        %v895 = vunpack.c.h.b16 %v858
        %v896 = vunpack.c.l.b16 %v859
        %v897 = vunpack.c.h.b16 %v859
        %v898 = vunpack.c.l.b16 %v860
        %v899 = vunpack.c.h.b16 %v860
        %v900 = vunpack.c.l.b16 %v861
        %v901 = vunpack.c.h.b16 %v861
        %v902 = vunpack.c.l.b16 %v862
        %v903 = vunpack.c.h.b16 %v862
        %v904 = vunpack.c.l.b16 %v863
        %v905 = vunpack.c.h.b16 %v863
        %v906 = vunpack.c.l.b16 %v864
        %v907 = vunpack.c.h.b16 %v864
        %v908 = vunpack.c.l.b16 %v865
        %v909 = vunpack.c.h.b16 %v865
        %v910 = vunpack.c.l.b16 %v866
        %v911 = vunpack.c.h.b16 %v866
        %v912 = vunpack.c.l.b16 %v867
        %v913 = vunpack.c.h.b16 %v867
        %v914 = vunpack.c.l.b16 %v868
        %v915 = vunpack.c.h.b16 %v868
        %v916 = vunpack.c.l.b16 %v869
        %v917 = vunpack.c.h.b16 %v869
        %v918 = vpack.c.b16 %v890, %v886
        %v919 = vpack.c.b16 %v891, %v887
        %v920 = vpack.c.b16 %v892, %v888
        %v921 = vpack.c.b16 %v893, %v889
        %v922 = vpack.c.b16 %v898, %v894
        %v923 = vpack.c.b16 %v899, %v895
        %v924 = vpack.c.b16 %v900, %v896
        %v925 = vpack.c.b16 %v901, %v897
        %v926 = vpack.c.b16 %v906, %v902
        %v927 = vpack.c.b16 %v907, %v903
        %v928 = vpack.c.b16 %v908, %v904
        %v929 = vpack.c.b16 %v909, %v905
        %v930 = vpack.c.b16 %v914, %v910
        %v931 = vpack.c.b16 %v915, %v911
        %v932 = vpack.c.b16 %v916, %v912
        %v933 = vpack.c.b16 %v917, %v913
        %v951 = vsel %vm809, %v853, 0
        %953 = vmatprep.subr.bf16.mxu0 0
        %954 = vmatpush1.bf16.msra.mxu0 0
        %955 = vmatprep.subr.bf16.mxu0 0
        %956 = vmatpush1.bf16.msra.mxu0 0
        %957 = vmatprep.subr.bf16.mxu0 0
        %958 = vmatpush1.bf16.msra.mxu0 0
        %959 = vmatprep.subr.bf16.mxu0 0
        %960 = vmatpush1.bf16.msra.mxu0 0
        %961 = vmatprep.subr.bf16.mxu0 %v931
        %962 = vmatpush1.bf16.msra.mxu0 %v930
        %963 = vmatprep.subr.bf16.mxu0 %v927
        %964 = vmatpush1.bf16.msra.mxu0 %v926
        %965 = vmatprep.subr.bf16.mxu0 %v923
        %966 = vmatpush1.bf16.msra.mxu0 %v922
        %967 = vmatprep.subr.bf16.mxu0 %v919
        %968 = vmatpush1.bf16.msra.mxu0 %v918
        %969 = vmatprep.subr.bf16.mxu0 0
        %970 = vmatpush2.bf16.msra.mxu0 0
        %971 = vmatprep.subr.bf16.mxu0 0
        %972 = vmatpush2.bf16.msra.mxu0 0
        %973 = vmatprep.subr.bf16.mxu0 0
        %974 = vmatpush2.bf16.msra.mxu0 0
        %975 = vmatprep.subr.bf16.mxu0 0
        %976 = vmatpush2.bf16.msra.mxu0 0
        %977 = vmatprep.subr.bf16.mxu0 0
        %978 = vmatpush2.bf16.msra.mxu0 0
        %979 = vmatprep.subr.bf16.mxu0 0
        %980 = vmatpush2.bf16.msra.mxu0 0
        %981 = vmatprep.subr.bf16.mxu0 0
        %982 = vmatpush2.bf16.msra.mxu0 0
        %983 = vmatprep.subr.bf16.mxu0 0
        %984 = vmatpush2.bf16.msra.mxu0 0
        %985 = vmatprep.mubr.bf16.mxu0 0
        %986 = vmatmul.mubr.bf16.gmra.mxu0 %v951
        %v987 = vpop.f32.mrf.mxu0
        %v988 = vadd.f32 0.0, %v987
        %v989 = vpop.f32.mrf.mxu0
        %v990 = vadd.f32 0.0, %v989
        %v991 = vpop.f32.mrf.mxu0
        %v992 = vadd.f32 0.0, %v991
        %v993 = vpop.f32.mrf.mxu0
        %v994 = vadd.f32 0.0, %v993
        %995 = vdwg.mxu0
        %996 = vmatprep.subr.bf16.mxu0 0
        %997 = vmatpush1.bf16.msra.mxu0 0
        %998 = vmatprep.subr.bf16.mxu0 0
        %999 = vmatpush1.bf16.msra.mxu0 0
        %1000 = vmatprep.subr.bf16.mxu0 0
        %1001 = vmatpush1.bf16.msra.mxu0 0
        %1002 = vmatprep.subr.bf16.mxu0 0
        %1003 = vmatpush1.bf16.msra.mxu0 0
        %1004 = vmatprep.subr.bf16.mxu0 %v933
        %1005 = vmatpush1.bf16.msra.mxu0 %v932
        %1006 = vmatprep.subr.bf16.mxu0 %v929
        %1007 = vmatpush1.bf16.msra.mxu0 %v928
        %1008 = vmatprep.subr.bf16.mxu0 %v925
        %1009 = vmatpush1.bf16.msra.mxu0 %v924
        %1010 = vmatprep.subr.bf16.mxu0 %v921
        %1011 = vmatpush1.bf16.msra.mxu0 %v920
        %1012 = vmatprep.subr.bf16.mxu0 0
        %1013 = vmatpush2.bf16.msra.mxu0 0
        %1014 = vmatprep.subr.bf16.mxu0 0
        %1015 = vmatpush2.bf16.msra.mxu0 0
        %1016 = vmatprep.subr.bf16.mxu0 0
        %1017 = vmatpush2.bf16.msra.mxu0 0
        %1018 = vmatprep.subr.bf16.mxu0 0
        %1019 = vmatpush2.bf16.msra.mxu0 0
        %1020 = vmatprep.subr.bf16.mxu0 0
        %1021 = vmatpush2.bf16.msra.mxu0 0
        %1022 = vmatprep.subr.bf16.mxu0 0
        %1023 = vmatpush2.bf16.msra.mxu0 0
        %1024 = vmatprep.subr.bf16.mxu0 0
        %1025 = vmatpush2.bf16.msra.mxu0 0
        %1026 = vmatprep.subr.bf16.mxu0 0
        %1027 = vmatpush2.bf16.msra.mxu0 0
        %1028 = vmatprep.mubr.bf16.mxu0 0
        %1029 = vmatmul.mubr.bf16.gmra.mxu0 %v951
        %v1030 = vpop.f32.mrf.mxu0
        %v1031 = vadd.f32 0.0, %v1030
        %v1032 = vpop.f32.mrf.mxu0
        %v1033 = vadd.f32 0.0, %v1032
        %v1034 = vpop.f32.mrf.mxu0
        %v1035 = vadd.f32 0.0, %v1034
        %v1036 = vpop.f32.mrf.mxu0
        %v1037 = vadd.f32 0.0, %v1036
        %1038 = vdwg.mxu0
        %v1039 = vmul.f32 %v988, 0.125
        %v1040 = vmul.f32 %v990, 0.125
        %v1041 = vmul.f32 %v1031, 0.125
        %v1042 = vmul.f32 %v1033, 0.125
        %v1043 = vmul.f32 %v992, 0.125
        %v1044 = vmul.f32 %v994, 0.125
        %v1045 = vmul.f32 %v1035, 0.125
        %v1046 = vmul.f32 %v1037, 0.125
        %v1047 = vpack.c.bf16 %v1043, %v1039
        %v1048 = vpack.c.bf16 %v1044, %v1040
        %v1049 = vpack.c.bf16 %v1045, %v1041
        %v1050 = vpack.c.bf16 %v1046, %v1042
        %v1051 = vld [vmem:[%s634] sm:$0xff]
        %v1052 = vld [vmem:[%s634 + $0x8] sm:$0xff]
        %v1053 = vld [vmem:[%s634 + $0x10] sm:$0xff]
        %v1054 = vld [vmem:[%s634 + $0x18] sm:$0xff]
        %v1055 = vld [vmem:[%s634 + $0x20] sm:$0xff]
        %v1056 = vld [vmem:[%s634 + $0x28] sm:$0xff]
        %v1057 = vld [vmem:[%s634 + $0x30] sm:$0xff]
        %v1058 = vld [vmem:[%s634 + $0x38] sm:$0xff]
        %v1059 = vld [vmem:[%s634 + $0x40] sm:$0xff]
        %v1060 = vld [vmem:[%s634 + $0x48] sm:$0xff]
        %v1061 = vld [vmem:[%s634 + $0x50] sm:$0xff]
        %v1062 = vld [vmem:[%s634 + $0x58] sm:$0xff]
        %v1063 = vld [vmem:[%s634 + $0x60] sm:$0xff]
        %v1064 = vld [vmem:[%s634 + $0x68] sm:$0xff]
        %v1065 = vld [vmem:[%s634 + $0x70] sm:$0xff]
        %v1066 = vld [vmem:[%s634 + $0x78] sm:$0xff]
        %v1083 = vunpack.c.l.b16 %v1051
        %v1084 = vunpack.c.h.b16 %v1051
        %v1085 = vunpack.c.l.b16 %v1052
        %v1086 = vunpack.c.h.b16 %v1052
        %v1087 = vunpack.c.l.b16 %v1053
        %v1088 = vunpack.c.h.b16 %v1053
        %v1089 = vunpack.c.l.b16 %v1054
        %v1090 = vunpack.c.h.b16 %v1054
        %v1091 = vunpack.c.l.b16 %v1055
        %v1092 = vunpack.c.h.b16 %v1055
        %v1093 = vunpack.c.l.b16 %v1056
        %v1094 = vunpack.c.h.b16 %v1056
        %v1095 = vunpack.c.l.b16 %v1057
        %v1096 = vunpack.c.h.b16 %v1057
        %v1097 = vunpack.c.l.b16 %v1058
        %v1098 = vunpack.c.h.b16 %v1058
        %v1099 = vunpack.c.l.b16 %v1059
        %v1100 = vunpack.c.h.b16 %v1059
        %v1101 = vunpack.c.l.b16 %v1060
        %v1102 = vunpack.c.h.b16 %v1060
        %v1103 = vunpack.c.l.b16 %v1061
        %v1104 = vunpack.c.h.b16 %v1061
        %v1105 = vunpack.c.l.b16 %v1062
        %v1106 = vunpack.c.h.b16 %v1062
        %v1107 = vunpack.c.l.b16 %v1063
        %v1108 = vunpack.c.h.b16 %v1063
        %v1109 = vunpack.c.l.b16 %v1064
        %v1110 = vunpack.c.h.b16 %v1064
        %v1111 = vunpack.c.l.b16 %v1065
        %v1112 = vunpack.c.h.b16 %v1065
        %v1113 = vunpack.c.l.b16 %v1066
        %v1114 = vunpack.c.h.b16 %v1066
        %v1115 = vpack.c.b16 %v1087, %v1083
        %v1116 = vpack.c.b16 %v1088, %v1084
        %v1117 = vpack.c.b16 %v1089, %v1085
        %v1118 = vpack.c.b16 %v1090, %v1086
        %v1119 = vpack.c.b16 %v1095, %v1091
        %v1120 = vpack.c.b16 %v1096, %v1092
        %v1121 = vpack.c.b16 %v1097, %v1093
        %v1122 = vpack.c.b16 %v1098, %v1094
        %v1123 = vpack.c.b16 %v1103, %v1099
        %v1124 = vpack.c.b16 %v1104, %v1100
        %v1125 = vpack.c.b16 %v1105, %v1101
        %v1126 = vpack.c.b16 %v1106, %v1102
        %v1127 = vpack.c.b16 %v1111, %v1107
        %v1128 = vpack.c.b16 %v1112, %v1108
        %v1129 = vpack.c.b16 %v1113, %v1109
        %v1130 = vpack.c.b16 %v1114, %v1110
        %1147 = vmatprep.subr.bf16.mxu0 0
        %1148 = vmatpush1.bf16.msra.mxu0 0
        %1149 = vmatprep.subr.bf16.mxu0 0
        %1150 = vmatpush1.bf16.msra.mxu0 0
        %1151 = vmatprep.subr.bf16.mxu0 0
        %1152 = vmatpush1.bf16.msra.mxu0 0
        %1153 = vmatprep.subr.bf16.mxu0 0
        %1154 = vmatpush1.bf16.msra.mxu0 0
        %1155 = vmatprep.subr.bf16.mxu0 %v1128
        %1156 = vmatpush1.bf16.msra.mxu0 %v1127
        %1157 = vmatprep.subr.bf16.mxu0 %v1124
        %1158 = vmatpush1.bf16.msra.mxu0 %v1123
        %1159 = vmatprep.subr.bf16.mxu0 %v1120
        %1160 = vmatpush1.bf16.msra.mxu0 %v1119
        %1161 = vmatprep.subr.bf16.mxu0 %v1116
        %1162 = vmatpush1.bf16.msra.mxu0 %v1115
        %1163 = vmatprep.subr.bf16.mxu0 0
        %1164 = vmatpush2.bf16.msra.mxu0 0
        %1165 = vmatprep.subr.bf16.mxu0 0
        %1166 = vmatpush2.bf16.msra.mxu0 0
        %1167 = vmatprep.subr.bf16.mxu0 0
        %1168 = vmatpush2.bf16.msra.mxu0 0
        %1169 = vmatprep.subr.bf16.mxu0 0
        %1170 = vmatpush2.bf16.msra.mxu0 0
        %1171 = vmatprep.subr.bf16.mxu0 0
        %1172 = vmatpush2.bf16.msra.mxu0 0
        %1173 = vmatprep.subr.bf16.mxu0 0
        %1174 = vmatpush2.bf16.msra.mxu0 0
        %1175 = vmatprep.subr.bf16.mxu0 0
        %1176 = vmatpush2.bf16.msra.mxu0 0
        %1177 = vmatprep.subr.bf16.mxu0 0
        %1178 = vmatpush2.bf16.msra.mxu0 0
        %1179 = vmatprep.mubr.bf16.mxu0 0
        %1180 = vmatmul.mubr.bf16.gmra.mxu0 %v951
        %v1181 = vpop.f32.mrf.mxu0
        %v1182 = vadd.f32 0.0, %v1181
        %v1183 = vpop.f32.mrf.mxu0
        %v1184 = vadd.f32 0.0, %v1183
        %v1185 = vpop.f32.mrf.mxu0
        %v1186 = vadd.f32 0.0, %v1185
        %v1187 = vpop.f32.mrf.mxu0
        %v1188 = vadd.f32 0.0, %v1187
        %1189 = vdwg.mxu0
        %1190 = vmatprep.subr.bf16.mxu0 0
        %1191 = vmatpush1.bf16.msra.mxu0 0
        %1192 = vmatprep.subr.bf16.mxu0 0
        %1193 = vmatpush1.bf16.msra.mxu0 0
        %1194 = vmatprep.subr.bf16.mxu0 0
        %1195 = vmatpush1.bf16.msra.mxu0 0
        %1196 = vmatprep.subr.bf16.mxu0 0
        %1197 = vmatpush1.bf16.msra.mxu0 0
        %1198 = vmatprep.subr.bf16.mxu0 %v1130
        %1199 = vmatpush1.bf16.msra.mxu0 %v1129
        %1200 = vmatprep.subr.bf16.mxu0 %v1126
        %1201 = vmatpush1.bf16.msra.mxu0 %v1125
        %1202 = vmatprep.subr.bf16.mxu0 %v1122
        %1203 = vmatpush1.bf16.msra.mxu0 %v1121
        %1204 = vmatprep.subr.bf16.mxu0 %v1118
        %1205 = vmatpush1.bf16.msra.mxu0 %v1117
        %1206 = vmatprep.subr.bf16.mxu0 0
        %1207 = vmatpush2.bf16.msra.mxu0 0
        %1208 = vmatprep.subr.bf16.mxu0 0
        %1209 = vmatpush2.bf16.msra.mxu0 0
        %1210 = vmatprep.subr.bf16.mxu0 0
        %1211 = vmatpush2.bf16.msra.mxu0 0
        %1212 = vmatprep.subr.bf16.mxu0 0
        %1213 = vmatpush2.bf16.msra.mxu0 0
        %1214 = vmatprep.subr.bf16.mxu0 0
        %1215 = vmatpush2.bf16.msra.mxu0 0
        %1216 = vmatprep.subr.bf16.mxu0 0
        %1217 = vmatpush2.bf16.msra.mxu0 0
        %1218 = vmatprep.subr.bf16.mxu0 0
        %1219 = vmatpush2.bf16.msra.mxu0 0
        %1220 = vmatprep.subr.bf16.mxu0 0
        %1221 = vmatpush2.bf16.msra.mxu0 0
        %1222 = vmatprep.mubr.bf16.mxu0 0
        %1223 = vmatmul.mubr.bf16.gmra.mxu0 %v951
        %v1224 = vpop.f32.mrf.mxu0
        %v1225 = vadd.f32 0.0, %v1224
        %v1226 = vpop.f32.mrf.mxu0
        %v1227 = vadd.f32 0.0, %v1226
        %v1228 = vpop.f32.mrf.mxu0
        %v1229 = vadd.f32 0.0, %v1228
        %v1230 = vpop.f32.mrf.mxu0
        %v1231 = vadd.f32 0.0, %v1230
        %1232 = vdwg.mxu0
        %v1233 = vpack.c.bf16 %v1186, %v1182
        %v1234 = vpack.c.bf16 %v1188, %v1184
        %v1235 = vpack.c.bf16 %v1229, %v1225
        %v1236 = vpack.c.bf16 %v1231, %v1227
        %v1237 = vld [vmem:[%s643] sm:$0xff]
        %v1238 = vld [vmem:[%s643 + $0x8] sm:$0xff]
        %v1239 = vld [vmem:[%s643 + $0x10] sm:$0xff]
        %v1240 = vld [vmem:[%s643 + $0x18] sm:$0xff]
        %v1241 = vld [vmem:[%s643 + $0x20] sm:$0xff]
        %v1242 = vld [vmem:[%s643 + $0x28] sm:$0xff]
        %v1243 = vld [vmem:[%s643 + $0x30] sm:$0xff]
        %v1244 = vld [vmem:[%s643 + $0x38] sm:$0xff]
        %v1245 = vld [vmem:[%s643 + $0x40] sm:$0xff]
        %v1246 = vld [vmem:[%s643 + $0x48] sm:$0xff]
        %v1247 = vld [vmem:[%s643 + $0x50] sm:$0xff]
        %v1248 = vld [vmem:[%s643 + $0x58] sm:$0xff]
        %v1249 = vld [vmem:[%s643 + $0x60] sm:$0xff]
        %v1250 = vld [vmem:[%s643 + $0x68] sm:$0xff]
        %v1251 = vld [vmem:[%s643 + $0x70] sm:$0xff]
        %v1252 = vld [vmem:[%s643 + $0x78] sm:$0xff]
        %v1269 = vunpack.c.l.b16 %v1237
        %v1270 = vunpack.c.h.b16 %v1237
        %v1271 = vunpack.c.l.b16 %v1238
        %v1272 = vunpack.c.h.b16 %v1238
        %v1273 = vunpack.c.l.b16 %v1239
        %v1274 = vunpack.c.h.b16 %v1239
        %v1275 = vunpack.c.l.b16 %v1240
        %v1276 = vunpack.c.h.b16 %v1240
        %v1277 = vunpack.c.l.b16 %v1241
        %v1278 = vunpack.c.h.b16 %v1241
        %v1279 = vunpack.c.l.b16 %v1242
        %v1280 = vunpack.c.h.b16 %v1242
        %v1281 = vunpack.c.l.b16 %v1243
        %v1282 = vunpack.c.h.b16 %v1243
        %v1283 = vunpack.c.l.b16 %v1244
        %v1284 = vunpack.c.h.b16 %v1244
        %v1285 = vunpack.c.l.b16 %v1245
        %v1286 = vunpack.c.h.b16 %v1245
        %v1287 = vunpack.c.l.b16 %v1246
        %v1288 = vunpack.c.h.b16 %v1246
        %v1289 = vunpack.c.l.b16 %v1247
        %v1290 = vunpack.c.h.b16 %v1247
        %v1291 = vunpack.c.l.b16 %v1248
        %v1292 = vunpack.c.h.b16 %v1248
        %v1293 = vunpack.c.l.b16 %v1249
        %v1294 = vunpack.c.h.b16 %v1249
        %v1295 = vunpack.c.l.b16 %v1250
        %v1296 = vunpack.c.h.b16 %v1250
        %v1297 = vunpack.c.l.b16 %v1251
        %v1298 = vunpack.c.h.b16 %v1251
        %v1299 = vunpack.c.l.b16 %v1252
        %v1300 = vunpack.c.h.b16 %v1252
        %v1301 = vpack.c.b16 %v1273, %v1269
        %v1302 = vpack.c.b16 %v1274, %v1270
        %v1303 = vpack.c.b16 %v1275, %v1271
        %v1304 = vpack.c.b16 %v1276, %v1272
        %v1305 = vpack.c.b16 %v1281, %v1277
        %v1306 = vpack.c.b16 %v1282, %v1278
        %v1307 = vpack.c.b16 %v1283, %v1279
        %v1308 = vpack.c.b16 %v1284, %v1280
        %v1309 = vpack.c.b16 %v1289, %v1285
        %v1310 = vpack.c.b16 %v1290, %v1286
        %v1311 = vpack.c.b16 %v1291, %v1287
        %v1312 = vpack.c.b16 %v1292, %v1288
        %v1313 = vpack.c.b16 %v1297, %v1293
        %v1314 = vpack.c.b16 %v1298, %v1294
        %v1315 = vpack.c.b16 %v1299, %v1295
        %v1316 = vpack.c.b16 %v1300, %v1296
        %1333 = vmatprep.subr.bf16.mxu0 0
        %1334 = vmatpush1.bf16.msra.mxu0 0
        %1335 = vmatprep.subr.bf16.mxu0 0
        %1336 = vmatpush1.bf16.msra.mxu0 0
        %1337 = vmatprep.subr.bf16.mxu0 0
        %1338 = vmatpush1.bf16.msra.mxu0 0
        %1339 = vmatprep.subr.bf16.mxu0 0
        %1340 = vmatpush1.bf16.msra.mxu0 0
        %1341 = vmatprep.subr.bf16.mxu0 %v1314
        %1342 = vmatpush1.bf16.msra.mxu0 %v1313
        %1343 = vmatprep.subr.bf16.mxu0 %v1310
        %1344 = vmatpush1.bf16.msra.mxu0 %v1309
        %1345 = vmatprep.subr.bf16.mxu0 %v1306
        %1346 = vmatpush1.bf16.msra.mxu0 %v1305
        %1347 = vmatprep.subr.bf16.mxu0 %v1302
        %1348 = vmatpush1.bf16.msra.mxu0 %v1301
        %1349 = vmatprep.subr.bf16.mxu0 0
        %1350 = vmatpush2.bf16.msra.mxu0 0
        %1351 = vmatprep.subr.bf16.mxu0 0
        %1352 = vmatpush2.bf16.msra.mxu0 0
        %1353 = vmatprep.subr.bf16.mxu0 0
        %1354 = vmatpush2.bf16.msra.mxu0 0
        %1355 = vmatprep.subr.bf16.mxu0 0
        %1356 = vmatpush2.bf16.msra.mxu0 0
        %1357 = vmatprep.subr.bf16.mxu0 0
        %1358 = vmatpush2.bf16.msra.mxu0 0
        %1359 = vmatprep.subr.bf16.mxu0 0
        %1360 = vmatpush2.bf16.msra.mxu0 0
        %1361 = vmatprep.subr.bf16.mxu0 0
        %1362 = vmatpush2.bf16.msra.mxu0 0
        %1363 = vmatprep.subr.bf16.mxu0 0
        %1364 = vmatpush2.bf16.msra.mxu0 0
        %1365 = vmatprep.mubr.bf16.mxu0 0
        %1366 = vmatmul.mubr.bf16.gmra.mxu0 %v951
        %v1367 = vpop.f32.mrf.mxu0
        %v1368 = vadd.f32 0.0, %v1367
        %v1369 = vpop.f32.mrf.mxu0
        %v1370 = vadd.f32 0.0, %v1369
        %v1371 = vpop.f32.mrf.mxu0
        %v1372 = vadd.f32 0.0, %v1371
        %v1373 = vpop.f32.mrf.mxu0
        %v1374 = vadd.f32 0.0, %v1373
        %1375 = vdwg.mxu0
        %1376 = vmatprep.subr.bf16.mxu0 0
        %1377 = vmatpush1.bf16.msra.mxu0 0
        %1378 = vmatprep.subr.bf16.mxu0 0
        %1379 = vmatpush1.bf16.msra.mxu0 0
        %1380 = vmatprep.subr.bf16.mxu0 0
        %1381 = vmatpush1.bf16.msra.mxu0 0
        %1382 = vmatprep.subr.bf16.mxu0 0
        %1383 = vmatpush1.bf16.msra.mxu0 0
        %1384 = vmatprep.subr.bf16.mxu0 %v1316
        %1385 = vmatpush1.bf16.msra.mxu0 %v1315
        %1386 = vmatprep.subr.bf16.mxu0 %v1312
        %1387 = vmatpush1.bf16.msra.mxu0 %v1311
        %1388 = vmatprep.subr.bf16.mxu0 %v1308
        %1389 = vmatpush1.bf16.msra.mxu0 %v1307
        %1390 = vmatprep.subr.bf16.mxu0 %v1304
        %1391 = vmatpush1.bf16.msra.mxu0 %v1303
        %1392 = vmatprep.subr.bf16.mxu0 0
        %1393 = vmatpush2.bf16.msra.mxu0 0
        %1394 = vmatprep.subr.bf16.mxu0 0
        %1395 = vmatpush2.bf16.msra.mxu0 0
        %1396 = vmatprep.subr.bf16.mxu0 0
        %1397 = vmatpush2.bf16.msra.mxu0 0
        %1398 = vmatprep.subr.bf16.mxu0 0
        %1399 = vmatpush2.bf16.msra.mxu0 0
        %1400 = vmatprep.subr.bf16.mxu0 0
        %1401 = vmatpush2.bf16.msra.mxu0 0
        %1402 = vmatprep.subr.bf16.mxu0 0
        %1403 = vmatpush2.bf16.msra.mxu0 0
        %1404 = vmatprep.subr.bf16.mxu0 0
        %1405 = vmatpush2.bf16.msra.mxu0 0
        %1406 = vmatprep.subr.bf16.mxu0 0
        %1407 = vmatpush2.bf16.msra.mxu0 0
        %1408 = vmatprep.mubr.bf16.mxu0 0
        %1409 = vmatmul.mubr.bf16.gmra.mxu0 %v951
        %v1410 = vpop.f32.mrf.mxu0
        %v1411 = vadd.f32 0.0, %v1410
        %v1412 = vpop.f32.mrf.mxu0
        %v1413 = vadd.f32 0.0, %v1412
        %v1414 = vpop.f32.mrf.mxu0
        %v1415 = vadd.f32 0.0, %v1414
        %v1416 = vpop.f32.mrf.mxu0
        %v1417 = vadd.f32 0.0, %v1416
        %1418 = vdwg.mxu0
        %v1419 = vpack.c.bf16 %v1372, %v1368
        %v1420 = vpack.c.bf16 %v1374, %v1370
        %v1421 = vpack.c.bf16 %v1415, %v1411
        %v1422 = vpack.c.bf16 %v1417, %v1413
        %v1424 = vsel %vm809, %v1047, 0
        %v1427 = vsel %vm809, %v1233, 0
        %1429 = vmatprep.subr.bf16.mxu0 0
        %1430 = vmatpush1.bf16.xpose.msra.mxu0 0
        %1431 = vmatprep.subr.bf16.mxu0 0
        %1432 = vmatpush1.bf16.xpose.msra.mxu0 0
        %1433 = vmatprep.subr.bf16.mxu0 0
        %1434 = vmatpush1.bf16.xpose.msra.mxu0 0
        %1435 = vmatprep.subr.bf16.mxu0 0
        %1436 = vmatpush1.bf16.xpose.msra.mxu0 0
        %1437 = vmatprep.subr.bf16.mxu0 0
        %1438 = vmatpush1.bf16.xpose.msra.mxu0 0
        %1439 = vmatprep.subr.bf16.mxu0 0
        %1440 = vmatpush1.bf16.xpose.msra.mxu0 0
        %1441 = vmatprep.subr.bf16.mxu0 0
        %1442 = vmatpush1.bf16.xpose.msra.mxu0 0
        %1443 = vmatprep.subr.bf16.mxu0 0
        %1444 = vmatpush1.bf16.xpose.msra.mxu0 %v1427
        %1445 = vmatprep.subr.bf16.mxu0 0
        %1446 = vmatpush2.bf16.xpose.msra.mxu0 0
        %1447 = vmatprep.subr.bf16.mxu0 0
        %1448 = vmatpush2.bf16.xpose.msra.mxu0 0
        %1449 = vmatprep.subr.bf16.mxu0 0
        %1450 = vmatpush2.bf16.xpose.msra.mxu0 0
        %1451 = vmatprep.subr.bf16.mxu0 0
        %1452 = vmatpush2.bf16.xpose.msra.mxu0 0
        %1453 = vmatprep.subr.bf16.mxu0 0
        %1454 = vmatpush2.bf16.xpose.msra.mxu0 0
        %1455 = vmatprep.subr.bf16.mxu0 0
        %1456 = vmatpush2.bf16.xpose.msra.mxu0 0
        %1457 = vmatprep.subr.bf16.mxu0 0
        %1458 = vmatpush2.bf16.xpose.msra.mxu0 0
        %1459 = vmatprep.subr.bf16.mxu0 0
        %1460 = vmatpush2.bf16.xpose.msra.mxu0 0
        %1461 = vmatprep.mubr.bf16.mxu0 0
        %1462 = vmatmul.mubr.bf16.gmra.mxu0 %v1424
        %v1463 = vpop.f32.mrf.mxu0
        %v1464 = vadd.f32 0.0, %v1463
        %v1465 = vpop.f32.mrf.mxu0
        %v1466 = vpop.f32.mrf.mxu0
        %v1467 = vadd.f32 0.0, %v1466
        %v1468 = vpop.f32.mrf.mxu0
        %1469 = vdwg.mxu0
        %vm1470 = vcmask 130048
        %v1471 = vsel %vm1470, %v1464, -inf
        %1472 = vmax.xlane.f32.xlu0 %v1471
        %v1473 = vpop.xlane.xlu0 %1472
        %v1474 = vsel %vm1470, %v1467, -inf
        %1475 = vmax.xlane.f32.xlu0 %v1474
        %v1476 = vpop.xlane.xlu0 %1475
        %v1477 = vsub.f32 %v1464, %v1473
        %v1478 = vsub.f32 %v1467, %v1476
        %v1479 = vmul.f32 %v1477, 1.442695
        %v1480 = vpow.pop %v1479
        %v1481 = vmul.f32 %v1478, 1.442695
        %v1482 = vpow.pop %v1481
        %v1483 = vsel %vm1470, %v1480, 0.0
        %1484 = vadd.xlane.f32.xlu0 %v1483
        %v1485 = vpop.xlane.xlu0 %1484
        %v1486 = vsel %vm1470, %v1482, 0.0
        %1487 = vadd.xlane.f32.xlu0 %v1486
        %v1488 = vpop.xlane.xlu0 %1487
        %v1489 = vrcp.pop %v1485
        %v1490 = vrcp.pop %v1488
        %v1491 = vmul.f32 %v1480, %v1489
        %v1492 = vmul.f32 %v1482, %v1490
        %v1493 = vpack.c.bf16 %v1492, %v1491
        %v1495 = vsel %vm1470, %v1493, 0
        %1497 = vmatprep.subr.bf16.mxu0 0
        %1498 = vmatpush1.bf16.msra.mxu0 0
        %1499 = vmatprep.subr.bf16.mxu0 0
        %1500 = vmatpush1.bf16.msra.mxu0 0
        %1501 = vmatprep.subr.bf16.mxu0 0
        %1502 = vmatpush1.bf16.msra.mxu0 0
        %1503 = vmatprep.subr.bf16.mxu0 0
        %1504 = vmatpush1.bf16.msra.mxu0 0
        %1505 = vmatprep.subr.bf16.mxu0 0
        %1506 = vmatpush1.bf16.msra.mxu0 0
        %1507 = vmatprep.subr.bf16.mxu0 0
        %1508 = vmatpush1.bf16.msra.mxu0 0
        %1509 = vmatprep.subr.bf16.mxu0 0
        %1510 = vmatpush1.bf16.msra.mxu0 0
        %1511 = vmatprep.subr.bf16.mxu0 0
        %1512 = vmatpush1.bf16.msra.mxu0 %v1419
        %1513 = vmatprep.subr.bf16.mxu0 0
        %1514 = vmatpush2.bf16.msra.mxu0 0
        %1515 = vmatprep.subr.bf16.mxu0 0
        %1516 = vmatpush2.bf16.msra.mxu0 0
        %1517 = vmatprep.subr.bf16.mxu0 0
        %1518 = vmatpush2.bf16.msra.mxu0 0
        %1519 = vmatprep.subr.bf16.mxu0 0
        %1520 = vmatpush2.bf16.msra.mxu0 0
        %1521 = vmatprep.subr.bf16.mxu0 0
        %1522 = vmatpush2.bf16.msra.mxu0 0
        %1523 = vmatprep.subr.bf16.mxu0 0
        %1524 = vmatpush2.bf16.msra.mxu0 0
        %1525 = vmatprep.subr.bf16.mxu0 0
        %1526 = vmatpush2.bf16.msra.mxu0 0
        %1527 = vmatprep.subr.bf16.mxu0 0
        %1528 = vmatpush2.bf16.msra.mxu0 0
        %1529 = vmatprep.mubr.bf16.mxu0 0
        %1530 = vmatmul.mubr.bf16.gmra.mxu0 %v1495
        %v1531 = vpop.f32.mrf.mxu0
        %v1532 = vadd.f32 0.0, %v1531
        %v1533 = vpop.f32.mrf.mxu0
        %v1534 = vpop.f32.mrf.mxu0
        %v1535 = vadd.f32 0.0, %v1534
        %v1536 = vpop.f32.mrf.mxu0
        %1537 = vdwg.mxu0
        %1538 = vst.msk [vmem:[#allocation3] sm:$0xff] %vm809, %v1532
        %1539 = vst.msk [vmem:[#allocation3 + $0x20] sm:$0xff] %vm809, %v1535
        %1541 = vrot.lane.b32.xlu0 %v1047, 64
        %v1542 = vpop.permute.xlu0 %1541
        %1544 = vrot.lane.b32.xlu0 %v1233, 64
        %v1545 = vpop.permute.xlu0 %1544
        %v1547 = vsel %vm809, %v1542, 0
        %v1550 = vsel %vm809, %v1545, 0
        %1552 = vmatprep.subr.bf16.mxu0 0
        %1553 = vmatpush1.bf16.xpose.msra.mxu0 0
        %1554 = vmatprep.subr.bf16.mxu0 0
        %1555 = vmatpush1.bf16.xpose.msra.mxu0 0
        %1556 = vmatprep.subr.bf16.mxu0 0
        %1557 = vmatpush1.bf16.xpose.msra.mxu0 0
        %1558 = vmatprep.subr.bf16.mxu0 0
        %1559 = vmatpush1.bf16.xpose.msra.mxu0 0
        %1560 = vmatprep.subr.bf16.mxu0 0
        %1561 = vmatpush1.bf16.xpose.msra.mxu0 0
        %1562 = vmatprep.subr.bf16.mxu0 0
        %1563 = vmatpush1.bf16.xpose.msra.mxu0 0
        %1564 = vmatprep.subr.bf16.mxu0 0
        %1565 = vmatpush1.bf16.xpose.msra.mxu0 0
        %1566 = vmatprep.subr.bf16.mxu0 0
        %1567 = vmatpush1.bf16.xpose.msra.mxu0 %v1550
        %1568 = vmatprep.subr.bf16.mxu0 0
        %1569 = vmatpush2.bf16.xpose.msra.mxu0 0
        %1570 = vmatprep.subr.bf16.mxu0 0
        %1571 = vmatpush2.bf16.xpose.msra.mxu0 0
        %1572 = vmatprep.subr.bf16.mxu0 0
        %1573 = vmatpush2.bf16.xpose.msra.mxu0 0
        %1574 = vmatprep.subr.bf16.mxu0 0
        %1575 = vmatpush2.bf16.xpose.msra.mxu0 0
        %1576 = vmatprep.subr.bf16.mxu0 0
        %1577 = vmatpush2.bf16.xpose.msra.mxu0 0
        %1578 = vmatprep.subr.bf16.mxu0 0
        %1579 = vmatpush2.bf16.xpose.msra.mxu0 0
        %1580 = vmatprep.subr.bf16.mxu0 0
        %1581 = vmatpush2.bf16.xpose.msra.mxu0 0
        %1582 = vmatprep.subr.bf16.mxu0 0
        %1583 = vmatpush2.bf16.xpose.msra.mxu0 0
        %1584 = vmatprep.mubr.bf16.mxu0 0
        %1585 = vmatmul.mubr.bf16.gmra.mxu0 %v1547
        %v1586 = vpop.f32.mrf.mxu0
        %v1587 = vadd.f32 0.0, %v1586
        %v1588 = vpop.f32.mrf.mxu0
        %v1589 = vpop.f32.mrf.mxu0
        %v1590 = vadd.f32 0.0, %v1589
        %v1591 = vpop.f32.mrf.mxu0
        %1592 = vdwg.mxu0
        %v1593 = vsel %vm1470, %v1587, -inf
        %1594 = vmax.xlane.f32.xlu0 %v1593
        %v1595 = vpop.xlane.xlu0 %1594
        %v1596 = vsel %vm1470, %v1590, -inf
        %1597 = vmax.xlane.f32.xlu0 %v1596
        %v1598 = vpop.xlane.xlu0 %1597
        %v1599 = vsub.f32 %v1587, %v1595
        %v1600 = vsub.f32 %v1590, %v1598
        %v1601 = vmul.f32 %v1599, 1.442695
        %v1602 = vpow.pop %v1601
        %v1603 = vmul.f32 %v1600, 1.442695
        %v1604 = vpow.pop %v1603
        %v1605 = vsel %vm1470, %v1602, 0.0
        %1606 = vadd.xlane.f32.xlu0 %v1605
        %v1607 = vpop.xlane.xlu0 %1606
        %v1608 = vsel %vm1470, %v1604, 0.0
        %1609 = vadd.xlane.f32.xlu0 %v1608
        %v1610 = vpop.xlane.xlu0 %1609
        %v1611 = vrcp.pop %v1607
        %v1612 = vrcp.pop %v1610
        %v1613 = vmul.f32 %v1602, %v1611
        %v1614 = vmul.f32 %v1604, %v1612
        %v1615 = vpack.c.bf16 %v1614, %v1613
        %1617 = vrot.lane.b32.xlu0 %v1419, 64
        %v1618 = vpop.permute.xlu0 %1617
        %v1621 = vsel %vm1470, %v1615, 0
        %1623 = vmatprep.subr.bf16.mxu0 0
        %1624 = vmatpush1.bf16.msra.mxu0 0
        %1625 = vmatprep.subr.bf16.mxu0 0
        %1626 = vmatpush1.bf16.msra.mxu0 0
        %1627 = vmatprep.subr.bf16.mxu0 0
        %1628 = vmatpush1.bf16.msra.mxu0 0
        %1629 = vmatprep.subr.bf16.mxu0 0
        %1630 = vmatpush1.bf16.msra.mxu0 0
        %1631 = vmatprep.subr.bf16.mxu0 0
        %1632 = vmatpush1.bf16.msra.mxu0 0
        %1633 = vmatprep.subr.bf16.mxu0 0
        %1634 = vmatpush1.bf16.msra.mxu0 0
        %1635 = vmatprep.subr.bf16.mxu0 0
        %1636 = vmatpush1.bf16.msra.mxu0 0
        %1637 = vmatprep.subr.bf16.mxu0 0
        %1638 = vmatpush1.bf16.msra.mxu0 %v1618
        %1639 = vmatprep.subr.bf16.mxu0 0
        %1640 = vmatpush2.bf16.msra.mxu0 0
        %1641 = vmatprep.subr.bf16.mxu0 0
        %1642 = vmatpush2.bf16.msra.mxu0 0
        %1643 = vmatprep.subr.bf16.mxu0 0
        %1644 = vmatpush2.bf16.msra.mxu0 0
        %1645 = vmatprep.subr.bf16.mxu0 0
        %1646 = vmatpush2.bf16.msra.mxu0 0
        %1647 = vmatprep.subr.bf16.mxu0 0
        %1648 = vmatpush2.bf16.msra.mxu0 0
        %1649 = vmatprep.subr.bf16.mxu0 0
        %1650 = vmatpush2.bf16.msra.mxu0 0
        %1651 = vmatprep.subr.bf16.mxu0 0
        %1652 = vmatpush2.bf16.msra.mxu0 0
        %1653 = vmatprep.subr.bf16.mxu0 0
        %1654 = vmatpush2.bf16.msra.mxu0 0
        %1655 = vmatprep.mubr.bf16.mxu0 0
        %1656 = vmatmul.mubr.bf16.gmra.mxu0 %v1621
        %v1657 = vpop.f32.mrf.mxu0
        %v1658 = vadd.f32 0.0, %v1657
        %v1659 = vpop.f32.mrf.mxu0
        %v1660 = vpop.f32.mrf.mxu0
        %v1661 = vadd.f32 0.0, %v1660
        %v1662 = vpop.f32.mrf.mxu0
        %1663 = vdwg.mxu0
        %1666 = vrot.lane.b32.xlu0 %v1658, 64
        %v1667 = vpop.permute.xlu0 %1666
        %1668 = vrot.lane.b32.xlu0 %v1661, 64
        %v1669 = vpop.permute.xlu0 %1668
        %vm1672 = vcmask 1048064
        %1673 = vst.msk [vmem:[#allocation3] sm:$0xff] %vm1672, %v1667
        %1674 = vst.msk [vmem:[#allocation3 + $0x20] sm:$0xff] %vm1672, %v1669
        %v1676 = vsel %vm809, %v1048, 0
        %v1679 = vsel %vm809, %v1234, 0
        %1681 = vmatprep.subr.bf16.mxu0 0
        %1682 = vmatpush1.bf16.xpose.msra.mxu0 0
        %1683 = vmatprep.subr.bf16.mxu0 0
        %1684 = vmatpush1.bf16.xpose.msra.mxu0 0
        %1685 = vmatprep.subr.bf16.mxu0 0
        %1686 = vmatpush1.bf16.xpose.msra.mxu0 0
        %1687 = vmatprep.subr.bf16.mxu0 0
        %1688 = vmatpush1.bf16.xpose.msra.mxu0 0
        %1689 = vmatprep.subr.bf16.mxu0 0
        %1690 = vmatpush1.bf16.xpose.msra.mxu0 0
        %1691 = vmatprep.subr.bf16.mxu0 0
        %1692 = vmatpush1.bf16.xpose.msra.mxu0 0
        %1693 = vmatprep.subr.bf16.mxu0 0
        %1694 = vmatpush1.bf16.xpose.msra.mxu0 0
        %1695 = vmatprep.subr.bf16.mxu0 0
        %1696 = vmatpush1.bf16.xpose.msra.mxu0 %v1679
        %1697 = vmatprep.subr.bf16.mxu0 0
        %1698 = vmatpush2.bf16.xpose.msra.mxu0 0
        %1699 = vmatprep.subr.bf16.mxu0 0
        %1700 = vmatpush2.bf16.xpose.msra.mxu0 0
        %1701 = vmatprep.subr.bf16.mxu0 0
        %1702 = vmatpush2.bf16.xpose.msra.mxu0 0
        %1703 = vmatprep.subr.bf16.mxu0 0
        %1704 = vmatpush2.bf16.xpose.msra.mxu0 0
        %1705 = vmatprep.subr.bf16.mxu0 0
        %1706 = vmatpush2.bf16.xpose.msra.mxu0 0
        %1707 = vmatprep.subr.bf16.mxu0 0
        %1708 = vmatpush2.bf16.xpose.msra.mxu0 0
        %1709 = vmatprep.subr.bf16.mxu0 0
        %1710 = vmatpush2.bf16.xpose.msra.mxu0 0
        %1711 = vmatprep.subr.bf16.mxu0 0
        %1712 = vmatpush2.bf16.xpose.msra.mxu0 0
        %1713 = vmatprep.mubr.bf16.mxu0 0
        %1714 = vmatmul.mubr.bf16.gmra.mxu0 %v1676
        %v1715 = vpop.f32.mrf.mxu0
        %v1716 = vadd.f32 0.0, %v1715
        %v1717 = vpop.f32.mrf.mxu0
        %v1718 = vpop.f32.mrf.mxu0
        %v1719 = vadd.f32 0.0, %v1718
        %v1720 = vpop.f32.mrf.mxu0
        %1721 = vdwg.mxu0
        %v1722 = vsel %vm1470, %v1716, -inf
        %1723 = vmax.xlane.f32.xlu0 %v1722
        %v1724 = vpop.xlane.xlu0 %1723
        %v1725 = vsel %vm1470, %v1719, -inf
        %1726 = vmax.xlane.f32.xlu0 %v1725
        %v1727 = vpop.xlane.xlu0 %1726
        %v1728 = vsub.f32 %v1716, %v1724
        %v1729 = vsub.f32 %v1719, %v1727
        %v1730 = vmul.f32 %v1728, 1.442695
        %v1731 = vpow.pop %v1730
        %v1732 = vmul.f32 %v1729, 1.442695
        %v1733 = vpow.pop %v1732
        %v1734 = vsel %vm1470, %v1731, 0.0
        %1735 = vadd.xlane.f32.xlu0 %v1734
        %v1736 = vpop.xlane.xlu0 %1735
        %v1737 = vsel %vm1470, %v1733, 0.0
        %1738 = vadd.xlane.f32.xlu0 %v1737
        %v1739 = vpop.xlane.xlu0 %1738
        %v1740 = vrcp.pop %v1736
        %v1741 = vrcp.pop %v1739
        %v1742 = vmul.f32 %v1731, %v1740
        %v1743 = vmul.f32 %v1733, %v1741
        %v1744 = vpack.c.bf16 %v1743, %v1742
        %v1746 = vsel %vm1470, %v1744, 0
        %1748 = vmatprep.subr.bf16.mxu0 0
        %1749 = vmatpush1.bf16.msra.mxu0 0
        %1750 = vmatprep.subr.bf16.mxu0 0
        %1751 = vmatpush1.bf16.msra.mxu0 0
        %1752 = vmatprep.subr.bf16.mxu0 0
        %1753 = vmatpush1.bf16.msra.mxu0 0
        %1754 = vmatprep.subr.bf16.mxu0 0
        %1755 = vmatpush1.bf16.msra.mxu0 0
        %1756 = vmatprep.subr.bf16.mxu0 0
        %1757 = vmatpush1.bf16.msra.mxu0 0
        %1758 = vmatprep.subr.bf16.mxu0 0
        %1759 = vmatpush1.bf16.msra.mxu0 0
        %1760 = vmatprep.subr.bf16.mxu0 0
        %1761 = vmatpush1.bf16.msra.mxu0 0
        %1762 = vmatprep.subr.bf16.mxu0 0
        %1763 = vmatpush1.bf16.msra.mxu0 %v1420
        %1764 = vmatprep.subr.bf16.mxu0 0
        %1765 = vmatpush2.bf16.msra.mxu0 0
        %1766 = vmatprep.subr.bf16.mxu0 0
        %1767 = vmatpush2.bf16.msra.mxu0 0
        %1768 = vmatprep.subr.bf16.mxu0 0
        %1769 = vmatpush2.bf16.msra.mxu0 0
        %1770 = vmatprep.subr.bf16.mxu0 0
        %1771 = vmatpush2.bf16.msra.mxu0 0
        %1772 = vmatprep.subr.bf16.mxu0 0
        %1773 = vmatpush2.bf16.msra.mxu0 0
        %1774 = vmatprep.subr.bf16.mxu0 0
        %1775 = vmatpush2.bf16.msra.mxu0 0
        %1776 = vmatprep.subr.bf16.mxu0 0
        %1777 = vmatpush2.bf16.msra.mxu0 0
        %1778 = vmatprep.subr.bf16.mxu0 0
        %1779 = vmatpush2.bf16.msra.mxu0 0
        %1780 = vmatprep.mubr.bf16.mxu0 0
        %1781 = vmatmul.mubr.bf16.gmra.mxu0 %v1746
        %v1782 = vpop.f32.mrf.mxu0
        %v1783 = vadd.f32 0.0, %v1782
        %v1784 = vpop.f32.mrf.mxu0
        %v1785 = vpop.f32.mrf.mxu0
        %v1786 = vadd.f32 0.0, %v1785
        %v1787 = vpop.f32.mrf.mxu0
        %1788 = vdwg.mxu0
        %1789 = vst.msk [vmem:[#allocation3 + $0x8] sm:$0xff] %vm809, %v1783
        %1790 = vst.msk [vmem:[#allocation3 + $0x28] sm:$0xff] %vm809, %v1786
        %1792 = vrot.lane.b32.xlu0 %v1048, 64
        %v1793 = vpop.permute.xlu0 %1792
        %1795 = vrot.lane.b32.xlu0 %v1234, 64
        %v1796 = vpop.permute.xlu0 %1795
        %v1798 = vsel %vm809, %v1793, 0
        %v1801 = vsel %vm809, %v1796, 0
        %1803 = vmatprep.subr.bf16.mxu0 0
        %1804 = vmatpush1.bf16.xpose.msra.mxu0 0
        %1805 = vmatprep.subr.bf16.mxu0 0
        %1806 = vmatpush1.bf16.xpose.msra.mxu0 0
        %1807 = vmatprep.subr.bf16.mxu0 0
        %1808 = vmatpush1.bf16.xpose.msra.mxu0 0
        %1809 = vmatprep.subr.bf16.mxu0 0
        %1810 = vmatpush1.bf16.xpose.msra.mxu0 0
        %1811 = vmatprep.subr.bf16.mxu0 0
        %1812 = vmatpush1.bf16.xpose.msra.mxu0 0
        %1813 = vmatprep.subr.bf16.mxu0 0
        %1814 = vmatpush1.bf16.xpose.msra.mxu0 0
        %1815 = vmatprep.subr.bf16.mxu0 0
        %1816 = vmatpush1.bf16.xpose.msra.mxu0 0
        %1817 = vmatprep.subr.bf16.mxu0 0
        %1818 = vmatpush1.bf16.xpose.msra.mxu0 %v1801
        %1819 = vmatprep.subr.bf16.mxu0 0
        %1820 = vmatpush2.bf16.xpose.msra.mxu0 0
        %1821 = vmatprep.subr.bf16.mxu0 0
        %1822 = vmatpush2.bf16.xpose.msra.mxu0 0
        %1823 = vmatprep.subr.bf16.mxu0 0
        %1824 = vmatpush2.bf16.xpose.msra.mxu0 0
        %1825 = vmatprep.subr.bf16.mxu0 0
        %1826 = vmatpush2.bf16.xpose.msra.mxu0 0
        %1827 = vmatprep.subr.bf16.mxu0 0
        %1828 = vmatpush2.bf16.xpose.msra.mxu0 0
        %1829 = vmatprep.subr.bf16.mxu0 0
        %1830 = vmatpush2.bf16.xpose.msra.mxu0 0
        %1831 = vmatprep.subr.bf16.mxu0 0
        %1832 = vmatpush2.bf16.xpose.msra.mxu0 0
        %1833 = vmatprep.subr.bf16.mxu0 0
        %1834 = vmatpush2.bf16.xpose.msra.mxu0 0
        %1835 = vmatprep.mubr.bf16.mxu0 0
        %1836 = vmatmul.mubr.bf16.gmra.mxu0 %v1798
        %v1837 = vpop.f32.mrf.mxu0
        %v1838 = vadd.f32 0.0, %v1837
        %v1839 = vpop.f32.mrf.mxu0
        %v1840 = vpop.f32.mrf.mxu0
        %v1841 = vadd.f32 0.0, %v1840
        %v1842 = vpop.f32.mrf.mxu0
        %1843 = vdwg.mxu0
        %v1844 = vsel %vm1470, %v1838, -inf
        %1845 = vmax.xlane.f32.xlu0 %v1844
        %v1846 = vpop.xlane.xlu0 %1845
        %v1847 = vsel %vm1470, %v1841, -inf
        %1848 = vmax.xlane.f32.xlu0 %v1847
        %v1849 = vpop.xlane.xlu0 %1848
        %v1850 = vsub.f32 %v1838, %v1846
        %v1851 = vsub.f32 %v1841, %v1849
        %v1852 = vmul.f32 %v1850, 1.442695
        %v1853 = vpow.pop %v1852
        %v1854 = vmul.f32 %v1851, 1.442695
        %v1855 = vpow.pop %v1854
        %v1856 = vsel %vm1470, %v1853, 0.0
        %1857 = vadd.xlane.f32.xlu0 %v1856
        %v1858 = vpop.xlane.xlu0 %1857
        %v1859 = vsel %vm1470, %v1855, 0.0
        %1860 = vadd.xlane.f32.xlu0 %v1859
        %v1861 = vpop.xlane.xlu0 %1860
        %v1862 = vrcp.pop %v1858
        %v1863 = vrcp.pop %v1861
        %v1864 = vmul.f32 %v1853, %v1862
        %v1865 = vmul.f32 %v1855, %v1863
        %v1866 = vpack.c.bf16 %v1865, %v1864
        %1868 = vrot.lane.b32.xlu0 %v1420, 64
        %v1869 = vpop.permute.xlu0 %1868
        %v1872 = vsel %vm1470, %v1866, 0
        %1874 = vmatprep.subr.bf16.mxu0 0
        %1875 = vmatpush1.bf16.msra.mxu0 0
        %1876 = vmatprep.subr.bf16.mxu0 0
        %1877 = vmatpush1.bf16.msra.mxu0 0
        %1878 = vmatprep.subr.bf16.mxu0 0
        %1879 = vmatpush1.bf16.msra.mxu0 0
        %1880 = vmatprep.subr.bf16.mxu0 0
        %1881 = vmatpush1.bf16.msra.mxu0 0
        %1882 = vmatprep.subr.bf16.mxu0 0
        %1883 = vmatpush1.bf16.msra.mxu0 0
        %1884 = vmatprep.subr.bf16.mxu0 0
        %1885 = vmatpush1.bf16.msra.mxu0 0
        %1886 = vmatprep.subr.bf16.mxu0 0
        %1887 = vmatpush1.bf16.msra.mxu0 0
        %1888 = vmatprep.subr.bf16.mxu0 0
        %1889 = vmatpush1.bf16.msra.mxu0 %v1869
        %1890 = vmatprep.subr.bf16.mxu0 0
        %1891 = vmatpush2.bf16.msra.mxu0 0
        %1892 = vmatprep.subr.bf16.mxu0 0
        %1893 = vmatpush2.bf16.msra.mxu0 0
        %1894 = vmatprep.subr.bf16.mxu0 0
        %1895 = vmatpush2.bf16.msra.mxu0 0
        %1896 = vmatprep.subr.bf16.mxu0 0
        %1897 = vmatpush2.bf16.msra.mxu0 0
        %1898 = vmatprep.subr.bf16.mxu0 0
        %1899 = vmatpush2.bf16.msra.mxu0 0
        %1900 = vmatprep.subr.bf16.mxu0 0
        %1901 = vmatpush2.bf16.msra.mxu0 0
        %1902 = vmatprep.subr.bf16.mxu0 0
        %1903 = vmatpush2.bf16.msra.mxu0 0
        %1904 = vmatprep.subr.bf16.mxu0 0
        %1905 = vmatpush2.bf16.msra.mxu0 0
        %1906 = vmatprep.mubr.bf16.mxu0 0
        %1907 = vmatmul.mubr.bf16.gmra.mxu0 %v1872
        %v1908 = vpop.f32.mrf.mxu0
        %v1909 = vadd.f32 0.0, %v1908
        %v1910 = vpop.f32.mrf.mxu0
        %v1911 = vpop.f32.mrf.mxu0
        %v1912 = vadd.f32 0.0, %v1911
        %v1913 = vpop.f32.mrf.mxu0
        %1914 = vdwg.mxu0
        %1917 = vrot.lane.b32.xlu0 %v1909, 64
        %v1918 = vpop.permute.xlu0 %1917
        %1919 = vrot.lane.b32.xlu0 %v1912, 64
        %v1920 = vpop.permute.xlu0 %1919
        %1923 = vst.msk [vmem:[#allocation3 + $0x8] sm:$0xff] %vm1672, %v1918
        %1924 = vst.msk [vmem:[#allocation3 + $0x28] sm:$0xff] %vm1672, %v1920
        %v1926 = vsel %vm809, %v1049, 0
        %v1929 = vsel %vm809, %v1235, 0
        %1931 = vmatprep.subr.bf16.mxu0 0
        %1932 = vmatpush1.bf16.xpose.msra.mxu0 0
        %1933 = vmatprep.subr.bf16.mxu0 0
        %1934 = vmatpush1.bf16.xpose.msra.mxu0 0
        %1935 = vmatprep.subr.bf16.mxu0 0
        %1936 = vmatpush1.bf16.xpose.msra.mxu0 0
        %1937 = vmatprep.subr.bf16.mxu0 0
        %1938 = vmatpush1.bf16.xpose.msra.mxu0 0
        %1939 = vmatprep.subr.bf16.mxu0 0
        %1940 = vmatpush1.bf16.xpose.msra.mxu0 0
        %1941 = vmatprep.subr.bf16.mxu0 0
        %1942 = vmatpush1.bf16.xpose.msra.mxu0 0
        %1943 = vmatprep.subr.bf16.mxu0 0
        %1944 = vmatpush1.bf16.xpose.msra.mxu0 0
        %1945 = vmatprep.subr.bf16.mxu0 0
        %1946 = vmatpush1.bf16.xpose.msra.mxu0 %v1929
        %1947 = vmatprep.subr.bf16.mxu0 0
        %1948 = vmatpush2.bf16.xpose.msra.mxu0 0
        %1949 = vmatprep.subr.bf16.mxu0 0
        %1950 = vmatpush2.bf16.xpose.msra.mxu0 0
        %1951 = vmatprep.subr.bf16.mxu0 0
        %1952 = vmatpush2.bf16.xpose.msra.mxu0 0
        %1953 = vmatprep.subr.bf16.mxu0 0
        %1954 = vmatpush2.bf16.xpose.msra.mxu0 0
        %1955 = vmatprep.subr.bf16.mxu0 0
        %1956 = vmatpush2.bf16.xpose.msra.mxu0 0
        %1957 = vmatprep.subr.bf16.mxu0 0
        %1958 = vmatpush2.bf16.xpose.msra.mxu0 0
        %1959 = vmatprep.subr.bf16.mxu0 0
        %1960 = vmatpush2.bf16.xpose.msra.mxu0 0
        %1961 = vmatprep.subr.bf16.mxu0 0
        %1962 = vmatpush2.bf16.xpose.msra.mxu0 0
        %1963 = vmatprep.mubr.bf16.mxu0 0
        %1964 = vmatmul.mubr.bf16.gmra.mxu0 %v1926
        %v1965 = vpop.f32.mrf.mxu0
        %v1966 = vadd.f32 0.0, %v1965
        %v1967 = vpop.f32.mrf.mxu0
        %v1968 = vpop.f32.mrf.mxu0
        %v1969 = vadd.f32 0.0, %v1968
        %v1970 = vpop.f32.mrf.mxu0
        %1971 = vdwg.mxu0
        %v1972 = vsel %vm1470, %v1966, -inf
        %1973 = vmax.xlane.f32.xlu0 %v1972
        %v1974 = vpop.xlane.xlu0 %1973
        %v1975 = vsel %vm1470, %v1969, -inf
        %1976 = vmax.xlane.f32.xlu0 %v1975
        %v1977 = vpop.xlane.xlu0 %1976
        %v1978 = vsub.f32 %v1966, %v1974
        %v1979 = vsub.f32 %v1969, %v1977
        %v1980 = vmul.f32 %v1978, 1.442695
        %v1981 = vpow.pop %v1980
        %v1982 = vmul.f32 %v1979, 1.442695
        %v1983 = vpow.pop %v1982
        %v1984 = vsel %vm1470, %v1981, 0.0
        %1985 = vadd.xlane.f32.xlu0 %v1984
        %v1986 = vpop.xlane.xlu0 %1985
        %v1987 = vsel %vm1470, %v1983, 0.0
        %1988 = vadd.xlane.f32.xlu0 %v1987
        %v1989 = vpop.xlane.xlu0 %1988
        %v1990 = vrcp.pop %v1986
        %v1991 = vrcp.pop %v1989
        %v1992 = vmul.f32 %v1981, %v1990
        %v1993 = vmul.f32 %v1983, %v1991
        %v1994 = vpack.c.bf16 %v1993, %v1992
        %v1996 = vsel %vm1470, %v1994, 0
        %1998 = vmatprep.subr.bf16.mxu0 0
        %1999 = vmatpush1.bf16.msra.mxu0 0
        %2000 = vmatprep.subr.bf16.mxu0 0
        %2001 = vmatpush1.bf16.msra.mxu0 0
        %2002 = vmatprep.subr.bf16.mxu0 0
        %2003 = vmatpush1.bf16.msra.mxu0 0
        %2004 = vmatprep.subr.bf16.mxu0 0
        %2005 = vmatpush1.bf16.msra.mxu0 0
        %2006 = vmatprep.subr.bf16.mxu0 0
        %2007 = vmatpush1.bf16.msra.mxu0 0
        %2008 = vmatprep.subr.bf16.mxu0 0
        %2009 = vmatpush1.bf16.msra.mxu0 0
        %2010 = vmatprep.subr.bf16.mxu0 0
        %2011 = vmatpush1.bf16.msra.mxu0 0
        %2012 = vmatprep.subr.bf16.mxu0 0
        %2013 = vmatpush1.bf16.msra.mxu0 %v1421
        %2014 = vmatprep.subr.bf16.mxu0 0
        %2015 = vmatpush2.bf16.msra.mxu0 0
        %2016 = vmatprep.subr.bf16.mxu0 0
        %2017 = vmatpush2.bf16.msra.mxu0 0
        %2018 = vmatprep.subr.bf16.mxu0 0
        %2019 = vmatpush2.bf16.msra.mxu0 0
        %2020 = vmatprep.subr.bf16.mxu0 0
        %2021 = vmatpush2.bf16.msra.mxu0 0
        %2022 = vmatprep.subr.bf16.mxu0 0
        %2023 = vmatpush2.bf16.msra.mxu0 0
        %2024 = vmatprep.subr.bf16.mxu0 0
        %2025 = vmatpush2.bf16.msra.mxu0 0
        %2026 = vmatprep.subr.bf16.mxu0 0
        %2027 = vmatpush2.bf16.msra.mxu0 0
        %2028 = vmatprep.subr.bf16.mxu0 0
        %2029 = vmatpush2.bf16.msra.mxu0 0
        %2030 = vmatprep.mubr.bf16.mxu0 0
        %2031 = vmatmul.mubr.bf16.gmra.mxu0 %v1996
        %v2032 = vpop.f32.mrf.mxu0
        %v2033 = vadd.f32 0.0, %v2032
        %v2034 = vpop.f32.mrf.mxu0
        %v2035 = vpop.f32.mrf.mxu0
        %v2036 = vadd.f32 0.0, %v2035
        %v2037 = vpop.f32.mrf.mxu0
        %2038 = vdwg.mxu0
        %2039 = vst.msk [vmem:[#allocation3 + $0x10] sm:$0xff] %vm809, %v2033
        %2040 = vst.msk [vmem:[#allocation3 + $0x30] sm:$0xff] %vm809, %v2036
        %2042 = vrot.lane.b32.xlu0 %v1049, 64
        %v2043 = vpop.permute.xlu0 %2042
        %2045 = vrot.lane.b32.xlu0 %v1235, 64
        %v2046 = vpop.permute.xlu0 %2045
        %v2048 = vsel %vm809, %v2043, 0
        %v2051 = vsel %vm809, %v2046, 0
        %2053 = vmatprep.subr.bf16.mxu0 0
        %2054 = vmatpush1.bf16.xpose.msra.mxu0 0
        %2055 = vmatprep.subr.bf16.mxu0 0
        %2056 = vmatpush1.bf16.xpose.msra.mxu0 0
        %2057 = vmatprep.subr.bf16.mxu0 0
        %2058 = vmatpush1.bf16.xpose.msra.mxu0 0
        %2059 = vmatprep.subr.bf16.mxu0 0
        %2060 = vmatpush1.bf16.xpose.msra.mxu0 0
        %2061 = vmatprep.subr.bf16.mxu0 0
        %2062 = vmatpush1.bf16.xpose.msra.mxu0 0
        %2063 = vmatprep.subr.bf16.mxu0 0
        %2064 = vmatpush1.bf16.xpose.msra.mxu0 0
        %2065 = vmatprep.subr.bf16.mxu0 0
        %2066 = vmatpush1.bf16.xpose.msra.mxu0 0
        %2067 = vmatprep.subr.bf16.mxu0 0
        %2068 = vmatpush1.bf16.xpose.msra.mxu0 %v2051
        %2069 = vmatprep.subr.bf16.mxu0 0
        %2070 = vmatpush2.bf16.xpose.msra.mxu0 0
        %2071 = vmatprep.subr.bf16.mxu0 0
        %2072 = vmatpush2.bf16.xpose.msra.mxu0 0
        %2073 = vmatprep.subr.bf16.mxu0 0
        %2074 = vmatpush2.bf16.xpose.msra.mxu0 0
        %2075 = vmatprep.subr.bf16.mxu0 0
        %2076 = vmatpush2.bf16.xpose.msra.mxu0 0
        %2077 = vmatprep.subr.bf16.mxu0 0
        %2078 = vmatpush2.bf16.xpose.msra.mxu0 0
        %2079 = vmatprep.subr.bf16.mxu0 0
        %2080 = vmatpush2.bf16.xpose.msra.mxu0 0
        %2081 = vmatprep.subr.bf16.mxu0 0
        %2082 = vmatpush2.bf16.xpose.msra.mxu0 0
        %2083 = vmatprep.subr.bf16.mxu0 0
        %2084 = vmatpush2.bf16.xpose.msra.mxu0 0
        %2085 = vmatprep.mubr.bf16.mxu0 0
        %2086 = vmatmul.mubr.bf16.gmra.mxu0 %v2048
        %v2087 = vpop.f32.mrf.mxu0
        %v2088 = vadd.f32 0.0, %v2087
        %v2089 = vpop.f32.mrf.mxu0
        %v2090 = vpop.f32.mrf.mxu0
        %v2091 = vadd.f32 0.0, %v2090
        %v2092 = vpop.f32.mrf.mxu0
        %2093 = vdwg.mxu0
        %v2094 = vsel %vm1470, %v2088, -inf
        %2095 = vmax.xlane.f32.xlu0 %v2094
        %v2096 = vpop.xlane.xlu0 %2095
        %v2097 = vsel %vm1470, %v2091, -inf
        %2098 = vmax.xlane.f32.xlu0 %v2097
        %v2099 = vpop.xlane.xlu0 %2098
        %v2100 = vsub.f32 %v2088, %v2096
        %v2101 = vsub.f32 %v2091, %v2099
        %v2102 = vmul.f32 %v2100, 1.442695
        %v2103 = vpow.pop %v2102
        %v2104 = vmul.f32 %v2101, 1.442695
        %v2105 = vpow.pop %v2104
        %v2106 = vsel %vm1470, %v2103, 0.0
        %2107 = vadd.xlane.f32.xlu0 %v2106
        %v2108 = vpop.xlane.xlu0 %2107
        %v2109 = vsel %vm1470, %v2105, 0.0
        %2110 = vadd.xlane.f32.xlu0 %v2109
        %v2111 = vpop.xlane.xlu0 %2110
        %v2112 = vrcp.pop %v2108
        %v2113 = vrcp.pop %v2111
        %v2114 = vmul.f32 %v2103, %v2112
        %v2115 = vmul.f32 %v2105, %v2113
        %v2116 = vpack.c.bf16 %v2115, %v2114
        %2118 = vrot.lane.b32.xlu0 %v1421, 64
        %v2119 = vpop.permute.xlu0 %2118
        %v2122 = vsel %vm1470, %v2116, 0
        %2124 = vmatprep.subr.bf16.mxu0 0
        %2125 = vmatpush1.bf16.msra.mxu0 0
        %2126 = vmatprep.subr.bf16.mxu0 0
        %2127 = vmatpush1.bf16.msra.mxu0 0
        %2128 = vmatprep.subr.bf16.mxu0 0
        %2129 = vmatpush1.bf16.msra.mxu0 0
        %2130 = vmatprep.subr.bf16.mxu0 0
        %2131 = vmatpush1.bf16.msra.mxu0 0
        %2132 = vmatprep.subr.bf16.mxu0 0
        %2133 = vmatpush1.bf16.msra.mxu0 0
        %2134 = vmatprep.subr.bf16.mxu0 0
        %2135 = vmatpush1.bf16.msra.mxu0 0
        %2136 = vmatprep.subr.bf16.mxu0 0
        %2137 = vmatpush1.bf16.msra.mxu0 0
        %2138 = vmatprep.subr.bf16.mxu0 0
        %2139 = vmatpush1.bf16.msra.mxu0 %v2119
        %2140 = vmatprep.subr.bf16.mxu0 0
        %2141 = vmatpush2.bf16.msra.mxu0 0
        %2142 = vmatprep.subr.bf16.mxu0 0
        %2143 = vmatpush2.bf16.msra.mxu0 0
        %2144 = vmatprep.subr.bf16.mxu0 0
        %2145 = vmatpush2.bf16.msra.mxu0 0
        %2146 = vmatprep.subr.bf16.mxu0 0
        %2147 = vmatpush2.bf16.msra.mxu0 0
        %2148 = vmatprep.subr.bf16.mxu0 0
        %2149 = vmatpush2.bf16.msra.mxu0 0
        %2150 = vmatprep.subr.bf16.mxu0 0
        %2151 = vmatpush2.bf16.msra.mxu0 0
        %2152 = vmatprep.subr.bf16.mxu0 0
        %2153 = vmatpush2.bf16.msra.mxu0 0
        %2154 = vmatprep.subr.bf16.mxu0 0
        %2155 = vmatpush2.bf16.msra.mxu0 0
        %2156 = vmatprep.mubr.bf16.mxu0 0
        %2157 = vmatmul.mubr.bf16.gmra.mxu0 %v2122
        %v2158 = vpop.f32.mrf.mxu0
        %v2159 = vadd.f32 0.0, %v2158
        %v2160 = vpop.f32.mrf.mxu0
        %v2161 = vpop.f32.mrf.mxu0
        %v2162 = vadd.f32 0.0, %v2161
        %v2163 = vpop.f32.mrf.mxu0
        %2164 = vdwg.mxu0
        %2167 = vrot.lane.b32.xlu0 %v2159, 64
        %v2168 = vpop.permute.xlu0 %2167
        %2169 = vrot.lane.b32.xlu0 %v2162, 64
        %v2170 = vpop.permute.xlu0 %2169
        %2173 = vst.msk [vmem:[#allocation3 + $0x10] sm:$0xff] %vm1672, %v2168
        %2174 = vst.msk [vmem:[#allocation3 + $0x30] sm:$0xff] %vm1672, %v2170
        %v2176 = vsel %vm809, %v1050, 0
        %v2179 = vsel %vm809, %v1236, 0
        %2181 = vmatprep.subr.bf16.mxu0 0
        %2182 = vmatpush1.bf16.xpose.msra.mxu0 0
        %2183 = vmatprep.subr.bf16.mxu0 0
        %2184 = vmatpush1.bf16.xpose.msra.mxu0 0
        %2185 = vmatprep.subr.bf16.mxu0 0
        %2186 = vmatpush1.bf16.xpose.msra.mxu0 0
        %2187 = vmatprep.subr.bf16.mxu0 0
        %2188 = vmatpush1.bf16.xpose.msra.mxu0 0
        %2189 = vmatprep.subr.bf16.mxu0 0
        %2190 = vmatpush1.bf16.xpose.msra.mxu0 0
        %2191 = vmatprep.subr.bf16.mxu0 0
        %2192 = vmatpush1.bf16.xpose.msra.mxu0 0
        %2193 = vmatprep.subr.bf16.mxu0 0
        %2194 = vmatpush1.bf16.xpose.msra.mxu0 0
        %2195 = vmatprep.subr.bf16.mxu0 0
        %2196 = vmatpush1.bf16.xpose.msra.mxu0 %v2179
        %2197 = vmatprep.subr.bf16.mxu0 0
        %2198 = vmatpush2.bf16.xpose.msra.mxu0 0
        %2199 = vmatprep.subr.bf16.mxu0 0
        %2200 = vmatpush2.bf16.xpose.msra.mxu0 0
        %2201 = vmatprep.subr.bf16.mxu0 0
        %2202 = vmatpush2.bf16.xpose.msra.mxu0 0
        %2203 = vmatprep.subr.bf16.mxu0 0
        %2204 = vmatpush2.bf16.xpose.msra.mxu0 0
        %2205 = vmatprep.subr.bf16.mxu0 0
        %2206 = vmatpush2.bf16.xpose.msra.mxu0 0
        %2207 = vmatprep.subr.bf16.mxu0 0
        %2208 = vmatpush2.bf16.xpose.msra.mxu0 0
        %2209 = vmatprep.subr.bf16.mxu0 0
        %2210 = vmatpush2.bf16.xpose.msra.mxu0 0
        %2211 = vmatprep.subr.bf16.mxu0 0
        %2212 = vmatpush2.bf16.xpose.msra.mxu0 0
        %2213 = vmatprep.mubr.bf16.mxu0 0
        %2214 = vmatmul.mubr.bf16.gmra.mxu0 %v2176
        %v2215 = vpop.f32.mrf.mxu0
        %v2216 = vadd.f32 0.0, %v2215
        %v2217 = vpop.f32.mrf.mxu0
        %v2218 = vpop.f32.mrf.mxu0
        %v2219 = vadd.f32 0.0, %v2218
        %v2220 = vpop.f32.mrf.mxu0
        %2221 = vdwg.mxu0
        %v2222 = vsel %vm1470, %v2216, -inf
        %2223 = vmax.xlane.f32.xlu0 %v2222
        %v2224 = vpop.xlane.xlu0 %2223
        %v2225 = vsel %vm1470, %v2219, -inf
        %2226 = vmax.xlane.f32.xlu0 %v2225
        %v2227 = vpop.xlane.xlu0 %2226
        %v2228 = vsub.f32 %v2216, %v2224
        %v2229 = vsub.f32 %v2219, %v2227
        %v2230 = vmul.f32 %v2228, 1.442695
        %v2231 = vpow.pop %v2230
        %v2232 = vmul.f32 %v2229, 1.442695
        %v2233 = vpow.pop %v2232
        %v2234 = vsel %vm1470, %v2231, 0.0
        %2235 = vadd.xlane.f32.xlu0 %v2234
        %v2236 = vpop.xlane.xlu0 %2235
        %v2237 = vsel %vm1470, %v2233, 0.0
        %2238 = vadd.xlane.f32.xlu0 %v2237
        %v2239 = vpop.xlane.xlu0 %2238
        %v2240 = vrcp.pop %v2236
        %v2241 = vrcp.pop %v2239
        %v2242 = vmul.f32 %v2231, %v2240
        %v2243 = vmul.f32 %v2233, %v2241
        %v2244 = vpack.c.bf16 %v2243, %v2242
        %v2246 = vsel %vm1470, %v2244, 0
        %2248 = vmatprep.subr.bf16.mxu0 0
        %2249 = vmatpush1.bf16.msra.mxu0 0
        %2250 = vmatprep.subr.bf16.mxu0 0
        %2251 = vmatpush1.bf16.msra.mxu0 0
        %2252 = vmatprep.subr.bf16.mxu0 0
        %2253 = vmatpush1.bf16.msra.mxu0 0
        %2254 = vmatprep.subr.bf16.mxu0 0
        %2255 = vmatpush1.bf16.msra.mxu0 0
        %2256 = vmatprep.subr.bf16.mxu0 0
        %2257 = vmatpush1.bf16.msra.mxu0 0
        %2258 = vmatprep.subr.bf16.mxu0 0
        %2259 = vmatpush1.bf16.msra.mxu0 0
        %2260 = vmatprep.subr.bf16.mxu0 0
        %2261 = vmatpush1.bf16.msra.mxu0 0
        %2262 = vmatprep.subr.bf16.mxu0 0
        %2263 = vmatpush1.bf16.msra.mxu0 %v1422
        %2264 = vmatprep.subr.bf16.mxu0 0
        %2265 = vmatpush2.bf16.msra.mxu0 0
        %2266 = vmatprep.subr.bf16.mxu0 0
        %2267 = vmatpush2.bf16.msra.mxu0 0
        %2268 = vmatprep.subr.bf16.mxu0 0
        %2269 = vmatpush2.bf16.msra.mxu0 0
        %2270 = vmatprep.subr.bf16.mxu0 0
        %2271 = vmatpush2.bf16.msra.mxu0 0
        %2272 = vmatprep.subr.bf16.mxu0 0
        %2273 = vmatpush2.bf16.msra.mxu0 0
        %2274 = vmatprep.subr.bf16.mxu0 0
        %2275 = vmatpush2.bf16.msra.mxu0 0
        %2276 = vmatprep.subr.bf16.mxu0 0
        %2277 = vmatpush2.bf16.msra.mxu0 0
        %2278 = vmatprep.subr.bf16.mxu0 0
        %2279 = vmatpush2.bf16.msra.mxu0 0
        %2280 = vmatprep.mubr.bf16.mxu0 0
        %2281 = vmatmul.mubr.bf16.gmra.mxu0 %v2246
        %v2282 = vpop.f32.mrf.mxu0
        %v2283 = vadd.f32 0.0, %v2282
        %v2284 = vpop.f32.mrf.mxu0
        %v2285 = vpop.f32.mrf.mxu0
        %v2286 = vadd.f32 0.0, %v2285
        %v2287 = vpop.f32.mrf.mxu0
        %2288 = vdwg.mxu0
        %2289 = vst.msk [vmem:[#allocation3 + $0x18] sm:$0xff] %vm809, %v2283
        %2290 = vst.msk [vmem:[#allocation3 + $0x38] sm:$0xff] %vm809, %v2286
        %2292 = vrot.lane.b32.xlu0 %v1050, 64
        %v2293 = vpop.permute.xlu0 %2292
        %2295 = vrot.lane.b32.xlu0 %v1236, 64
        %v2296 = vpop.permute.xlu0 %2295
        %v2298 = vsel %vm809, %v2293, 0
        %v2301 = vsel %vm809, %v2296, 0
        %2303 = vmatprep.subr.bf16.mxu0 0
        %2304 = vmatpush1.bf16.xpose.msra.mxu0 0
        %2305 = vmatprep.subr.bf16.mxu0 0
        %2306 = vmatpush1.bf16.xpose.msra.mxu0 0
        %2307 = vmatprep.subr.bf16.mxu0 0
        %2308 = vmatpush1.bf16.xpose.msra.mxu0 0
        %2309 = vmatprep.subr.bf16.mxu0 0
        %2310 = vmatpush1.bf16.xpose.msra.mxu0 0
        %2311 = vmatprep.subr.bf16.mxu0 0
        %2312 = vmatpush1.bf16.xpose.msra.mxu0 0
        %2313 = vmatprep.subr.bf16.mxu0 0
        %2314 = vmatpush1.bf16.xpose.msra.mxu0 0
        %2315 = vmatprep.subr.bf16.mxu0 0
        %2316 = vmatpush1.bf16.xpose.msra.mxu0 0
        %2317 = vmatprep.subr.bf16.mxu0 0
        %2318 = vmatpush1.bf16.xpose.msra.mxu0 %v2301
        %2319 = vmatprep.subr.bf16.mxu0 0
        %2320 = vmatpush2.bf16.xpose.msra.mxu0 0
        %2321 = vmatprep.subr.bf16.mxu0 0
        %2322 = vmatpush2.bf16.xpose.msra.mxu0 0
        %2323 = vmatprep.subr.bf16.mxu0 0
        %2324 = vmatpush2.bf16.xpose.msra.mxu0 0
        %2325 = vmatprep.subr.bf16.mxu0 0
        %2326 = vmatpush2.bf16.xpose.msra.mxu0 0
        %2327 = vmatprep.subr.bf16.mxu0 0
        %2328 = vmatpush2.bf16.xpose.msra.mxu0 0
        %2329 = vmatprep.subr.bf16.mxu0 0
        %2330 = vmatpush2.bf16.xpose.msra.mxu0 0
        %2331 = vmatprep.subr.bf16.mxu0 0
        %2332 = vmatpush2.bf16.xpose.msra.mxu0 0
        %2333 = vmatprep.subr.bf16.mxu0 0
        %2334 = vmatpush2.bf16.xpose.msra.mxu0 0
        %2335 = vmatprep.mubr.bf16.mxu0 0
        %2336 = vmatmul.mubr.bf16.gmra.mxu0 %v2298
        %v2337 = vpop.f32.mrf.mxu0
        %v2338 = vadd.f32 0.0, %v2337
        %v2339 = vpop.f32.mrf.mxu0
        %v2340 = vpop.f32.mrf.mxu0
        %v2341 = vadd.f32 0.0, %v2340
        %v2342 = vpop.f32.mrf.mxu0
        %2343 = vdwg.mxu0
        %v2344 = vsel %vm1470, %v2338, -inf
        %2345 = vmax.xlane.f32.xlu0 %v2344
        %v2346 = vpop.xlane.xlu0 %2345
        %v2347 = vsel %vm1470, %v2341, -inf
        %2348 = vmax.xlane.f32.xlu0 %v2347
        %v2349 = vpop.xlane.xlu0 %2348
        %v2350 = vsub.f32 %v2338, %v2346
        %v2351 = vsub.f32 %v2341, %v2349
        %v2352 = vmul.f32 %v2350, 1.442695
        %v2353 = vpow.pop %v2352
        %v2354 = vmul.f32 %v2351, 1.442695
        %v2355 = vpow.pop %v2354
        %v2356 = vsel %vm1470, %v2353, 0.0
        %2357 = vadd.xlane.f32.xlu0 %v2356
        %v2358 = vpop.xlane.xlu0 %2357
        %v2359 = vsel %vm1470, %v2355, 0.0
        %2360 = vadd.xlane.f32.xlu0 %v2359
        %v2361 = vpop.xlane.xlu0 %2360
        %v2362 = vrcp.pop %v2358
        %v2363 = vrcp.pop %v2361
        %v2364 = vmul.f32 %v2353, %v2362
        %v2365 = vmul.f32 %v2355, %v2363
        %v2366 = vpack.c.bf16 %v2365, %v2364
        %2368 = vrot.lane.b32.xlu0 %v1422, 64
        %v2369 = vpop.permute.xlu0 %2368
        %v2372 = vsel %vm1470, %v2366, 0
        %2374 = vmatprep.subr.bf16.mxu0 0
        %2375 = vmatpush1.bf16.msra.mxu0 0
        %2376 = vmatprep.subr.bf16.mxu0 0
        %2377 = vmatpush1.bf16.msra.mxu0 0
        %2378 = vmatprep.subr.bf16.mxu0 0
        %2379 = vmatpush1.bf16.msra.mxu0 0
        %2380 = vmatprep.subr.bf16.mxu0 0
        %2381 = vmatpush1.bf16.msra.mxu0 0
        %2382 = vmatprep.subr.bf16.mxu0 0
        %2383 = vmatpush1.bf16.msra.mxu0 0
        %2384 = vmatprep.subr.bf16.mxu0 0
        %2385 = vmatpush1.bf16.msra.mxu0 0
        %2386 = vmatprep.subr.bf16.mxu0 0
        %2387 = vmatpush1.bf16.msra.mxu0 0
        %2388 = vmatprep.subr.bf16.mxu0 0
        %2389 = vmatpush1.bf16.msra.mxu0 %v2369
        %2390 = vmatprep.subr.bf16.mxu0 0
        %2391 = vmatpush2.bf16.msra.mxu0 0
        %2392 = vmatprep.subr.bf16.mxu0 0
        %2393 = vmatpush2.bf16.msra.mxu0 0
        %2394 = vmatprep.subr.bf16.mxu0 0
        %2395 = vmatpush2.bf16.msra.mxu0 0
        %2396 = vmatprep.subr.bf16.mxu0 0
        %2397 = vmatpush2.bf16.msra.mxu0 0
        %2398 = vmatprep.subr.bf16.mxu0 0
        %2399 = vmatpush2.bf16.msra.mxu0 0
        %2400 = vmatprep.subr.bf16.mxu0 0
        %2401 = vmatpush2.bf16.msra.mxu0 0
        %2402 = vmatprep.subr.bf16.mxu0 0
        %2403 = vmatpush2.bf16.msra.mxu0 0
        %2404 = vmatprep.subr.bf16.mxu0 0
        %2405 = vmatpush2.bf16.msra.mxu0 0
        %2406 = vmatprep.mubr.bf16.mxu0 0
        %2407 = vmatmul.mubr.bf16.gmra.mxu0 %v2372
        %v2408 = vpop.f32.mrf.mxu0
        %v2409 = vadd.f32 0.0, %v2408
        %v2410 = vpop.f32.mrf.mxu0
        %v2411 = vpop.f32.mrf.mxu0
        %v2412 = vadd.f32 0.0, %v2411
        %v2413 = vpop.f32.mrf.mxu0
        %2414 = vdwg.mxu0
        %2417 = vrot.lane.b32.xlu0 %v2409, 64
        %v2418 = vpop.permute.xlu0 %2417
        %2419 = vrot.lane.b32.xlu0 %v2412, 64
        %v2420 = vpop.permute.xlu0 %2419
        %2423 = vst.msk [vmem:[#allocation3 + $0x18] sm:$0xff] %vm1672, %v2418
        %2424 = vst.msk [vmem:[#allocation3 + $0x38] sm:$0xff] %vm1672, %v2420
        %v2425 = vld [vmem:[#allocation3] sm:$0xff]
        %v2426 = vld [vmem:[#allocation3 + $0x8] sm:$0xff]
        %v2427 = vld [vmem:[#allocation3 + $0x10] sm:$0xff]
        %v2428 = vld [vmem:[#allocation3 + $0x18] sm:$0xff]
        %v2429 = vld [vmem:[#allocation3 + $0x20] sm:$0xff]
        %v2430 = vld [vmem:[#allocation3 + $0x28] sm:$0xff]
        %v2431 = vld [vmem:[#allocation3 + $0x30] sm:$0xff]
        %v2432 = vld [vmem:[#allocation3 + $0x38] sm:$0xff]
        %v2433 = vpack.c.bf16 %v2429, %v2425
        %v2434 = vpack.c.bf16 %v2430, %v2426
        %v2435 = vpack.c.bf16 %v2431, %v2427
        %v2436 = vpack.c.bf16 %v2432, %v2428
        %v2437 = vld [vmem:[%s652] sm:$0xf]
        %v2438 = vld [vmem:[%s652 + $0x4] sm:$0xf]
        %v2439 = vld [vmem:[%s652 + $0x8] sm:$0xf]
        %v2440 = vld [vmem:[%s652 + $0xc] sm:$0xf]
        %v2441 = vld [vmem:[%s652 + $0x10] sm:$0xf]
        %v2442 = vld [vmem:[%s652 + $0x14] sm:$0xf]
        %v2443 = vld [vmem:[%s652 + $0x18] sm:$0xf]
        %v2444 = vld [vmem:[%s652 + $0x1c] sm:$0xf]
        %v2445 = vld [vmem:[%s652 + $0x20] sm:$0xf]
        %v2446 = vld [vmem:[%s652 + $0x24] sm:$0xf]
        %v2447 = vld [vmem:[%s652 + $0x28] sm:$0xf]
        %v2448 = vld [vmem:[%s652 + $0x2c] sm:$0xf]
        %v2449 = vld [vmem:[%s652 + $0x30] sm:$0xf]
        %v2450 = vld [vmem:[%s652 + $0x34] sm:$0xf]
        %v2451 = vld [vmem:[%s652 + $0x38] sm:$0xf]
        %v2452 = vld [vmem:[%s652 + $0x3c] sm:$0xf]
        %v2453 = vld [vmem:[%s652 + $0x40] sm:$0xf]
        %v2454 = vld [vmem:[%s652 + $0x44] sm:$0xf]
        %v2455 = vld [vmem:[%s652 + $0x48] sm:$0xf]
        %v2456 = vld [vmem:[%s652 + $0x4c] sm:$0xf]
        %v2457 = vld [vmem:[%s652 + $0x50] sm:$0xf]
        %v2458 = vld [vmem:[%s652 + $0x54] sm:$0xf]
        %v2459 = vld [vmem:[%s652 + $0x58] sm:$0xf]
        %v2460 = vld [vmem:[%s652 + $0x5c] sm:$0xf]
        %v2461 = vld [vmem:[%s652 + $0x60] sm:$0xf]
        %v2462 = vld [vmem:[%s652 + $0x64] sm:$0xf]
        %v2463 = vld [vmem:[%s652 + $0x68] sm:$0xf]
        %v2464 = vld [vmem:[%s652 + $0x6c] sm:$0xf]
        %v2465 = vld [vmem:[%s652 + $0x70] sm:$0xf]
        %v2466 = vld [vmem:[%s652 + $0x74] sm:$0xf]
        %v2467 = vld [vmem:[%s652 + $0x78] sm:$0xf]
        %v2468 = vld [vmem:[%s652 + $0x7c] sm:$0xf]
        %v2469 = vld [vmem:[%s652 + $0x80] sm:$0xf]
        %v2470 = vld [vmem:[%s652 + $0x84] sm:$0xf]
        %v2471 = vld [vmem:[%s652 + $0x88] sm:$0xf]
        %v2472 = vld [vmem:[%s652 + $0x8c] sm:$0xf]
        %v2473 = vld [vmem:[%s652 + $0x90] sm:$0xf]
        %v2474 = vld [vmem:[%s652 + $0x94] sm:$0xf]
        %v2475 = vld [vmem:[%s652 + $0x98] sm:$0xf]
        %v2476 = vld [vmem:[%s652 + $0x9c] sm:$0xf]
        %v2477 = vld [vmem:[%s652 + $0xa0] sm:$0xf]
        %v2478 = vld [vmem:[%s652 + $0xa4] sm:$0xf]
        %v2479 = vld [vmem:[%s652 + $0xa8] sm:$0xf]
        %v2480 = vld [vmem:[%s652 + $0xac] sm:$0xf]
        %v2481 = vld [vmem:[%s652 + $0xb0] sm:$0xf]
        %v2482 = vld [vmem:[%s652 + $0xb4] sm:$0xf]
        %v2483 = vld [vmem:[%s652 + $0xb8] sm:$0xf]
        %v2484 = vld [vmem:[%s652 + $0xbc] sm:$0xf]
        %v2485 = vld [vmem:[%s652 + $0xc0] sm:$0xf]
        %v2486 = vld [vmem:[%s652 + $0xc4] sm:$0xf]
        %v2487 = vld [vmem:[%s652 + $0xc8] sm:$0xf]
        %v2488 = vld [vmem:[%s652 + $0xcc] sm:$0xf]
        %v2489 = vld [vmem:[%s652 + $0xd0] sm:$0xf]
        %v2490 = vld [vmem:[%s652 + $0xd4] sm:$0xf]
        %v2491 = vld [vmem:[%s652 + $0xd8] sm:$0xf]
        %v2492 = vld [vmem:[%s652 + $0xdc] sm:$0xf]
        %v2493 = vld [vmem:[%s652 + $0xe0] sm:$0xf]
        %v2494 = vld [vmem:[%s652 + $0xe4] sm:$0xf]
        %v2495 = vld [vmem:[%s652 + $0xe8] sm:$0xf]
        %v2496 = vld [vmem:[%s652 + $0xec] sm:$0xf]
        %v2497 = vld [vmem:[%s652 + $0xf0] sm:$0xf]
        %v2498 = vld [vmem:[%s652 + $0xf4] sm:$0xf]
        %v2499 = vld [vmem:[%s652 + $0xf8] sm:$0xf]
        %v2500 = vld [vmem:[%s652 + $0xfc] sm:$0xf]
        %v2501 = vld [vmem:[%s771] sm:$0x1]
        %v2503 = vlaneseq
        %v2504 = vshrl.u32 %v2503, 7
        %v2505 = vsub.s32 0, %v2504
        %v2506 = vrot.slane %v2501, %v2505
        %v2572 = vunpack.c.l.b16 %v2437
        %v2573 = vunpack.c.l.b16 %v2438
        %v2574 = vunpack.c.l.b16 %v2439
        %v2575 = vunpack.c.l.b16 %v2440
        %v2576 = vunpack.c.l.b16 %v2441
        %v2577 = vunpack.c.l.b16 %v2442
        %v2578 = vunpack.c.l.b16 %v2443
        %v2579 = vunpack.c.l.b16 %v2444
        %v2580 = vunpack.c.l.b16 %v2445
        %v2581 = vunpack.c.l.b16 %v2446
        %v2582 = vunpack.c.l.b16 %v2447
        %v2583 = vunpack.c.l.b16 %v2448
        %v2584 = vunpack.c.l.b16 %v2449
        %v2585 = vunpack.c.l.b16 %v2450
        %v2586 = vunpack.c.l.b16 %v2451
        %v2587 = vunpack.c.l.b16 %v2452
        %v2588 = vunpack.c.l.b16 %v2453
        %v2589 = vunpack.c.l.b16 %v2454
        %v2590 = vunpack.c.l.b16 %v2455
        %v2591 = vunpack.c.l.b16 %v2456
        %v2592 = vunpack.c.l.b16 %v2457
        %v2593 = vunpack.c.l.b16 %v2458
        %v2594 = vunpack.c.l.b16 %v2459
        %v2595 = vunpack.c.l.b16 %v2460
        %v2596 = vunpack.c.l.b16 %v2461
        %v2597 = vunpack.c.l.b16 %v2462
        %v2598 = vunpack.c.l.b16 %v2463
        %v2599 = vunpack.c.l.b16 %v2464
        %v2600 = vunpack.c.l.b16 %v2465
        %v2601 = vunpack.c.l.b16 %v2466
        %v2602 = vunpack.c.l.b16 %v2467
        %v2603 = vunpack.c.l.b16 %v2468
        %v2604 = vunpack.c.l.b16 %v2469
        %v2605 = vunpack.c.l.b16 %v2470
        %v2606 = vunpack.c.l.b16 %v2471
        %v2607 = vunpack.c.l.b16 %v2472
        %v2608 = vunpack.c.l.b16 %v2473
        %v2609 = vunpack.c.l.b16 %v2474
        %v2610 = vunpack.c.l.b16 %v2475
        %v2611 = vunpack.c.l.b16 %v2476
        %v2612 = vunpack.c.l.b16 %v2477
        %v2613 = vunpack.c.l.b16 %v2478
        %v2614 = vunpack.c.l.b16 %v2479
        %v2615 = vunpack.c.l.b16 %v2480
        %v2616 = vunpack.c.l.b16 %v2481
        %v2617 = vunpack.c.l.b16 %v2482
        %v2618 = vunpack.c.l.b16 %v2483
        %v2619 = vunpack.c.l.b16 %v2484
        %v2620 = vunpack.c.l.b16 %v2485
        %v2621 = vunpack.c.l.b16 %v2486
        %v2622 = vunpack.c.l.b16 %v2487
        %v2623 = vunpack.c.l.b16 %v2488
        %v2624 = vunpack.c.l.b16 %v2489
        %v2625 = vunpack.c.l.b16 %v2490
        %v2626 = vunpack.c.l.b16 %v2491
        %v2627 = vunpack.c.l.b16 %v2492
        %v2628 = vunpack.c.l.b16 %v2493
        %v2629 = vunpack.c.l.b16 %v2494
        %v2630 = vunpack.c.l.b16 %v2495
        %v2631 = vunpack.c.l.b16 %v2496
        %v2632 = vunpack.c.l.b16 %v2497
        %v2633 = vunpack.c.l.b16 %v2498
        %v2634 = vunpack.c.l.b16 %v2499
        %v2635 = vunpack.c.l.b16 %v2500
        %v2636 = vpack.c.b16 %v2573, %v2572
        %v2637 = vpack.c.b16 %v2575, %v2574
        %v2638 = vpack.c.b16 %v2577, %v2576
        %v2639 = vpack.c.b16 %v2579, %v2578
        %v2640 = vpack.c.b16 %v2581, %v2580
        %v2641 = vpack.c.b16 %v2583, %v2582
        %v2642 = vpack.c.b16 %v2585, %v2584
        %v2643 = vpack.c.b16 %v2587, %v2586
        %v2644 = vpack.c.b16 %v2589, %v2588
        %v2645 = vpack.c.b16 %v2591, %v2590
        %v2646 = vpack.c.b16 %v2593, %v2592
        %v2647 = vpack.c.b16 %v2595, %v2594
        %v2648 = vpack.c.b16 %v2597, %v2596
        %v2649 = vpack.c.b16 %v2599, %v2598
        %v2650 = vpack.c.b16 %v2601, %v2600
        %v2651 = vpack.c.b16 %v2603, %v2602
        %v2652 = vpack.c.b16 %v2605, %v2604
        %v2653 = vpack.c.b16 %v2607, %v2606
        %v2654 = vpack.c.b16 %v2609, %v2608
        %v2655 = vpack.c.b16 %v2611, %v2610
        %v2656 = vpack.c.b16 %v2613, %v2612
        %v2657 = vpack.c.b16 %v2615, %v2614
        %v2658 = vpack.c.b16 %v2617, %v2616
        %v2659 = vpack.c.b16 %v2619, %v2618
        %v2660 = vpack.c.b16 %v2621, %v2620
        %v2661 = vpack.c.b16 %v2623, %v2622
        %v2662 = vpack.c.b16 %v2625, %v2624
        %v2663 = vpack.c.b16 %v2627, %v2626
        %v2664 = vpack.c.b16 %v2629, %v2628
        %v2665 = vpack.c.b16 %v2631, %v2630
        %v2666 = vpack.c.b16 %v2633, %v2632
        %v2667 = vpack.c.b16 %v2635, %v2634
        %2700 = vmatprep.subr.bf16.mxu0 0
        %2701 = vmatpush1.bf16.msra.mxu0 %v2643
        %2702 = vmatprep.subr.bf16.mxu0 0
        %2703 = vmatpush1.bf16.msra.mxu0 %v2642
        %2704 = vmatprep.subr.bf16.mxu0 0
        %2705 = vmatpush1.bf16.msra.mxu0 %v2641
        %2706 = vmatprep.subr.bf16.mxu0 0
        %2707 = vmatpush1.bf16.msra.mxu0 %v2640
        %2708 = vmatprep.subr.bf16.mxu0 0
        %2709 = vmatpush1.bf16.msra.mxu0 %v2639
        %2710 = vmatprep.subr.bf16.mxu0 0
        %2711 = vmatpush1.bf16.msra.mxu0 %v2638
        %2712 = vmatprep.subr.bf16.mxu0 0
        %2713 = vmatpush1.bf16.msra.mxu0 %v2637
        %2714 = vmatprep.subr.bf16.mxu0 0
        %2715 = vmatpush1.bf16.msra.mxu0 %v2636
        %2716 = vmatprep.subr.bf16.mxu0 0
        %2717 = vmatpush2.bf16.msra.mxu0 %v2651
        %2718 = vmatprep.subr.bf16.mxu0 0
        %2719 = vmatpush2.bf16.msra.mxu0 %v2650
        %2720 = vmatprep.subr.bf16.mxu0 0
        %2721 = vmatpush2.bf16.msra.mxu0 %v2649
        %2722 = vmatprep.subr.bf16.mxu0 0
        %2723 = vmatpush2.bf16.msra.mxu0 %v2648
        %2724 = vmatprep.subr.bf16.mxu0 0
        %2725 = vmatpush2.bf16.msra.mxu0 %v2647
        %2726 = vmatprep.subr.bf16.mxu0 0
        %2727 = vmatpush2.bf16.msra.mxu0 %v2646
        %2728 = vmatprep.subr.bf16.mxu0 0
        %2729 = vmatpush2.bf16.msra.mxu0 %v2645
        %2730 = vmatprep.subr.bf16.mxu0 0
        %2731 = vmatpush2.bf16.msra.mxu0 %v2644
        %2732 = vmatprep.mubr.bf16.mxu0 %v2434
        %2733 = vmatmul.mubr.bf16.gmra.mxu0 %v2433
        %v2734 = vpop.f32.mrf.mxu0
        %v2735 = vadd.f32 %v2506, %v2734
        %v2736 = vpop.f32.mrf.mxu0
        %v2737 = vpop.f32.mrf.mxu0
        %v2738 = vadd.f32 %v2506, %v2737
        %v2739 = vpop.f32.mrf.mxu0
        %2740 = vdwg.mxu0
        %2741 = vmatprep.subr.bf16.mxu0 0
        %2742 = vmatpush1.bf16.msra.mxu0 %v2659
        %2743 = vmatprep.subr.bf16.mxu0 0
        %2744 = vmatpush1.bf16.msra.mxu0 %v2658
        %2745 = vmatprep.subr.bf16.mxu0 0
        %2746 = vmatpush1.bf16.msra.mxu0 %v2657
        %2747 = vmatprep.subr.bf16.mxu0 0
        %2748 = vmatpush1.bf16.msra.mxu0 %v2656
        %2749 = vmatprep.subr.bf16.mxu0 0
        %2750 = vmatpush1.bf16.msra.mxu0 %v2655
        %2751 = vmatprep.subr.bf16.mxu0 0
        %2752 = vmatpush1.bf16.msra.mxu0 %v2654
        %2753 = vmatprep.subr.bf16.mxu0 0
        %2754 = vmatpush1.bf16.msra.mxu0 %v2653
        %2755 = vmatprep.subr.bf16.mxu0 0
        %2756 = vmatpush1.bf16.msra.mxu0 %v2652
        %2757 = vmatprep.subr.bf16.mxu0 0
        %2758 = vmatpush2.bf16.msra.mxu0 %v2667
        %2759 = vmatprep.subr.bf16.mxu0 0
        %2760 = vmatpush2.bf16.msra.mxu0 %v2666
        %2761 = vmatprep.subr.bf16.mxu0 0
        %2762 = vmatpush2.bf16.msra.mxu0 %v2665
        %2763 = vmatprep.subr.bf16.mxu0 0
        %2764 = vmatpush2.bf16.msra.mxu0 %v2664
        %2765 = vmatprep.subr.bf16.mxu0 0
        %2766 = vmatpush2.bf16.msra.mxu0 %v2663
        %2767 = vmatprep.subr.bf16.mxu0 0
        %2768 = vmatpush2.bf16.msra.mxu0 %v2662
        %2769 = vmatprep.subr.bf16.mxu0 0
        %2770 = vmatpush2.bf16.msra.mxu0 %v2661
        %2771 = vmatprep.subr.bf16.mxu0 0
        %2772 = vmatpush2.bf16.msra.mxu0 %v2660
        %2773 = vmatprep.mubr.bf16.mxu0 %v2436
        %2774 = vmatmul.mubr.bf16.gmra.mxu0 %v2435
        %v2775 = vpop.f32.mrf.mxu0
        %v2776 = vadd.f32 %v2735, %v2775
        %v2777 = vpop.f32.mrf.mxu0
        %v2778 = vpop.f32.mrf.mxu0
        %v2779 = vadd.f32 %v2738, %v2778
        %v2780 = vpop.f32.mrf.mxu0
        %2781 = vdwg.mxu0
        %v2782 = vadd.f32 %v2776, %v805
        %v2783 = vadd.f32 %v2779, %v806
        %v2784 = vld [vmem:[%s774] sm:$0x1]
        %v2785 = vld [vmem:[%s777] sm:$0x1]
        %v2786 = vld [vmem:[%s661] sm:$0xff]
        %v2787 = vld [vmem:[%s661 + $0x8] sm:$0xff]
        %v2788 = vld [vmem:[%s661 + $0x10] sm:$0xff]
        %v2789 = vld [vmem:[%s661 + $0x18] sm:$0xff]
        %v2790 = vld [vmem:[%s661 + $0x20] sm:$0xff]
        %v2791 = vld [vmem:[%s661 + $0x28] sm:$0xff]
        %v2792 = vld [vmem:[%s661 + $0x30] sm:$0xff]
        %v2793 = vld [vmem:[%s661 + $0x38] sm:$0xff]
        %v2794 = vld [vmem:[%s661 + $0x40] sm:$0xff]
        %v2795 = vld [vmem:[%s661 + $0x48] sm:$0xff]
        %v2796 = vld [vmem:[%s661 + $0x50] sm:$0xff]
        %v2797 = vld [vmem:[%s661 + $0x58] sm:$0xff]
        %v2798 = vld [vmem:[%s661 + $0x60] sm:$0xff]
        %v2799 = vld [vmem:[%s661 + $0x68] sm:$0xff]
        %v2800 = vld [vmem:[%s661 + $0x70] sm:$0xff]
        %v2801 = vld [vmem:[%s661 + $0x78] sm:$0xff]
        %v2802 = vld [vmem:[%s781] sm:$0xf]
        %v2803 = vld [vmem:[%s786] sm:$0xf]
        %v2804 = vld [vmem:[%s786 + $0x4] sm:$0xf]
        %v2805 = vld [vmem:[%s786 + $0x8] sm:$0xf]
        %v2806 = vld [vmem:[%s786 + $0xc] sm:$0xf]
        %v2807 = vld [vmem:[%s786 + $0x10] sm:$0xf]
        %v2808 = vld [vmem:[%s786 + $0x14] sm:$0xf]
        %v2809 = vld [vmem:[%s786 + $0x18] sm:$0xf]
        %v2810 = vld [vmem:[%s786 + $0x1c] sm:$0xf]
        %v2811 = vld [vmem:[%s786 + $0x20] sm:$0xf]
        %v2812 = vld [vmem:[%s786 + $0x24] sm:$0xf]
        %v2813 = vld [vmem:[%s786 + $0x28] sm:$0xf]
        %v2814 = vld [vmem:[%s786 + $0x2c] sm:$0xf]
        %v2815 = vld [vmem:[%s786 + $0x30] sm:$0xf]
        %v2816 = vld [vmem:[%s786 + $0x34] sm:$0xf]
        %v2817 = vld [vmem:[%s786 + $0x38] sm:$0xf]
        %v2818 = vld [vmem:[%s786 + $0x3c] sm:$0xf]
        %v2819 = vld [vmem:[%s786 + $0x40] sm:$0xf]
        %v2820 = vld [vmem:[%s786 + $0x44] sm:$0xf]
        %v2821 = vld [vmem:[%s786 + $0x48] sm:$0xf]
        %v2822 = vld [vmem:[%s786 + $0x4c] sm:$0xf]
        %v2823 = vld [vmem:[%s786 + $0x50] sm:$0xf]
        %v2824 = vld [vmem:[%s786 + $0x54] sm:$0xf]
        %v2825 = vld [vmem:[%s786 + $0x58] sm:$0xf]
        %v2826 = vld [vmem:[%s786 + $0x5c] sm:$0xf]
        %v2827 = vld [vmem:[%s786 + $0x60] sm:$0xf]
        %v2828 = vld [vmem:[%s786 + $0x64] sm:$0xf]
        %v2829 = vld [vmem:[%s786 + $0x68] sm:$0xf]
        %v2830 = vld [vmem:[%s786 + $0x6c] sm:$0xf]
        %v2831 = vld [vmem:[%s786 + $0x70] sm:$0xf]
        %v2832 = vld [vmem:[%s786 + $0x74] sm:$0xf]
        %v2833 = vld [vmem:[%s786 + $0x78] sm:$0xf]
        %v2834 = vld [vmem:[%s786 + $0x7c] sm:$0xf]
        %v2835 = vld [vmem:[%s789] sm:$0x1]
        %v2836 = vsel %vm809, %v2782, 0.0
        %2837 = vadd.xlane.f32.xlu0 %v2836
        %v2838 = vpop.xlane.xlu0 %2837
        %v2839 = vsel %vm809, %v2783, 0.0
        %2840 = vadd.xlane.f32.xlu0 %v2839
        %v2841 = vpop.xlane.xlu0 %2840
        %v2842 = vmul.f32 %v2838, %v816
        %v2843 = vmul.f32 %v2841, %v816
        %v2844 = vsub.f32 %v2782, %v2842
        %v2845 = vsub.f32 %v2783, %v2843
        %v2846 = vmul.f32 %v2844, %v2844
        %v2847 = vmul.f32 %v2845, %v2845
        %v2848 = vsel %vm809, %v2846, 0.0
        %2849 = vadd.xlane.f32.xlu0 %v2848
        %v2850 = vpop.xlane.xlu0 %2849
        %v2851 = vsel %vm809, %v2847, 0.0
        %2852 = vadd.xlane.f32.xlu0 %v2851
        %v2853 = vpop.xlane.xlu0 %2852
        %v2854 = vmul.f32 %v2850, %v816
        %v2855 = vmul.f32 %v2853, %v816
        %v2856 = vadd.f32 %v2854, 1e-05
        %v2857 = vadd.f32 %v2855, 1e-05
        %v2858 = vrsqrt.pop %v2856
        %v2859 = vrsqrt.pop %v2857
        %v2860 = vmul.f32 %v2844, %v2858
        %v2861 = vmul.f32 %v2845, %v2859
        %v2863 = vlaneseq
        %v2864 = vshrl.u32 %v2863, 7
        %v2865 = vsub.s32 0, %v2864
        %v2866 = vrot.slane %v2784, %v2865
        %v2868 = vmul.f32 %v2860, %v2866
        %v2869 = vmul.f32 %v2861, %v2866
        %v2871 = vlaneseq
        %v2872 = vshrl.u32 %v2871, 7
        %v2873 = vsub.s32 0, %v2872
        %v2874 = vrot.slane %v2785, %v2873
        %v2876 = vadd.f32 %v2868, %v2874
        %v2877 = vadd.f32 %v2869, %v2874
        %v2878 = vpack.c.bf16 %v2877, %v2876
        %v2880 = vlaneseq
        %v2881 = vshrl.u32 %v2880, 7
        %v2882 = vsub.s32 0, %v2881
        %v2883 = vrot.slane %v2802, %v2882
        %v2884 = vlaneseq
        %v2885 = vshrl.u32 %v2884, 7
        %v2886 = vsub.s32 1, %v2885
        %v2887 = vrot.slane %v2802, %v2886
        %v2888 = vlaneseq
        %v2889 = vshrl.u32 %v2888, 7
        %v2890 = vsub.s32 2, %v2889
        %v2891 = vrot.slane %v2802, %v2890
        %v2892 = vlaneseq
        %v2893 = vshrl.u32 %v2892, 7
        %v2894 = vsub.s32 3, %v2893
        %v2895 = vrot.slane %v2802, %v2894
        %v2916 = vunpack.c.l.b16 %v2786
        %v2917 = vunpack.c.h.b16 %v2786
        %v2918 = vunpack.c.l.b16 %v2787
        %v2919 = vunpack.c.h.b16 %v2787
        %v2920 = vunpack.c.l.b16 %v2788
        %v2921 = vunpack.c.h.b16 %v2788
        %v2922 = vunpack.c.l.b16 %v2789
        %v2923 = vunpack.c.h.b16 %v2789
        %v2924 = vunpack.c.l.b16 %v2790
        %v2925 = vunpack.c.h.b16 %v2790
        %v2926 = vunpack.c.l.b16 %v2791
        %v2927 = vunpack.c.h.b16 %v2791
        %v2928 = vunpack.c.l.b16 %v2792
        %v2929 = vunpack.c.h.b16 %v2792
        %v2930 = vunpack.c.l.b16 %v2793
        %v2931 = vunpack.c.h.b16 %v2793
        %v2932 = vunpack.c.l.b16 %v2794
        %v2933 = vunpack.c.h.b16 %v2794
        %v2934 = vunpack.c.l.b16 %v2795
        %v2935 = vunpack.c.h.b16 %v2795
        %v2936 = vunpack.c.l.b16 %v2796
        %v2937 = vunpack.c.h.b16 %v2796
        %v2938 = vunpack.c.l.b16 %v2797
        %v2939 = vunpack.c.h.b16 %v2797
        %v2940 = vunpack.c.l.b16 %v2798
        %v2941 = vunpack.c.h.b16 %v2798
        %v2942 = vunpack.c.l.b16 %v2799
        %v2943 = vunpack.c.h.b16 %v2799
        %v2944 = vunpack.c.l.b16 %v2800
        %v2945 = vunpack.c.h.b16 %v2800
        %v2946 = vunpack.c.l.b16 %v2801
        %v2947 = vunpack.c.h.b16 %v2801
        %v2948 = vpack.c.b16 %v2920, %v2916
        %v2949 = vpack.c.b16 %v2921, %v2917
        %v2950 = vpack.c.b16 %v2922, %v2918
        %v2951 = vpack.c.b16 %v2923, %v2919
        %v2952 = vpack.c.b16 %v2928, %v2924
        %v2953 = vpack.c.b16 %v2929, %v2925
        %v2954 = vpack.c.b16 %v2930, %v2926
        %v2955 = vpack.c.b16 %v2931, %v2927
        %v2956 = vpack.c.b16 %v2936, %v2932
        %v2957 = vpack.c.b16 %v2937, %v2933
        %v2958 = vpack.c.b16 %v2938, %v2934
        %v2959 = vpack.c.b16 %v2939, %v2935
        %v2960 = vpack.c.b16 %v2944, %v2940
        %v2961 = vpack.c.b16 %v2945, %v2941
        %v2962 = vpack.c.b16 %v2946, %v2942
        %v2963 = vpack.c.b16 %v2947, %v2943
        %v2981 = vsel %vm809, %v2878, 0
        %2983 = vmatprep.subr.bf16.mxu0 0
        %2984 = vmatpush1.bf16.msra.mxu0 0
        %2985 = vmatprep.subr.bf16.mxu0 0
        %2986 = vmatpush1.bf16.msra.mxu0 0
        %2987 = vmatprep.subr.bf16.mxu0 0
        %2988 = vmatpush1.bf16.msra.mxu0 0
        %2989 = vmatprep.subr.bf16.mxu0 0
        %2990 = vmatpush1.bf16.msra.mxu0 0
        %2991 = vmatprep.subr.bf16.mxu0 %v2961
        %2992 = vmatpush1.bf16.msra.mxu0 %v2960
        %2993 = vmatprep.subr.bf16.mxu0 %v2957
        %2994 = vmatpush1.bf16.msra.mxu0 %v2956
        %2995 = vmatprep.subr.bf16.mxu0 %v2953
        %2996 = vmatpush1.bf16.msra.mxu0 %v2952
        %2997 = vmatprep.subr.bf16.mxu0 %v2949
        %2998 = vmatpush1.bf16.msra.mxu0 %v2948
        %2999 = vmatprep.subr.bf16.mxu0 0
        %3000 = vmatpush2.bf16.msra.mxu0 0
        %3001 = vmatprep.subr.bf16.mxu0 0
        %3002 = vmatpush2.bf16.msra.mxu0 0
        %3003 = vmatprep.subr.bf16.mxu0 0
        %3004 = vmatpush2.bf16.msra.mxu0 0
        %3005 = vmatprep.subr.bf16.mxu0 0
        %3006 = vmatpush2.bf16.msra.mxu0 0
        %3007 = vmatprep.subr.bf16.mxu0 0
        %3008 = vmatpush2.bf16.msra.mxu0 0
        %3009 = vmatprep.subr.bf16.mxu0 0
        %3010 = vmatpush2.bf16.msra.mxu0 0
        %3011 = vmatprep.subr.bf16.mxu0 0
        %3012 = vmatpush2.bf16.msra.mxu0 0
        %3013 = vmatprep.subr.bf16.mxu0 0
        %3014 = vmatpush2.bf16.msra.mxu0 0
        %3015 = vmatprep.mubr.bf16.mxu0 0
        %3016 = vmatmul.mubr.bf16.gmra.mxu0 %v2981
        %v3017 = vpop.f32.mrf.mxu0
        %v3018 = vadd.f32 %v2883, %v3017
        %v3019 = vpop.f32.mrf.mxu0
        %v3020 = vadd.f32 %v2887, %v3019
        %v3021 = vpop.f32.mrf.mxu0
        %v3022 = vadd.f32 %v2883, %v3021
        %v3023 = vpop.f32.mrf.mxu0
        %v3024 = vadd.f32 %v2887, %v3023
        %3025 = vdwg.mxu0
        %3026 = vmatprep.subr.bf16.mxu0 0
        %3027 = vmatpush1.bf16.msra.mxu0 0
        %3028 = vmatprep.subr.bf16.mxu0 0
        %3029 = vmatpush1.bf16.msra.mxu0 0
        %3030 = vmatprep.subr.bf16.mxu0 0
        %3031 = vmatpush1.bf16.msra.mxu0 0
        %3032 = vmatprep.subr.bf16.mxu0 0
        %3033 = vmatpush1.bf16.msra.mxu0 0
        %3034 = vmatprep.subr.bf16.mxu0 %v2963
        %3035 = vmatpush1.bf16.msra.mxu0 %v2962
        %3036 = vmatprep.subr.bf16.mxu0 %v2959
        %3037 = vmatpush1.bf16.msra.mxu0 %v2958
        %3038 = vmatprep.subr.bf16.mxu0 %v2955
        %3039 = vmatpush1.bf16.msra.mxu0 %v2954
        %3040 = vmatprep.subr.bf16.mxu0 %v2951
        %3041 = vmatpush1.bf16.msra.mxu0 %v2950
        %3042 = vmatprep.subr.bf16.mxu0 0
        %3043 = vmatpush2.bf16.msra.mxu0 0
        %3044 = vmatprep.subr.bf16.mxu0 0
        %3045 = vmatpush2.bf16.msra.mxu0 0
        %3046 = vmatprep.subr.bf16.mxu0 0
        %3047 = vmatpush2.bf16.msra.mxu0 0
        %3048 = vmatprep.subr.bf16.mxu0 0
        %3049 = vmatpush2.bf16.msra.mxu0 0
        %3050 = vmatprep.subr.bf16.mxu0 0
        %3051 = vmatpush2.bf16.msra.mxu0 0
        %3052 = vmatprep.subr.bf16.mxu0 0
        %3053 = vmatpush2.bf16.msra.mxu0 0
        %3054 = vmatprep.subr.bf16.mxu0 0
        %3055 = vmatpush2.bf16.msra.mxu0 0
        %3056 = vmatprep.subr.bf16.mxu0 0
        %3057 = vmatpush2.bf16.msra.mxu0 0
        %3058 = vmatprep.mubr.bf16.mxu0 0
        %3059 = vmatmul.mubr.bf16.gmra.mxu0 %v2981
        %v3060 = vpop.f32.mrf.mxu0
        %v3061 = vadd.f32 %v2891, %v3060
        %v3062 = vpop.f32.mrf.mxu0
        %v3063 = vadd.f32 %v2895, %v3062
        %v3064 = vpop.f32.mrf.mxu0
        %v3065 = vadd.f32 %v2891, %v3064
        %v3066 = vpop.f32.mrf.mxu0
        %v3067 = vadd.f32 %v2895, %v3066
        %3068 = vdwg.mxu0
        %v3069 = vmul.f32 %v3061, 0.5
        %v3070 = vmul.f32 %v3063, 0.5
        %v3071 = vmul.f32 %v3065, 0.5
        %v3072 = vmul.f32 %v3067, 0.5
        %v3073 = vmul.f32 %v3061, 0.044715
        %v3074 = vmul.f32 %v3063, 0.044715
        %v3075 = vmul.f32 %v3065, 0.044715
        %v3076 = vmul.f32 %v3067, 0.044715
        %v3077 = vmul.f32 %v3073, %v3061
        %v3078 = vmul.f32 %v3074, %v3063
        %v3079 = vmul.f32 %v3075, %v3065
        %v3080 = vmul.f32 %v3076, %v3067
        %v3081 = vmul.f32 %v3077, %v3061
        %v3082 = vmul.f32 %v3078, %v3063
        %v3083 = vmul.f32 %v3079, %v3065
        %v3084 = vmul.f32 %v3080, %v3067
        %v3085 = vadd.f32 %v3061, %v3081
        %v3086 = vadd.f32 %v3063, %v3082
        %v3087 = vadd.f32 %v3065, %v3083
        %v3088 = vadd.f32 %v3067, %v3084
        %v3089 = vmul.f32 %v3085, 0.7978846
        %v3090 = vmul.f32 %v3086, 0.7978846
        %v3091 = vmul.f32 %v3087, 0.7978846
        %v3092 = vmul.f32 %v3088, 0.7978846
        %v3093 = vtanh.pop %v3089
        %v3094 = vtanh.pop %v3090
        %v3095 = vtanh.pop %v3091
        %v3096 = vtanh.pop %v3092
        %v3097 = vadd.f32 %v3093, 1.0
        %v3098 = vadd.f32 %v3094, 1.0
        %v3099 = vadd.f32 %v3095, 1.0
        %v3100 = vadd.f32 %v3096, 1.0
        %v3101 = vmul.f32 %v3069, %v3097
        %v3102 = vmul.f32 %v3070, %v3098
        %v3103 = vmul.f32 %v3071, %v3099
        %v3104 = vmul.f32 %v3072, %v3100
        %v3105 = vmul.f32 %v3018, %v3101
        %v3106 = vmul.f32 %v3020, %v3102
        %v3107 = vmul.f32 %v3022, %v3103
        %v3108 = vmul.f32 %v3024, %v3104
        %v3109 = vpack.c.bf16 %v3107, %v3105
        %v3110 = vpack.c.bf16 %v3108, %v3106
        %v3112 = vlaneseq
        %v3113 = vshrl.u32 %v3112, 7
        %v3114 = vsub.s32 0, %v3113
        %v3115 = vrot.slane %v2835, %v3114
        %v3149 = vunpack.c.l.b16 %v2803
        %v3150 = vunpack.c.l.b16 %v2804
        %v3151 = vunpack.c.l.b16 %v2805
        %v3152 = vunpack.c.l.b16 %v2806
        %v3153 = vunpack.c.l.b16 %v2807
        %v3154 = vunpack.c.l.b16 %v2808
        %v3155 = vunpack.c.l.b16 %v2809
        %v3156 = vunpack.c.l.b16 %v2810
        %v3157 = vunpack.c.l.b16 %v2811
        %v3158 = vunpack.c.l.b16 %v2812
        %v3159 = vunpack.c.l.b16 %v2813
        %v3160 = vunpack.c.l.b16 %v2814
        %v3161 = vunpack.c.l.b16 %v2815
        %v3162 = vunpack.c.l.b16 %v2816
        %v3163 = vunpack.c.l.b16 %v2817
        %v3164 = vunpack.c.l.b16 %v2818
        %v3165 = vunpack.c.l.b16 %v2819
        %v3166 = vunpack.c.l.b16 %v2820
        %v3167 = vunpack.c.l.b16 %v2821
        %v3168 = vunpack.c.l.b16 %v2822
        %v3169 = vunpack.c.l.b16 %v2823
        %v3170 = vunpack.c.l.b16 %v2824
        %v3171 = vunpack.c.l.b16 %v2825
        %v3172 = vunpack.c.l.b16 %v2826
        %v3173 = vunpack.c.l.b16 %v2827
        %v3174 = vunpack.c.l.b16 %v2828
        %v3175 = vunpack.c.l.b16 %v2829
        %v3176 = vunpack.c.l.b16 %v2830
        %v3177 = vunpack.c.l.b16 %v2831
        %v3178 = vunpack.c.l.b16 %v2832
        %v3179 = vunpack.c.l.b16 %v2833
        %v3180 = vunpack.c.l.b16 %v2834
        %v3181 = vpack.c.b16 %v3150, %v3149
        %v3182 = vpack.c.b16 %v3152, %v3151
        %v3183 = vpack.c.b16 %v3154, %v3153
        %v3184 = vpack.c.b16 %v3156, %v3155
        %v3185 = vpack.c.b16 %v3158, %v3157
        %v3186 = vpack.c.b16 %v3160, %v3159
        %v3187 = vpack.c.b16 %v3162, %v3161
        %v3188 = vpack.c.b16 %v3164, %v3163
        %v3189 = vpack.c.b16 %v3166, %v3165
        %v3190 = vpack.c.b16 %v3168, %v3167
        %v3191 = vpack.c.b16 %v3170, %v3169
        %v3192 = vpack.c.b16 %v3172, %v3171
        %v3193 = vpack.c.b16 %v3174, %v3173
        %v3194 = vpack.c.b16 %v3176, %v3175
        %v3195 = vpack.c.b16 %v3178, %v3177
        %v3196 = vpack.c.b16 %v3180, %v3179
        %3213 = vmatprep.subr.bf16.mxu0 0
        %3214 = vmatpush1.bf16.msra.mxu0 %v3188
        %3215 = vmatprep.subr.bf16.mxu0 0
        %3216 = vmatpush1.bf16.msra.mxu0 %v3187
        %3217 = vmatprep.subr.bf16.mxu0 0
        %3218 = vmatpush1.bf16.msra.mxu0 %v3186
        %3219 = vmatprep.subr.bf16.mxu0 0
        %3220 = vmatpush1.bf16.msra.mxu0 %v3185
        %3221 = vmatprep.subr.bf16.mxu0 0
        %3222 = vmatpush1.bf16.msra.mxu0 %v3184
        %3223 = vmatprep.subr.bf16.mxu0 0
        %3224 = vmatpush1.bf16.msra.mxu0 %v3183
        %3225 = vmatprep.subr.bf16.mxu0 0
        %3226 = vmatpush1.bf16.msra.mxu0 %v3182
        %3227 = vmatprep.subr.bf16.mxu0 0
        %3228 = vmatpush1.bf16.msra.mxu0 %v3181
        %3229 = vmatprep.subr.bf16.mxu0 0
        %3230 = vmatpush2.bf16.msra.mxu0 %v3196
        %3231 = vmatprep.subr.bf16.mxu0 0
        %3232 = vmatpush2.bf16.msra.mxu0 %v3195
        %3233 = vmatprep.subr.bf16.mxu0 0
        %3234 = vmatpush2.bf16.msra.mxu0 %v3194
        %3235 = vmatprep.subr.bf16.mxu0 0
        %3236 = vmatpush2.bf16.msra.mxu0 %v3193
        %3237 = vmatprep.subr.bf16.mxu0 0
        %3238 = vmatpush2.bf16.msra.mxu0 %v3192
        %3239 = vmatprep.subr.bf16.mxu0 0
        %3240 = vmatpush2.bf16.msra.mxu0 %v3191
        %3241 = vmatprep.subr.bf16.mxu0 0
        %3242 = vmatpush2.bf16.msra.mxu0 %v3190
        %3243 = vmatprep.subr.bf16.mxu0 0
        %3244 = vmatpush2.bf16.msra.mxu0 %v3189
        %3245 = vmatprep.mubr.bf16.mxu0 %v3110
        %3246 = vmatmul.mubr.bf16.gmra.mxu0 %v3109
        %v3247 = vpop.f32.mrf.mxu0
        %v3248 = vadd.f32 %v3115, %v3247
        %v3249 = vpop.f32.mrf.mxu0
        %v3250 = vpop.f32.mrf.mxu0
        %v3251 = vadd.f32 %v3115, %v3250
        %v3252 = vpop.f32.mrf.mxu0
        %3253 = vdwg.mxu0
        %v3254 = vadd.f32 %v3248, %v2782
        %v3255 = vadd.f32 %v3251, %v2783
        %3256 = vst.msk [vmem:[#allocation2] sm:$0xff] %vm809, %v3254
        %3257 = vst.msk [vmem:[#allocation2 + $0x8] sm:$0xff] %vm809, %v3255
        %p3258 = scmp.eq.s32.totalorder %s39, 1
        // Predicated region
        $region101: #{_lambda_.4} parent=75 // pred_check
          %p3259 = pneg %p3258
        $region102: #{_lambda_.4} parent=75 // pred_check_branch
          %3261 = sbr.rel (%p3259) target = $region104
        $region103: #{_lambda_.4} parent=75 // pred_region
          %3262 = vst.msk [vmem:[%s794] sm:$0xff] %vm809, %v3254
          %3263 = vst.msk [vmem:[%s794 + $0x8] sm:$0xff] %vm809, %v3255
        $region104: #{_lambda_.4} parent=75 // pred_fallthru
          _
        %p3264 = scmp.lt.s32.totalorder %s38, 1
        %s3265 = scalar_select %p3264, %s38, 1
        %s3266 = smul.addr %s3265, 2
        %s3267 = smul.addr %s3266, 8
        %s3268 = scalar_lea.vmem %s14, %s3267
        // Predicated region
        $region105: #{_lambda_.4} parent=75 // pred_check
          %p3269 = pneg %p428
        $region106: #{_lambda_.4} parent=75 // pred_check_branch
          %3271 = sbr.rel (%p3269) target = $region108
        $region107: #{_lambda_.4} parent=75 // pred_region
          _
        $region108: #{_lambda_.4} parent=75 // pred_fallthru
          _
      $region76: #{_lambda_.4} parent=5 // pred_fallthru
        _
      %p3272 = scmp.le.s32.totalorder 2, %s29
      // Predicated region
      $region109: #{_lambda_.4} parent=5 // pred_check
        %p3273 = pneg %p3272
      $region110: #{_lambda_.4} parent=5 // pred_check_branch
        %3275 = sbr.rel (%p3273) target = $region112
      $region111: #{_lambda_.4} parent=5 // pred_region
        %s3276 = ssub.s32 %s29, 2
        // Predicated region
        $region113: #{_lambda_.4} parent=111 // pred_check
          %p3277 = pneg %p434
        $region114: #{_lambda_.4} parent=111 // pred_check_branch
          %3279 = sbr.rel (%p3277) target = $region116
        $region115: #{_lambda_.4} parent=111 // pred_region
          %p3280 = scmp.lt.s32.totalorder %s40, 1
          %s3281 = scalar_select %p3280, %s40, 1
          %s3282 = smul.addr %s3281, 2
          %s3283 = smul.addr %s3282, 8
          %s3284 = scalar_lea.vmem %s14, %s3283
        $region116: #{_lambda_.4} parent=111 // pred_fallthru
          _
      $region112: #{_lambda_.4} parent=5 // pred_fallthru
        _
    $region6: #{_lambda_.4} parent=1 // loop_footer
      %s33 = sadd.s32 1, %s29
    $region7: #{_lambda_.4} parent=1 // loop_footer_branch
      %28 = sbr.rel target = $region3
    $region8: #{_lambda_.4} parent=1 // loop_exit
      _
    %3285 = vsyncpa [#allocation5], 1
    %s3286 = scalar_lea.sflag [#allocation5], 1
    %3287 = vsyncpa %s3286, 1
    %3288 = vsyncpa [#allocation7], 1
    %s3289 = scalar_lea.sflag [#allocation7], 1
    %3290 = vsyncpa %s3289, 1
    %3291 = vsyncpa [#allocation10], 1
    %s3292 = scalar_lea.sflag [#allocation10], 1
    %3293 = vsyncpa %s3292, 1

</llo_original>
